<compile_context>
chip_gen: v7x
topology: tpu7x:2x2x1
jax: 0.10.0
libtpu: 0.0.40
codegen_flags: <defaults>
</compile_context>

<pallas_src>
import functools

import jax
import jax.numpy as jnp
from jax.experimental import pallas as pl
from jax.experimental.pallas import tpu as pltpu


# ----------------------------------------------------------------------------
# Fused Pallas kernel (one grid step == one board)
# ----------------------------------------------------------------------------
def _conv3x3_relu(xp_ref, w_ref, b_ref, H, W):
    """xp_ref: (H+2, W+2, Cin) padded NHWC VMEM ref, w_ref: (3,3,Cin,Cout) ref,
    b_ref: (1,Cout) ref. Returns ReLU(conv) as (H*W, Cout) f32 value."""
    Cin = w_ref.shape[2]
    Cout = w_ref.shape[3]
    acc = jnp.zeros((H * W, Cout), jnp.float32)
    for dy in range(3):
        for dx in range(3):
            patch = xp_ref[dy:dy + H, dx:dx + W, :].reshape(H * W, Cin)
            acc = acc + jnp.dot(patch, w_ref[dy, dx],
                                preferred_element_type=jnp.float32)
    return jnp.maximum(acc + b_ref[0, :], 0.0)


def fused_net_kernel(x_ref, w1_ref, b1_ref, w2_ref, b2_ref, w3_ref, b3_ref,
                     wh_ref, bh_ref, wa_ref, ba_ref, wv1_ref, bv1_ref,
                     wv2_ref, bv2_ref,
                     act_ref, val_ref, pad0_ref, pad1_ref, pad2_ref, *, H, W):
    c1 = w1_ref.shape[3]
    c2 = w2_ref.shape[3]

    # ---- conv trunk: 3x (conv3x3 + ReLU); activations stay in VMEM ----
    # in-kernel zero padding of the raw board (zero every step: safe under
    # megacore where each core only sees part of the grid).
    pad0_ref[...] = jnp.zeros_like(pad0_ref)
    pad0_ref[1:H + 1, 1:W + 1, :] = x_ref[0]
    y = _conv3x3_relu(pad0_ref, w1_ref, b1_ref, H, W)              # (P, 32)

    pad1_ref[...] = jnp.zeros_like(pad1_ref)
    pad1_ref[1:H + 1, 1:W + 1, :] = y.reshape(H, W, c1)
    y = _conv3x3_relu(pad1_ref, w2_ref, b2_ref, H, W)              # (P, 64)

    pad2_ref[...] = jnp.zeros_like(pad2_ref)
    pad2_ref[1:H + 1, 1:W + 1, :] = y.reshape(H, W, c2)
    y = _conv3x3_relu(pad2_ref, w3_ref, b3_ref, H, W)              # (P, 128)

    # ---- fused 1x1 heads: act_conv1 (4) + val_conv1 (2) in one matmul ----
    h = jnp.maximum(
        jnp.dot(y, wh_ref[...], preferred_element_type=jnp.float32)
        + bh_ref[0, :], 0.0)                                       # (P, 6)
    ht = h.T                                                       # (6, P): rows are channels

    n_act = wa_ref.shape[0]                                        # 4
    n_val = wv1_ref.shape[0]                                       # 2

    # ---- policy head: act_fc1 (per-channel contraction) + log_softmax ----
    logits = ba_ref[...]                                           # (1, P_out)
    for c in range(n_act):
        logits = logits + jnp.dot(ht[c:c + 1, :], wa_ref[c],
                                  preferred_element_type=jnp.float32)
    m = jnp.max(logits, axis=-1, keepdims=True)
    s = logits - m
    lse = jnp.log(jnp.sum(jnp.exp(s), axis=-1, keepdims=True))
    act_ref[0] = s - lse                                           # (1, P_out)

    # ---- value head: val_fc1 -> ReLU -> val_fc2 -> tanh ----
    hv = bv1_ref[...]                                              # (1, 64)
    for c in range(n_val):
        hv = hv + jnp.dot(ht[n_act + c:n_act + c + 1, :], wv1_ref[c],
                          preferred_element_type=jnp.float32)
    hv = jnp.maximum(hv, 0.0)
    v = jnp.dot(hv, wv2_ref[...],
                preferred_element_type=jnp.float32) + bv2_ref[...]
    val_ref[0] = jnp.tanh(v)                                       # (1, 1)


# ----------------------------------------------------------------------------
# Wrapper: one pallas_call for the whole network
# ----------------------------------------------------------------------------
def net_forward(prepared, state_input):
    # state_input: NCHW (N, 4, H, W) float32, same convention as PyTorch.
    N, Cin, H, W = state_input.shape
    P = H * W

    w1, b1 = prepared["conv1"]
    w2, b2 = prepared["conv2"]
    w3, b3 = prepared["conv3"]
    wh, bh = prepared["head_conv"]
    wa, ba = prepared["act_fc1"]
    wv1, bv1 = prepared["val_fc1"]
    wv2, bv2 = prepared["val_fc2"]

    x = jnp.transpose(state_input, (0, 2, 3, 1))                   # NCHW -> NHWC (tiny)

    kernel = functools.partial(fused_net_kernel, H=H, W=W)

    out_act, out_val = pl.pallas_call(
        kernel,
        out_shape=(jax.ShapeDtypeStruct((N, 1, P), jnp.float32),
                   jax.ShapeDtypeStruct((N, 1, 1), jnp.float32)),
        grid=(N,),
        in_specs=[
            pl.BlockSpec((1, H, W, Cin), lambda n: (n, 0, 0, 0)),
            pl.BlockSpec(w1.shape, lambda n: (0, 0, 0, 0)),
            pl.BlockSpec(b1.shape, lambda n: (0, 0)),
            pl.BlockSpec(w2.shape, lambda n: (0, 0, 0, 0)),
            pl.BlockSpec(b2.shape, lambda n: (0, 0)),
            pl.BlockSpec(w3.shape, lambda n: (0, 0, 0, 0)),
            pl.BlockSpec(b3.shape, lambda n: (0, 0)),
            pl.BlockSpec(wh.shape, lambda n: (0, 0)),
            pl.BlockSpec(bh.shape, lambda n: (0, 0)),
            pl.BlockSpec(wa.shape, lambda n: (0, 0, 0)),
            pl.BlockSpec(ba.shape, lambda n: (0, 0)),
            pl.BlockSpec(wv1.shape, lambda n: (0, 0, 0)),
            pl.BlockSpec(bv1.shape, lambda n: (0, 0)),
            pl.BlockSpec(wv2.shape, lambda n: (0, 0)),
            pl.BlockSpec(bv2.shape, lambda n: (0, 0)),
        ],
        out_specs=(pl.BlockSpec((1, 1, P), lambda n: (n, 0, 0)),
                   pl.BlockSpec((1, 1, 1), lambda n: (n, 0, 0))),
        scratch_shapes=[
            pltpu.VMEM((H + 2, W + 2, Cin), jnp.float32),          # conv1 input pad
            pltpu.VMEM((H + 2, W + 2, w1.shape[3]), jnp.float32),  # conv2 input pad
            pltpu.VMEM((H + 2, W + 2, w2.shape[3]), jnp.float32),  # conv3 input pad
        ],
        compiler_params=pltpu.CompilerParams(
            dimension_semantics=("parallel",),
            vmem_limit_bytes=16 * 1024 * 1024),
    )(x, w1, b1, w2, b2, w3, b3, wh, bh, wa, ba, wv1, bv1, wv2, bv2)

    return out_act.reshape(N, P), out_val.reshape(N, 1)


# ----------------------------------------------------------------------------
# Parameters (deterministic, PyTorch-style uniform fan-in init, torch layout)
# ----------------------------------------------------------------------------
def init_params(key, board_width, board_height):
    H, W = board_height, board_width
    keys = iter(jax.random.split(key, 16))

    def uni(k, shape, fan_in):
        bound = 1.0 / (fan_in ** 0.5)
        return jax.random.uniform(k, shape, jnp.float32, -bound, bound)

    p = {}

    def conv(name, kh, kw, cin, cout):
        fan = kh * kw * cin
        p[name] = (uni(next(keys), (kh, kw, cin, cout), fan),   # HWIO
                   uni(next(keys), (1, cout), fan))

    def lin(name, fin, fout):
        p[name] = (uni(next(keys), (fin, fout), fin),           # (in, out)
                   uni(next(keys), (1, fout), fin))

    conv("conv1", 3, 3, 4, 32)
    conv("conv2", 3, 3, 32, 64)
    conv("conv3", 3, 3, 64, 128)
    conv("act_conv1", 1, 1, 128, 4)
    conv("val_conv1", 1, 1, 128, 2)
    lin("act_fc1", 4 * W * H, W * H)
    lin("val_fc1", 2 * W * H, 64)
    lin("val_fc2", 64, 1)
    return p


def prepare_params(params):
    """One-time host-side re-layout of the torch-style params into the shapes
    the fused kernel consumes (all weight reshapes hoisted out of the call)."""
    wa1, ba1 = params["act_conv1"]            # (1,1,128,4), (1,4)
    wv1c, bv1c = params["val_conv1"]          # (1,1,128,2), (1,2)
    n_act, n_val = wa1.shape[3], wv1c.shape[3]
    wh = jnp.concatenate(
        [wa1.reshape(wa1.shape[2], n_act), wv1c.reshape(wv1c.shape[2], n_val)],
        axis=1)                               # (128, 6)
    bh = jnp.concatenate([ba1, bv1c], axis=1)  # (1, 6)

    wf, bf = params["act_fc1"]                # (4*P, P), (1, P); rows in torch
    P = bf.shape[1]                           # (C,H,W) order: row = c*P + p
    wa3 = wf.reshape(n_act, P, wf.shape[1])   # (4, P, P)

    w1f, b1f = params["val_fc1"]              # (2*P, 64), (1, 64)
    wv13 = w1f.reshape(n_val, P, w1f.shape[1])  # (2, P, 64)

    return {
        "conv1": params["conv1"],
        "conv2": params["conv2"],
        "conv3": params["conv3"],
        "head_conv": (wh, bh),
        "act_fc1": (wa3, bf),
        "val_fc1": (wv13, b1f),
        "val_fc2": params["val_fc2"],
    }


# ----------------------------------------------------------------------------
# Pure-JAX reference (mirrors the PyTorch module exactly)
# ----------------------------------------------------------------------------
def reference_forward(params, state_input):
    dn = ("NHWC", "HWIO", "NHWC")
    x = jnp.transpose(state_input, (0, 2, 3, 1))
    for name in ("conv1", "conv2", "conv3"):
        w, b = params[name]
        x = jax.nn.relu(
            jax.lax.conv_general_dilated(x, w, (1, 1), "SAME",
                                         dimension_numbers=dn) + b[0])
    N, H, W, _ = x.shape
    wa, ba = params["act_conv1"]
    xa = jax.nn.relu(
        jax.lax.conv_general_dilated(x, wa, (1, 1), "SAME",
                                     dimension_numbers=dn) + ba[0])
    xa = xa.transpose(0, 3, 1, 2).reshape(N, -1)
    wf, bf = params["act_fc1"]
    x_act = jax.nn.log_softmax(xa @ wf + bf[0], axis=-1)

    wv, bv = params["val_conv1"]
    xv = jax.nn.relu(
        jax.lax.conv_general_dilated(x, wv, (1, 1), "SAME",
                                     dimension_numbers=dn) + bv[0])
    xv = xv.transpose(0, 3, 1, 2).reshape(N, -1)
    w1, b1 = params["val_fc1"]
    w2, b2 = params["val_fc2"]
    h = jax.nn.relu(xv @ w1 + b1[0])
    x_val = jnp.tanh(h @ w2 + b2[0])
    return x_act, x_val


# ----------------------------------------------------------------------------
if __name__ == "__main__":
    board_width = board_height = 8
    batch = 2

    key = jax.random.PRNGKey(0)
    pkey, xkey = jax.random.split(key)
    params = init_params(pkey, board_width, board_height)
    prepared = prepare_params(params)          # host-side, once
    state_input = jax.random.uniform(
        xkey, (batch, 4, board_height, board_width), jnp.float32)

    fwd = jax.jit(net_forward)
    x_act, x_val = fwd(prepared, state_input)
    jax.block_until_ready((x_act, x_val))

    # sanity check against a pure-JAX reference of the torch module
    ref_act, ref_val = reference_forward(params, state_input)
    assert x_act.shape == (batch, board_width * board_height)
    assert x_val.shape == (batch, 1)
    assert jnp.allclose(x_act, ref_act, rtol=1e-4, atol=1e-4)
    assert jnp.allclose(x_val, ref_val, rtol=1e-4, atol=1e-4)

    print("KERNEL_OK")
</pallas_src>

<mosaic_0001>
module attributes {stable_mosaic.version = 11 : i64} {
  func.func @fused_net_kernel(%arg0: i32, %arg1: memref<1x8x8x4xf32, #tpu.memory_space<vmem>>, %arg2: memref<3x3x4x32xf32, #tpu.memory_space<vmem>>, %arg3: memref<1x32xf32, #tpu.memory_space<vmem>>, %arg4: memref<3x3x32x64xf32, #tpu.memory_space<vmem>>, %arg5: memref<1x64xf32, #tpu.memory_space<vmem>>, %arg6: memref<3x3x64x128xf32, #tpu.memory_space<vmem>>, %arg7: memref<1x128xf32, #tpu.memory_space<vmem>>, %arg8: memref<128x6xf32, #tpu.memory_space<vmem>>, %arg9: memref<1x6xf32, #tpu.memory_space<vmem>>, %arg10: memref<4x64x64xf32, #tpu.memory_space<vmem>>, %arg11: memref<1x64xf32, #tpu.memory_space<vmem>>, %arg12: memref<2x64x64xf32, #tpu.memory_space<vmem>>, %arg13: memref<1x64xf32, #tpu.memory_space<vmem>>, %arg14: memref<64x1xf32, #tpu.memory_space<vmem>>, %arg15: memref<1x1xf32, #tpu.memory_space<vmem>>, %arg16: memref<1x1x64xf32, #tpu.memory_space<vmem>>, %arg17: memref<1x1x1xf32, #tpu.memory_space<vmem>>, %arg18: memref<10x10x4xf32, #tpu.memory_space<vmem>>, %arg19: memref<10x10x32xf32, #tpu.memory_space<vmem>>, %arg20: memref<10x10x64xf32, #tpu.memory_space<vmem>>) attributes {dimension_semantics = [#tpu.dimension_semantics<parallel>], iteration_bounds = array<i64: 2>, scalar_prefetch = 0 : i64, scratch_operands = 3 : i64, tpu.core_type = #tpu.core_type<tc>, window_params = [{transform_indices = @transform_0, window_bounds = array<i64: 1, 8, 8, 4>}, {pipeline_mode = #tpu.pipeline_mode<synchronous>, transform_indices = @transform_1, window_bounds = array<i64: 3, 3, 4, 32>}, {pipeline_mode = #tpu.pipeline_mode<synchronous>, transform_indices = @transform_2, window_bounds = array<i64: 1, 32>}, {pipeline_mode = #tpu.pipeline_mode<synchronous>, transform_indices = @transform_3, window_bounds = array<i64: 3, 3, 32, 64>}, {pipeline_mode = #tpu.pipeline_mode<synchronous>, transform_indices = @transform_4, window_bounds = array<i64: 1, 64>}, {pipeline_mode = #tpu.pipeline_mode<synchronous>, transform_indices = @transform_5, window_bounds = array<i64: 3, 3, 64, 128>}, {pipeline_mode = #tpu.pipeline_mode<synchronous>, transform_indices = @transform_6, window_bounds = array<i64: 1, 128>}, {pipeline_mode = #tpu.pipeline_mode<synchronous>, transform_indices = @transform_7, window_bounds = array<i64: 128, 6>}, {pipeline_mode = #tpu.pipeline_mode<synchronous>, transform_indices = @transform_8, window_bounds = array<i64: 1, 6>}, {pipeline_mode = #tpu.pipeline_mode<synchronous>, transform_indices = @transform_9, window_bounds = array<i64: 4, 64, 64>}, {pipeline_mode = #tpu.pipeline_mode<synchronous>, transform_indices = @transform_10, window_bounds = array<i64: 1, 64>}, {pipeline_mode = #tpu.pipeline_mode<synchronous>, transform_indices = @transform_11, window_bounds = array<i64: 2, 64, 64>}, {pipeline_mode = #tpu.pipeline_mode<synchronous>, transform_indices = @transform_12, window_bounds = array<i64: 1, 64>}, {pipeline_mode = #tpu.pipeline_mode<synchronous>, transform_indices = @transform_13, window_bounds = array<i64: 64, 1>}, {pipeline_mode = #tpu.pipeline_mode<synchronous>, transform_indices = @transform_14, window_bounds = array<i64: 1, 1>}, {transform_indices = @transform_15, window_bounds = array<i64: 1, 1, 64>}, {transform_indices = @transform_16, window_bounds = array<i64: 1, 1, 1>}]} {
    %cst = arith.constant 0.000000e+00 : f32
    %0 = vector.broadcast %cst : f32 to vector<10x10x4xf32>
    %c0 = arith.constant 0 : index
    %c0_0 = arith.constant 0 : index
    %c0_1 = arith.constant 0 : index
    %1 = vector.load %arg18[%c0, %c0_0, %c0_1] : memref<10x10x4xf32, #tpu.memory_space<vmem>>, vector<10x10x4xf32>
    tpu.vector_store %arg18[%c0, %c0_0, %c0_1], %0 {strides = array<i32>} : memref<10x10x4xf32, #tpu.memory_space<vmem>>, vector<10x10x4xf32>,
    %c0_2 = arith.constant 0 : index
    %c0_3 = arith.constant 0 : index
    %c0_4 = arith.constant 0 : index
    %c0_5 = arith.constant 0 : index
    %2 = vector.load %arg1[%c0_2, %c0_3, %c0_4, %c0_5] : memref<1x8x8x4xf32, #tpu.memory_space<vmem>>, vector<1x8x8x4xf32>
    %3 = vector.shape_cast %2 : vector<1x8x8x4xf32> to vector<8x8x4xf32>
    %c1 = arith.constant 1 : index
    %c1_6 = arith.constant 1 : index
    %c0_7 = arith.constant 0 : index
    %4 = vector.load %arg18[%c1, %c1_6, %c0_7] : memref<10x10x4xf32, #tpu.memory_space<vmem>>, vector<8x8x4xf32>
    tpu.vector_store %arg18[%c1, %c1_6, %c0_7], %3 {strides = array<i32>} : memref<10x10x4xf32, #tpu.memory_space<vmem>>, vector<8x8x4xf32>,
    %cst_8 = arith.constant 0.000000e+00 : f32
    %5 = vector.broadcast %cst_8 : f32 to vector<64x32xf32>
    %c0_9 = arith.constant 0 : index
    %c0_10 = arith.constant 0 : index
    %c0_11 = arith.constant 0 : index
    %6 = vector.load %arg18[%c0_9, %c0_10, %c0_11] : memref<10x10x4xf32, #tpu.memory_space<vmem>>, vector<8x8x4xf32>
    %7 = vector.shape_cast %6 : vector<8x8x4xf32> to vector<64x4xf32>
    %c0_12 = arith.constant 0 : index
    %c0_13 = arith.constant 0 : index
    %c0_14 = arith.constant 0 : index
    %c0_15 = arith.constant 0 : index
    %8 = vector.load %arg2[%c0_12, %c0_13, %c0_14, %c0_15] : memref<3x3x4x32xf32, #tpu.memory_space<vmem>>, vector<1x1x4x32xf32>
    %9 = vector.shape_cast %8 : vector<1x1x4x32xf32> to vector<4x32xf32>
    %cst_16 = arith.constant dense<0.000000e+00> : vector<64x32xf32>
    %10 = tpu.matmul %7, %9, %cst_16 {dimension_numbers = #tpu.dot_dimension_numbers<[1], [0], [0], [1], [0, 0, 1, 1], [], []>} : vector<64x4xf32>, vector<4x32xf32>, vector<64x32xf32> -> vector<64x32xf32>
    %11 = arith.addf %5, %10 : vector<64x32xf32>
    %c0_17 = arith.constant 0 : index
    %c1_18 = arith.constant 1 : index
    %c0_19 = arith.constant 0 : index
    %12 = vector.load %arg18[%c0_17, %c1_18, %c0_19] : memref<10x10x4xf32, #tpu.memory_space<vmem>>, vector<8x8x4xf32>
    %13 = vector.shape_cast %12 : vector<8x8x4xf32> to vector<64x4xf32>
    %c0_20 = arith.constant 0 : index
    %c1_21 = arith.constant 1 : index
    %c0_22 = arith.constant 0 : index
    %c0_23 = arith.constant 0 : index
    %14 = vector.load %arg2[%c0_20, %c1_21, %c0_22, %c0_23] : memref<3x3x4x32xf32, #tpu.memory_space<vmem>>, vector<1x1x4x32xf32>
    %15 = vector.shape_cast %14 : vector<1x1x4x32xf32> to vector<4x32xf32>
    %cst_24 = arith.constant dense<0.000000e+00> : vector<64x32xf32>
    %16 = tpu.matmul %13, %15, %cst_24 {dimension_numbers = #tpu.dot_dimension_numbers<[1], [0], [0], [1], [0, 0, 1, 1], [], []>} : vector<64x4xf32>, vector<4x32xf32>, vector<64x32xf32> -> vector<64x32xf32>
    %17 = arith.addf %11, %16 : vector<64x32xf32>
    %c0_25 = arith.constant 0 : index
    %c2 = arith.constant 2 : index
    %c0_26 = arith.constant 0 : index
    %18 = vector.load %arg18[%c0_25, %c2, %c0_26] : memref<10x10x4xf32, #tpu.memory_space<vmem>>, vector<8x8x4xf32>
    %19 = vector.shape_cast %18 : vector<8x8x4xf32> to vector<64x4xf32>
    %c0_27 = arith.constant 0 : index
    %c2_28 = arith.constant 2 : index
    %c0_29 = arith.constant 0 : index
    %c0_30 = arith.constant 0 : index
    %20 = vector.load %arg2[%c0_27, %c2_28, %c0_29, %c0_30] : memref<3x3x4x32xf32, #tpu.memory_space<vmem>>, vector<1x1x4x32xf32>
    %21 = vector.shape_cast %20 : vector<1x1x4x32xf32> to vector<4x32xf32>
    %cst_31 = arith.constant dense<0.000000e+00> : vector<64x32xf32>
    %22 = tpu.matmul %19, %21, %cst_31 {dimension_numbers = #tpu.dot_dimension_numbers<[1], [0], [0], [1], [0, 0, 1, 1], [], []>} : vector<64x4xf32>, vector<4x32xf32>, vector<64x32xf32> -> vector<64x32xf32>
    %23 = arith.addf %17, %22 : vector<64x32xf32>
    %c1_32 = arith.constant 1 : index
    %c0_33 = arith.constant 0 : index
    %c0_34 = arith.constant 0 : index
    %24 = vector.load %arg18[%c1_32, %c0_33, %c0_34] : memref<10x10x4xf32, #tpu.memory_space<vmem>>, vector<8x8x4xf32>
    %25 = vector.shape_cast %24 : vector<8x8x4xf32> to vector<64x4xf32>
    %c1_35 = arith.constant 1 : index
    %c0_36 = arith.constant 0 : index
    %c0_37 = arith.constant 0 : index
    %c0_38 = arith.constant 0 : index
    %26 = vector.load %arg2[%c1_35, %c0_36, %c0_37, %c0_38] : memref<3x3x4x32xf32, #tpu.memory_space<vmem>>, vector<1x1x4x32xf32>
    %27 = vector.shape_cast %26 : vector<1x1x4x32xf32> to vector<4x32xf32>
    %cst_39 = arith.constant dense<0.000000e+00> : vector<64x32xf32>
    %28 = tpu.matmul %25, %27, %cst_39 {dimension_numbers = #tpu.dot_dimension_numbers<[1], [0], [0], [1], [0, 0, 1, 1], [], []>} : vector<64x4xf32>, vector<4x32xf32>, vector<64x32xf32> -> vector<64x32xf32>
    %29 = arith.addf %23, %28 : vector<64x32xf32>
    %c1_40 = arith.constant 1 : index
    %c1_41 = arith.constant 1 : index
    %c0_42 = arith.constant 0 : index
    %30 = vector.load %arg18[%c1_40, %c1_41, %c0_42] : memref<10x10x4xf32, #tpu.memory_space<vmem>>, vector<8x8x4xf32>
    %31 = vector.shape_cast %30 : vector<8x8x4xf32> to vector<64x4xf32>
    %c1_43 = arith.constant 1 : index
    %c1_44 = arith.constant 1 : index
    %c0_45 = arith.constant 0 : index
    %c0_46 = arith.constant 0 : index
    %32 = vector.load %arg2[%c1_43, %c1_44, %c0_45, %c0_46] : memref<3x3x4x32xf32, #tpu.memory_space<vmem>>, vector<1x1x4x32xf32>
    %33 = vector.shape_cast %32 : vector<1x1x4x32xf32> to vector<4x32xf32>
    %cst_47 = arith.constant dense<0.000000e+00> : vector<64x32xf32>
    %34 = tpu.matmul %31, %33, %cst_47 {dimension_numbers = #tpu.dot_dimension_numbers<[1], [0], [0], [1], [0, 0, 1, 1], [], []>} : vector<64x4xf32>, vector<4x32xf32>, vector<64x32xf32> -> vector<64x32xf32>
    %35 = arith.addf %29, %34 : vector<64x32xf32>
    %c1_48 = arith.constant 1 : index
    %c2_49 = arith.constant 2 : index
    %c0_50 = arith.constant 0 : index
    %36 = vector.load %arg18[%c1_48, %c2_49, %c0_50] : memref<10x10x4xf32, #tpu.memory_space<vmem>>, vector<8x8x4xf32>
    %37 = vector.shape_cast %36 : vector<8x8x4xf32> to vector<64x4xf32>
    %c1_51 = arith.constant 1 : index
    %c2_52 = arith.constant 2 : index
    %c0_53 = arith.constant 0 : index
    %c0_54 = arith.constant 0 : index
    %38 = vector.load %arg2[%c1_51, %c2_52, %c0_53, %c0_54] : memref<3x3x4x32xf32, #tpu.memory_space<vmem>>, vector<1x1x4x32xf32>
    %39 = vector.shape_cast %38 : vector<1x1x4x32xf32> to vector<4x32xf32>
    %cst_55 = arith.constant dense<0.000000e+00> : vector<64x32xf32>
    %40 = tpu.matmul %37, %39, %cst_55 {dimension_numbers = #tpu.dot_dimension_numbers<[1], [0], [0], [1], [0, 0, 1, 1], [], []>} : vector<64x4xf32>, vector<4x32xf32>, vector<64x32xf32> -> vector<64x32xf32>
    %41 = arith.addf %35, %40 : vector<64x32xf32>
    %c2_56 = arith.constant 2 : index
    %c0_57 = arith.constant 0 : index
    %c0_58 = arith.constant 0 : index
    %42 = vector.load %arg18[%c2_56, %c0_57, %c0_58] : memref<10x10x4xf32, #tpu.memory_space<vmem>>, vector<8x8x4xf32>
    %43 = vector.shape_cast %42 : vector<8x8x4xf32> to vector<64x4xf32>
    %c2_59 = arith.constant 2 : index
    %c0_60 = arith.constant 0 : index
    %c0_61 = arith.constant 0 : index
    %c0_62 = arith.constant 0 : index
    %44 = vector.load %arg2[%c2_59, %c0_60, %c0_61, %c0_62] : memref<3x3x4x32xf32, #tpu.memory_space<vmem>>, vector<1x1x4x32xf32>
    %45 = vector.shape_cast %44 : vector<1x1x4x32xf32> to vector<4x32xf32>
    %cst_63 = arith.constant dense<0.000000e+00> : vector<64x32xf32>
    %46 = tpu.matmul %43, %45, %cst_63 {dimension_numbers = #tpu.dot_dimension_numbers<[1], [0], [0], [1], [0, 0, 1, 1], [], []>} : vector<64x4xf32>, vector<4x32xf32>, vector<64x32xf32> -> vector<64x32xf32>
    %47 = arith.addf %41, %46 : vector<64x32xf32>
    %c2_64 = arith.constant 2 : index
    %c1_65 = arith.constant 1 : index
    %c0_66 = arith.constant 0 : index
    %48 = vector.load %arg18[%c2_64, %c1_65, %c0_66] : memref<10x10x4xf32, #tpu.memory_space<vmem>>, vector<8x8x4xf32>
    %49 = vector.shape_cast %48 : vector<8x8x4xf32> to vector<64x4xf32>
    %c2_67 = arith.constant 2 : index
    %c1_68 = arith.constant 1 : index
    %c0_69 = arith.constant 0 : index
    %c0_70 = arith.constant 0 : index
    %50 = vector.load %arg2[%c2_67, %c1_68, %c0_69, %c0_70] : memref<3x3x4x32xf32, #tpu.memory_space<vmem>>, vector<1x1x4x32xf32>
    %51 = vector.shape_cast %50 : vector<1x1x4x32xf32> to vector<4x32xf32>
    %cst_71 = arith.constant dense<0.000000e+00> : vector<64x32xf32>
    %52 = tpu.matmul %49, %51, %cst_71 {dimension_numbers = #tpu.dot_dimension_numbers<[1], [0], [0], [1], [0, 0, 1, 1], [], []>} : vector<64x4xf32>, vector<4x32xf32>, vector<64x32xf32> -> vector<64x32xf32>
    %53 = arith.addf %47, %52 : vector<64x32xf32>
    %c2_72 = arith.constant 2 : index
    %c2_73 = arith.constant 2 : index
    %c0_74 = arith.constant 0 : index
    %54 = vector.load %arg18[%c2_72, %c2_73, %c0_74] : memref<10x10x4xf32, #tpu.memory_space<vmem>>, vector<8x8x4xf32>
    %55 = vector.shape_cast %54 : vector<8x8x4xf32> to vector<64x4xf32>
    %c2_75 = arith.constant 2 : index
    %c2_76 = arith.constant 2 : index
    %c0_77 = arith.constant 0 : index
    %c0_78 = arith.constant 0 : index
    %56 = vector.load %arg2[%c2_75, %c2_76, %c0_77, %c0_78] : memref<3x3x4x32xf32, #tpu.memory_space<vmem>>, vector<1x1x4x32xf32>
    %57 = vector.shape_cast %56 : vector<1x1x4x32xf32> to vector<4x32xf32>
    %cst_79 = arith.constant dense<0.000000e+00> : vector<64x32xf32>
    %58 = tpu.matmul %55, %57, %cst_79 {dimension_numbers = #tpu.dot_dimension_numbers<[1], [0], [0], [1], [0, 0, 1, 1], [], []>} : vector<64x4xf32>, vector<4x32xf32>, vector<64x32xf32> -> vector<64x32xf32>
    %59 = arith.addf %53, %58 : vector<64x32xf32>
    %c0_80 = arith.constant 0 : index
    %c0_81 = arith.constant 0 : index
    %60 = vector.load %arg3[%c0_80, %c0_81] : memref<1x32xf32, #tpu.memory_space<vmem>>, vector<1x32xf32>
    %61 = vector.shape_cast %60 : vector<1x32xf32> to vector<32xf32>
    %62 = vector.shape_cast %61 : vector<32xf32> to vector<1x32xf32>
    %63 = vector.broadcast %62 : vector<1x32xf32> to vector<64x32xf32>
    %64 = arith.addf %59, %63 : vector<64x32xf32>
    %cst_82 = arith.constant 0.000000e+00 : f32
    %65 = vector.broadcast %cst_82 : f32 to vector<64x32xf32>
    %66 = arith.maximumf %64, %65 : vector<64x32xf32>
    %cst_83 = arith.constant 0.000000e+00 : f32
    %67 = vector.broadcast %cst_83 : f32 to vector<10x10x32xf32>
    %c0_84 = arith.constant 0 : index
    %c0_85 = arith.constant 0 : index
    %c0_86 = arith.constant 0 : index
    %68 = vector.load %arg19[%c0_84, %c0_85, %c0_86] : memref<10x10x32xf32, #tpu.memory_space<vmem>>, vector<10x10x32xf32>
    tpu.vector_store %arg19[%c0_84, %c0_85, %c0_86], %67 {strides = array<i32>} : memref<10x10x32xf32, #tpu.memory_space<vmem>>, vector<10x10x32xf32>,
    %69 = vector.shape_cast %66 : vector<64x32xf32> to vector<8x8x32xf32>
    %c1_87 = arith.constant 1 : index
    %c1_88 = arith.constant 1 : index
    %c0_89 = arith.constant 0 : index
    %70 = vector.load %arg19[%c1_87, %c1_88, %c0_89] : memref<10x10x32xf32, #tpu.memory_space<vmem>>, vector<8x8x32xf32>
    tpu.vector_store %arg19[%c1_87, %c1_88, %c0_89], %69 {strides = array<i32>} : memref<10x10x32xf32, #tpu.memory_space<vmem>>, vector<8x8x32xf32>,
    %cst_90 = arith.constant 0.000000e+00 : f32
    %71 = vector.broadcast %cst_90 : f32 to vector<64x64xf32>
    %c0_91 = arith.constant 0 : index
    %c0_92 = arith.constant 0 : index
    %c0_93 = arith.constant 0 : index
    %72 = vector.load %arg19[%c0_91, %c0_92, %c0_93] : memref<10x10x32xf32, #tpu.memory_space<vmem>>, vector<8x8x32xf32>
    %73 = vector.shape_cast %72 : vector<8x8x32xf32> to vector<64x32xf32>
    %c0_94 = arith.constant 0 : index
    %c0_95 = arith.constant 0 : index
    %c0_96 = arith.constant 0 : index
    %c0_97 = arith.constant 0 : index
    %74 = vector.load %arg4[%c0_94, %c0_95, %c0_96, %c0_97] : memref<3x3x32x64xf32, #tpu.memory_space<vmem>>, vector<1x1x32x64xf32>
    %75 = vector.shape_cast %74 : vector<1x1x32x64xf32> to vector<32x64xf32>
    %cst_98 = arith.constant dense<0.000000e+00> : vector<64x64xf32>
    %76 = tpu.matmul %73, %75, %cst_98 {dimension_numbers = #tpu.dot_dimension_numbers<[1], [0], [0], [1], [0, 0, 1, 1], [], []>} : vector<64x32xf32>, vector<32x64xf32>, vector<64x64xf32> -> vector<64x64xf32>
    %77 = arith.addf %71, %76 : vector<64x64xf32>
    %c0_99 = arith.constant 0 : index
    %c1_100 = arith.constant 1 : index
    %c0_101 = arith.constant 0 : index
    %78 = vector.load %arg19[%c0_99, %c1_100, %c0_101] : memref<10x10x32xf32, #tpu.memory_space<vmem>>, vector<8x8x32xf32>
    %79 = vector.shape_cast %78 : vector<8x8x32xf32> to vector<64x32xf32>
    %c0_102 = arith.constant 0 : index
    %c1_103 = arith.constant 1 : index
    %c0_104 = arith.constant 0 : index
    %c0_105 = arith.constant 0 : index
    %80 = vector.load %arg4[%c0_102, %c1_103, %c0_104, %c0_105] : memref<3x3x32x64xf32, #tpu.memory_space<vmem>>, vector<1x1x32x64xf32>
    %81 = vector.shape_cast %80 : vector<1x1x32x64xf32> to vector<32x64xf32>
    %cst_106 = arith.constant dense<0.000000e+00> : vector<64x64xf32>
    %82 = tpu.matmul %79, %81, %cst_106 {dimension_numbers = #tpu.dot_dimension_numbers<[1], [0], [0], [1], [0, 0, 1, 1], [], []>} : vector<64x32xf32>, vector<32x64xf32>, vector<64x64xf32> -> vector<64x64xf32>
    %83 = arith.addf %77, %82 : vector<64x64xf32>
    %c0_107 = arith.constant 0 : index
    %c2_108 = arith.constant 2 : index
    %c0_109 = arith.constant 0 : index
    %84 = vector.load %arg19[%c0_107, %c2_108, %c0_109] : memref<10x10x32xf32, #tpu.memory_space<vmem>>, vector<8x8x32xf32>
    %85 = vector.shape_cast %84 : vector<8x8x32xf32> to vector<64x32xf32>
    %c0_110 = arith.constant 0 : index
    %c2_111 = arith.constant 2 : index
    %c0_112 = arith.constant 0 : index
    %c0_113 = arith.constant 0 : index
    %86 = vector.load %arg4[%c0_110, %c2_111, %c0_112, %c0_113] : memref<3x3x32x64xf32, #tpu.memory_space<vmem>>, vector<1x1x32x64xf32>
    %87 = vector.shape_cast %86 : vector<1x1x32x64xf32> to vector<32x64xf32>
    %cst_114 = arith.constant dense<0.000000e+00> : vector<64x64xf32>
    %88 = tpu.matmul %85, %87, %cst_114 {dimension_numbers = #tpu.dot_dimension_numbers<[1], [0], [0], [1], [0, 0, 1, 1], [], []>} : vector<64x32xf32>, vector<32x64xf32>, vector<64x64xf32> -> vector<64x64xf32>
    %89 = arith.addf %83, %88 : vector<64x64xf32>
    %c1_115 = arith.constant 1 : index
    %c0_116 = arith.constant 0 : index
    %c0_117 = arith.constant 0 : index
    %90 = vector.load %arg19[%c1_115, %c0_116, %c0_117] : memref<10x10x32xf32, #tpu.memory_space<vmem>>, vector<8x8x32xf32>
    %91 = vector.shape_cast %90 : vector<8x8x32xf32> to vector<64x32xf32>
    %c1_118 = arith.constant 1 : index
    %c0_119 = arith.constant 0 : index
    %c0_120 = arith.constant 0 : index
    %c0_121 = arith.constant 0 : index
    %92 = vector.load %arg4[%c1_118, %c0_119, %c0_120, %c0_121] : memref<3x3x32x64xf32, #tpu.memory_space<vmem>>, vector<1x1x32x64xf32>
    %93 = vector.shape_cast %92 : vector<1x1x32x64xf32> to vector<32x64xf32>
    %cst_122 = arith.constant dense<0.000000e+00> : vector<64x64xf32>
    %94 = tpu.matmul %91, %93, %cst_122 {dimension_numbers = #tpu.dot_dimension_numbers<[1], [0], [0], [1], [0, 0, 1, 1], [], []>} : vector<64x32xf32>, vector<32x64xf32>, vector<64x64xf32> -> vector<64x64xf32>
    %95 = arith.addf %89, %94 : vector<64x64xf32>
    %c1_123 = arith.constant 1 : index
    %c1_124 = arith.constant 1 : index
    %c0_125 = arith.constant 0 : index
    %96 = vector.load %arg19[%c1_123, %c1_124, %c0_125] : memref<10x10x32xf32, #tpu.memory_space<vmem>>, vector<8x8x32xf32>
    %97 = vector.shape_cast %96 : vector<8x8x32xf32> to vector<64x32xf32>
    %c1_126 = arith.constant 1 : index
    %c1_127 = arith.constant 1 : index
    %c0_128 = arith.constant 0 : index
    %c0_129 = arith.constant 0 : index
    %98 = vector.load %arg4[%c1_126, %c1_127, %c0_128, %c0_129] : memref<3x3x32x64xf32, #tpu.memory_space<vmem>>, vector<1x1x32x64xf32>
    %99 = vector.shape_cast %98 : vector<1x1x32x64xf32> to vector<32x64xf32>
    %cst_130 = arith.constant dense<0.000000e+00> : vector<64x64xf32>
    %100 = tpu.matmul %97, %99, %cst_130 {dimension_numbers = #tpu.dot_dimension_numbers<[1], [0], [0], [1], [0, 0, 1, 1], [], []>} : vector<64x32xf32>, vector<32x64xf32>, vector<64x64xf32> -> vector<64x64xf32>
    %101 = arith.addf %95, %100 : vector<64x64xf32>
    %c1_131 = arith.constant 1 : index
    %c2_132 = arith.constant 2 : index
    %c0_133 = arith.constant 0 : index
    %102 = vector.load %arg19[%c1_131, %c2_132, %c0_133] : memref<10x10x32xf32, #tpu.memory_space<vmem>>, vector<8x8x32xf32>
    %103 = vector.shape_cast %102 : vector<8x8x32xf32> to vector<64x32xf32>
    %c1_134 = arith.constant 1 : index
    %c2_135 = arith.constant 2 : index
    %c0_136 = arith.constant 0 : index
    %c0_137 = arith.constant 0 : index
    %104 = vector.load %arg4[%c1_134, %c2_135, %c0_136, %c0_137] : memref<3x3x32x64xf32, #tpu.memory_space<vmem>>, vector<1x1x32x64xf32>
    %105 = vector.shape_cast %104 : vector<1x1x32x64xf32> to vector<32x64xf32>
    %cst_138 = arith.constant dense<0.000000e+00> : vector<64x64xf32>
    %106 = tpu.matmul %103, %105, %cst_138 {dimension_numbers = #tpu.dot_dimension_numbers<[1], [0], [0], [1], [0, 0, 1, 1], [], []>} : vector<64x32xf32>, vector<32x64xf32>, vector<64x64xf32> -> vector<64x64xf32>
    %107 = arith.addf %101, %106 : vector<64x64xf32>
    %c2_139 = arith.constant 2 : index
    %c0_140 = arith.constant 0 : index
    %c0_141 = arith.constant 0 : index
    %108 = vector.load %arg19[%c2_139, %c0_140, %c0_141] : memref<10x10x32xf32, #tpu.memory_space<vmem>>, vector<8x8x32xf32>
    %109 = vector.shape_cast %108 : vector<8x8x32xf32> to vector<64x32xf32>
    %c2_142 = arith.constant 2 : index
    %c0_143 = arith.constant 0 : index
    %c0_144 = arith.constant 0 : index
    %c0_145 = arith.constant 0 : index
    %110 = vector.load %arg4[%c2_142, %c0_143, %c0_144, %c0_145] : memref<3x3x32x64xf32, #tpu.memory_space<vmem>>, vector<1x1x32x64xf32>
    %111 = vector.shape_cast %110 : vector<1x1x32x64xf32> to vector<32x64xf32>
    %cst_146 = arith.constant dense<0.000000e+00> : vector<64x64xf32>
    %112 = tpu.matmul %109, %111, %cst_146 {dimension_numbers = #tpu.dot_dimension_numbers<[1], [0], [0], [1], [0, 0, 1, 1], [], []>} : vector<64x32xf32>, vector<32x64xf32>, vector<64x64xf32> -> vector<64x64xf32>
    %113 = arith.addf %107, %112 : vector<64x64xf32>
    %c2_147 = arith.constant 2 : index
    %c1_148 = arith.constant 1 : index
    %c0_149 = arith.constant 0 : index
    %114 = vector.load %arg19[%c2_147, %c1_148, %c0_149] : memref<10x10x32xf32, #tpu.memory_space<vmem>>, vector<8x8x32xf32>
    %115 = vector.shape_cast %114 : vector<8x8x32xf32> to vector<64x32xf32>
    %c2_150 = arith.constant 2 : index
    %c1_151 = arith.constant 1 : index
    %c0_152 = arith.constant 0 : index
    %c0_153 = arith.constant 0 : index
    %116 = vector.load %arg4[%c2_150, %c1_151, %c0_152, %c0_153] : memref<3x3x32x64xf32, #tpu.memory_space<vmem>>, vector<1x1x32x64xf32>
    %117 = vector.shape_cast %116 : vector<1x1x32x64xf32> to vector<32x64xf32>
    %cst_154 = arith.constant dense<0.000000e+00> : vector<64x64xf32>
    %118 = tpu.matmul %115, %117, %cst_154 {dimension_numbers = #tpu.dot_dimension_numbers<[1], [0], [0], [1], [0, 0, 1, 1], [], []>} : vector<64x32xf32>, vector<32x64xf32>, vector<64x64xf32> -> vector<64x64xf32>
    %119 = arith.addf %113, %118 : vector<64x64xf32>
    %c2_155 = arith.constant 2 : index
    %c2_156 = arith.constant 2 : index
    %c0_157 = arith.constant 0 : index
    %120 = vector.load %arg19[%c2_155, %c2_156, %c0_157] : memref<10x10x32xf32, #tpu.memory_space<vmem>>, vector<8x8x32xf32>
    %121 = vector.shape_cast %120 : vector<8x8x32xf32> to vector<64x32xf32>
    %c2_158 = arith.constant 2 : index
    %c2_159 = arith.constant 2 : index
    %c0_160 = arith.constant 0 : index
    %c0_161 = arith.constant 0 : index
    %122 = vector.load %arg4[%c2_158, %c2_159, %c0_160, %c0_161] : memref<3x3x32x64xf32, #tpu.memory_space<vmem>>, vector<1x1x32x64xf32>
    %123 = vector.shape_cast %122 : vector<1x1x32x64xf32> to vector<32x64xf32>
    %cst_162 = arith.constant dense<0.000000e+00> : vector<64x64xf32>
    %124 = tpu.matmul %121, %123, %cst_162 {dimension_numbers = #tpu.dot_dimension_numbers<[1], [0], [0], [1], [0, 0, 1, 1], [], []>} : vector<64x32xf32>, vector<32x64xf32>, vector<64x64xf32> -> vector<64x64xf32>
    %125 = arith.addf %119, %124 : vector<64x64xf32>
    %c0_163 = arith.constant 0 : index
    %c0_164 = arith.constant 0 : index
    %126 = vector.load %arg5[%c0_163, %c0_164] : memref<1x64xf32, #tpu.memory_space<vmem>>, vector<1x64xf32>
    %127 = vector.shape_cast %126 : vector<1x64xf32> to vector<64xf32>
    %128 = vector.shape_cast %127 : vector<64xf32> to vector<1x64xf32>
    %129 = vector.broadcast %128 : vector<1x64xf32> to vector<64x64xf32>
    %130 = arith.addf %125, %129 : vector<64x64xf32>
    %cst_165 = arith.constant 0.000000e+00 : f32
    %131 = vector.broadcast %cst_165 : f32 to vector<64x64xf32>
    %132 = arith.maximumf %130, %131 : vector<64x64xf32>
    %cst_166 = arith.constant 0.000000e+00 : f32
    %133 = vector.broadcast %cst_166 : f32 to vector<10x10x64xf32>
    %c0_167 = arith.constant 0 : index
    %c0_168 = arith.constant 0 : index
    %c0_169 = arith.constant 0 : index
    %134 = vector.load %arg20[%c0_167, %c0_168, %c0_169] : memref<10x10x64xf32, #tpu.memory_space<vmem>>, vector<10x10x64xf32>
    tpu.vector_store %arg20[%c0_167, %c0_168, %c0_169], %133 {strides = array<i32>} : memref<10x10x64xf32, #tpu.memory_space<vmem>>, vector<10x10x64xf32>,
    %135 = vector.shape_cast %132 : vector<64x64xf32> to vector<8x8x64xf32>
    %c1_170 = arith.constant 1 : index
    %c1_171 = arith.constant 1 : index
    %c0_172 = arith.constant 0 : index
    %136 = vector.load %arg20[%c1_170, %c1_171, %c0_172] : memref<10x10x64xf32, #tpu.memory_space<vmem>>, vector<8x8x64xf32>
    tpu.vector_store %arg20[%c1_170, %c1_171, %c0_172], %135 {strides = array<i32>} : memref<10x10x64xf32, #tpu.memory_space<vmem>>, vector<8x8x64xf32>,
    %cst_173 = arith.constant 0.000000e+00 : f32
    %137 = vector.broadcast %cst_173 : f32 to vector<64x128xf32>
    %c0_174 = arith.constant 0 : index
    %c0_175 = arith.constant 0 : index
    %c0_176 = arith.constant 0 : index
    %138 = vector.load %arg20[%c0_174, %c0_175, %c0_176] : memref<10x10x64xf32, #tpu.memory_space<vmem>>, vector<8x8x64xf32>
    %139 = vector.shape_cast %138 : vector<8x8x64xf32> to vector<64x64xf32>
    %c0_177 = arith.constant 0 : index
    %c0_178 = arith.constant 0 : index
    %c0_179 = arith.constant 0 : index
    %c0_180 = arith.constant 0 : index
    %140 = vector.load %arg6[%c0_177, %c0_178, %c0_179, %c0_180] : memref<3x3x64x128xf32, #tpu.memory_space<vmem>>, vector<1x1x64x128xf32>
    %141 = vector.shape_cast %140 : vector<1x1x64x128xf32> to vector<64x128xf32>
    %cst_181 = arith.constant dense<0.000000e+00> : vector<64x128xf32>
    %142 = tpu.matmul %139, %141, %cst_181 {dimension_numbers = #tpu.dot_dimension_numbers<[1], [0], [0], [1], [0, 0, 1, 1], [], []>} : vector<64x64xf32>, vector<64x128xf32>, vector<64x128xf32> -> vector<64x128xf32>
    %143 = arith.addf %137, %142 : vector<64x128xf32>
    %c0_182 = arith.constant 0 : index
    %c1_183 = arith.constant 1 : index
    %c0_184 = arith.constant 0 : index
    %144 = vector.load %arg20[%c0_182, %c1_183, %c0_184] : memref<10x10x64xf32, #tpu.memory_space<vmem>>, vector<8x8x64xf32>
    %145 = vector.shape_cast %144 : vector<8x8x64xf32> to vector<64x64xf32>
    %c0_185 = arith.constant 0 : index
    %c1_186 = arith.constant 1 : index
    %c0_187 = arith.constant 0 : index
    %c0_188 = arith.constant 0 : index
    %146 = vector.load %arg6[%c0_185, %c1_186, %c0_187, %c0_188] : memref<3x3x64x128xf32, #tpu.memory_space<vmem>>, vector<1x1x64x128xf32>
    %147 = vector.shape_cast %146 : vector<1x1x64x128xf32> to vector<64x128xf32>
    %cst_189 = arith.constant dense<0.000000e+00> : vector<64x128xf32>
    %148 = tpu.matmul %145, %147, %cst_189 {dimension_numbers = #tpu.dot_dimension_numbers<[1], [0], [0], [1], [0, 0, 1, 1], [], []>} : vector<64x64xf32>, vector<64x128xf32>, vector<64x128xf32> -> vector<64x128xf32>
    %149 = arith.addf %143, %148 : vector<64x128xf32>
    %c0_190 = arith.constant 0 : index
    %c2_191 = arith.constant 2 : index
    %c0_192 = arith.constant 0 : index
    %150 = vector.load %arg20[%c0_190, %c2_191, %c0_192] : memref<10x10x64xf32, #tpu.memory_space<vmem>>, vector<8x8x64xf32>
    %151 = vector.shape_cast %150 : vector<8x8x64xf32> to vector<64x64xf32>
    %c0_193 = arith.constant 0 : index
    %c2_194 = arith.constant 2 : index
    %c0_195 = arith.constant 0 : index
    %c0_196 = arith.constant 0 : index
    %152 = vector.load %arg6[%c0_193, %c2_194, %c0_195, %c0_196] : memref<3x3x64x128xf32, #tpu.memory_space<vmem>>, vector<1x1x64x128xf32>
    %153 = vector.shape_cast %152 : vector<1x1x64x128xf32> to vector<64x128xf32>
    %cst_197 = arith.constant dense<0.000000e+00> : vector<64x128xf32>
    %154 = tpu.matmul %151, %153, %cst_197 {dimension_numbers = #tpu.dot_dimension_numbers<[1], [0], [0], [1], [0, 0, 1, 1], [], []>} : vector<64x64xf32>, vector<64x128xf32>, vector<64x128xf32> -> vector<64x128xf32>
    %155 = arith.addf %149, %154 : vector<64x128xf32>
    %c1_198 = arith.constant 1 : index
    %c0_199 = arith.constant 0 : index
    %c0_200 = arith.constant 0 : index
    %156 = vector.load %arg20[%c1_198, %c0_199, %c0_200] : memref<10x10x64xf32, #tpu.memory_space<vmem>>, vector<8x8x64xf32>
    %157 = vector.shape_cast %156 : vector<8x8x64xf32> to vector<64x64xf32>
    %c1_201 = arith.constant 1 : index
    %c0_202 = arith.constant 0 : index
    %c0_203 = arith.constant 0 : index
    %c0_204 = arith.constant 0 : index
    %158 = vector.load %arg6[%c1_201, %c0_202, %c0_203, %c0_204] : memref<3x3x64x128xf32, #tpu.memory_space<vmem>>, vector<1x1x64x128xf32>
    %159 = vector.shape_cast %158 : vector<1x1x64x128xf32> to vector<64x128xf32>
    %cst_205 = arith.constant dense<0.000000e+00> : vector<64x128xf32>
    %160 = tpu.matmul %157, %159, %cst_205 {dimension_numbers = #tpu.dot_dimension_numbers<[1], [0], [0], [1], [0, 0, 1, 1], [], []>} : vector<64x64xf32>, vector<64x128xf32>, vector<64x128xf32> -> vector<64x128xf32>
    %161 = arith.addf %155, %160 : vector<64x128xf32>
    %c1_206 = arith.constant 1 : index
    %c1_207 = arith.constant 1 : index
    %c0_208 = arith.constant 0 : index
    %162 = vector.load %arg20[%c1_206, %c1_207, %c0_208] : memref<10x10x64xf32, #tpu.memory_space<vmem>>, vector<8x8x64xf32>
    %163 = vector.shape_cast %162 : vector<8x8x64xf32> to vector<64x64xf32>
    %c1_209 = arith.constant 1 : index
    %c1_210 = arith.constant 1 : index
    %c0_211 = arith.constant 0 : index
    %c0_212 = arith.constant 0 : index
    %164 = vector.load %arg6[%c1_209, %c1_210, %c0_211, %c0_212] : memref<3x3x64x128xf32, #tpu.memory_space<vmem>>, vector<1x1x64x128xf32>
    %165 = vector.shape_cast %164 : vector<1x1x64x128xf32> to vector<64x128xf32>
    %cst_213 = arith.constant dense<0.000000e+00> : vector<64x128xf32>
    %166 = tpu.matmul %163, %165, %cst_213 {dimension_numbers = #tpu.dot_dimension_numbers<[1], [0], [0], [1], [0, 0, 1, 1], [], []>} : vector<64x64xf32>, vector<64x128xf32>, vector<64x128xf32> -> vector<64x128xf32>
    %167 = arith.addf %161, %166 : vector<64x128xf32>
    %c1_214 = arith.constant 1 : index
    %c2_215 = arith.constant 2 : index
    %c0_216 = arith.constant 0 : index
    %168 = vector.load %arg20[%c1_214, %c2_215, %c0_216] : memref<10x10x64xf32, #tpu.memory_space<vmem>>, vector<8x8x64xf32>
    %169 = vector.shape_cast %168 : vector<8x8x64xf32> to vector<64x64xf32>
    %c1_217 = arith.constant 1 : index
    %c2_218 = arith.constant 2 : index
    %c0_219 = arith.constant 0 : index
    %c0_220 = arith.constant 0 : index
    %170 = vector.load %arg6[%c1_217, %c2_218, %c0_219, %c0_220] : memref<3x3x64x128xf32, #tpu.memory_space<vmem>>, vector<1x1x64x128xf32>
    %171 = vector.shape_cast %170 : vector<1x1x64x128xf32> to vector<64x128xf32>
    %cst_221 = arith.constant dense<0.000000e+00> : vector<64x128xf32>
    %172 = tpu.matmul %169, %171, %cst_221 {dimension_numbers = #tpu.dot_dimension_numbers<[1], [0], [0], [1], [0, 0, 1, 1], [], []>} : vector<64x64xf32>, vector<64x128xf32>, vector<64x128xf32> -> vector<64x128xf32>
    %173 = arith.addf %167, %172 : vector<64x128xf32>
    %c2_222 = arith.constant 2 : index
    %c0_223 = arith.constant 0 : index
    %c0_224 = arith.constant 0 : index
    %174 = vector.load %arg20[%c2_222, %c0_223, %c0_224] : memref<10x10x64xf32, #tpu.memory_space<vmem>>, vector<8x8x64xf32>
    %175 = vector.shape_cast %174 : vector<8x8x64xf32> to vector<64x64xf32>
    %c2_225 = arith.constant 2 : index
    %c0_226 = arith.constant 0 : index
    %c0_227 = arith.constant 0 : index
    %c0_228 = arith.constant 0 : index
    %176 = vector.load %arg6[%c2_225, %c0_226, %c0_227, %c0_228] : memref<3x3x64x128xf32, #tpu.memory_space<vmem>>, vector<1x1x64x128xf32>
    %177 = vector.shape_cast %176 : vector<1x1x64x128xf32> to vector<64x128xf32>
    %cst_229 = arith.constant dense<0.000000e+00> : vector<64x128xf32>
    %178 = tpu.matmul %175, %177, %cst_229 {dimension_numbers = #tpu.dot_dimension_numbers<[1], [0], [0], [1], [0, 0, 1, 1], [], []>} : vector<64x64xf32>, vector<64x128xf32>, vector<64x128xf32> -> vector<64x128xf32>
    %179 = arith.addf %173, %178 : vector<64x128xf32>
    %c2_230 = arith.constant 2 : index
    %c1_231 = arith.constant 1 : index
    %c0_232 = arith.constant 0 : index
    %180 = vector.load %arg20[%c2_230, %c1_231, %c0_232] : memref<10x10x64xf32, #tpu.memory_space<vmem>>, vector<8x8x64xf32>
    %181 = vector.shape_cast %180 : vector<8x8x64xf32> to vector<64x64xf32>
    %c2_233 = arith.constant 2 : index
    %c1_234 = arith.constant 1 : index
    %c0_235 = arith.constant 0 : index
    %c0_236 = arith.constant 0 : index
    %182 = vector.load %arg6[%c2_233, %c1_234, %c0_235, %c0_236] : memref<3x3x64x128xf32, #tpu.memory_space<vmem>>, vector<1x1x64x128xf32>
    %183 = vector.shape_cast %182 : vector<1x1x64x128xf32> to vector<64x128xf32>
    %cst_237 = arith.constant dense<0.000000e+00> : vector<64x128xf32>
    %184 = tpu.matmul %181, %183, %cst_237 {dimension_numbers = #tpu.dot_dimension_numbers<[1], [0], [0], [1], [0, 0, 1, 1], [], []>} : vector<64x64xf32>, vector<64x128xf32>, vector<64x128xf32> -> vector<64x128xf32>
    %185 = arith.addf %179, %184 : vector<64x128xf32>
    %c2_238 = arith.constant 2 : index
    %c2_239 = arith.constant 2 : index
    %c0_240 = arith.constant 0 : index
    %186 = vector.load %arg20[%c2_238, %c2_239, %c0_240] : memref<10x10x64xf32, #tpu.memory_space<vmem>>, vector<8x8x64xf32>
    %187 = vector.shape_cast %186 : vector<8x8x64xf32> to vector<64x64xf32>
    %c2_241 = arith.constant 2 : index
    %c2_242 = arith.constant 2 : index
    %c0_243 = arith.constant 0 : index
    %c0_244 = arith.constant 0 : index
    %188 = vector.load %arg6[%c2_241, %c2_242, %c0_243, %c0_244] : memref<3x3x64x128xf32, #tpu.memory_space<vmem>>, vector<1x1x64x128xf32>
    %189 = vector.shape_cast %188 : vector<1x1x64x128xf32> to vector<64x128xf32>
    %cst_245 = arith.constant dense<0.000000e+00> : vector<64x128xf32>
    %190 = tpu.matmul %187, %189, %cst_245 {dimension_numbers = #tpu.dot_dimension_numbers<[1], [0], [0], [1], [0, 0, 1, 1], [], []>} : vector<64x64xf32>, vector<64x128xf32>, vector<64x128xf32> -> vector<64x128xf32>
    %191 = arith.addf %185, %190 : vector<64x128xf32>
    %c0_246 = arith.constant 0 : index
    %c0_247 = arith.constant 0 : index
    %192 = vector.load %arg7[%c0_246, %c0_247] : memref<1x128xf32, #tpu.memory_space<vmem>>, vector<1x128xf32>
    %193 = vector.shape_cast %192 : vector<1x128xf32> to vector<128xf32>
    %194 = vector.shape_cast %193 : vector<128xf32> to vector<1x128xf32>
    %195 = vector.broadcast %194 : vector<1x128xf32> to vector<64x128xf32>
    %196 = arith.addf %191, %195 : vector<64x128xf32>
    %cst_248 = arith.constant 0.000000e+00 : f32
    %197 = vector.broadcast %cst_248 : f32 to vector<64x128xf32>
    %198 = arith.maximumf %196, %197 : vector<64x128xf32>
    %c0_249 = arith.constant 0 : index
    %c0_250 = arith.constant 0 : index
    %199 = vector.load %arg8[%c0_249, %c0_250] : memref<128x6xf32, #tpu.memory_space<vmem>>, vector<128x6xf32>
    %cst_251 = arith.constant dense<0.000000e+00> : vector<64x6xf32>
    %200 = tpu.matmul %198, %199, %cst_251 {dimension_numbers = #tpu.dot_dimension_numbers<[1], [0], [0], [1], [0, 0, 1, 1], [], []>} : vector<64x128xf32>, vector<128x6xf32>, vector<64x6xf32> -> vector<64x6xf32>
    %c0_252 = arith.constant 0 : index
    %c0_253 = arith.constant 0 : index
    %201 = vector.load %arg9[%c0_252, %c0_253] : memref<1x6xf32, #tpu.memory_space<vmem>>, vector<1x6xf32>
    %202 = vector.shape_cast %201 : vector<1x6xf32> to vector<6xf32>
    %203 = vector.shape_cast %202 : vector<6xf32> to vector<1x6xf32>
    %204 = vector.broadcast %203 : vector<1x6xf32> to vector<64x6xf32>
    %205 = arith.addf %200, %204 : vector<64x6xf32>
    %cst_254 = arith.constant 0.000000e+00 : f32
    %206 = vector.broadcast %cst_254 : f32 to vector<64x6xf32>
    %207 = arith.maximumf %205, %206 : vector<64x6xf32>
    %208 = tpu.transpose %207, [1, 0] : vector<64x6xf32> -> vector<6x64xf32>
    %c0_255 = arith.constant 0 : index
    %c0_256 = arith.constant 0 : index
    %209 = vector.load %arg11[%c0_255, %c0_256] : memref<1x64xf32, #tpu.memory_space<vmem>>, vector<1x64xf32>
    %210 = vector.extract_strided_slice %208 {offsets = [0, 0], sizes = [1, 64], strides = [1, 1]} : vector<6x64xf32> to vector<1x64xf32>
    %c0_257 = arith.constant 0 : index
    %c0_258 = arith.constant 0 : index
    %c0_259 = arith.constant 0 : index
    %211 = vector.load %arg10[%c0_257, %c0_258, %c0_259] : memref<4x64x64xf32, #tpu.memory_space<vmem>>, vector<1x64x64xf32>
    %212 = vector.shape_cast %211 : vector<1x64x64xf32> to vector<64x64xf32>
    %cst_260 = arith.constant dense<0.000000e+00> : vector<1x64xf32>
    %213 = tpu.matmul %210, %212, %cst_260 {dimension_numbers = #tpu.dot_dimension_numbers<[1], [0], [0], [1], [0, 0, 1, 1], [], []>} : vector<1x64xf32>, vector<64x64xf32>, vector<1x64xf32> -> vector<1x64xf32>
    %214 = arith.addf %209, %213 : vector<1x64xf32>
    %215 = vector.extract_strided_slice %208 {offsets = [1, 0], sizes = [1, 64], strides = [1, 1]} : vector<6x64xf32> to vector<1x64xf32>
    %c1_261 = arith.constant 1 : index
    %c0_262 = arith.constant 0 : index
    %c0_263 = arith.constant 0 : index
    %216 = vector.load %arg10[%c1_261, %c0_262, %c0_263] : memref<4x64x64xf32, #tpu.memory_space<vmem>>, vector<1x64x64xf32>
    %217 = vector.shape_cast %216 : vector<1x64x64xf32> to vector<64x64xf32>
    %cst_264 = arith.constant dense<0.000000e+00> : vector<1x64xf32>
    %218 = tpu.matmul %215, %217, %cst_264 {dimension_numbers = #tpu.dot_dimension_numbers<[1], [0], [0], [1], [0, 0, 1, 1], [], []>} : vector<1x64xf32>, vector<64x64xf32>, vector<1x64xf32> -> vector<1x64xf32>
    %219 = arith.addf %214, %218 : vector<1x64xf32>
    %220 = vector.extract_strided_slice %208 {offsets = [2, 0], sizes = [1, 64], strides = [1, 1]} : vector<6x64xf32> to vector<1x64xf32>
    %c2_265 = arith.constant 2 : index
    %c0_266 = arith.constant 0 : index
    %c0_267 = arith.constant 0 : index
    %221 = vector.load %arg10[%c2_265, %c0_266, %c0_267] : memref<4x64x64xf32, #tpu.memory_space<vmem>>, vector<1x64x64xf32>
    %222 = vector.shape_cast %221 : vector<1x64x64xf32> to vector<64x64xf32>
    %cst_268 = arith.constant dense<0.000000e+00> : vector<1x64xf32>
    %223 = tpu.matmul %220, %222, %cst_268 {dimension_numbers = #tpu.dot_dimension_numbers<[1], [0], [0], [1], [0, 0, 1, 1], [], []>} : vector<1x64xf32>, vector<64x64xf32>, vector<1x64xf32> -> vector<1x64xf32>
    %224 = arith.addf %219, %223 : vector<1x64xf32>
    %225 = vector.extract_strided_slice %208 {offsets = [3, 0], sizes = [1, 64], strides = [1, 1]} : vector<6x64xf32> to vector<1x64xf32>
    %c3 = arith.constant 3 : index
    %c0_269 = arith.constant 0 : index
    %c0_270 = arith.constant 0 : index
    %226 = vector.load %arg10[%c3, %c0_269, %c0_270] : memref<4x64x64xf32, #tpu.memory_space<vmem>>, vector<1x64x64xf32>
    %227 = vector.shape_cast %226 : vector<1x64x64xf32> to vector<64x64xf32>
    %cst_271 = arith.constant dense<0.000000e+00> : vector<1x64xf32>
    %228 = tpu.matmul %225, %227, %cst_271 {dimension_numbers = #tpu.dot_dimension_numbers<[1], [0], [0], [1], [0, 0, 1, 1], [], []>} : vector<1x64xf32>, vector<64x64xf32>, vector<1x64xf32> -> vector<1x64xf32>
    %229 = arith.addf %224, %228 : vector<1x64xf32>
    %cst_272 = arith.constant dense<0xFF800000> : vector<1xf32>
    %230 = vector.multi_reduction <maximumf>, %229, %cst_272 [1] : vector<1x64xf32> to vector<1xf32>
    %231 = vector.shape_cast %230 : vector<1xf32> to vector<1x1xf32>
    %232 = vector.broadcast %231 : vector<1x1xf32> to vector<1x64xf32>
    %233 = arith.subf %229, %232 : vector<1x64xf32>
    %234 = math.exp %233 : vector<1x64xf32>
    %cst_273 = arith.constant dense<0.000000e+00> : vector<1xf32>
    %235 = vector.multi_reduction <add>, %234, %cst_273 [1] : vector<1x64xf32> to vector<1xf32>
    %236 = vector.shape_cast %235 : vector<1xf32> to vector<1x1xf32>
    %237 = math.log %236 : vector<1x1xf32>
    %238 = vector.broadcast %237 : vector<1x1xf32> to vector<1x64xf32>
    %239 = arith.subf %233, %238 : vector<1x64xf32>
    %c0_274 = arith.constant 0 : index
    %c0_275 = arith.constant 0 : index
    %c0_276 = arith.constant 0 : index
    %240 = vector.load %arg16[%c0_274, %c0_275, %c0_276] : memref<1x1x64xf32, #tpu.memory_space<vmem>>, vector<1x1x64xf32>
    %241 = vector.shape_cast %240 : vector<1x1x64xf32> to vector<1x64xf32>
    %242 = vector.shape_cast %239 : vector<1x64xf32> to vector<1x1x64xf32>
    tpu.vector_store %arg16[%c0_274, %c0_275, %c0_276], %242 {strides = array<i32>} : memref<1x1x64xf32, #tpu.memory_space<vmem>>, vector<1x1x64xf32>,
    %c0_277 = arith.constant 0 : index
    %c0_278 = arith.constant 0 : index
    %243 = vector.load %arg13[%c0_277, %c0_278] : memref<1x64xf32, #tpu.memory_space<vmem>>, vector<1x64xf32>
    %244 = vector.extract_strided_slice %208 {offsets = [4, 0], sizes = [1, 64], strides = [1, 1]} : vector<6x64xf32> to vector<1x64xf32>
    %c0_279 = arith.constant 0 : index
    %c0_280 = arith.constant 0 : index
    %c0_281 = arith.constant 0 : index
    %245 = vector.load %arg12[%c0_279, %c0_280, %c0_281] : memref<2x64x64xf32, #tpu.memory_space<vmem>>, vector<1x64x64xf32>
    %246 = vector.shape_cast %245 : vector<1x64x64xf32> to vector<64x64xf32>
    %cst_282 = arith.constant dense<0.000000e+00> : vector<1x64xf32>
    %247 = tpu.matmul %244, %246, %cst_282 {dimension_numbers = #tpu.dot_dimension_numbers<[1], [0], [0], [1], [0, 0, 1, 1], [], []>} : vector<1x64xf32>, vector<64x64xf32>, vector<1x64xf32> -> vector<1x64xf32>
    %248 = arith.addf %243, %247 : vector<1x64xf32>
    %249 = vector.extract_strided_slice %208 {offsets = [5, 0], sizes = [1, 64], strides = [1, 1]} : vector<6x64xf32> to vector<1x64xf32>
    %c1_283 = arith.constant 1 : index
    %c0_284 = arith.constant 0 : index
    %c0_285 = arith.constant 0 : index
    %250 = vector.load %arg12[%c1_283, %c0_284, %c0_285] : memref<2x64x64xf32, #tpu.memory_space<vmem>>, vector<1x64x64xf32>
    %251 = vector.shape_cast %250 : vector<1x64x64xf32> to vector<64x64xf32>
    %cst_286 = arith.constant dense<0.000000e+00> : vector<1x64xf32>
    %252 = tpu.matmul %249, %251, %cst_286 {dimension_numbers = #tpu.dot_dimension_numbers<[1], [0], [0], [1], [0, 0, 1, 1], [], []>} : vector<1x64xf32>, vector<64x64xf32>, vector<1x64xf32> -> vector<1x64xf32>
    %253 = arith.addf %248, %252 : vector<1x64xf32>
    %cst_287 = arith.constant 0.000000e+00 : f32
    %254 = vector.broadcast %cst_287 : f32 to vector<1x64xf32>
    %255 = arith.maximumf %253, %254 : vector<1x64xf32>
    %c0_288 = arith.constant 0 : index
    %c0_289 = arith.constant 0 : index
    %256 = vector.load %arg14[%c0_288, %c0_289] : memref<64x1xf32, #tpu.memory_space<vmem>>, vector<64x1xf32>
    %cst_290 = arith.constant dense<0.000000e+00> : vector<1x1xf32>
    %257 = tpu.matmul %255, %256, %cst_290 {dimension_numbers = #tpu.dot_dimension_numbers<[1], [0], [0], [1], [0, 0, 1, 1], [], []>} : vector<1x64xf32>, vector<64x1xf32>, vector<1x1xf32> -> vector<1x1xf32>
    %c0_291 = arith.constant 0 : index
    %c0_292 = arith.constant 0 : index
    %258 = vector.load %arg15[%c0_291, %c0_292] : memref<1x1xf32, #tpu.memory_space<vmem>>, vector<1x1xf32>
    %259 = arith.addf %257, %258 : vector<1x1xf32>
    %260 = math.tanh %259 : vector<1x1xf32>
    %c0_293 = arith.constant 0 : index
    %c0_294 = arith.constant 0 : index
    %c0_295 = arith.constant 0 : index
    %261 = vector.load %arg17[%c0_293, %c0_294, %c0_295] : memref<1x1x1xf32, #tpu.memory_space<vmem>>, vector<1x1x1xf32>
    %262 = vector.shape_cast %261 : vector<1x1x1xf32> to vector<1x1xf32>
    %263 = vector.shape_cast %260 : vector<1x1xf32> to vector<1x1x1xf32>
    tpu.vector_store %arg17[%c0_293, %c0_294, %c0_295], %263 {strides = array<i32>} : memref<1x1x1xf32, #tpu.memory_space<vmem>>, vector<1x1x1xf32>,
    return
  }
  func.func @transform_0(%arg0: i32) -> (i32, i32, i32, i32) {
    %c0_i32 = arith.constant 0 : i32
    %c0_i32_0 = arith.constant 0 : i32
    %c0_i32_1 = arith.constant 0 : i32
    %c0_i32_2 = arith.constant 0 : i32
    return %arg0, %c0_i32, %c0_i32_0, %c0_i32_1 : i32, i32, i32, i32
  }
  func.func @transform_1(%arg0: i32) -> (i32, i32, i32, i32) {
    %c0_i32 = arith.constant 0 : i32
    %c0_i32_0 = arith.constant 0 : i32
    %c0_i32_1 = arith.constant 0 : i32
    %c0_i32_2 = arith.constant 0 : i32
    %c0_i32_3 = arith.constant 0 : i32
    return %c0_i32, %c0_i32_0, %c0_i32_1, %c0_i32_2 : i32, i32, i32, i32
  }
  func.func @transform_2(%arg0: i32) -> (i32, i32) {
    %c0_i32 = arith.constant 0 : i32
    %c0_i32_0 = arith.constant 0 : i32
    %c0_i32_1 = arith.constant 0 : i32
    return %c0_i32, %c0_i32_0 : i32, i32
  }
  func.func @transform_3(%arg0: i32) -> (i32, i32, i32, i32) {
    %c0_i32 = arith.constant 0 : i32
    %c0_i32_0 = arith.constant 0 : i32
    %c0_i32_1 = arith.constant 0 : i32
    %c0_i32_2 = arith.constant 0 : i32
    %c0_i32_3 = arith.constant 0 : i32
    return %c0_i32, %c0_i32_0, %c0_i32_1, %c0_i32_2 : i32, i32, i32, i32
  }
  func.func @transform_4(%arg0: i32) -> (i32, i32) {
    %c0_i32 = arith.constant 0 : i32
    %c0_i32_0 = arith.constant 0 : i32
    %c0_i32_1 = arith.constant 0 : i32
    return %c0_i32, %c0_i32_0 : i32, i32
  }
  func.func @transform_5(%arg0: i32) -> (i32, i32, i32, i32) {
    %c0_i32 = arith.constant 0 : i32
    %c0_i32_0 = arith.constant 0 : i32
    %c0_i32_1 = arith.constant 0 : i32
    %c0_i32_2 = arith.constant 0 : i32
    %c0_i32_3 = arith.constant 0 : i32
    return %c0_i32, %c0_i32_0, %c0_i32_1, %c0_i32_2 : i32, i32, i32, i32
  }
  func.func @transform_6(%arg0: i32) -> (i32, i32) {
    %c0_i32 = arith.constant 0 : i32
    %c0_i32_0 = arith.constant 0 : i32
    %c0_i32_1 = arith.constant 0 : i32
    return %c0_i32, %c0_i32_0 : i32, i32
  }
  func.func @transform_7(%arg0: i32) -> (i32, i32) {
    %c0_i32 = arith.constant 0 : i32
    %c0_i32_0 = arith.constant 0 : i32
    %c0_i32_1 = arith.constant 0 : i32
    return %c0_i32, %c0_i32_0 : i32, i32
  }
  func.func @transform_8(%arg0: i32) -> (i32, i32) {
    %c0_i32 = arith.constant 0 : i32
    %c0_i32_0 = arith.constant 0 : i32
    %c0_i32_1 = arith.constant 0 : i32
    return %c0_i32, %c0_i32_0 : i32, i32
  }
  func.func @transform_9(%arg0: i32) -> (i32, i32, i32) {
    %c0_i32 = arith.constant 0 : i32
    %c0_i32_0 = arith.constant 0 : i32
    %c0_i32_1 = arith.constant 0 : i32
    %c0_i32_2 = arith.constant 0 : i32
    return %c0_i32, %c0_i32_0, %c0_i32_1 : i32, i32, i32
  }
  func.func @transform_10(%arg0: i32) -> (i32, i32) {
    %c0_i32 = arith.constant 0 : i32
    %c0_i32_0 = arith.constant 0 : i32
    %c0_i32_1 = arith.constant 0 : i32
    return %c0_i32, %c0_i32_0 : i32, i32
  }
  func.func @transform_11(%arg0: i32) -> (i32, i32, i32) {
    %c0_i32 = arith.constant 0 : i32
    %c0_i32_0 = arith.constant 0 : i32
    %c0_i32_1 = arith.constant 0 : i32
    %c0_i32_2 = arith.constant 0 : i32
    return %c0_i32, %c0_i32_0, %c0_i32_1 : i32, i32, i32
  }
  func.func @transform_12(%arg0: i32) -> (i32, i32) {
    %c0_i32 = arith.constant 0 : i32
    %c0_i32_0 = arith.constant 0 : i32
    %c0_i32_1 = arith.constant 0 : i32
    return %c0_i32, %c0_i32_0 : i32, i32
  }
  func.func @transform_13(%arg0: i32) -> (i32, i32) {
    %c0_i32 = arith.constant 0 : i32
    %c0_i32_0 = arith.constant 0 : i32
    %c0_i32_1 = arith.constant 0 : i32
    return %c0_i32, %c0_i32_0 : i32, i32
  }
  func.func @transform_14(%arg0: i32) -> (i32, i32) {
    %c0_i32 = arith.constant 0 : i32
    %c0_i32_0 = arith.constant 0 : i32
    %c0_i32_1 = arith.constant 0 : i32
    return %c0_i32, %c0_i32_0 : i32, i32
  }
  func.func @transform_15(%arg0: i32) -> (i32, i32, i32) {
    %c0_i32 = arith.constant 0 : i32
    %c0_i32_0 = arith.constant 0 : i32
    %c0_i32_1 = arith.constant 0 : i32
    return %arg0, %c0_i32, %c0_i32_0 : i32, i32, i32
  }
  func.func @transform_16(%arg0: i32) -> (i32, i32, i32) {
    %c0_i32 = arith.constant 0 : i32
    %c0_i32_0 = arith.constant 0 : i32
    %c0_i32_1 = arith.constant 0 : i32
    return %arg0, %c0_i32, %c0_i32_0 : i32, i32, i32
  }
}

</mosaic_0001>

<llo_original>
// kernel: net_forward.1
$region0: #{net_forward.1}
  #allocation0 [shape = 'u32[]', space=smem, size = 0x4, offset = 0x4, fixed_abs, tag = 'smem constant byte address 0x4 - core index']
  #allocation1 [shape = 'u32[144,128]{1,0:T(1,128)}', space=vmem, size = 0x12000, scoped, tag = 'internal scratch']
  #allocation2 [shape = 'f32[10,10,4]{2,1,0:T(8,128)}', space=vmem, size = 0x14000, scoped, tag = 'scratch operand']
  #allocation3 [shape = 'f32[10,10,32]{2,1,0:T(8,128)}', space=vmem, size = 0x14000, scoped, tag = 'scratch operand']
  #allocation4 [shape = 'f32[10,10,64]{2,1,0:T(8,128)}', space=vmem, size = 0x14000, scoped, tag = 'scratch operand']
  #allocation5 [shape = 'f32[1,1]{1,0:T(1,128)S(1)}', space=vmem, size = 0x200, scoped, tag = 'scoped memory for net_forward.1']
  %s0 = inlined_call_operand.vmem [shape: f32[2,8,8,4], index: 0, kind: input, shape index: {}]
  %s1 = inlined_call_operand.hbm [shape: f32[3,3,4,32], index: 1, kind: input, shape index: {}]
  %s2 = inlined_call_operand.vmem [shape: f32[1,32], index: 2, kind: input, shape index: {}]
  %s3 = inlined_call_operand.vmem [shape: f32[3,3,32,64], index: 3, kind: input, shape index: {}]
  %s4 = inlined_call_operand.vmem [shape: f32[1,64], index: 4, kind: input, shape index: {}]
  %s5 = inlined_call_operand.hbm [shape: f32[3,3,64,128], index: 5, kind: input, shape index: {}]
  %s6 = inlined_call_operand.hbm [shape: f32[1,128], index: 6, kind: input, shape index: {}]
  %s7 = inlined_call_operand.vmem [shape: f32[128,6], index: 7, kind: input, shape index: {}]
  %s8 = inlined_call_operand.vmem [shape: f32[1,6], index: 8, kind: input, shape index: {}]
  %s9 = inlined_call_operand.hbm [shape: f32[4,64,64], index: 9, kind: input, shape index: {}]
  %s10 = inlined_call_operand.hbm [shape: f32[1,64], index: 10, kind: input, shape index: {}]
  %s11 = inlined_call_operand.vmem [shape: f32[2,64,64], index: 11, kind: input, shape index: {}]
  %s12 = inlined_call_operand.vmem [shape: f32[1,64], index: 12, kind: input, shape index: {}]
  %s13 = inlined_call_operand.vmem [shape: f32[64,1], index: 13, kind: input, shape index: {}]
  %s14 = inlined_call_operand.<no memory space> [shape: f32[1,1], index: 14, kind: input, shape index: {}]
  %s15 = inlined_call_operand.hbm [shape: f32[2,1,64], index: 15, kind: output, shape index: {0}]
  %s16 = inlined_call_operand.vmem [shape: f32[2,1,1], index: 16, kind: output, shape index: {1}]
  %17 = xla_tuple %s15, %s16
  %s18 = sld [smem:[#allocation0]]
  $region121: #{net_forward.1} parent=0
    _
  %s20 = ssub.s32 1, %s18
  %s21 = scalar_select 0, %s20, %s18
  %v22 = vstv %s14
  %23 = vst [vmem:[#allocation5] sm:$0x1] %v22
  $region1: #{net_forward.1} parent=0
    #allocation6 [shape = 'u8[18432]{0}', space=vmem, size = 0x4800, scoped, tag = 'input window, operand 1, single buffered']
    #allocation7 [shape = 's32[2]{0}', space=sflag, size = 0x8, scoped, tag = 'scoped memory for net_forward.1']
    #allocation8 [shape = 's32[2]{0}', space=sflag, size = 0x8, scoped, tag = 'scoped memory for net_forward.1']
    #allocation9 [shape = 'u8[294912]{0}', space=vmem, size = 0x48000, scoped, tag = 'input window, operand 5, single buffered']
    #allocation10 [shape = 's32[1]{0}', space=sflag, size = 0x4, scoped, tag = 'scoped memory for net_forward.1']
    #allocation11 [shape = 'u8[512]{0}', space=vmem, size = 0x400, scoped, tag = 'input window, operand 6, single buffered']
    #allocation12 [shape = 'u8[131072]{0}', space=vmem, size = 0x20000, scoped, tag = 'input window, operand 9, single buffered']
    #allocation13 [shape = 's32[1]{0}', space=sflag, size = 0x4, scoped, tag = 'scoped memory for net_forward.1']
    #allocation14 [shape = 'u8[512]{0}', space=vmem, size = 0x400, scoped, tag = 'input window, operand 10, single buffered']
    #allocation15 [shape = 'u8[1024]{0}', space=vmem, size = 0x400, scoped, tag = 'output window, operand 0']
    %24 = vsyncpa [#allocation7], 0
    %25 = vsyncpa [#allocation10], 0
    %26 = vsyncpa [#allocation13], 0
    %27 = vsyncpa [#allocation8], 0
    %s28 = scalar_lea.sflag [#allocation8], 1
    %29 = vsyncpa %s28, 0
    loop: start=0, step=1, limit=4
    $region2: #{net_forward.1} parent=1 // loop_pre_header
      _
    $region3: #{net_forward.1} parent=1 // loop_header
      %s31 = sphi 0, %s35
      %p32 = scmp.ge.s32.totalorder %s31, 4
      %s41 = sphi 0, %s43
      %s44 = sphi 0, %s41
      %s45 = sphi 0, %s44
      %s61 = sphi 0, %s45
      %s65 = sphi 0, %s65
      %s67 = sphi 0, %s65
      %s68 = sphi 0, %s67
      %s82 = sphi 0, %s68
      %s86 = sphi 0, %s86
      %s88 = sphi 0, %s86
      %s89 = sphi 0, %s88
      %s103 = sphi 0, %s89
      %s107 = sphi 0, %s107
      %s109 = sphi 0, %s107
      %s110 = sphi 0, %s109
      %s124 = sphi 0, %s110
      %s128 = sphi 0, %s128
      %s130 = sphi 0, %s128
      %s131 = sphi 0, %s130
      %s145 = sphi 0, %s131
      %s149 = sphi 0, %s149
      %s151 = sphi 0, %s149
      %s152 = sphi 0, %s151
      %s166 = sphi 0, %s152
      %s170 = sphi 0, %s170
      %s172 = sphi 0, %s170
      %s173 = sphi 0, %s172
      %s187 = sphi 0, %s173
      %s191 = sphi 0, %s191
      %s193 = sphi 0, %s191
      %s194 = sphi 0, %s193
      %s208 = sphi 0, %s194
      %s212 = sphi 0, %s212
      %s214 = sphi 0, %s212
      %s215 = sphi 0, %s214
      %s229 = sphi 0, %s215
      %s233 = sphi 0, %s233
      %s235 = sphi 0, %s233
      %s236 = sphi 0, %s235
      %s250 = sphi 0, %s236
      %s254 = sphi 0, %s254
      %s256 = sphi 0, %s254
      %s257 = sphi 0, %s256
      %s271 = sphi 0, %s257
      %s275 = sphi 0, %s275
      %s277 = sphi 0, %s275
      %s278 = sphi 0, %s277
      %s292 = sphi 0, %s278
      %s296 = sphi 0, %s296
      %s298 = sphi 0, %s296
      %s299 = sphi 0, %s298
      %s313 = sphi 0, %s299
      %s317 = sphi 0, %s317
      %s319 = sphi 0, %s317
      %s320 = sphi 0, %s319
      %s334 = sphi 0, %s320
      %s338 = sphi 0, %s338
      %s340 = sphi 0, %s338
      %s341 = sphi 0, %s340
      %s355 = sphi 0, %s341
      %s361 = sphi 0, %s363
      %s364 = sphi 0, %s361
      %s365 = sphi 0, %s364
      %s381 = sphi 0, %s365
      %s387 = sphi 0, %s389
      %s390 = sphi 0, %s387
      %s391 = sphi 0, %s390
      %s407 = sphi 0, %s391
    $region4: #{net_forward.1} parent=1 // loop_header_branch
      %34 = sbr.rel (%p32) target = $region8
    $region5: #{net_forward.1} parent=1 // loop_body
      %s36 = ssub.s32 %s31, 1
      %s37 = ssub.s32 %s31, 2
      %s38 = sadd.s32 %s31, 1
      %s39 = ssub.s32 %s31, %s38
      %p40 = scmp.eq.s32.totalorder %s39, 0
      %s42 = sadd.s32 %s41, 1
      %s43 = scalar_select %p40, %s41, %s42
      %p46 = pneg %p40
      %p47 = scmp.eq.s32.totalorder %s31, 1
      %p48 = por %p46, %p47
      %p49 = scmp.ne.s32.totalorder %s41, %s44
      %p50 = scmp.eq.s32.totalorder %s31, 0
      %p51 = por %p49, %p50
      %p52 = scmp.ne.s32.totalorder %s41, %s44
      %p53 = scmp.eq.s32.totalorder %s36, 1
      %p54 = por %p52, %p53
      %p55 = scmp.ne.s32.totalorder %s44, %s45
      %p56 = scmp.eq.s32.totalorder %s36, 0
      %p57 = por %p55, %p56
      %p58 = scmp.ne.s32.totalorder %s44, %s45
      %p59 = scmp.eq.s32.totalorder %s37, 1
      %p60 = por %p58, %p59
      %p62 = scmp.ne.s32.totalorder %s45, %s61
      %p63 = scmp.eq.s32.totalorder %s37, 0
      %p64 = por %p62, %p63
      %s66 = sadd.s32 %s65, 1
      %p69 = scmp.eq.s32.totalorder %s31, 1
      %p70 = scmp.ne.s32.totalorder %s65, %s67
      %p71 = scmp.eq.s32.totalorder %s31, 0
      %p72 = por %p70, %p71
      %p73 = scmp.ne.s32.totalorder %s65, %s67
      %p74 = scmp.eq.s32.totalorder %s36, 1
      %p75 = por %p73, %p74
      %p76 = scmp.ne.s32.totalorder %s67, %s68
      %p77 = scmp.eq.s32.totalorder %s36, 0
      %p78 = por %p76, %p77
      %p79 = scmp.ne.s32.totalorder %s67, %s68
      %p80 = scmp.eq.s32.totalorder %s37, 1
      %p81 = por %p79, %p80
      %p83 = scmp.ne.s32.totalorder %s68, %s82
      %p84 = scmp.eq.s32.totalorder %s37, 0
      %p85 = por %p83, %p84
      %s87 = sadd.s32 %s86, 1
      %p90 = scmp.eq.s32.totalorder %s31, 1
      %p91 = scmp.ne.s32.totalorder %s86, %s88
      %p92 = scmp.eq.s32.totalorder %s31, 0
      %p93 = por %p91, %p92
      %p94 = scmp.ne.s32.totalorder %s86, %s88
      %p95 = scmp.eq.s32.totalorder %s36, 1
      %p96 = por %p94, %p95
      %p97 = scmp.ne.s32.totalorder %s88, %s89
      %p98 = scmp.eq.s32.totalorder %s36, 0
      %p99 = por %p97, %p98
      %p100 = scmp.ne.s32.totalorder %s88, %s89
      %p101 = scmp.eq.s32.totalorder %s37, 1
      %p102 = por %p100, %p101
      %p104 = scmp.ne.s32.totalorder %s89, %s103
      %p105 = scmp.eq.s32.totalorder %s37, 0
      %p106 = por %p104, %p105
      %s108 = sadd.s32 %s107, 1
      %p111 = scmp.eq.s32.totalorder %s31, 1
      %p112 = scmp.ne.s32.totalorder %s107, %s109
      %p113 = scmp.eq.s32.totalorder %s31, 0
      %p114 = por %p112, %p113
      %p115 = scmp.ne.s32.totalorder %s107, %s109
      %p116 = scmp.eq.s32.totalorder %s36, 1
      %p117 = por %p115, %p116
      %p118 = scmp.ne.s32.totalorder %s109, %s110
      %p119 = scmp.eq.s32.totalorder %s36, 0
      %p120 = por %p118, %p119
      %p121 = scmp.ne.s32.totalorder %s109, %s110
      %p122 = scmp.eq.s32.totalorder %s37, 1
      %p123 = por %p121, %p122
      %p125 = scmp.ne.s32.totalorder %s110, %s124
      %p126 = scmp.eq.s32.totalorder %s37, 0
      %p127 = por %p125, %p126
      %s129 = sadd.s32 %s128, 1
      %p132 = scmp.eq.s32.totalorder %s31, 1
      %p133 = scmp.ne.s32.totalorder %s128, %s130
      %p134 = scmp.eq.s32.totalorder %s31, 0
      %p135 = por %p133, %p134
      %p136 = scmp.ne.s32.totalorder %s128, %s130
      %p137 = scmp.eq.s32.totalorder %s36, 1
      %p138 = por %p136, %p137
      %p139 = scmp.ne.s32.totalorder %s130, %s131
      %p140 = scmp.eq.s32.totalorder %s36, 0
      %p141 = por %p139, %p140
      %p142 = scmp.ne.s32.totalorder %s130, %s131
      %p143 = scmp.eq.s32.totalorder %s37, 1
      %p144 = por %p142, %p143
      %p146 = scmp.ne.s32.totalorder %s131, %s145
      %p147 = scmp.eq.s32.totalorder %s37, 0
      %p148 = por %p146, %p147
      %s150 = sadd.s32 %s149, 1
      %p153 = scmp.eq.s32.totalorder %s31, 1
      %p154 = scmp.ne.s32.totalorder %s149, %s151
      %p155 = scmp.eq.s32.totalorder %s31, 0
      %p156 = por %p154, %p155
      %p157 = scmp.ne.s32.totalorder %s149, %s151
      %p158 = scmp.eq.s32.totalorder %s36, 1
      %p159 = por %p157, %p158
      %p160 = scmp.ne.s32.totalorder %s151, %s152
      %p161 = scmp.eq.s32.totalorder %s36, 0
      %p162 = por %p160, %p161
      %p163 = scmp.ne.s32.totalorder %s151, %s152
      %p164 = scmp.eq.s32.totalorder %s37, 1
      %p165 = por %p163, %p164
      %p167 = scmp.ne.s32.totalorder %s152, %s166
      %p168 = scmp.eq.s32.totalorder %s37, 0
      %p169 = por %p167, %p168
      %s171 = sadd.s32 %s170, 1
      %p174 = scmp.eq.s32.totalorder %s31, 1
      %p175 = scmp.ne.s32.totalorder %s170, %s172
      %p176 = scmp.eq.s32.totalorder %s31, 0
      %p177 = por %p175, %p176
      %p178 = scmp.ne.s32.totalorder %s170, %s172
      %p179 = scmp.eq.s32.totalorder %s36, 1
      %p180 = por %p178, %p179
      %p181 = scmp.ne.s32.totalorder %s172, %s173
      %p182 = scmp.eq.s32.totalorder %s36, 0
      %p183 = por %p181, %p182
      %p184 = scmp.ne.s32.totalorder %s172, %s173
      %p185 = scmp.eq.s32.totalorder %s37, 1
      %p186 = por %p184, %p185
      %p188 = scmp.ne.s32.totalorder %s173, %s187
      %p189 = scmp.eq.s32.totalorder %s37, 0
      %p190 = por %p188, %p189
      %s192 = sadd.s32 %s191, 1
      %p195 = scmp.eq.s32.totalorder %s31, 1
      %p196 = scmp.ne.s32.totalorder %s191, %s193
      %p197 = scmp.eq.s32.totalorder %s31, 0
      %p198 = por %p196, %p197
      %p199 = scmp.ne.s32.totalorder %s191, %s193
      %p200 = scmp.eq.s32.totalorder %s36, 1
      %p201 = por %p199, %p200
      %p202 = scmp.ne.s32.totalorder %s193, %s194
      %p203 = scmp.eq.s32.totalorder %s36, 0
      %p204 = por %p202, %p203
      %p205 = scmp.ne.s32.totalorder %s193, %s194
      %p206 = scmp.eq.s32.totalorder %s37, 1
      %p207 = por %p205, %p206
      %p209 = scmp.ne.s32.totalorder %s194, %s208
      %p210 = scmp.eq.s32.totalorder %s37, 0
      %p211 = por %p209, %p210
      %s213 = sadd.s32 %s212, 1
      %p216 = scmp.eq.s32.totalorder %s31, 1
      %p217 = scmp.ne.s32.totalorder %s212, %s214
      %p218 = scmp.eq.s32.totalorder %s31, 0
      %p219 = por %p217, %p218
      %p220 = scmp.ne.s32.totalorder %s212, %s214
      %p221 = scmp.eq.s32.totalorder %s36, 1
      %p222 = por %p220, %p221
      %p223 = scmp.ne.s32.totalorder %s214, %s215
      %p224 = scmp.eq.s32.totalorder %s36, 0
      %p225 = por %p223, %p224
      %p226 = scmp.ne.s32.totalorder %s214, %s215
      %p227 = scmp.eq.s32.totalorder %s37, 1
      %p228 = por %p226, %p227
      %p230 = scmp.ne.s32.totalorder %s215, %s229
      %p231 = scmp.eq.s32.totalorder %s37, 0
      %p232 = por %p230, %p231
      %s234 = sadd.s32 %s233, 1
      %p237 = scmp.eq.s32.totalorder %s31, 1
      %p238 = scmp.ne.s32.totalorder %s233, %s235
      %p239 = scmp.eq.s32.totalorder %s31, 0
      %p240 = por %p238, %p239
      %p241 = scmp.ne.s32.totalorder %s233, %s235
      %p242 = scmp.eq.s32.totalorder %s36, 1
      %p243 = por %p241, %p242
      %p244 = scmp.ne.s32.totalorder %s235, %s236
      %p245 = scmp.eq.s32.totalorder %s36, 0
      %p246 = por %p244, %p245
      %p247 = scmp.ne.s32.totalorder %s235, %s236
      %p248 = scmp.eq.s32.totalorder %s37, 1
      %p249 = por %p247, %p248
      %p251 = scmp.ne.s32.totalorder %s236, %s250
      %p252 = scmp.eq.s32.totalorder %s37, 0
      %p253 = por %p251, %p252
      %s255 = sadd.s32 %s254, 1
      %p258 = scmp.eq.s32.totalorder %s31, 1
      %p259 = scmp.ne.s32.totalorder %s254, %s256
      %p260 = scmp.eq.s32.totalorder %s31, 0
      %p261 = por %p259, %p260
      %p262 = scmp.ne.s32.totalorder %s254, %s256
      %p263 = scmp.eq.s32.totalorder %s36, 1
      %p264 = por %p262, %p263
      %p265 = scmp.ne.s32.totalorder %s256, %s257
      %p266 = scmp.eq.s32.totalorder %s36, 0
      %p267 = por %p265, %p266
      %p268 = scmp.ne.s32.totalorder %s256, %s257
      %p269 = scmp.eq.s32.totalorder %s37, 1
      %p270 = por %p268, %p269
      %p272 = scmp.ne.s32.totalorder %s257, %s271
      %p273 = scmp.eq.s32.totalorder %s37, 0
      %p274 = por %p272, %p273
      %s276 = sadd.s32 %s275, 1
      %p279 = scmp.eq.s32.totalorder %s31, 1
      %p280 = scmp.ne.s32.totalorder %s275, %s277
      %p281 = scmp.eq.s32.totalorder %s31, 0
      %p282 = por %p280, %p281
      %p283 = scmp.ne.s32.totalorder %s275, %s277
      %p284 = scmp.eq.s32.totalorder %s36, 1
      %p285 = por %p283, %p284
      %p286 = scmp.ne.s32.totalorder %s277, %s278
      %p287 = scmp.eq.s32.totalorder %s36, 0
      %p288 = por %p286, %p287
      %p289 = scmp.ne.s32.totalorder %s277, %s278
      %p290 = scmp.eq.s32.totalorder %s37, 1
      %p291 = por %p289, %p290
      %p293 = scmp.ne.s32.totalorder %s278, %s292
      %p294 = scmp.eq.s32.totalorder %s37, 0
      %p295 = por %p293, %p294
      %s297 = sadd.s32 %s296, 1
      %p300 = scmp.eq.s32.totalorder %s31, 1
      %p301 = scmp.ne.s32.totalorder %s296, %s298
      %p302 = scmp.eq.s32.totalorder %s31, 0
      %p303 = por %p301, %p302
      %p304 = scmp.ne.s32.totalorder %s296, %s298
      %p305 = scmp.eq.s32.totalorder %s36, 1
      %p306 = por %p304, %p305
      %p307 = scmp.ne.s32.totalorder %s298, %s299
      %p308 = scmp.eq.s32.totalorder %s36, 0
      %p309 = por %p307, %p308
      %p310 = scmp.ne.s32.totalorder %s298, %s299
      %p311 = scmp.eq.s32.totalorder %s37, 1
      %p312 = por %p310, %p311
      %p314 = scmp.ne.s32.totalorder %s299, %s313
      %p315 = scmp.eq.s32.totalorder %s37, 0
      %p316 = por %p314, %p315
      %s318 = sadd.s32 %s317, 1
      %p321 = scmp.eq.s32.totalorder %s31, 1
      %p322 = scmp.ne.s32.totalorder %s317, %s319
      %p323 = scmp.eq.s32.totalorder %s31, 0
      %p324 = por %p322, %p323
      %p325 = scmp.ne.s32.totalorder %s317, %s319
      %p326 = scmp.eq.s32.totalorder %s36, 1
      %p327 = por %p325, %p326
      %p328 = scmp.ne.s32.totalorder %s319, %s320
      %p329 = scmp.eq.s32.totalorder %s36, 0
      %p330 = por %p328, %p329
      %p331 = scmp.ne.s32.totalorder %s319, %s320
      %p332 = scmp.eq.s32.totalorder %s37, 1
      %p333 = por %p331, %p332
      %p335 = scmp.ne.s32.totalorder %s320, %s334
      %p336 = scmp.eq.s32.totalorder %s37, 0
      %p337 = por %p335, %p336
      %s339 = sadd.s32 %s338, 1
      %p342 = scmp.eq.s32.totalorder %s31, 1
      %p343 = scmp.ne.s32.totalorder %s338, %s340
      %p344 = scmp.eq.s32.totalorder %s31, 0
      %p345 = por %p343, %p344
      %p346 = scmp.ne.s32.totalorder %s338, %s340
      %p347 = scmp.eq.s32.totalorder %s36, 1
      %p348 = por %p346, %p347
      %p349 = scmp.ne.s32.totalorder %s340, %s341
      %p350 = scmp.eq.s32.totalorder %s36, 0
      %p351 = por %p349, %p350
      %p352 = scmp.ne.s32.totalorder %s340, %s341
      %p353 = scmp.eq.s32.totalorder %s37, 1
      %p354 = por %p352, %p353
      %p356 = scmp.ne.s32.totalorder %s341, %s355
      %p357 = scmp.eq.s32.totalorder %s37, 0
      %p358 = por %p356, %p357
      %s359 = ssub.s32 %s31, %s38
      %p360 = scmp.eq.s32.totalorder %s359, 0
      %s362 = sadd.s32 %s361, 1
      %s363 = scalar_select %p360, %s361, %s362
      %p366 = pneg %p360
      %p367 = scmp.eq.s32.totalorder %s31, 1
      %p368 = por %p366, %p367
      %p369 = scmp.ne.s32.totalorder %s361, %s364
      %p370 = scmp.eq.s32.totalorder %s31, 0
      %p371 = por %p369, %p370
      %p372 = scmp.ne.s32.totalorder %s361, %s364
      %p373 = scmp.eq.s32.totalorder %s36, 1
      %p374 = por %p372, %p373
      %p375 = scmp.ne.s32.totalorder %s364, %s365
      %p376 = scmp.eq.s32.totalorder %s36, 0
      %p377 = por %p375, %p376
      %p378 = scmp.ne.s32.totalorder %s364, %s365
      %p379 = scmp.eq.s32.totalorder %s37, 1
      %p380 = por %p378, %p379
      %p382 = scmp.ne.s32.totalorder %s365, %s381
      %p383 = scmp.eq.s32.totalorder %s37, 0
      %p384 = por %p382, %p383
      %s385 = ssub.s32 %s31, %s38
      %p386 = scmp.eq.s32.totalorder %s385, 0
      %s388 = sadd.s32 %s387, 1
      %s389 = scalar_select %p386, %s387, %s388
      %p392 = pneg %p386
      %p393 = scmp.eq.s32.totalorder %s31, 1
      %p394 = por %p392, %p393
      %p395 = scmp.ne.s32.totalorder %s387, %s390
      %p396 = scmp.eq.s32.totalorder %s31, 0
      %p397 = por %p395, %p396
      %p398 = scmp.ne.s32.totalorder %s387, %s390
      %p399 = scmp.eq.s32.totalorder %s36, 1
      %p400 = por %p398, %p399
      %p401 = scmp.ne.s32.totalorder %s390, %s391
      %p402 = scmp.eq.s32.totalorder %s36, 0
      %p403 = por %p401, %p402
      %p404 = scmp.ne.s32.totalorder %s390, %s391
      %p405 = scmp.eq.s32.totalorder %s37, 1
      %p406 = por %p404, %p405
      %p408 = scmp.ne.s32.totalorder %s391, %s407
      %p409 = scmp.eq.s32.totalorder %s37, 0
      %p410 = por %p408, %p409
      %p411 = scmp.le.s32.totalorder 1, %s31
      %p412 = scmp.lt.s32.totalorder %s31, 3
      %p413 = pnand %p411, %p412
      %p414 = pneg %p413
      // Predicated region
      $region9: #{net_forward.1} parent=5 // pred_check
        _
      $region10: #{net_forward.1} parent=5 // pred_check_branch
        %416 = sbr.rel (%p413) target = $region12
      $region11: #{net_forward.1} parent=5 // pred_region
        %s417 = ssub.s32 %s31, 1
        // Predicated region
        $region13: #{net_forward.1} parent=11 // pred_check
          %p418 = pneg %p78
        $region14: #{net_forward.1} parent=11 // pred_check_branch
          %420 = sbr.rel (%p418) target = $region16
        $region15: #{net_forward.1} parent=11 // pred_region
          %s422 = ssub.s32 576, 576
          %423 = vsyncadd [#allocation7], %s422
          %s424 = sshll.u32 [#allocation6], 4
          %s425 = int_to_ptr.vmem [resolvable:$true] %s424
          %430 = dma.hbm_to_vmem [thread:$0]  %s1, 576, %s425, [#allocation7], 64, 64, 4
        $region16: #{net_forward.1} parent=11 // pred_fallthru
          _
        // Predicated region
        $region17: #{net_forward.1} parent=11 // pred_check
          %p431 = pneg %p99
        $region18: #{net_forward.1} parent=11 // pred_check_branch
          %433 = sbr.rel (%p431) target = $region20
        $region19: #{net_forward.1} parent=11 // pred_region
          _
        $region20: #{net_forward.1} parent=11 // pred_fallthru
          _
        // Predicated region
        $region21: #{net_forward.1} parent=11 // pred_check
          %p434 = pneg %p120
        $region22: #{net_forward.1} parent=11 // pred_check_branch
          %436 = sbr.rel (%p434) target = $region24
        $region23: #{net_forward.1} parent=11 // pred_region
          _
        $region24: #{net_forward.1} parent=11 // pred_fallthru
          _
        // Predicated region
        $region25: #{net_forward.1} parent=11 // pred_check
          %p437 = pneg %p141
        $region26: #{net_forward.1} parent=11 // pred_check_branch
          %439 = sbr.rel (%p437) target = $region28
        $region27: #{net_forward.1} parent=11 // pred_region
          _
        $region28: #{net_forward.1} parent=11 // pred_fallthru
          _
        // Predicated region
        $region29: #{net_forward.1} parent=11 // pred_check
          %p440 = pneg %p162
        $region30: #{net_forward.1} parent=11 // pred_check_branch
          %442 = sbr.rel (%p440) target = $region32
        $region31: #{net_forward.1} parent=11 // pred_region
          %s444 = ssub.s32 9216, 9216
          %445 = vsyncadd [#allocation10], %s444
          %s446 = sshll.u32 [#allocation9], 4
          %s447 = int_to_ptr.vmem [resolvable:$true] %s446
          %452 = dma.hbm_to_vmem [thread:$0]  %s5, 9216, %s447, [#allocation10], 128, 128, 8
        $region32: #{net_forward.1} parent=11 // pred_fallthru
          _
        // Predicated region
        $region33: #{net_forward.1} parent=11 // pred_check
          %p453 = pneg %p183
        $region34: #{net_forward.1} parent=11 // pred_check_branch
          %455 = sbr.rel (%p453) target = $region36
        $region35: #{net_forward.1} parent=11 // pred_region
          %s457 = ssub.s32 16, 16
          %458 = vsyncadd [#allocation10], %s457
          %s460 = sshll.u32 [#allocation11], 4
          %s461 = int_to_ptr.vmem [resolvable:$true] %s460
          %463 = dma.hbm_to_vmem [thread:$0]  %s6, 16, %s461, [#allocation10]
        $region36: #{net_forward.1} parent=11 // pred_fallthru
          _
        // Predicated region
        $region37: #{net_forward.1} parent=11 // pred_check
          %p464 = pneg %p204
        $region38: #{net_forward.1} parent=11 // pred_check_branch
          %466 = sbr.rel (%p464) target = $region40
        $region39: #{net_forward.1} parent=11 // pred_region
          _
        $region40: #{net_forward.1} parent=11 // pred_fallthru
          _
        // Predicated region
        $region41: #{net_forward.1} parent=11 // pred_check
          %p467 = pneg %p225
        $region42: #{net_forward.1} parent=11 // pred_check_branch
          %469 = sbr.rel (%p467) target = $region44
        $region43: #{net_forward.1} parent=11 // pred_region
          _
        $region44: #{net_forward.1} parent=11 // pred_fallthru
          _
        // Predicated region
        $region45: #{net_forward.1} parent=11 // pred_check
          %p470 = pneg %p246
        $region46: #{net_forward.1} parent=11 // pred_check_branch
          %472 = sbr.rel (%p470) target = $region48
        $region47: #{net_forward.1} parent=11 // pred_region
          %s474 = ssub.s32 4096, 4096
          %475 = vsyncadd [#allocation13], %s474
          %s476 = sshll.u32 [#allocation12], 4
          %s477 = int_to_ptr.vmem [resolvable:$true] %s476
          %482 = dma.hbm_to_vmem [thread:$0]  %s9, 4096, %s477, [#allocation13], 128, 128, 8
        $region48: #{net_forward.1} parent=11 // pred_fallthru
          _
        // Predicated region
        $region49: #{net_forward.1} parent=11 // pred_check
          %p483 = pneg %p267
        $region50: #{net_forward.1} parent=11 // pred_check_branch
          %485 = sbr.rel (%p483) target = $region52
        $region51: #{net_forward.1} parent=11 // pred_region
          %s487 = ssub.s32 16, 16
          %488 = vsyncadd [#allocation13], %s487
          %s490 = sshll.u32 [#allocation14], 4
          %s491 = int_to_ptr.vmem [resolvable:$true] %s490
          %493 = dma.hbm_to_vmem [thread:$0]  %s10, 16, %s491, [#allocation13]
        $region52: #{net_forward.1} parent=11 // pred_fallthru
          _
        // Predicated region
        $region53: #{net_forward.1} parent=11 // pred_check
          %p494 = pneg %p288
        $region54: #{net_forward.1} parent=11 // pred_check_branch
          %496 = sbr.rel (%p494) target = $region56
        $region55: #{net_forward.1} parent=11 // pred_region
          _
        $region56: #{net_forward.1} parent=11 // pred_fallthru
          _
        // Predicated region
        $region57: #{net_forward.1} parent=11 // pred_check
          %p497 = pneg %p309
        $region58: #{net_forward.1} parent=11 // pred_check_branch
          %499 = sbr.rel (%p497) target = $region60
        $region59: #{net_forward.1} parent=11 // pred_region
          _
        $region60: #{net_forward.1} parent=11 // pred_fallthru
          _
        // Predicated region
        $region61: #{net_forward.1} parent=11 // pred_check
          %p500 = pneg %p330
        $region62: #{net_forward.1} parent=11 // pred_check_branch
          %502 = sbr.rel (%p500) target = $region64
        $region63: #{net_forward.1} parent=11 // pred_region
          _
        $region64: #{net_forward.1} parent=11 // pred_fallthru
          _
        // Predicated region
        $region65: #{net_forward.1} parent=11 // pred_check
          %p503 = pneg %p351
        $region66: #{net_forward.1} parent=11 // pred_check_branch
          %505 = sbr.rel (%p503) target = $region68
        $region67: #{net_forward.1} parent=11 // pred_region
          _
        $region68: #{net_forward.1} parent=11 // pred_fallthru
          _
      $region12: #{net_forward.1} parent=5 // pred_fallthru
        _
      %p506 = scmp.lt.s32.totalorder %s31, 2
      // Predicated region
      $region69: #{net_forward.1} parent=5 // pred_check
        %p507 = pneg %p506
      $region70: #{net_forward.1} parent=5 // pred_check_branch
        %509 = sbr.rel (%p507) target = $region72
      $region71: #{net_forward.1} parent=5 // pred_region
        // Predicated region
        $region73: #{net_forward.1} parent=71 // pred_check
          %p510 = pneg %p51
        $region74: #{net_forward.1} parent=71 // pred_check_branch
          %512 = sbr.rel (%p510) target = $region76
        $region75: #{net_forward.1} parent=71 // pred_region
          %p513 = scmp.lt.s32.totalorder %s31, 1
          %s514 = scalar_select %p513, %s31, 1
          %s515 = smul.addr %s514, 8
          %s516 = smul.addr %s515, 8
          %s517 = scalar_lea.vmem %s0, %s516
        $region76: #{net_forward.1} parent=71 // pred_fallthru
          _
      $region72: #{net_forward.1} parent=5 // pred_fallthru
        _
      %p518 = scmp.le.s32.totalorder 1, %s31
      %p519 = scmp.lt.s32.totalorder %s31, 3
      %p520 = pnand %p518, %p519
      %p521 = pneg %p520
      // Predicated region
      $region77: #{net_forward.1} parent=5 // pred_check
        _
      $region78: #{net_forward.1} parent=5 // pred_check_branch
        %523 = sbr.rel (%p520) target = $region80
      $region79: #{net_forward.1} parent=5 // pred_region
        %s524 = ssub.s32 %s31, 1
        // Predicated region
        $region81: #{net_forward.1} parent=79 // pred_check
          %p525 = pneg %p78
        $region82: #{net_forward.1} parent=79 // pred_check_branch
          %527 = sbr.rel (%p525) target = $region84
        $region83: #{net_forward.1} parent=79 // pred_region
          %528 = dma.done [#allocation7], 576
        $region84: #{net_forward.1} parent=79 // pred_fallthru
          _
        // Predicated region
        $region85: #{net_forward.1} parent=79 // pred_check
          %p529 = pneg %p162
        $region86: #{net_forward.1} parent=79 // pred_check_branch
          %531 = sbr.rel (%p529) target = $region88
        $region87: #{net_forward.1} parent=79 // pred_region
          %532 = dma.done [#allocation10], 9216
        $region88: #{net_forward.1} parent=79 // pred_fallthru
          _
        // Predicated region
        $region89: #{net_forward.1} parent=79 // pred_check
          %p533 = pneg %p183
        $region90: #{net_forward.1} parent=79 // pred_check_branch
          %535 = sbr.rel (%p533) target = $region92
        $region91: #{net_forward.1} parent=79 // pred_region
          %536 = dma.done [#allocation10], 16
        $region92: #{net_forward.1} parent=79 // pred_fallthru
          _
        // Predicated region
        $region93: #{net_forward.1} parent=79 // pred_check
          %p537 = pneg %p246
        $region94: #{net_forward.1} parent=79 // pred_check_branch
          %539 = sbr.rel (%p537) target = $region96
        $region95: #{net_forward.1} parent=79 // pred_region
          %540 = dma.done [#allocation13], 4096
        $region96: #{net_forward.1} parent=79 // pred_fallthru
          _
        // Predicated region
        $region97: #{net_forward.1} parent=79 // pred_check
          %p541 = pneg %p267
        $region98: #{net_forward.1} parent=79 // pred_check_branch
          %543 = sbr.rel (%p541) target = $region100
        $region99: #{net_forward.1} parent=79 // pred_region
          %544 = dma.done [#allocation13], 16
        $region100: #{net_forward.1} parent=79 // pred_fallthru
          _
        %p545 = scmp.lt.s32.totalorder %s36, 1
        %s546 = scalar_select %p545, %s36, 1
        %s547 = smul.addr %s546, 8
        %s548 = smul.addr %s547, 8
        %s549 = scalar_lea.vmem %s0, %s548
        %p550 = pneg %p57
        %p551 = pneg %p54
        %p552 = pneg %p78
        %p553 = pneg %p75
        %p554 = pneg %p99
        %p555 = pneg %p96
        %p556 = pneg %p120
        %p557 = pneg %p117
        %p558 = pneg %p141
        %p559 = pneg %p138
        %p560 = pneg %p162
        %p561 = pneg %p159
        %p562 = pneg %p183
        %p563 = pneg %p180
        %p564 = pneg %p204
        %p565 = pneg %p201
        %p566 = pneg %p225
        %p567 = pneg %p222
        %p568 = pneg %p246
        %p569 = pneg %p243
        %p570 = pneg %p267
        %p571 = pneg %p264
        %p572 = pneg %p288
        %p573 = pneg %p285
        %p574 = pneg %p309
        %p575 = pneg %p306
        %p576 = pneg %p330
        %p577 = pneg %p327
        %p578 = pneg %p351
        %p579 = pneg %p348
        %p580 = pneg %p377
        %p581 = pneg %p374
        %s582 = sand.u32 %s364, 1
        %s583 = scalar_lea.sflag [#allocation8], %s582
        %s584 = sand.u32 %s364, 1
        %s585 = scalar_lea.vmem [#allocation15], %s584
        %p586 = pneg %p403
        %p587 = pneg %p400
        %p588 = scmp.lt.s32.totalorder %s36, 1
        %s589 = scalar_select %p588, %s36, 1
        %s590 = scalar_lea.vmem %s16, %s589
        %p591 = scmp.lt.s32.totalorder %s36, 1
        %s592 = scalar_select %p591, %s36, 1
        %s593 = smul.addr %s592, 8
        %s594 = smul.addr %s593, 8
        %s595 = scalar_lea.vmem %s0, %s594
        %p596 = scmp.lt.s32.totalorder %s36, 1
        %s597 = scalar_select %p596, %s36, 1
        %s598 = scalar_lea.vmem %s16, %s597
        %vm599 = vcmask 31744
        %600 = vst.msk [vmem:[#allocation2] sm:$0xff] %vm599, 0.0
        %vm601 = vcmask 25600
        %602 = vst.msk [vmem:[#allocation2 + $0x8] sm:$0x3] %vm601, 0.0
        %603 = vst.msk [vmem:[#allocation2 + $0x10] sm:$0xff] %vm599, 0.0
        %604 = vst.msk [vmem:[#allocation2 + $0x18] sm:$0x3] %vm601, 0.0
        %605 = vst.msk [vmem:[#allocation2 + $0x20] sm:$0xff] %vm599, 0.0
        %606 = vst.msk [vmem:[#allocation2 + $0x28] sm:$0x3] %vm601, 0.0
        %607 = vst.msk [vmem:[#allocation2 + $0x30] sm:$0xff] %vm599, 0.0
        %608 = vst.msk [vmem:[#allocation2 + $0x38] sm:$0x3] %vm601, 0.0
        %609 = vst.msk [vmem:[#allocation2 + $0x40] sm:$0xff] %vm599, 0.0
        %610 = vst.msk [vmem:[#allocation2 + $0x48] sm:$0x3] %vm601, 0.0
        %611 = vst.msk [vmem:[#allocation2 + $0x50] sm:$0xff] %vm599, 0.0
        %612 = vst.msk [vmem:[#allocation2 + $0x58] sm:$0x3] %vm601, 0.0
        %613 = vst.msk [vmem:[#allocation2 + $0x60] sm:$0xff] %vm599, 0.0
        %614 = vst.msk [vmem:[#allocation2 + $0x68] sm:$0x3] %vm601, 0.0
        %615 = vst.msk [vmem:[#allocation2 + $0x70] sm:$0xff] %vm599, 0.0
        %616 = vst.msk [vmem:[#allocation2 + $0x78] sm:$0x3] %vm601, 0.0
        %617 = vst.msk [vmem:[#allocation2 + $0x80] sm:$0xff] %vm599, 0.0
        %618 = vst.msk [vmem:[#allocation2 + $0x88] sm:$0x3] %vm601, 0.0
        %619 = vst.msk [vmem:[#allocation2 + $0x90] sm:$0xff] %vm599, 0.0
        %620 = vst.msk [vmem:[#allocation2 + $0x98] sm:$0x3] %vm601, 0.0
        %v621 = vld [vmem:[%s595] sm:$0xff]
        %v622 = vld [vmem:[%s595 + $0x8] sm:$0xff]
        %v623 = vld [vmem:[%s595 + $0x10] sm:$0xff]
        %v624 = vld [vmem:[%s595 + $0x18] sm:$0xff]
        %v625 = vld [vmem:[%s595 + $0x20] sm:$0xff]
        %v626 = vld [vmem:[%s595 + $0x28] sm:$0xff]
        %v627 = vld [vmem:[%s595 + $0x30] sm:$0xff]
        %v628 = vld [vmem:[%s595 + $0x38] sm:$0xff]
        %s629 = scalar_lea.vmem [#allocation2], 16
        %630 = vst.msk [vmem:[%s629 + $0x1] sm:$0xff] %vm599, %v621
        %631 = vst.msk [vmem:[%s629 + $0x11] sm:$0xff] %vm599, %v622
        %632 = vst.msk [vmem:[%s629 + $0x21] sm:$0xff] %vm599, %v623
        %633 = vst.msk [vmem:[%s629 + $0x31] sm:$0xff] %vm599, %v624
        %634 = vst.msk [vmem:[%s629 + $0x41] sm:$0xff] %vm599, %v625
        %635 = vst.msk [vmem:[%s629 + $0x51] sm:$0xff] %vm599, %v626
        %636 = vst.msk [vmem:[%s629 + $0x61] sm:$0xff] %vm599, %v627
        %637 = vst.msk [vmem:[%s629 + $0x71] sm:$0xff] %vm599, %v628
        %v638 = vld [vmem:[#allocation2] sm:$0xff]
        %v639 = vld [vmem:[#allocation2 + $0x10] sm:$0xff]
        %v640 = vld [vmem:[#allocation2 + $0x20] sm:$0xff]
        %v641 = vld [vmem:[#allocation2 + $0x30] sm:$0xff]
        %v642 = vld [vmem:[#allocation2 + $0x40] sm:$0xff]
        %v643 = vld [vmem:[#allocation2 + $0x50] sm:$0xff]
        %v644 = vld [vmem:[#allocation2 + $0x60] sm:$0xff]
        %v645 = vld [vmem:[#allocation2 + $0x70] sm:$0xff]
        %v646 = vld [vmem:[#allocation6] sm:$0xf]
        %v647 = vld [vmem:[#allocation2 + $0x1] sm:$0xff]
        %v648 = vld [vmem:[#allocation2 + $0x11] sm:$0xff]
        %v649 = vld [vmem:[#allocation2 + $0x21] sm:$0xff]
        %v650 = vld [vmem:[#allocation2 + $0x31] sm:$0xff]
        %v651 = vld [vmem:[#allocation2 + $0x41] sm:$0xff]
        %v652 = vld [vmem:[#allocation2 + $0x51] sm:$0xff]
        %v653 = vld [vmem:[#allocation2 + $0x61] sm:$0xff]
        %v654 = vld [vmem:[#allocation2 + $0x71] sm:$0xff]
        %s655 = scalar_lea.vmem [#allocation6], 4
        %v656 = vld [vmem:[%s655] sm:$0xf]
        %v658 = vsel %vm599, %v647, 0
        %v661 = vsel %vm599, %v648, 0
        %v664 = vsel %vm599, %v649, 0
        %v667 = vsel %vm599, %v650, 0
        %v670 = vsel %vm599, %v651, 0
        %v673 = vsel %vm599, %v652, 0
        %v676 = vsel %vm599, %v653, 0
        %v679 = vsel %vm599, %v654, 0
        %vm681 = vcmask 1043456
        %v683 = vsel %vm681, %v656, 0
        %685 = vmatprep.subr.mxu0 0.0
        %686 = vmatpush1.msra.mxu0 %v683
        %687 = vmatprep.subr.mxu0 0.0
        %688 = vmatpush1.msra.mxu0 0.0
        %689 = vmatprep.subr.mxu0 0.0
        %690 = vmatpush1.msra.mxu0 0.0
        %691 = vmatprep.subr.mxu0 0.0
        %692 = vmatpush1.msra.mxu0 0.0
        %693 = vmatprep.subr.mxu0 0.0
        %694 = vmatpush1.msra.mxu0 0.0
        %695 = vmatprep.subr.mxu0 0.0
        %696 = vmatpush1.msra.mxu0 0.0
        %697 = vmatprep.subr.mxu0 0.0
        %698 = vmatpush1.msra.mxu0 0.0
        %699 = vmatprep.subr.mxu0 0.0
        %700 = vmatpush1.msra.mxu0 0.0
        %701 = vmatprep.subr.mxu0 0.0
        %702 = vmatpush1.msra.mxu0 0.0
        %703 = vmatprep.subr.mxu0 0.0
        %704 = vmatpush1.msra.mxu0 0.0
        %705 = vmatprep.subr.mxu0 0.0
        %706 = vmatpush1.msra.mxu0 0.0
        %707 = vmatprep.subr.mxu0 0.0
        %708 = vmatpush1.msra.mxu0 0.0
        %709 = vmatprep.subr.mxu0 0.0
        %710 = vmatpush1.msra.mxu0 0.0
        %711 = vmatprep.subr.mxu0 0.0
        %712 = vmatpush1.msra.mxu0 0.0
        %713 = vmatprep.subr.mxu0 0.0
        %714 = vmatpush1.msra.mxu0 0.0
        %715 = vmatprep.subr.mxu0 0.0
        %716 = vmatpush1.msra.mxu0 0.0
        %717 = vmatprep.subr.mxu0 0.0
        %718 = vmatpush1.msra.mxu0 0.0
        %719 = vmatprep.subr.mxu0 0.0
        %720 = vmatpush1.msra.mxu0 0.0
        %721 = vmatprep.subr.mxu0 0.0
        %722 = vmatpush1.msra.mxu0 0.0
        %723 = vmatprep.subr.mxu0 0.0
        %724 = vmatpush1.msra.mxu0 0.0
        %725 = vmatprep.subr.mxu0 0.0
        %726 = vmatpush1.msra.mxu0 0.0
        %727 = vmatprep.subr.mxu0 0.0
        %728 = vmatpush1.msra.mxu0 0.0
        %729 = vmatprep.subr.mxu0 0.0
        %730 = vmatpush1.msra.mxu0 0.0
        %731 = vmatprep.subr.mxu0 0.0
        %732 = vmatpush1.msra.mxu0 0.0
        %733 = vmatprep.subr.mxu0 0.0
        %734 = vmatpush1.msra.mxu0 0.0
        %735 = vmatprep.subr.mxu0 0.0
        %736 = vmatpush1.msra.mxu0 0.0
        %737 = vmatprep.subr.mxu0 0.0
        %738 = vmatpush1.msra.mxu0 0.0
        %739 = vmatprep.subr.mxu0 0.0
        %740 = vmatpush1.msra.mxu0 0.0
        %741 = vmatprep.subr.mxu0 0.0
        %742 = vmatpush1.msra.mxu0 0.0
        %743 = vmatprep.subr.mxu0 0.0
        %744 = vmatpush1.msra.mxu0 0.0
        %745 = vmatprep.subr.mxu0 0.0
        %746 = vmatpush1.msra.mxu0 0.0
        %747 = vmatprep.subr.mxu0 0.0
        %748 = vmatpush1.msra.mxu0 0.0
        %749 = vmatprep.mubr.f32.mxu0 0.0
        %750 = vmatmul.mubr.f32.gmra.mrb[0].mxu0 %v658
        %v751 = vpop.f32.mrb[0].mxu0
        %v752 = vadd.f32 0.0, %v751
        %v753 = vpop.f32.mrb[0].mxu0
        %754 = vmatprep.mubr.f32.mxu0 0.0
        %755 = vmatmul.mubr.f32.gmra.mrb[0].mxu0 %v661
        %v756 = vpop.f32.mrb[0].mxu0
        %v757 = vadd.f32 0.0, %v756
        %v758 = vpop.f32.mrb[0].mxu0
        %759 = vmatprep.mubr.f32.mxu0 0.0
        %760 = vmatmul.mubr.f32.gmra.mrb[0].mxu0 %v664
        %v761 = vpop.f32.mrb[0].mxu0
        %v762 = vadd.f32 0.0, %v761
        %v763 = vpop.f32.mrb[0].mxu0
        %764 = vmatprep.mubr.f32.mxu0 0.0
        %765 = vmatmul.mubr.f32.gmra.mrb[0].mxu0 %v667
        %v766 = vpop.f32.mrb[0].mxu0
        %v767 = vadd.f32 0.0, %v766
        %v768 = vpop.f32.mrb[0].mxu0
        %769 = vmatprep.mubr.f32.mxu0 0.0
        %770 = vmatmul.mubr.f32.gmra.mrb[0].mxu0 %v670
        %v771 = vpop.f32.mrb[0].mxu0
        %v772 = vadd.f32 0.0, %v771
        %v773 = vpop.f32.mrb[0].mxu0
        %774 = vmatprep.mubr.f32.mxu0 0.0
        %775 = vmatmul.mubr.f32.gmra.mrb[0].mxu0 %v673
        %v776 = vpop.f32.mrb[0].mxu0
        %v777 = vadd.f32 0.0, %v776
        %v778 = vpop.f32.mrb[0].mxu0
        %779 = vmatprep.mubr.f32.mxu0 0.0
        %780 = vmatmul.mubr.f32.gmra.mrb[0].mxu0 %v676
        %v781 = vpop.f32.mrb[0].mxu0
        %v782 = vadd.f32 0.0, %v781
        %v783 = vpop.f32.mrb[0].mxu0
        %784 = vmatprep.mubr.f32.mxu0 0.0
        %785 = vmatmul.mubr.f32.gmra.mrb[0].mxu0 %v679
        %v786 = vpop.f32.mrb[0].mxu0
        %v787 = vadd.f32 0.0, %v786
        %v788 = vpop.f32.mrb[0].mxu0
        %789 = vdwg.mxu0
        %v791 = vsel %vm599, %v638, 0
        %v794 = vsel %vm599, %v639, 0
        %v797 = vsel %vm599, %v640, 0
        %v800 = vsel %vm599, %v641, 0
        %v803 = vsel %vm599, %v642, 0
        %v806 = vsel %vm599, %v643, 0
        %v809 = vsel %vm599, %v644, 0
        %v812 = vsel %vm599, %v645, 0
        %v815 = vsel %vm681, %v646, 0
        %817 = vmatprep.subr.mxu0 0.0
        %818 = vmatpush1.msra.mxu0 %v815
        %819 = vmatprep.subr.mxu0 0.0
        %820 = vmatpush1.msra.mxu0 0.0
        %821 = vmatprep.subr.mxu0 0.0
        %822 = vmatpush1.msra.mxu0 0.0
        %823 = vmatprep.subr.mxu0 0.0
        %824 = vmatpush1.msra.mxu0 0.0
        %825 = vmatprep.subr.mxu0 0.0
        %826 = vmatpush1.msra.mxu0 0.0
        %827 = vmatprep.subr.mxu0 0.0
        %828 = vmatpush1.msra.mxu0 0.0
        %829 = vmatprep.subr.mxu0 0.0
        %830 = vmatpush1.msra.mxu0 0.0
        %831 = vmatprep.subr.mxu0 0.0
        %832 = vmatpush1.msra.mxu0 0.0
        %833 = vmatprep.subr.mxu0 0.0
        %834 = vmatpush1.msra.mxu0 0.0
        %835 = vmatprep.subr.mxu0 0.0
        %836 = vmatpush1.msra.mxu0 0.0
        %837 = vmatprep.subr.mxu0 0.0
        %838 = vmatpush1.msra.mxu0 0.0
        %839 = vmatprep.subr.mxu0 0.0
        %840 = vmatpush1.msra.mxu0 0.0
        %841 = vmatprep.subr.mxu0 0.0
        %842 = vmatpush1.msra.mxu0 0.0
        %843 = vmatprep.subr.mxu0 0.0
        %844 = vmatpush1.msra.mxu0 0.0
        %845 = vmatprep.subr.mxu0 0.0
        %846 = vmatpush1.msra.mxu0 0.0
        %847 = vmatprep.subr.mxu0 0.0
        %848 = vmatpush1.msra.mxu0 0.0
        %849 = vmatprep.subr.mxu0 0.0
        %850 = vmatpush1.msra.mxu0 0.0
        %851 = vmatprep.subr.mxu0 0.0
        %852 = vmatpush1.msra.mxu0 0.0
        %853 = vmatprep.subr.mxu0 0.0
        %854 = vmatpush1.msra.mxu0 0.0
        %855 = vmatprep.subr.mxu0 0.0
        %856 = vmatpush1.msra.mxu0 0.0
        %857 = vmatprep.subr.mxu0 0.0
        %858 = vmatpush1.msra.mxu0 0.0
        %859 = vmatprep.subr.mxu0 0.0
        %860 = vmatpush1.msra.mxu0 0.0
        %861 = vmatprep.subr.mxu0 0.0
        %862 = vmatpush1.msra.mxu0 0.0
        %863 = vmatprep.subr.mxu0 0.0
        %864 = vmatpush1.msra.mxu0 0.0
        %865 = vmatprep.subr.mxu0 0.0
        %866 = vmatpush1.msra.mxu0 0.0
        %867 = vmatprep.subr.mxu0 0.0
        %868 = vmatpush1.msra.mxu0 0.0
        %869 = vmatprep.subr.mxu0 0.0
        %870 = vmatpush1.msra.mxu0 0.0
        %871 = vmatprep.subr.mxu0 0.0
        %872 = vmatpush1.msra.mxu0 0.0
        %873 = vmatprep.subr.mxu0 0.0
        %874 = vmatpush1.msra.mxu0 0.0
        %875 = vmatprep.subr.mxu0 0.0
        %876 = vmatpush1.msra.mxu0 0.0
        %877 = vmatprep.subr.mxu0 0.0
        %878 = vmatpush1.msra.mxu0 0.0
        %879 = vmatprep.subr.mxu0 0.0
        %880 = vmatpush1.msra.mxu0 0.0
        %881 = vmatprep.mubr.f32.mxu0 0.0
        %882 = vmatmul.mubr.f32.gmra.mrb[0].mxu0 %v791
        %v883 = vpop.f32.mrb[0].mxu0
        %v884 = vadd.f32 %v752, %v883
        %v885 = vpop.f32.mrb[0].mxu0
        %886 = vmatprep.mubr.f32.mxu0 0.0
        %887 = vmatmul.mubr.f32.gmra.mrb[0].mxu0 %v794
        %v888 = vpop.f32.mrb[0].mxu0
        %v889 = vadd.f32 %v757, %v888
        %v890 = vpop.f32.mrb[0].mxu0
        %891 = vmatprep.mubr.f32.mxu0 0.0
        %892 = vmatmul.mubr.f32.gmra.mrb[0].mxu0 %v797
        %v893 = vpop.f32.mrb[0].mxu0
        %v894 = vadd.f32 %v762, %v893
        %v895 = vpop.f32.mrb[0].mxu0
        %896 = vmatprep.mubr.f32.mxu0 0.0
        %897 = vmatmul.mubr.f32.gmra.mrb[0].mxu0 %v800
        %v898 = vpop.f32.mrb[0].mxu0
        %v899 = vadd.f32 %v767, %v898
        %v900 = vpop.f32.mrb[0].mxu0
        %901 = vmatprep.mubr.f32.mxu0 0.0
        %902 = vmatmul.mubr.f32.gmra.mrb[0].mxu0 %v803
        %v903 = vpop.f32.mrb[0].mxu0
        %v904 = vadd.f32 %v772, %v903
        %v905 = vpop.f32.mrb[0].mxu0
        %906 = vmatprep.mubr.f32.mxu0 0.0
        %907 = vmatmul.mubr.f32.gmra.mrb[0].mxu0 %v806
        %v908 = vpop.f32.mrb[0].mxu0
        %v909 = vadd.f32 %v777, %v908
        %v910 = vpop.f32.mrb[0].mxu0
        %911 = vmatprep.mubr.f32.mxu0 0.0
        %912 = vmatmul.mubr.f32.gmra.mrb[0].mxu0 %v809
        %v913 = vpop.f32.mrb[0].mxu0
        %v914 = vadd.f32 %v782, %v913
        %v915 = vpop.f32.mrb[0].mxu0
        %916 = vmatprep.mubr.f32.mxu0 0.0
        %917 = vmatmul.mubr.f32.gmra.mrb[0].mxu0 %v812
        %v918 = vpop.f32.mrb[0].mxu0
        %v919 = vadd.f32 %v787, %v918
        %v920 = vpop.f32.mrb[0].mxu0
        %921 = vdwg.mxu0
        %v922 = vld [vmem:[#allocation2 + $0x2] sm:$0xff]
        %v923 = vld [vmem:[#allocation2 + $0x12] sm:$0xff]
        %v924 = vld [vmem:[#allocation2 + $0x22] sm:$0xff]
        %v925 = vld [vmem:[#allocation2 + $0x32] sm:$0xff]
        %v926 = vld [vmem:[#allocation2 + $0x42] sm:$0xff]
        %v927 = vld [vmem:[#allocation2 + $0x52] sm:$0xff]
        %v928 = vld [vmem:[#allocation2 + $0x62] sm:$0xff]
        %v929 = vld [vmem:[#allocation2 + $0x72] sm:$0xff]
        %s930 = scalar_lea.vmem [#allocation6], 8
        %v931 = vld [vmem:[%s930] sm:$0xf]
        %v933 = vsel %vm599, %v922, 0
        %v936 = vsel %vm599, %v923, 0
        %v939 = vsel %vm599, %v924, 0
        %v942 = vsel %vm599, %v925, 0
        %v945 = vsel %vm599, %v926, 0
        %v948 = vsel %vm599, %v927, 0
        %v951 = vsel %vm599, %v928, 0
        %v954 = vsel %vm599, %v929, 0
        %v957 = vsel %vm681, %v931, 0
        %959 = vmatprep.subr.mxu0 0.0
        %960 = vmatpush1.msra.mxu0 %v957
        %961 = vmatprep.subr.mxu0 0.0
        %962 = vmatpush1.msra.mxu0 0.0
        %963 = vmatprep.subr.mxu0 0.0
        %964 = vmatpush1.msra.mxu0 0.0
        %965 = vmatprep.subr.mxu0 0.0
        %966 = vmatpush1.msra.mxu0 0.0
        %967 = vmatprep.subr.mxu0 0.0
        %968 = vmatpush1.msra.mxu0 0.0
        %969 = vmatprep.subr.mxu0 0.0
        %970 = vmatpush1.msra.mxu0 0.0
        %971 = vmatprep.subr.mxu0 0.0
        %972 = vmatpush1.msra.mxu0 0.0
        %973 = vmatprep.subr.mxu0 0.0
        %974 = vmatpush1.msra.mxu0 0.0
        %975 = vmatprep.subr.mxu0 0.0
        %976 = vmatpush1.msra.mxu0 0.0
        %977 = vmatprep.subr.mxu0 0.0
        %978 = vmatpush1.msra.mxu0 0.0
        %979 = vmatprep.subr.mxu0 0.0
        %980 = vmatpush1.msra.mxu0 0.0
        %981 = vmatprep.subr.mxu0 0.0
        %982 = vmatpush1.msra.mxu0 0.0
        %983 = vmatprep.subr.mxu0 0.0
        %984 = vmatpush1.msra.mxu0 0.0
        %985 = vmatprep.subr.mxu0 0.0
        %986 = vmatpush1.msra.mxu0 0.0
        %987 = vmatprep.subr.mxu0 0.0
        %988 = vmatpush1.msra.mxu0 0.0
        %989 = vmatprep.subr.mxu0 0.0
        %990 = vmatpush1.msra.mxu0 0.0
        %991 = vmatprep.subr.mxu0 0.0
        %992 = vmatpush1.msra.mxu0 0.0
        %993 = vmatprep.subr.mxu0 0.0
        %994 = vmatpush1.msra.mxu0 0.0
        %995 = vmatprep.subr.mxu0 0.0
        %996 = vmatpush1.msra.mxu0 0.0
        %997 = vmatprep.subr.mxu0 0.0
        %998 = vmatpush1.msra.mxu0 0.0
        %999 = vmatprep.subr.mxu0 0.0
        %1000 = vmatpush1.msra.mxu0 0.0
        %1001 = vmatprep.subr.mxu0 0.0
        %1002 = vmatpush1.msra.mxu0 0.0
        %1003 = vmatprep.subr.mxu0 0.0
        %1004 = vmatpush1.msra.mxu0 0.0
        %1005 = vmatprep.subr.mxu0 0.0
        %1006 = vmatpush1.msra.mxu0 0.0
        %1007 = vmatprep.subr.mxu0 0.0
        %1008 = vmatpush1.msra.mxu0 0.0
        %1009 = vmatprep.subr.mxu0 0.0
        %1010 = vmatpush1.msra.mxu0 0.0
        %1011 = vmatprep.subr.mxu0 0.0
        %1012 = vmatpush1.msra.mxu0 0.0
        %1013 = vmatprep.subr.mxu0 0.0
        %1014 = vmatpush1.msra.mxu0 0.0
        %1015 = vmatprep.subr.mxu0 0.0
        %1016 = vmatpush1.msra.mxu0 0.0
        %1017 = vmatprep.subr.mxu0 0.0
        %1018 = vmatpush1.msra.mxu0 0.0
        %1019 = vmatprep.subr.mxu0 0.0
        %1020 = vmatpush1.msra.mxu0 0.0
        %1021 = vmatprep.subr.mxu0 0.0
        %1022 = vmatpush1.msra.mxu0 0.0
        %1023 = vmatprep.mubr.f32.mxu0 0.0
        %1024 = vmatmul.mubr.f32.gmra.mrb[0].mxu0 %v933
        %v1025 = vpop.f32.mrb[0].mxu0
        %v1026 = vadd.f32 0.0, %v1025
        %v1027 = vpop.f32.mrb[0].mxu0
        %1028 = vmatprep.mubr.f32.mxu0 0.0
        %1029 = vmatmul.mubr.f32.gmra.mrb[0].mxu0 %v936
        %v1030 = vpop.f32.mrb[0].mxu0
        %v1031 = vadd.f32 0.0, %v1030
        %v1032 = vpop.f32.mrb[0].mxu0
        %1033 = vmatprep.mubr.f32.mxu0 0.0
        %1034 = vmatmul.mubr.f32.gmra.mrb[0].mxu0 %v939
        %v1035 = vpop.f32.mrb[0].mxu0
        %v1036 = vadd.f32 0.0, %v1035
        %v1037 = vpop.f32.mrb[0].mxu0
        %1038 = vmatprep.mubr.f32.mxu0 0.0
        %1039 = vmatmul.mubr.f32.gmra.mrb[0].mxu0 %v942
        %v1040 = vpop.f32.mrb[0].mxu0
        %v1041 = vadd.f32 0.0, %v1040
        %v1042 = vpop.f32.mrb[0].mxu0
        %1043 = vmatprep.mubr.f32.mxu0 0.0
        %1044 = vmatmul.mubr.f32.gmra.mrb[0].mxu0 %v945
        %v1045 = vpop.f32.mrb[0].mxu0
        %v1046 = vadd.f32 0.0, %v1045
        %v1047 = vpop.f32.mrb[0].mxu0
        %1048 = vmatprep.mubr.f32.mxu0 0.0
        %1049 = vmatmul.mubr.f32.gmra.mrb[0].mxu0 %v948
        %v1050 = vpop.f32.mrb[0].mxu0
        %v1051 = vadd.f32 0.0, %v1050
        %v1052 = vpop.f32.mrb[0].mxu0
        %1053 = vmatprep.mubr.f32.mxu0 0.0
        %1054 = vmatmul.mubr.f32.gmra.mrb[0].mxu0 %v951
        %v1055 = vpop.f32.mrb[0].mxu0
        %v1056 = vadd.f32 0.0, %v1055
        %v1057 = vpop.f32.mrb[0].mxu0
        %1058 = vmatprep.mubr.f32.mxu0 0.0
        %1059 = vmatmul.mubr.f32.gmra.mrb[0].mxu0 %v954
        %v1060 = vpop.f32.mrb[0].mxu0
        %v1061 = vadd.f32 0.0, %v1060
        %v1062 = vpop.f32.mrb[0].mxu0
        %1063 = vdwg.mxu0
        %v1064 = vadd.f32 %v884, %v1026
        %v1065 = vadd.f32 %v889, %v1031
        %v1066 = vadd.f32 %v894, %v1036
        %v1067 = vadd.f32 %v899, %v1041
        %v1068 = vadd.f32 %v904, %v1046
        %v1069 = vadd.f32 %v909, %v1051
        %v1070 = vadd.f32 %v914, %v1056
        %v1071 = vadd.f32 %v919, %v1061
        %v1072 = vld [vmem:[%s629] sm:$0xff]
        %v1073 = vld [vmem:[%s629 + $0x10] sm:$0xff]
        %v1074 = vld [vmem:[%s629 + $0x20] sm:$0xff]
        %v1075 = vld [vmem:[%s629 + $0x30] sm:$0xff]
        %v1076 = vld [vmem:[%s629 + $0x40] sm:$0xff]
        %v1077 = vld [vmem:[%s629 + $0x50] sm:$0xff]
        %v1078 = vld [vmem:[%s629 + $0x60] sm:$0xff]
        %v1079 = vld [vmem:[%s629 + $0x70] sm:$0xff]
        %s1080 = scalar_lea.vmem [#allocation6], 12
        %v1081 = vld [vmem:[%s1080] sm:$0xf]
        %v1083 = vsel %vm599, %v1072, 0
        %v1086 = vsel %vm599, %v1073, 0
        %v1089 = vsel %vm599, %v1074, 0
        %v1092 = vsel %vm599, %v1075, 0
        %v1095 = vsel %vm599, %v1076, 0
        %v1098 = vsel %vm599, %v1077, 0
        %v1101 = vsel %vm599, %v1078, 0
        %v1104 = vsel %vm599, %v1079, 0
        %v1107 = vsel %vm681, %v1081, 0
        %1109 = vmatprep.subr.mxu0 0.0
        %1110 = vmatpush1.msra.mxu0 %v1107
        %1111 = vmatprep.subr.mxu0 0.0
        %1112 = vmatpush1.msra.mxu0 0.0
        %1113 = vmatprep.subr.mxu0 0.0
        %1114 = vmatpush1.msra.mxu0 0.0
        %1115 = vmatprep.subr.mxu0 0.0
        %1116 = vmatpush1.msra.mxu0 0.0
        %1117 = vmatprep.subr.mxu0 0.0
        %1118 = vmatpush1.msra.mxu0 0.0
        %1119 = vmatprep.subr.mxu0 0.0
        %1120 = vmatpush1.msra.mxu0 0.0
        %1121 = vmatprep.subr.mxu0 0.0
        %1122 = vmatpush1.msra.mxu0 0.0
        %1123 = vmatprep.subr.mxu0 0.0
        %1124 = vmatpush1.msra.mxu0 0.0
        %1125 = vmatprep.subr.mxu0 0.0
        %1126 = vmatpush1.msra.mxu0 0.0
        %1127 = vmatprep.subr.mxu0 0.0
        %1128 = vmatpush1.msra.mxu0 0.0
        %1129 = vmatprep.subr.mxu0 0.0
        %1130 = vmatpush1.msra.mxu0 0.0
        %1131 = vmatprep.subr.mxu0 0.0
        %1132 = vmatpush1.msra.mxu0 0.0
        %1133 = vmatprep.subr.mxu0 0.0
        %1134 = vmatpush1.msra.mxu0 0.0
        %1135 = vmatprep.subr.mxu0 0.0
        %1136 = vmatpush1.msra.mxu0 0.0
        %1137 = vmatprep.subr.mxu0 0.0
        %1138 = vmatpush1.msra.mxu0 0.0
        %1139 = vmatprep.subr.mxu0 0.0
        %1140 = vmatpush1.msra.mxu0 0.0
        %1141 = vmatprep.subr.mxu0 0.0
        %1142 = vmatpush1.msra.mxu0 0.0
        %1143 = vmatprep.subr.mxu0 0.0
        %1144 = vmatpush1.msra.mxu0 0.0
        %1145 = vmatprep.subr.mxu0 0.0
        %1146 = vmatpush1.msra.mxu0 0.0
        %1147 = vmatprep.subr.mxu0 0.0
        %1148 = vmatpush1.msra.mxu0 0.0
        %1149 = vmatprep.subr.mxu0 0.0
        %1150 = vmatpush1.msra.mxu0 0.0
        %1151 = vmatprep.subr.mxu0 0.0
        %1152 = vmatpush1.msra.mxu0 0.0
        %1153 = vmatprep.subr.mxu0 0.0
        %1154 = vmatpush1.msra.mxu0 0.0
        %1155 = vmatprep.subr.mxu0 0.0
        %1156 = vmatpush1.msra.mxu0 0.0
        %1157 = vmatprep.subr.mxu0 0.0
        %1158 = vmatpush1.msra.mxu0 0.0
        %1159 = vmatprep.subr.mxu0 0.0
        %1160 = vmatpush1.msra.mxu0 0.0
        %1161 = vmatprep.subr.mxu0 0.0
        %1162 = vmatpush1.msra.mxu0 0.0
        %1163 = vmatprep.subr.mxu0 0.0
        %1164 = vmatpush1.msra.mxu0 0.0
        %1165 = vmatprep.subr.mxu0 0.0
        %1166 = vmatpush1.msra.mxu0 0.0
        %1167 = vmatprep.subr.mxu0 0.0
        %1168 = vmatpush1.msra.mxu0 0.0
        %1169 = vmatprep.subr.mxu0 0.0
        %1170 = vmatpush1.msra.mxu0 0.0
        %1171 = vmatprep.subr.mxu0 0.0
        %1172 = vmatpush1.msra.mxu0 0.0
        %1173 = vmatprep.mubr.f32.mxu0 0.0
        %1174 = vmatmul.mubr.f32.gmra.mrb[0].mxu0 %v1083
        %v1175 = vpop.f32.mrb[0].mxu0
        %v1176 = vadd.f32 0.0, %v1175
        %v1177 = vpop.f32.mrb[0].mxu0
        %1178 = vmatprep.mubr.f32.mxu0 0.0
        %1179 = vmatmul.mubr.f32.gmra.mrb[0].mxu0 %v1086
        %v1180 = vpop.f32.mrb[0].mxu0
        %v1181 = vadd.f32 0.0, %v1180
        %v1182 = vpop.f32.mrb[0].mxu0
        %1183 = vmatprep.mubr.f32.mxu0 0.0
        %1184 = vmatmul.mubr.f32.gmra.mrb[0].mxu0 %v1089
        %v1185 = vpop.f32.mrb[0].mxu0
        %v1186 = vadd.f32 0.0, %v1185
        %v1187 = vpop.f32.mrb[0].mxu0
        %1188 = vmatprep.mubr.f32.mxu0 0.0
        %1189 = vmatmul.mubr.f32.gmra.mrb[0].mxu0 %v1092
        %v1190 = vpop.f32.mrb[0].mxu0
        %v1191 = vadd.f32 0.0, %v1190
        %v1192 = vpop.f32.mrb[0].mxu0
        %1193 = vmatprep.mubr.f32.mxu0 0.0
        %1194 = vmatmul.mubr.f32.gmra.mrb[0].mxu0 %v1095
        %v1195 = vpop.f32.mrb[0].mxu0
        %v1196 = vadd.f32 0.0, %v1195
        %v1197 = vpop.f32.mrb[0].mxu0
        %1198 = vmatprep.mubr.f32.mxu0 0.0
        %1199 = vmatmul.mubr.f32.gmra.mrb[0].mxu0 %v1098
        %v1200 = vpop.f32.mrb[0].mxu0
        %v1201 = vadd.f32 0.0, %v1200
        %v1202 = vpop.f32.mrb[0].mxu0
        %1203 = vmatprep.mubr.f32.mxu0 0.0
        %1204 = vmatmul.mubr.f32.gmra.mrb[0].mxu0 %v1101
        %v1205 = vpop.f32.mrb[0].mxu0
        %v1206 = vadd.f32 0.0, %v1205
        %v1207 = vpop.f32.mrb[0].mxu0
        %1208 = vmatprep.mubr.f32.mxu0 0.0
        %1209 = vmatmul.mubr.f32.gmra.mrb[0].mxu0 %v1104
        %v1210 = vpop.f32.mrb[0].mxu0
        %v1211 = vadd.f32 0.0, %v1210
        %v1212 = vpop.f32.mrb[0].mxu0
        %1213 = vdwg.mxu0
        %v1214 = vadd.f32 %v1064, %v1176
        %v1215 = vadd.f32 %v1065, %v1181
        %v1216 = vadd.f32 %v1066, %v1186
        %v1217 = vadd.f32 %v1067, %v1191
        %v1218 = vadd.f32 %v1068, %v1196
        %v1219 = vadd.f32 %v1069, %v1201
        %v1220 = vadd.f32 %v1070, %v1206
        %v1221 = vadd.f32 %v1071, %v1211
        %v1222 = vld [vmem:[%s629 + $0x1] sm:$0xff]
        %v1223 = vld [vmem:[%s629 + $0x11] sm:$0xff]
        %v1224 = vld [vmem:[%s629 + $0x21] sm:$0xff]
        %v1225 = vld [vmem:[%s629 + $0x31] sm:$0xff]
        %v1226 = vld [vmem:[%s629 + $0x41] sm:$0xff]
        %v1227 = vld [vmem:[%s629 + $0x51] sm:$0xff]
        %v1228 = vld [vmem:[%s629 + $0x61] sm:$0xff]
        %v1229 = vld [vmem:[%s629 + $0x71] sm:$0xff]
        %s1230 = scalar_lea.vmem [#allocation6], 16
        %v1231 = vld [vmem:[%s1230] sm:$0xf]
        %v1233 = vsel %vm599, %v1222, 0
        %v1236 = vsel %vm599, %v1223, 0
        %v1239 = vsel %vm599, %v1224, 0
        %v1242 = vsel %vm599, %v1225, 0
        %v1245 = vsel %vm599, %v1226, 0
        %v1248 = vsel %vm599, %v1227, 0
        %v1251 = vsel %vm599, %v1228, 0
        %v1254 = vsel %vm599, %v1229, 0
        %v1257 = vsel %vm681, %v1231, 0
        %1259 = vmatprep.subr.mxu0 0.0
        %1260 = vmatpush1.msra.mxu0 %v1257
        %1261 = vmatprep.subr.mxu0 0.0
        %1262 = vmatpush1.msra.mxu0 0.0
        %1263 = vmatprep.subr.mxu0 0.0
        %1264 = vmatpush1.msra.mxu0 0.0
        %1265 = vmatprep.subr.mxu0 0.0
        %1266 = vmatpush1.msra.mxu0 0.0
        %1267 = vmatprep.subr.mxu0 0.0
        %1268 = vmatpush1.msra.mxu0 0.0
        %1269 = vmatprep.subr.mxu0 0.0
        %1270 = vmatpush1.msra.mxu0 0.0
        %1271 = vmatprep.subr.mxu0 0.0
        %1272 = vmatpush1.msra.mxu0 0.0
        %1273 = vmatprep.subr.mxu0 0.0
        %1274 = vmatpush1.msra.mxu0 0.0
        %1275 = vmatprep.subr.mxu0 0.0
        %1276 = vmatpush1.msra.mxu0 0.0
        %1277 = vmatprep.subr.mxu0 0.0
        %1278 = vmatpush1.msra.mxu0 0.0
        %1279 = vmatprep.subr.mxu0 0.0
        %1280 = vmatpush1.msra.mxu0 0.0
        %1281 = vmatprep.subr.mxu0 0.0
        %1282 = vmatpush1.msra.mxu0 0.0
        %1283 = vmatprep.subr.mxu0 0.0
        %1284 = vmatpush1.msra.mxu0 0.0
        %1285 = vmatprep.subr.mxu0 0.0
        %1286 = vmatpush1.msra.mxu0 0.0
        %1287 = vmatprep.subr.mxu0 0.0
        %1288 = vmatpush1.msra.mxu0 0.0
        %1289 = vmatprep.subr.mxu0 0.0
        %1290 = vmatpush1.msra.mxu0 0.0
        %1291 = vmatprep.subr.mxu0 0.0
        %1292 = vmatpush1.msra.mxu0 0.0
        %1293 = vmatprep.subr.mxu0 0.0
        %1294 = vmatpush1.msra.mxu0 0.0
        %1295 = vmatprep.subr.mxu0 0.0
        %1296 = vmatpush1.msra.mxu0 0.0
        %1297 = vmatprep.subr.mxu0 0.0
        %1298 = vmatpush1.msra.mxu0 0.0
        %1299 = vmatprep.subr.mxu0 0.0
        %1300 = vmatpush1.msra.mxu0 0.0
        %1301 = vmatprep.subr.mxu0 0.0
        %1302 = vmatpush1.msra.mxu0 0.0
        %1303 = vmatprep.subr.mxu0 0.0
        %1304 = vmatpush1.msra.mxu0 0.0
        %1305 = vmatprep.subr.mxu0 0.0
        %1306 = vmatpush1.msra.mxu0 0.0
        %1307 = vmatprep.subr.mxu0 0.0
        %1308 = vmatpush1.msra.mxu0 0.0
        %1309 = vmatprep.subr.mxu0 0.0
        %1310 = vmatpush1.msra.mxu0 0.0
        %1311 = vmatprep.subr.mxu0 0.0
        %1312 = vmatpush1.msra.mxu0 0.0
        %1313 = vmatprep.subr.mxu0 0.0
        %1314 = vmatpush1.msra.mxu0 0.0
        %1315 = vmatprep.subr.mxu0 0.0
        %1316 = vmatpush1.msra.mxu0 0.0
        %1317 = vmatprep.subr.mxu0 0.0
        %1318 = vmatpush1.msra.mxu0 0.0
        %1319 = vmatprep.subr.mxu0 0.0
        %1320 = vmatpush1.msra.mxu0 0.0
        %1321 = vmatprep.subr.mxu0 0.0
        %1322 = vmatpush1.msra.mxu0 0.0
        %1323 = vmatprep.mubr.f32.mxu0 0.0
        %1324 = vmatmul.mubr.f32.gmra.mrb[0].mxu0 %v1233
        %v1325 = vpop.f32.mrb[0].mxu0
        %v1326 = vadd.f32 0.0, %v1325
        %v1327 = vpop.f32.mrb[0].mxu0
        %1328 = vmatprep.mubr.f32.mxu0 0.0
        %1329 = vmatmul.mubr.f32.gmra.mrb[0].mxu0 %v1236
        %v1330 = vpop.f32.mrb[0].mxu0
        %v1331 = vadd.f32 0.0, %v1330
        %v1332 = vpop.f32.mrb[0].mxu0
        %1333 = vmatprep.mubr.f32.mxu0 0.0
        %1334 = vmatmul.mubr.f32.gmra.mrb[0].mxu0 %v1239
        %v1335 = vpop.f32.mrb[0].mxu0
        %v1336 = vadd.f32 0.0, %v1335
        %v1337 = vpop.f32.mrb[0].mxu0
        %1338 = vmatprep.mubr.f32.mxu0 0.0
        %1339 = vmatmul.mubr.f32.gmra.mrb[0].mxu0 %v1242
        %v1340 = vpop.f32.mrb[0].mxu0
        %v1341 = vadd.f32 0.0, %v1340
        %v1342 = vpop.f32.mrb[0].mxu0
        %1343 = vmatprep.mubr.f32.mxu0 0.0
        %1344 = vmatmul.mubr.f32.gmra.mrb[0].mxu0 %v1245
        %v1345 = vpop.f32.mrb[0].mxu0
        %v1346 = vadd.f32 0.0, %v1345
        %v1347 = vpop.f32.mrb[0].mxu0
        %1348 = vmatprep.mubr.f32.mxu0 0.0
        %1349 = vmatmul.mubr.f32.gmra.mrb[0].mxu0 %v1248
        %v1350 = vpop.f32.mrb[0].mxu0
        %v1351 = vadd.f32 0.0, %v1350
        %v1352 = vpop.f32.mrb[0].mxu0
        %1353 = vmatprep.mubr.f32.mxu0 0.0
        %1354 = vmatmul.mubr.f32.gmra.mrb[0].mxu0 %v1251
        %v1355 = vpop.f32.mrb[0].mxu0
        %v1356 = vadd.f32 0.0, %v1355
        %v1357 = vpop.f32.mrb[0].mxu0
        %1358 = vmatprep.mubr.f32.mxu0 0.0
        %1359 = vmatmul.mubr.f32.gmra.mrb[0].mxu0 %v1254
        %v1360 = vpop.f32.mrb[0].mxu0
        %v1361 = vadd.f32 0.0, %v1360
        %v1362 = vpop.f32.mrb[0].mxu0
        %1363 = vdwg.mxu0
        %v1364 = vadd.f32 %v1214, %v1326
        %v1365 = vadd.f32 %v1215, %v1331
        %v1366 = vadd.f32 %v1216, %v1336
        %v1367 = vadd.f32 %v1217, %v1341
        %v1368 = vadd.f32 %v1218, %v1346
        %v1369 = vadd.f32 %v1219, %v1351
        %v1370 = vadd.f32 %v1220, %v1356
        %v1371 = vadd.f32 %v1221, %v1361
        %v1372 = vld [vmem:[%s629 + $0x2] sm:$0xff]
        %v1373 = vld [vmem:[%s629 + $0x12] sm:$0xff]
        %v1374 = vld [vmem:[%s629 + $0x22] sm:$0xff]
        %v1375 = vld [vmem:[%s629 + $0x32] sm:$0xff]
        %v1376 = vld [vmem:[%s629 + $0x42] sm:$0xff]
        %v1377 = vld [vmem:[%s629 + $0x52] sm:$0xff]
        %v1378 = vld [vmem:[%s629 + $0x62] sm:$0xff]
        %v1379 = vld [vmem:[%s629 + $0x72] sm:$0xff]
        %s1380 = scalar_lea.vmem [#allocation6], 20
        %v1381 = vld [vmem:[%s1380] sm:$0xf]
        %v1383 = vsel %vm599, %v1372, 0
        %v1386 = vsel %vm599, %v1373, 0
        %v1389 = vsel %vm599, %v1374, 0
        %v1392 = vsel %vm599, %v1375, 0
        %v1395 = vsel %vm599, %v1376, 0
        %v1398 = vsel %vm599, %v1377, 0
        %v1401 = vsel %vm599, %v1378, 0
        %v1404 = vsel %vm599, %v1379, 0
        %v1407 = vsel %vm681, %v1381, 0
        %1409 = vmatprep.subr.mxu0 0.0
        %1410 = vmatpush1.msra.mxu0 %v1407
        %1411 = vmatprep.subr.mxu0 0.0
        %1412 = vmatpush1.msra.mxu0 0.0
        %1413 = vmatprep.subr.mxu0 0.0
        %1414 = vmatpush1.msra.mxu0 0.0
        %1415 = vmatprep.subr.mxu0 0.0
        %1416 = vmatpush1.msra.mxu0 0.0
        %1417 = vmatprep.subr.mxu0 0.0
        %1418 = vmatpush1.msra.mxu0 0.0
        %1419 = vmatprep.subr.mxu0 0.0
        %1420 = vmatpush1.msra.mxu0 0.0
        %1421 = vmatprep.subr.mxu0 0.0
        %1422 = vmatpush1.msra.mxu0 0.0
        %1423 = vmatprep.subr.mxu0 0.0
        %1424 = vmatpush1.msra.mxu0 0.0
        %1425 = vmatprep.subr.mxu0 0.0
        %1426 = vmatpush1.msra.mxu0 0.0
        %1427 = vmatprep.subr.mxu0 0.0
        %1428 = vmatpush1.msra.mxu0 0.0
        %1429 = vmatprep.subr.mxu0 0.0
        %1430 = vmatpush1.msra.mxu0 0.0
        %1431 = vmatprep.subr.mxu0 0.0
        %1432 = vmatpush1.msra.mxu0 0.0
        %1433 = vmatprep.subr.mxu0 0.0
        %1434 = vmatpush1.msra.mxu0 0.0
        %1435 = vmatprep.subr.mxu0 0.0
        %1436 = vmatpush1.msra.mxu0 0.0
        %1437 = vmatprep.subr.mxu0 0.0
        %1438 = vmatpush1.msra.mxu0 0.0
        %1439 = vmatprep.subr.mxu0 0.0
        %1440 = vmatpush1.msra.mxu0 0.0
        %1441 = vmatprep.subr.mxu0 0.0
        %1442 = vmatpush1.msra.mxu0 0.0
        %1443 = vmatprep.subr.mxu0 0.0
        %1444 = vmatpush1.msra.mxu0 0.0
        %1445 = vmatprep.subr.mxu0 0.0
        %1446 = vmatpush1.msra.mxu0 0.0
        %1447 = vmatprep.subr.mxu0 0.0
        %1448 = vmatpush1.msra.mxu0 0.0
        %1449 = vmatprep.subr.mxu0 0.0
        %1450 = vmatpush1.msra.mxu0 0.0
        %1451 = vmatprep.subr.mxu0 0.0
        %1452 = vmatpush1.msra.mxu0 0.0
        %1453 = vmatprep.subr.mxu0 0.0
        %1454 = vmatpush1.msra.mxu0 0.0
        %1455 = vmatprep.subr.mxu0 0.0
        %1456 = vmatpush1.msra.mxu0 0.0
        %1457 = vmatprep.subr.mxu0 0.0
        %1458 = vmatpush1.msra.mxu0 0.0
        %1459 = vmatprep.subr.mxu0 0.0
        %1460 = vmatpush1.msra.mxu0 0.0
        %1461 = vmatprep.subr.mxu0 0.0
        %1462 = vmatpush1.msra.mxu0 0.0
        %1463 = vmatprep.subr.mxu0 0.0
        %1464 = vmatpush1.msra.mxu0 0.0
        %1465 = vmatprep.subr.mxu0 0.0
        %1466 = vmatpush1.msra.mxu0 0.0
        %1467 = vmatprep.subr.mxu0 0.0
        %1468 = vmatpush1.msra.mxu0 0.0
        %1469 = vmatprep.subr.mxu0 0.0
        %1470 = vmatpush1.msra.mxu0 0.0
        %1471 = vmatprep.subr.mxu0 0.0
        %1472 = vmatpush1.msra.mxu0 0.0
        %1473 = vmatprep.mubr.f32.mxu0 0.0
        %1474 = vmatmul.mubr.f32.gmra.mrb[0].mxu0 %v1383
        %v1475 = vpop.f32.mrb[0].mxu0
        %v1476 = vadd.f32 0.0, %v1475
        %v1477 = vpop.f32.mrb[0].mxu0
        %1478 = vmatprep.mubr.f32.mxu0 0.0
        %1479 = vmatmul.mubr.f32.gmra.mrb[0].mxu0 %v1386
        %v1480 = vpop.f32.mrb[0].mxu0
        %v1481 = vadd.f32 0.0, %v1480
        %v1482 = vpop.f32.mrb[0].mxu0
        %1483 = vmatprep.mubr.f32.mxu0 0.0
        %1484 = vmatmul.mubr.f32.gmra.mrb[0].mxu0 %v1389
        %v1485 = vpop.f32.mrb[0].mxu0
        %v1486 = vadd.f32 0.0, %v1485
        %v1487 = vpop.f32.mrb[0].mxu0
        %1488 = vmatprep.mubr.f32.mxu0 0.0
        %1489 = vmatmul.mubr.f32.gmra.mrb[0].mxu0 %v1392
        %v1490 = vpop.f32.mrb[0].mxu0
        %v1491 = vadd.f32 0.0, %v1490
        %v1492 = vpop.f32.mrb[0].mxu0
        %1493 = vmatprep.mubr.f32.mxu0 0.0
        %1494 = vmatmul.mubr.f32.gmra.mrb[0].mxu0 %v1395
        %v1495 = vpop.f32.mrb[0].mxu0
        %v1496 = vadd.f32 0.0, %v1495
        %v1497 = vpop.f32.mrb[0].mxu0
        %1498 = vmatprep.mubr.f32.mxu0 0.0
        %1499 = vmatmul.mubr.f32.gmra.mrb[0].mxu0 %v1398
        %v1500 = vpop.f32.mrb[0].mxu0
        %v1501 = vadd.f32 0.0, %v1500
        %v1502 = vpop.f32.mrb[0].mxu0
        %1503 = vmatprep.mubr.f32.mxu0 0.0
        %1504 = vmatmul.mubr.f32.gmra.mrb[0].mxu0 %v1401
        %v1505 = vpop.f32.mrb[0].mxu0
        %v1506 = vadd.f32 0.0, %v1505
        %v1507 = vpop.f32.mrb[0].mxu0
        %1508 = vmatprep.mubr.f32.mxu0 0.0
        %1509 = vmatmul.mubr.f32.gmra.mrb[0].mxu0 %v1404
        %v1510 = vpop.f32.mrb[0].mxu0
        %v1511 = vadd.f32 0.0, %v1510
        %v1512 = vpop.f32.mrb[0].mxu0
        %1513 = vdwg.mxu0
        %v1514 = vadd.f32 %v1364, %v1476
        %v1515 = vadd.f32 %v1365, %v1481
        %v1516 = vadd.f32 %v1366, %v1486
        %v1517 = vadd.f32 %v1367, %v1491
        %v1518 = vadd.f32 %v1368, %v1496
        %v1519 = vadd.f32 %v1369, %v1501
        %v1520 = vadd.f32 %v1370, %v1506
        %v1521 = vadd.f32 %v1371, %v1511
        %s1522 = scalar_lea.vmem [#allocation2], 32
        %v1523 = vld [vmem:[%s1522] sm:$0xff]
        %v1524 = vld [vmem:[%s1522 + $0x10] sm:$0xff]
        %v1525 = vld [vmem:[%s1522 + $0x20] sm:$0xff]
        %v1526 = vld [vmem:[%s1522 + $0x30] sm:$0xff]
        %v1527 = vld [vmem:[%s1522 + $0x40] sm:$0xff]
        %v1528 = vld [vmem:[%s1522 + $0x50] sm:$0xff]
        %v1529 = vld [vmem:[%s1522 + $0x60] sm:$0xff]
        %v1530 = vld [vmem:[%s1522 + $0x70] sm:$0xff]
        %s1531 = scalar_lea.vmem [#allocation6], 24
        %v1532 = vld [vmem:[%s1531] sm:$0xf]
        %v1534 = vsel %vm599, %v1523, 0
        %v1537 = vsel %vm599, %v1524, 0
        %v1540 = vsel %vm599, %v1525, 0
        %v1543 = vsel %vm599, %v1526, 0
        %v1546 = vsel %vm599, %v1527, 0
        %v1549 = vsel %vm599, %v1528, 0
        %v1552 = vsel %vm599, %v1529, 0
        %v1555 = vsel %vm599, %v1530, 0
        %v1558 = vsel %vm681, %v1532, 0
        %1560 = vmatprep.subr.mxu0 0.0
        %1561 = vmatpush1.msra.mxu0 %v1558
        %1562 = vmatprep.subr.mxu0 0.0
        %1563 = vmatpush1.msra.mxu0 0.0
        %1564 = vmatprep.subr.mxu0 0.0
        %1565 = vmatpush1.msra.mxu0 0.0
        %1566 = vmatprep.subr.mxu0 0.0
        %1567 = vmatpush1.msra.mxu0 0.0
        %1568 = vmatprep.subr.mxu0 0.0
        %1569 = vmatpush1.msra.mxu0 0.0
        %1570 = vmatprep.subr.mxu0 0.0
        %1571 = vmatpush1.msra.mxu0 0.0
        %1572 = vmatprep.subr.mxu0 0.0
        %1573 = vmatpush1.msra.mxu0 0.0
        %1574 = vmatprep.subr.mxu0 0.0
        %1575 = vmatpush1.msra.mxu0 0.0
        %1576 = vmatprep.subr.mxu0 0.0
        %1577 = vmatpush1.msra.mxu0 0.0
        %1578 = vmatprep.subr.mxu0 0.0
        %1579 = vmatpush1.msra.mxu0 0.0
        %1580 = vmatprep.subr.mxu0 0.0
        %1581 = vmatpush1.msra.mxu0 0.0
        %1582 = vmatprep.subr.mxu0 0.0
        %1583 = vmatpush1.msra.mxu0 0.0
        %1584 = vmatprep.subr.mxu0 0.0
        %1585 = vmatpush1.msra.mxu0 0.0
        %1586 = vmatprep.subr.mxu0 0.0
        %1587 = vmatpush1.msra.mxu0 0.0
        %1588 = vmatprep.subr.mxu0 0.0
        %1589 = vmatpush1.msra.mxu0 0.0
        %1590 = vmatprep.subr.mxu0 0.0
        %1591 = vmatpush1.msra.mxu0 0.0
        %1592 = vmatprep.subr.mxu0 0.0
        %1593 = vmatpush1.msra.mxu0 0.0
        %1594 = vmatprep.subr.mxu0 0.0
        %1595 = vmatpush1.msra.mxu0 0.0
        %1596 = vmatprep.subr.mxu0 0.0
        %1597 = vmatpush1.msra.mxu0 0.0
        %1598 = vmatprep.subr.mxu0 0.0
        %1599 = vmatpush1.msra.mxu0 0.0
        %1600 = vmatprep.subr.mxu0 0.0
        %1601 = vmatpush1.msra.mxu0 0.0
        %1602 = vmatprep.subr.mxu0 0.0
        %1603 = vmatpush1.msra.mxu0 0.0
        %1604 = vmatprep.subr.mxu0 0.0
        %1605 = vmatpush1.msra.mxu0 0.0
        %1606 = vmatprep.subr.mxu0 0.0
        %1607 = vmatpush1.msra.mxu0 0.0
        %1608 = vmatprep.subr.mxu0 0.0
        %1609 = vmatpush1.msra.mxu0 0.0
        %1610 = vmatprep.subr.mxu0 0.0
        %1611 = vmatpush1.msra.mxu0 0.0
        %1612 = vmatprep.subr.mxu0 0.0
        %1613 = vmatpush1.msra.mxu0 0.0
        %1614 = vmatprep.subr.mxu0 0.0
        %1615 = vmatpush1.msra.mxu0 0.0
        %1616 = vmatprep.subr.mxu0 0.0
        %1617 = vmatpush1.msra.mxu0 0.0
        %1618 = vmatprep.subr.mxu0 0.0
        %1619 = vmatpush1.msra.mxu0 0.0
        %1620 = vmatprep.subr.mxu0 0.0
        %1621 = vmatpush1.msra.mxu0 0.0
        %1622 = vmatprep.subr.mxu0 0.0
        %1623 = vmatpush1.msra.mxu0 0.0
        %1624 = vmatprep.mubr.f32.mxu0 0.0
        %1625 = vmatmul.mubr.f32.gmra.mrb[0].mxu0 %v1534
        %v1626 = vpop.f32.mrb[0].mxu0
        %v1627 = vadd.f32 0.0, %v1626
        %v1628 = vpop.f32.mrb[0].mxu0
        %1629 = vmatprep.mubr.f32.mxu0 0.0
        %1630 = vmatmul.mubr.f32.gmra.mrb[0].mxu0 %v1537
        %v1631 = vpop.f32.mrb[0].mxu0
        %v1632 = vadd.f32 0.0, %v1631
        %v1633 = vpop.f32.mrb[0].mxu0
        %1634 = vmatprep.mubr.f32.mxu0 0.0
        %1635 = vmatmul.mubr.f32.gmra.mrb[0].mxu0 %v1540
        %v1636 = vpop.f32.mrb[0].mxu0
        %v1637 = vadd.f32 0.0, %v1636
        %v1638 = vpop.f32.mrb[0].mxu0
        %1639 = vmatprep.mubr.f32.mxu0 0.0
        %1640 = vmatmul.mubr.f32.gmra.mrb[0].mxu0 %v1543
        %v1641 = vpop.f32.mrb[0].mxu0
        %v1642 = vadd.f32 0.0, %v1641
        %v1643 = vpop.f32.mrb[0].mxu0
        %1644 = vmatprep.mubr.f32.mxu0 0.0
        %1645 = vmatmul.mubr.f32.gmra.mrb[0].mxu0 %v1546
        %v1646 = vpop.f32.mrb[0].mxu0
        %v1647 = vadd.f32 0.0, %v1646
        %v1648 = vpop.f32.mrb[0].mxu0
        %1649 = vmatprep.mubr.f32.mxu0 0.0
        %1650 = vmatmul.mubr.f32.gmra.mrb[0].mxu0 %v1549
        %v1651 = vpop.f32.mrb[0].mxu0
        %v1652 = vadd.f32 0.0, %v1651
        %v1653 = vpop.f32.mrb[0].mxu0
        %1654 = vmatprep.mubr.f32.mxu0 0.0
        %1655 = vmatmul.mubr.f32.gmra.mrb[0].mxu0 %v1552
        %v1656 = vpop.f32.mrb[0].mxu0
        %v1657 = vadd.f32 0.0, %v1656
        %v1658 = vpop.f32.mrb[0].mxu0
        %1659 = vmatprep.mubr.f32.mxu0 0.0
        %1660 = vmatmul.mubr.f32.gmra.mrb[0].mxu0 %v1555
        %v1661 = vpop.f32.mrb[0].mxu0
        %v1662 = vadd.f32 0.0, %v1661
        %v1663 = vpop.f32.mrb[0].mxu0
        %1664 = vdwg.mxu0
        %v1665 = vadd.f32 %v1514, %v1627
        %v1666 = vadd.f32 %v1515, %v1632
        %v1667 = vadd.f32 %v1516, %v1637
        %v1668 = vadd.f32 %v1517, %v1642
        %v1669 = vadd.f32 %v1518, %v1647
        %v1670 = vadd.f32 %v1519, %v1652
        %v1671 = vadd.f32 %v1520, %v1657
        %v1672 = vadd.f32 %v1521, %v1662
        %v1673 = vld [vmem:[%s1522 + $0x1] sm:$0xff]
        %v1674 = vld [vmem:[%s1522 + $0x11] sm:$0xff]
        %v1675 = vld [vmem:[%s1522 + $0x21] sm:$0xff]
        %v1676 = vld [vmem:[%s1522 + $0x31] sm:$0xff]
        %v1677 = vld [vmem:[%s1522 + $0x41] sm:$0xff]
        %v1678 = vld [vmem:[%s1522 + $0x51] sm:$0xff]
        %v1679 = vld [vmem:[%s1522 + $0x61] sm:$0xff]
        %v1680 = vld [vmem:[%s1522 + $0x71] sm:$0xff]
        %s1681 = scalar_lea.vmem [#allocation6], 28
        %v1682 = vld [vmem:[%s1681] sm:$0xf]
        %v1684 = vsel %vm599, %v1673, 0
        %v1687 = vsel %vm599, %v1674, 0
        %v1690 = vsel %vm599, %v1675, 0
        %v1693 = vsel %vm599, %v1676, 0
        %v1696 = vsel %vm599, %v1677, 0
        %v1699 = vsel %vm599, %v1678, 0
        %v1702 = vsel %vm599, %v1679, 0
        %v1705 = vsel %vm599, %v1680, 0
        %v1708 = vsel %vm681, %v1682, 0
        %1710 = vmatprep.subr.mxu0 0.0
        %1711 = vmatpush1.msra.mxu0 %v1708
        %1712 = vmatprep.subr.mxu0 0.0
        %1713 = vmatpush1.msra.mxu0 0.0
        %1714 = vmatprep.subr.mxu0 0.0
        %1715 = vmatpush1.msra.mxu0 0.0
        %1716 = vmatprep.subr.mxu0 0.0
        %1717 = vmatpush1.msra.mxu0 0.0
        %1718 = vmatprep.subr.mxu0 0.0
        %1719 = vmatpush1.msra.mxu0 0.0
        %1720 = vmatprep.subr.mxu0 0.0
        %1721 = vmatpush1.msra.mxu0 0.0
        %1722 = vmatprep.subr.mxu0 0.0
        %1723 = vmatpush1.msra.mxu0 0.0
        %1724 = vmatprep.subr.mxu0 0.0
        %1725 = vmatpush1.msra.mxu0 0.0
        %1726 = vmatprep.subr.mxu0 0.0
        %1727 = vmatpush1.msra.mxu0 0.0
        %1728 = vmatprep.subr.mxu0 0.0
        %1729 = vmatpush1.msra.mxu0 0.0
        %1730 = vmatprep.subr.mxu0 0.0
        %1731 = vmatpush1.msra.mxu0 0.0
        %1732 = vmatprep.subr.mxu0 0.0
        %1733 = vmatpush1.msra.mxu0 0.0
        %1734 = vmatprep.subr.mxu0 0.0
        %1735 = vmatpush1.msra.mxu0 0.0
        %1736 = vmatprep.subr.mxu0 0.0
        %1737 = vmatpush1.msra.mxu0 0.0
        %1738 = vmatprep.subr.mxu0 0.0
        %1739 = vmatpush1.msra.mxu0 0.0
        %1740 = vmatprep.subr.mxu0 0.0
        %1741 = vmatpush1.msra.mxu0 0.0
        %1742 = vmatprep.subr.mxu0 0.0
        %1743 = vmatpush1.msra.mxu0 0.0
        %1744 = vmatprep.subr.mxu0 0.0
        %1745 = vmatpush1.msra.mxu0 0.0
        %1746 = vmatprep.subr.mxu0 0.0
        %1747 = vmatpush1.msra.mxu0 0.0
        %1748 = vmatprep.subr.mxu0 0.0
        %1749 = vmatpush1.msra.mxu0 0.0
        %1750 = vmatprep.subr.mxu0 0.0
        %1751 = vmatpush1.msra.mxu0 0.0
        %1752 = vmatprep.subr.mxu0 0.0
        %1753 = vmatpush1.msra.mxu0 0.0
        %1754 = vmatprep.subr.mxu0 0.0
        %1755 = vmatpush1.msra.mxu0 0.0
        %1756 = vmatprep.subr.mxu0 0.0
        %1757 = vmatpush1.msra.mxu0 0.0
        %1758 = vmatprep.subr.mxu0 0.0
        %1759 = vmatpush1.msra.mxu0 0.0
        %1760 = vmatprep.subr.mxu0 0.0
        %1761 = vmatpush1.msra.mxu0 0.0
        %1762 = vmatprep.subr.mxu0 0.0
        %1763 = vmatpush1.msra.mxu0 0.0
        %1764 = vmatprep.subr.mxu0 0.0
        %1765 = vmatpush1.msra.mxu0 0.0
        %1766 = vmatprep.subr.mxu0 0.0
        %1767 = vmatpush1.msra.mxu0 0.0
        %1768 = vmatprep.subr.mxu0 0.0
        %1769 = vmatpush1.msra.mxu0 0.0
        %1770 = vmatprep.subr.mxu0 0.0
        %1771 = vmatpush1.msra.mxu0 0.0
        %1772 = vmatprep.subr.mxu0 0.0
        %1773 = vmatpush1.msra.mxu0 0.0
        %1774 = vmatprep.mubr.f32.mxu0 0.0
        %1775 = vmatmul.mubr.f32.gmra.mrb[0].mxu0 %v1684
        %v1776 = vpop.f32.mrb[0].mxu0
        %v1777 = vadd.f32 0.0, %v1776
        %v1778 = vpop.f32.mrb[0].mxu0
        %1779 = vmatprep.mubr.f32.mxu0 0.0
        %1780 = vmatmul.mubr.f32.gmra.mrb[0].mxu0 %v1687
        %v1781 = vpop.f32.mrb[0].mxu0
        %v1782 = vadd.f32 0.0, %v1781
        %v1783 = vpop.f32.mrb[0].mxu0
        %1784 = vmatprep.mubr.f32.mxu0 0.0
        %1785 = vmatmul.mubr.f32.gmra.mrb[0].mxu0 %v1690
        %v1786 = vpop.f32.mrb[0].mxu0
        %v1787 = vadd.f32 0.0, %v1786
        %v1788 = vpop.f32.mrb[0].mxu0
        %1789 = vmatprep.mubr.f32.mxu0 0.0
        %1790 = vmatmul.mubr.f32.gmra.mrb[0].mxu0 %v1693
        %v1791 = vpop.f32.mrb[0].mxu0
        %v1792 = vadd.f32 0.0, %v1791
        %v1793 = vpop.f32.mrb[0].mxu0
        %1794 = vmatprep.mubr.f32.mxu0 0.0
        %1795 = vmatmul.mubr.f32.gmra.mrb[0].mxu0 %v1696
        %v1796 = vpop.f32.mrb[0].mxu0
        %v1797 = vadd.f32 0.0, %v1796
        %v1798 = vpop.f32.mrb[0].mxu0
        %1799 = vmatprep.mubr.f32.mxu0 0.0
        %1800 = vmatmul.mubr.f32.gmra.mrb[0].mxu0 %v1699
        %v1801 = vpop.f32.mrb[0].mxu0
        %v1802 = vadd.f32 0.0, %v1801
        %v1803 = vpop.f32.mrb[0].mxu0
        %1804 = vmatprep.mubr.f32.mxu0 0.0
        %1805 = vmatmul.mubr.f32.gmra.mrb[0].mxu0 %v1702
        %v1806 = vpop.f32.mrb[0].mxu0
        %v1807 = vadd.f32 0.0, %v1806
        %v1808 = vpop.f32.mrb[0].mxu0
        %1809 = vmatprep.mubr.f32.mxu0 0.0
        %1810 = vmatmul.mubr.f32.gmra.mrb[0].mxu0 %v1705
        %v1811 = vpop.f32.mrb[0].mxu0
        %v1812 = vadd.f32 0.0, %v1811
        %v1813 = vpop.f32.mrb[0].mxu0
        %1814 = vdwg.mxu0
        %v1815 = vadd.f32 %v1665, %v1777
        %v1816 = vadd.f32 %v1666, %v1782
        %v1817 = vadd.f32 %v1667, %v1787
        %v1818 = vadd.f32 %v1668, %v1792
        %v1819 = vadd.f32 %v1669, %v1797
        %v1820 = vadd.f32 %v1670, %v1802
        %v1821 = vadd.f32 %v1671, %v1807
        %v1822 = vadd.f32 %v1672, %v1812
        %v1823 = vld [vmem:[%s1522 + $0x2] sm:$0xff]
        %v1824 = vld [vmem:[%s1522 + $0x12] sm:$0xff]
        %v1825 = vld [vmem:[%s1522 + $0x22] sm:$0xff]
        %v1826 = vld [vmem:[%s1522 + $0x32] sm:$0xff]
        %v1827 = vld [vmem:[%s1522 + $0x42] sm:$0xff]
        %v1828 = vld [vmem:[%s1522 + $0x52] sm:$0xff]
        %v1829 = vld [vmem:[%s1522 + $0x62] sm:$0xff]
        %v1830 = vld [vmem:[%s1522 + $0x72] sm:$0xff]
        %s1831 = scalar_lea.vmem [#allocation6], 32
        %v1832 = vld [vmem:[%s1831] sm:$0xf]
        %v1834 = vsel %vm599, %v1823, 0
        %v1837 = vsel %vm599, %v1824, 0
        %v1840 = vsel %vm599, %v1825, 0
        %v1843 = vsel %vm599, %v1826, 0
        %v1846 = vsel %vm599, %v1827, 0
        %v1849 = vsel %vm599, %v1828, 0
        %v1852 = vsel %vm599, %v1829, 0
        %v1855 = vsel %vm599, %v1830, 0
        %v1858 = vsel %vm681, %v1832, 0
        %1860 = vmatprep.subr.mxu0 0.0
        %1861 = vmatpush1.msra.mxu0 %v1858
        %1862 = vmatprep.subr.mxu0 0.0
        %1863 = vmatpush1.msra.mxu0 0.0
        %1864 = vmatprep.subr.mxu0 0.0
        %1865 = vmatpush1.msra.mxu0 0.0
        %1866 = vmatprep.subr.mxu0 0.0
        %1867 = vmatpush1.msra.mxu0 0.0
        %1868 = vmatprep.subr.mxu0 0.0
        %1869 = vmatpush1.msra.mxu0 0.0
        %1870 = vmatprep.subr.mxu0 0.0
        %1871 = vmatpush1.msra.mxu0 0.0
        %1872 = vmatprep.subr.mxu0 0.0
        %1873 = vmatpush1.msra.mxu0 0.0
        %1874 = vmatprep.subr.mxu0 0.0
        %1875 = vmatpush1.msra.mxu0 0.0
        %1876 = vmatprep.subr.mxu0 0.0
        %1877 = vmatpush1.msra.mxu0 0.0
        %1878 = vmatprep.subr.mxu0 0.0
        %1879 = vmatpush1.msra.mxu0 0.0
        %1880 = vmatprep.subr.mxu0 0.0
        %1881 = vmatpush1.msra.mxu0 0.0
        %1882 = vmatprep.subr.mxu0 0.0
        %1883 = vmatpush1.msra.mxu0 0.0
        %1884 = vmatprep.subr.mxu0 0.0
        %1885 = vmatpush1.msra.mxu0 0.0
        %1886 = vmatprep.subr.mxu0 0.0
        %1887 = vmatpush1.msra.mxu0 0.0
        %1888 = vmatprep.subr.mxu0 0.0
        %1889 = vmatpush1.msra.mxu0 0.0
        %1890 = vmatprep.subr.mxu0 0.0
        %1891 = vmatpush1.msra.mxu0 0.0
        %1892 = vmatprep.subr.mxu0 0.0
        %1893 = vmatpush1.msra.mxu0 0.0
        %1894 = vmatprep.subr.mxu0 0.0
        %1895 = vmatpush1.msra.mxu0 0.0
        %1896 = vmatprep.subr.mxu0 0.0
        %1897 = vmatpush1.msra.mxu0 0.0
        %1898 = vmatprep.subr.mxu0 0.0
        %1899 = vmatpush1.msra.mxu0 0.0
        %1900 = vmatprep.subr.mxu0 0.0
        %1901 = vmatpush1.msra.mxu0 0.0
        %1902 = vmatprep.subr.mxu0 0.0
        %1903 = vmatpush1.msra.mxu0 0.0
        %1904 = vmatprep.subr.mxu0 0.0
        %1905 = vmatpush1.msra.mxu0 0.0
        %1906 = vmatprep.subr.mxu0 0.0
        %1907 = vmatpush1.msra.mxu0 0.0
        %1908 = vmatprep.subr.mxu0 0.0
        %1909 = vmatpush1.msra.mxu0 0.0
        %1910 = vmatprep.subr.mxu0 0.0
        %1911 = vmatpush1.msra.mxu0 0.0
        %1912 = vmatprep.subr.mxu0 0.0
        %1913 = vmatpush1.msra.mxu0 0.0
        %1914 = vmatprep.subr.mxu0 0.0
        %1915 = vmatpush1.msra.mxu0 0.0
        %1916 = vmatprep.subr.mxu0 0.0
        %1917 = vmatpush1.msra.mxu0 0.0
        %1918 = vmatprep.subr.mxu0 0.0
        %1919 = vmatpush1.msra.mxu0 0.0
        %1920 = vmatprep.subr.mxu0 0.0
        %1921 = vmatpush1.msra.mxu0 0.0
        %1922 = vmatprep.subr.mxu0 0.0
        %1923 = vmatpush1.msra.mxu0 0.0
        %1924 = vmatprep.mubr.f32.mxu0 0.0
        %1925 = vmatmul.mubr.f32.gmra.mrb[0].mxu0 %v1834
        %v1926 = vpop.f32.mrb[0].mxu0
        %v1927 = vadd.f32 0.0, %v1926
        %v1928 = vpop.f32.mrb[0].mxu0
        %1929 = vmatprep.mubr.f32.mxu0 0.0
        %1930 = vmatmul.mubr.f32.gmra.mrb[0].mxu0 %v1837
        %v1931 = vpop.f32.mrb[0].mxu0
        %v1932 = vadd.f32 0.0, %v1931
        %v1933 = vpop.f32.mrb[0].mxu0
        %1934 = vmatprep.mubr.f32.mxu0 0.0
        %1935 = vmatmul.mubr.f32.gmra.mrb[0].mxu0 %v1840
        %v1936 = vpop.f32.mrb[0].mxu0
        %v1937 = vadd.f32 0.0, %v1936
        %v1938 = vpop.f32.mrb[0].mxu0
        %1939 = vmatprep.mubr.f32.mxu0 0.0
        %1940 = vmatmul.mubr.f32.gmra.mrb[0].mxu0 %v1843
        %v1941 = vpop.f32.mrb[0].mxu0
        %v1942 = vadd.f32 0.0, %v1941
        %v1943 = vpop.f32.mrb[0].mxu0
        %1944 = vmatprep.mubr.f32.mxu0 0.0
        %1945 = vmatmul.mubr.f32.gmra.mrb[0].mxu0 %v1846
        %v1946 = vpop.f32.mrb[0].mxu0
        %v1947 = vadd.f32 0.0, %v1946
        %v1948 = vpop.f32.mrb[0].mxu0
        %1949 = vmatprep.mubr.f32.mxu0 0.0
        %1950 = vmatmul.mubr.f32.gmra.mrb[0].mxu0 %v1849
        %v1951 = vpop.f32.mrb[0].mxu0
        %v1952 = vadd.f32 0.0, %v1951
        %v1953 = vpop.f32.mrb[0].mxu0
        %1954 = vmatprep.mubr.f32.mxu0 0.0
        %1955 = vmatmul.mubr.f32.gmra.mrb[0].mxu0 %v1852
        %v1956 = vpop.f32.mrb[0].mxu0
        %v1957 = vadd.f32 0.0, %v1956
        %v1958 = vpop.f32.mrb[0].mxu0
        %1959 = vmatprep.mubr.f32.mxu0 0.0
        %1960 = vmatmul.mubr.f32.gmra.mrb[0].mxu0 %v1855
        %v1961 = vpop.f32.mrb[0].mxu0
        %v1962 = vadd.f32 0.0, %v1961
        %v1963 = vpop.f32.mrb[0].mxu0
        %1964 = vdwg.mxu0
        %v1965 = vadd.f32 %v1815, %v1927
        %v1966 = vadd.f32 %v1816, %v1932
        %v1967 = vadd.f32 %v1817, %v1937
        %v1968 = vadd.f32 %v1818, %v1942
        %v1969 = vadd.f32 %v1819, %v1947
        %v1970 = vadd.f32 %v1820, %v1952
        %v1971 = vadd.f32 %v1821, %v1957
        %v1972 = vadd.f32 %v1822, %v1962
        %v1973 = vld [vmem:[%s2] sm:$0x1]
        %v1975 = vlaneseq
        %v1976 = vshrl.u32 %v1975, 7
        %v1977 = vsub.s32 0, %v1976
        %v1978 = vrot.slane %v1973, %v1977
        %v1980 = vadd.f32 %v1965, %v1978
        %v1981 = vadd.f32 %v1966, %v1978
        %v1982 = vadd.f32 %v1967, %v1978
        %v1983 = vadd.f32 %v1968, %v1978
        %v1984 = vadd.f32 %v1969, %v1978
        %v1985 = vadd.f32 %v1970, %v1978
        %v1986 = vadd.f32 %v1971, %v1978
        %v1987 = vadd.f32 %v1972, %v1978
        %v1988 = vmax.f32 %v1980, 0.0
        %v1989 = vmax.f32 %v1981, 0.0
        %v1990 = vmax.f32 %v1982, 0.0
        %v1991 = vmax.f32 %v1983, 0.0
        %v1992 = vmax.f32 %v1984, 0.0
        %v1993 = vmax.f32 %v1985, 0.0
        %v1994 = vmax.f32 %v1986, 0.0
        %v1995 = vmax.f32 %v1987, 0.0
        %vm1996 = vcmask 261120
        %1997 = vst.msk [vmem:[#allocation3] sm:$0xff] %vm1996, 0.0
        %vm1998 = vcmask 254976
        %1999 = vst.msk [vmem:[#allocation3 + $0x8] sm:$0x3] %vm1998, 0.0
        %2000 = vst.msk [vmem:[#allocation3 + $0x10] sm:$0xff] %vm1996, 0.0
        %2001 = vst.msk [vmem:[#allocation3 + $0x18] sm:$0x3] %vm1998, 0.0
        %2002 = vst.msk [vmem:[#allocation3 + $0x20] sm:$0xff] %vm1996, 0.0
        %2003 = vst.msk [vmem:[#allocation3 + $0x28] sm:$0x3] %vm1998, 0.0
        %2004 = vst.msk [vmem:[#allocation3 + $0x30] sm:$0xff] %vm1996, 0.0
        %2005 = vst.msk [vmem:[#allocation3 + $0x38] sm:$0x3] %vm1998, 0.0
        %2006 = vst.msk [vmem:[#allocation3 + $0x40] sm:$0xff] %vm1996, 0.0
        %2007 = vst.msk [vmem:[#allocation3 + $0x48] sm:$0x3] %vm1998, 0.0
        %2008 = vst.msk [vmem:[#allocation3 + $0x50] sm:$0xff] %vm1996, 0.0
        %2009 = vst.msk [vmem:[#allocation3 + $0x58] sm:$0x3] %vm1998, 0.0
        %2010 = vst.msk [vmem:[#allocation3 + $0x60] sm:$0xff] %vm1996, 0.0
        %2011 = vst.msk [vmem:[#allocation3 + $0x68] sm:$0x3] %vm1998, 0.0
        %2012 = vst.msk [vmem:[#allocation3 + $0x70] sm:$0xff] %vm1996, 0.0
        %2013 = vst.msk [vmem:[#allocation3 + $0x78] sm:$0x3] %vm1998, 0.0
        %2014 = vst.msk [vmem:[#allocation3 + $0x80] sm:$0xff] %vm1996, 0.0
        %2015 = vst.msk [vmem:[#allocation3 + $0x88] sm:$0x3] %vm1998, 0.0
        %2016 = vst.msk [vmem:[#allocation3 + $0x90] sm:$0xff] %vm1996, 0.0
        %2017 = vst.msk [vmem:[#allocation3 + $0x98] sm:$0x3] %vm1998, 0.0
        %s2018 = scalar_lea.vmem [#allocation3], 16
        %2019 = vst.msk [vmem:[%s2018 + $0x1] sm:$0xff] %vm1996, %v1988
        %2020 = vst.msk [vmem:[%s2018 + $0x11] sm:$0xff] %vm1996, %v1989
        %2021 = vst.msk [vmem:[%s2018 + $0x21] sm:$0xff] %vm1996, %v1990
        %2022 = vst.msk [vmem:[%s2018 + $0x31] sm:$0xff] %vm1996, %v1991
        %2023 = vst.msk [vmem:[%s2018 + $0x41] sm:$0xff] %vm1996, %v1992
        %2024 = vst.msk [vmem:[%s2018 + $0x51] sm:$0xff] %vm1996, %v1993
        %2025 = vst.msk [vmem:[%s2018 + $0x61] sm:$0xff] %vm1996, %v1994
        %2026 = vst.msk [vmem:[%s2018 + $0x71] sm:$0xff] %vm1996, %v1995
        %v2027 = vld [vmem:[#allocation3] sm:$0xff]
        %v2028 = vld [vmem:[#allocation3 + $0x10] sm:$0xff]
        %v2029 = vld [vmem:[#allocation3 + $0x20] sm:$0xff]
        %v2030 = vld [vmem:[#allocation3 + $0x30] sm:$0xff]
        %v2031 = vld [vmem:[#allocation3 + $0x40] sm:$0xff]
        %v2032 = vld [vmem:[#allocation3 + $0x50] sm:$0xff]
        %v2033 = vld [vmem:[#allocation3 + $0x60] sm:$0xff]
        %v2034 = vld [vmem:[#allocation3 + $0x70] sm:$0xff]
        %v2035 = vld [vmem:[%s3] sm:$0xff]
        %v2036 = vld [vmem:[%s3 + $0x8] sm:$0xff]
        %v2037 = vld [vmem:[%s3 + $0x10] sm:$0xff]
        %v2038 = vld [vmem:[%s3 + $0x18] sm:$0xff]
        %v2039 = vld [vmem:[#allocation3 + $0x1] sm:$0xff]
        %v2040 = vld [vmem:[#allocation3 + $0x11] sm:$0xff]
        %v2041 = vld [vmem:[#allocation3 + $0x21] sm:$0xff]
        %v2042 = vld [vmem:[#allocation3 + $0x31] sm:$0xff]
        %v2043 = vld [vmem:[#allocation3 + $0x41] sm:$0xff]
        %v2044 = vld [vmem:[#allocation3 + $0x51] sm:$0xff]
        %v2045 = vld [vmem:[#allocation3 + $0x61] sm:$0xff]
        %v2046 = vld [vmem:[#allocation3 + $0x71] sm:$0xff]
        %s2047 = scalar_lea.vmem %s3, 32
        %v2048 = vld [vmem:[%s2047] sm:$0xff]
        %v2049 = vld [vmem:[%s2047 + $0x8] sm:$0xff]
        %v2050 = vld [vmem:[%s2047 + $0x10] sm:$0xff]
        %v2051 = vld [vmem:[%s2047 + $0x18] sm:$0xff]
        %v2053 = vsel %vm1996, %v2039, 0
        %v2056 = vsel %vm1996, %v2040, 0
        %v2059 = vsel %vm1996, %v2041, 0
        %v2062 = vsel %vm1996, %v2042, 0
        %v2065 = vsel %vm1996, %v2043, 0
        %v2068 = vsel %vm1996, %v2044, 0
        %v2071 = vsel %vm1996, %v2045, 0
        %v2074 = vsel %vm1996, %v2046, 0
        %2076 = vmatprep.subr.mxu0 0.0
        %2077 = vmatpush1.msra.mxu0 %v2048
        %2078 = vmatprep.subr.mxu0 0.0
        %2079 = vmatpush1.msra.mxu0 %v2049
        %2080 = vmatprep.subr.mxu0 0.0
        %2081 = vmatpush1.msra.mxu0 %v2050
        %2082 = vmatprep.subr.mxu0 0.0
        %2083 = vmatpush1.msra.mxu0 %v2051
        %2084 = vmatprep.subr.mxu0 0.0
        %2085 = vmatpush1.msra.mxu0 0.0
        %2086 = vmatprep.subr.mxu0 0.0
        %2087 = vmatpush1.msra.mxu0 0.0
        %2088 = vmatprep.subr.mxu0 0.0
        %2089 = vmatpush1.msra.mxu0 0.0
        %2090 = vmatprep.subr.mxu0 0.0
        %2091 = vmatpush1.msra.mxu0 0.0
        %2092 = vmatprep.subr.mxu0 0.0
        %2093 = vmatpush1.msra.mxu0 0.0
        %2094 = vmatprep.subr.mxu0 0.0
        %2095 = vmatpush1.msra.mxu0 0.0
        %2096 = vmatprep.subr.mxu0 0.0
        %2097 = vmatpush1.msra.mxu0 0.0
        %2098 = vmatprep.subr.mxu0 0.0
        %2099 = vmatpush1.msra.mxu0 0.0
        %2100 = vmatprep.subr.mxu0 0.0
        %2101 = vmatpush1.msra.mxu0 0.0
        %2102 = vmatprep.subr.mxu0 0.0
        %2103 = vmatpush1.msra.mxu0 0.0
        %2104 = vmatprep.subr.mxu0 0.0
        %2105 = vmatpush1.msra.mxu0 0.0
        %2106 = vmatprep.subr.mxu0 0.0
        %2107 = vmatpush1.msra.mxu0 0.0
        %2108 = vmatprep.subr.mxu0 0.0
        %2109 = vmatpush1.msra.mxu0 0.0
        %2110 = vmatprep.subr.mxu0 0.0
        %2111 = vmatpush1.msra.mxu0 0.0
        %2112 = vmatprep.subr.mxu0 0.0
        %2113 = vmatpush1.msra.mxu0 0.0
        %2114 = vmatprep.subr.mxu0 0.0
        %2115 = vmatpush1.msra.mxu0 0.0
        %2116 = vmatprep.subr.mxu0 0.0
        %2117 = vmatpush1.msra.mxu0 0.0
        %2118 = vmatprep.subr.mxu0 0.0
        %2119 = vmatpush1.msra.mxu0 0.0
        %2120 = vmatprep.subr.mxu0 0.0
        %2121 = vmatpush1.msra.mxu0 0.0
        %2122 = vmatprep.subr.mxu0 0.0
        %2123 = vmatpush1.msra.mxu0 0.0
        %2124 = vmatprep.subr.mxu0 0.0
        %2125 = vmatpush1.msra.mxu0 0.0
        %2126 = vmatprep.subr.mxu0 0.0
        %2127 = vmatpush1.msra.mxu0 0.0
        %2128 = vmatprep.subr.mxu0 0.0
        %2129 = vmatpush1.msra.mxu0 0.0
        %2130 = vmatprep.subr.mxu0 0.0
        %2131 = vmatpush1.msra.mxu0 0.0
        %2132 = vmatprep.subr.mxu0 0.0
        %2133 = vmatpush1.msra.mxu0 0.0
        %2134 = vmatprep.subr.mxu0 0.0
        %2135 = vmatpush1.msra.mxu0 0.0
        %2136 = vmatprep.subr.mxu0 0.0
        %2137 = vmatpush1.msra.mxu0 0.0
        %2138 = vmatprep.subr.mxu0 0.0
        %2139 = vmatpush1.msra.mxu0 0.0
        %2140 = vmatprep.mubr.f32.mxu0 0.0
        %2141 = vmatmul.mubr.f32.gmra.mrb[0].mxu0 %v2053
        %v2142 = vpop.f32.mrb[0].mxu0
        %v2143 = vadd.f32 0.0, %v2142
        %v2144 = vpop.f32.mrb[0].mxu0
        %2145 = vmatprep.mubr.f32.mxu0 0.0
        %2146 = vmatmul.mubr.f32.gmra.mrb[0].mxu0 %v2056
        %v2147 = vpop.f32.mrb[0].mxu0
        %v2148 = vadd.f32 0.0, %v2147
        %v2149 = vpop.f32.mrb[0].mxu0
        %2150 = vmatprep.mubr.f32.mxu0 0.0
        %2151 = vmatmul.mubr.f32.gmra.mrb[0].mxu0 %v2059
        %v2152 = vpop.f32.mrb[0].mxu0
        %v2153 = vadd.f32 0.0, %v2152
        %v2154 = vpop.f32.mrb[0].mxu0
        %2155 = vmatprep.mubr.f32.mxu0 0.0
        %2156 = vmatmul.mubr.f32.gmra.mrb[0].mxu0 %v2062
        %v2157 = vpop.f32.mrb[0].mxu0
        %v2158 = vadd.f32 0.0, %v2157
        %v2159 = vpop.f32.mrb[0].mxu0
        %2160 = vmatprep.mubr.f32.mxu0 0.0
        %2161 = vmatmul.mubr.f32.gmra.mrb[0].mxu0 %v2065
        %v2162 = vpop.f32.mrb[0].mxu0
        %v2163 = vadd.f32 0.0, %v2162
        %v2164 = vpop.f32.mrb[0].mxu0
        %2165 = vmatprep.mubr.f32.mxu0 0.0
        %2166 = vmatmul.mubr.f32.gmra.mrb[0].mxu0 %v2068
        %v2167 = vpop.f32.mrb[0].mxu0
        %v2168 = vadd.f32 0.0, %v2167
        %v2169 = vpop.f32.mrb[0].mxu0
        %2170 = vmatprep.mubr.f32.mxu0 0.0
        %2171 = vmatmul.mubr.f32.gmra.mrb[0].mxu0 %v2071
        %v2172 = vpop.f32.mrb[0].mxu0
        %v2173 = vadd.f32 0.0, %v2172
        %v2174 = vpop.f32.mrb[0].mxu0
        %2175 = vmatprep.mubr.f32.mxu0 0.0
        %2176 = vmatmul.mubr.f32.gmra.mrb[0].mxu0 %v2074
        %v2177 = vpop.f32.mrb[0].mxu0
        %v2178 = vadd.f32 0.0, %v2177
        %v2179 = vpop.f32.mrb[0].mxu0
        %2180 = vdwg.mxu0
        %v2182 = vsel %vm1996, %v2027, 0
        %v2185 = vsel %vm1996, %v2028, 0
        %v2188 = vsel %vm1996, %v2029, 0
        %v2191 = vsel %vm1996, %v2030, 0
        %v2194 = vsel %vm1996, %v2031, 0
        %v2197 = vsel %vm1996, %v2032, 0
        %v2200 = vsel %vm1996, %v2033, 0
        %v2203 = vsel %vm1996, %v2034, 0
        %2205 = vmatprep.subr.mxu0 0.0
        %2206 = vmatpush1.msra.mxu0 %v2035
        %2207 = vmatprep.subr.mxu0 0.0
        %2208 = vmatpush1.msra.mxu0 %v2036
        %2209 = vmatprep.subr.mxu0 0.0
        %2210 = vmatpush1.msra.mxu0 %v2037
        %2211 = vmatprep.subr.mxu0 0.0
        %2212 = vmatpush1.msra.mxu0 %v2038
        %2213 = vmatprep.subr.mxu0 0.0
        %2214 = vmatpush1.msra.mxu0 0.0
        %2215 = vmatprep.subr.mxu0 0.0
        %2216 = vmatpush1.msra.mxu0 0.0
        %2217 = vmatprep.subr.mxu0 0.0
        %2218 = vmatpush1.msra.mxu0 0.0
        %2219 = vmatprep.subr.mxu0 0.0
        %2220 = vmatpush1.msra.mxu0 0.0
        %2221 = vmatprep.subr.mxu0 0.0
        %2222 = vmatpush1.msra.mxu0 0.0
        %2223 = vmatprep.subr.mxu0 0.0
        %2224 = vmatpush1.msra.mxu0 0.0
        %2225 = vmatprep.subr.mxu0 0.0
        %2226 = vmatpush1.msra.mxu0 0.0
        %2227 = vmatprep.subr.mxu0 0.0
        %2228 = vmatpush1.msra.mxu0 0.0
        %2229 = vmatprep.subr.mxu0 0.0
        %2230 = vmatpush1.msra.mxu0 0.0
        %2231 = vmatprep.subr.mxu0 0.0
        %2232 = vmatpush1.msra.mxu0 0.0
        %2233 = vmatprep.subr.mxu0 0.0
        %2234 = vmatpush1.msra.mxu0 0.0
        %2235 = vmatprep.subr.mxu0 0.0
        %2236 = vmatpush1.msra.mxu0 0.0
        %2237 = vmatprep.subr.mxu0 0.0
        %2238 = vmatpush1.msra.mxu0 0.0
        %2239 = vmatprep.subr.mxu0 0.0
        %2240 = vmatpush1.msra.mxu0 0.0
        %2241 = vmatprep.subr.mxu0 0.0
        %2242 = vmatpush1.msra.mxu0 0.0
        %2243 = vmatprep.subr.mxu0 0.0
        %2244 = vmatpush1.msra.mxu0 0.0
        %2245 = vmatprep.subr.mxu0 0.0
        %2246 = vmatpush1.msra.mxu0 0.0
        %2247 = vmatprep.subr.mxu0 0.0
        %2248 = vmatpush1.msra.mxu0 0.0
        %2249 = vmatprep.subr.mxu0 0.0
        %2250 = vmatpush1.msra.mxu0 0.0
        %2251 = vmatprep.subr.mxu0 0.0
        %2252 = vmatpush1.msra.mxu0 0.0
        %2253 = vmatprep.subr.mxu0 0.0
        %2254 = vmatpush1.msra.mxu0 0.0
        %2255 = vmatprep.subr.mxu0 0.0
        %2256 = vmatpush1.msra.mxu0 0.0
        %2257 = vmatprep.subr.mxu0 0.0
        %2258 = vmatpush1.msra.mxu0 0.0
        %2259 = vmatprep.subr.mxu0 0.0
        %2260 = vmatpush1.msra.mxu0 0.0
        %2261 = vmatprep.subr.mxu0 0.0
        %2262 = vmatpush1.msra.mxu0 0.0
        %2263 = vmatprep.subr.mxu0 0.0
        %2264 = vmatpush1.msra.mxu0 0.0
        %2265 = vmatprep.subr.mxu0 0.0
        %2266 = vmatpush1.msra.mxu0 0.0
        %2267 = vmatprep.subr.mxu0 0.0
        %2268 = vmatpush1.msra.mxu0 0.0
        %2269 = vmatprep.mubr.f32.mxu0 0.0
        %2270 = vmatmul.mubr.f32.gmra.mrb[0].mxu0 %v2182
        %v2271 = vpop.f32.mrb[0].mxu0
        %v2272 = vadd.f32 %v2143, %v2271
        %v2273 = vpop.f32.mrb[0].mxu0
        %2274 = vmatprep.mubr.f32.mxu0 0.0
        %2275 = vmatmul.mubr.f32.gmra.mrb[0].mxu0 %v2185
        %v2276 = vpop.f32.mrb[0].mxu0
        %v2277 = vadd.f32 %v2148, %v2276
        %v2278 = vpop.f32.mrb[0].mxu0
        %2279 = vmatprep.mubr.f32.mxu0 0.0
        %2280 = vmatmul.mubr.f32.gmra.mrb[0].mxu0 %v2188
        %v2281 = vpop.f32.mrb[0].mxu0
        %v2282 = vadd.f32 %v2153, %v2281
        %v2283 = vpop.f32.mrb[0].mxu0
        %2284 = vmatprep.mubr.f32.mxu0 0.0
        %2285 = vmatmul.mubr.f32.gmra.mrb[0].mxu0 %v2191
        %v2286 = vpop.f32.mrb[0].mxu0
        %v2287 = vadd.f32 %v2158, %v2286
        %v2288 = vpop.f32.mrb[0].mxu0
        %2289 = vmatprep.mubr.f32.mxu0 0.0
        %2290 = vmatmul.mubr.f32.gmra.mrb[0].mxu0 %v2194
        %v2291 = vpop.f32.mrb[0].mxu0
        %v2292 = vadd.f32 %v2163, %v2291
        %v2293 = vpop.f32.mrb[0].mxu0
        %2294 = vmatprep.mubr.f32.mxu0 0.0
        %2295 = vmatmul.mubr.f32.gmra.mrb[0].mxu0 %v2197
        %v2296 = vpop.f32.mrb[0].mxu0
        %v2297 = vadd.f32 %v2168, %v2296
        %v2298 = vpop.f32.mrb[0].mxu0
        %2299 = vmatprep.mubr.f32.mxu0 0.0
        %2300 = vmatmul.mubr.f32.gmra.mrb[0].mxu0 %v2200
        %v2301 = vpop.f32.mrb[0].mxu0
        %v2302 = vadd.f32 %v2173, %v2301
        %v2303 = vpop.f32.mrb[0].mxu0
        %2304 = vmatprep.mubr.f32.mxu0 0.0
        %2305 = vmatmul.mubr.f32.gmra.mrb[0].mxu0 %v2203
        %v2306 = vpop.f32.mrb[0].mxu0
        %v2307 = vadd.f32 %v2178, %v2306
        %v2308 = vpop.f32.mrb[0].mxu0
        %2309 = vdwg.mxu0
        %v2310 = vld [vmem:[#allocation3 + $0x2] sm:$0xff]
        %v2311 = vld [vmem:[#allocation3 + $0x12] sm:$0xff]
        %v2312 = vld [vmem:[#allocation3 + $0x22] sm:$0xff]
        %v2313 = vld [vmem:[#allocation3 + $0x32] sm:$0xff]
        %v2314 = vld [vmem:[#allocation3 + $0x42] sm:$0xff]
        %v2315 = vld [vmem:[#allocation3 + $0x52] sm:$0xff]
        %v2316 = vld [vmem:[#allocation3 + $0x62] sm:$0xff]
        %v2317 = vld [vmem:[#allocation3 + $0x72] sm:$0xff]
        %s2318 = scalar_lea.vmem %s3, 64
        %v2319 = vld [vmem:[%s2318] sm:$0xff]
        %v2320 = vld [vmem:[%s2318 + $0x8] sm:$0xff]
        %v2321 = vld [vmem:[%s2318 + $0x10] sm:$0xff]
        %v2322 = vld [vmem:[%s2318 + $0x18] sm:$0xff]
        %v2324 = vsel %vm1996, %v2310, 0
        %v2327 = vsel %vm1996, %v2311, 0
        %v2330 = vsel %vm1996, %v2312, 0
        %v2333 = vsel %vm1996, %v2313, 0
        %v2336 = vsel %vm1996, %v2314, 0
        %v2339 = vsel %vm1996, %v2315, 0
        %v2342 = vsel %vm1996, %v2316, 0
        %v2345 = vsel %vm1996, %v2317, 0
        %2347 = vmatprep.subr.mxu0 0.0
        %2348 = vmatpush1.msra.mxu0 %v2319
        %2349 = vmatprep.subr.mxu0 0.0
        %2350 = vmatpush1.msra.mxu0 %v2320
        %2351 = vmatprep.subr.mxu0 0.0
        %2352 = vmatpush1.msra.mxu0 %v2321
        %2353 = vmatprep.subr.mxu0 0.0
        %2354 = vmatpush1.msra.mxu0 %v2322
        %2355 = vmatprep.subr.mxu0 0.0
        %2356 = vmatpush1.msra.mxu0 0.0
        %2357 = vmatprep.subr.mxu0 0.0
        %2358 = vmatpush1.msra.mxu0 0.0
        %2359 = vmatprep.subr.mxu0 0.0
        %2360 = vmatpush1.msra.mxu0 0.0
        %2361 = vmatprep.subr.mxu0 0.0
        %2362 = vmatpush1.msra.mxu0 0.0
        %2363 = vmatprep.subr.mxu0 0.0
        %2364 = vmatpush1.msra.mxu0 0.0
        %2365 = vmatprep.subr.mxu0 0.0
        %2366 = vmatpush1.msra.mxu0 0.0
        %2367 = vmatprep.subr.mxu0 0.0
        %2368 = vmatpush1.msra.mxu0 0.0
        %2369 = vmatprep.subr.mxu0 0.0
        %2370 = vmatpush1.msra.mxu0 0.0
        %2371 = vmatprep.subr.mxu0 0.0
        %2372 = vmatpush1.msra.mxu0 0.0
        %2373 = vmatprep.subr.mxu0 0.0
        %2374 = vmatpush1.msra.mxu0 0.0
        %2375 = vmatprep.subr.mxu0 0.0
        %2376 = vmatpush1.msra.mxu0 0.0
        %2377 = vmatprep.subr.mxu0 0.0
        %2378 = vmatpush1.msra.mxu0 0.0
        %2379 = vmatprep.subr.mxu0 0.0
        %2380 = vmatpush1.msra.mxu0 0.0
        %2381 = vmatprep.subr.mxu0 0.0
        %2382 = vmatpush1.msra.mxu0 0.0
        %2383 = vmatprep.subr.mxu0 0.0
        %2384 = vmatpush1.msra.mxu0 0.0
        %2385 = vmatprep.subr.mxu0 0.0
        %2386 = vmatpush1.msra.mxu0 0.0
        %2387 = vmatprep.subr.mxu0 0.0
        %2388 = vmatpush1.msra.mxu0 0.0
        %2389 = vmatprep.subr.mxu0 0.0
        %2390 = vmatpush1.msra.mxu0 0.0
        %2391 = vmatprep.subr.mxu0 0.0
        %2392 = vmatpush1.msra.mxu0 0.0
        %2393 = vmatprep.subr.mxu0 0.0
        %2394 = vmatpush1.msra.mxu0 0.0
        %2395 = vmatprep.subr.mxu0 0.0
        %2396 = vmatpush1.msra.mxu0 0.0
        %2397 = vmatprep.subr.mxu0 0.0
        %2398 = vmatpush1.msra.mxu0 0.0
        %2399 = vmatprep.subr.mxu0 0.0
        %2400 = vmatpush1.msra.mxu0 0.0
        %2401 = vmatprep.subr.mxu0 0.0
        %2402 = vmatpush1.msra.mxu0 0.0
        %2403 = vmatprep.subr.mxu0 0.0
        %2404 = vmatpush1.msra.mxu0 0.0
        %2405 = vmatprep.subr.mxu0 0.0
        %2406 = vmatpush1.msra.mxu0 0.0
        %2407 = vmatprep.subr.mxu0 0.0
        %2408 = vmatpush1.msra.mxu0 0.0
        %2409 = vmatprep.subr.mxu0 0.0
        %2410 = vmatpush1.msra.mxu0 0.0
        %2411 = vmatprep.mubr.f32.mxu0 0.0
        %2412 = vmatmul.mubr.f32.gmra.mrb[0].mxu0 %v2324
        %v2413 = vpop.f32.mrb[0].mxu0
        %v2414 = vadd.f32 0.0, %v2413
        %v2415 = vpop.f32.mrb[0].mxu0
        %2416 = vmatprep.mubr.f32.mxu0 0.0
        %2417 = vmatmul.mubr.f32.gmra.mrb[0].mxu0 %v2327
        %v2418 = vpop.f32.mrb[0].mxu0
        %v2419 = vadd.f32 0.0, %v2418
        %v2420 = vpop.f32.mrb[0].mxu0
        %2421 = vmatprep.mubr.f32.mxu0 0.0
        %2422 = vmatmul.mubr.f32.gmra.mrb[0].mxu0 %v2330
        %v2423 = vpop.f32.mrb[0].mxu0
        %v2424 = vadd.f32 0.0, %v2423
        %v2425 = vpop.f32.mrb[0].mxu0
        %2426 = vmatprep.mubr.f32.mxu0 0.0
        %2427 = vmatmul.mubr.f32.gmra.mrb[0].mxu0 %v2333
        %v2428 = vpop.f32.mrb[0].mxu0
        %v2429 = vadd.f32 0.0, %v2428
        %v2430 = vpop.f32.mrb[0].mxu0
        %2431 = vmatprep.mubr.f32.mxu0 0.0
        %2432 = vmatmul.mubr.f32.gmra.mrb[0].mxu0 %v2336
        %v2433 = vpop.f32.mrb[0].mxu0
        %v2434 = vadd.f32 0.0, %v2433
        %v2435 = vpop.f32.mrb[0].mxu0
        %2436 = vmatprep.mubr.f32.mxu0 0.0
        %2437 = vmatmul.mubr.f32.gmra.mrb[0].mxu0 %v2339
        %v2438 = vpop.f32.mrb[0].mxu0
        %v2439 = vadd.f32 0.0, %v2438
        %v2440 = vpop.f32.mrb[0].mxu0
        %2441 = vmatprep.mubr.f32.mxu0 0.0
        %2442 = vmatmul.mubr.f32.gmra.mrb[0].mxu0 %v2342
        %v2443 = vpop.f32.mrb[0].mxu0
        %v2444 = vadd.f32 0.0, %v2443
        %v2445 = vpop.f32.mrb[0].mxu0
        %2446 = vmatprep.mubr.f32.mxu0 0.0
        %2447 = vmatmul.mubr.f32.gmra.mrb[0].mxu0 %v2345
        %v2448 = vpop.f32.mrb[0].mxu0
        %v2449 = vadd.f32 0.0, %v2448
        %v2450 = vpop.f32.mrb[0].mxu0
        %2451 = vdwg.mxu0
        %v2452 = vadd.f32 %v2272, %v2414
        %v2453 = vadd.f32 %v2277, %v2419
        %v2454 = vadd.f32 %v2282, %v2424
        %v2455 = vadd.f32 %v2287, %v2429
        %v2456 = vadd.f32 %v2292, %v2434
        %v2457 = vadd.f32 %v2297, %v2439
        %v2458 = vadd.f32 %v2302, %v2444
        %v2459 = vadd.f32 %v2307, %v2449
        %v2460 = vld [vmem:[%s2018] sm:$0xff]
        %v2461 = vld [vmem:[%s2018 + $0x10] sm:$0xff]
        %v2462 = vld [vmem:[%s2018 + $0x20] sm:$0xff]
        %v2463 = vld [vmem:[%s2018 + $0x30] sm:$0xff]
        %v2464 = vld [vmem:[%s2018 + $0x40] sm:$0xff]
        %v2465 = vld [vmem:[%s2018 + $0x50] sm:$0xff]
        %v2466 = vld [vmem:[%s2018 + $0x60] sm:$0xff]
        %v2467 = vld [vmem:[%s2018 + $0x70] sm:$0xff]
        %s2468 = scalar_lea.vmem %s3, 96
        %v2469 = vld [vmem:[%s2468] sm:$0xff]
        %v2470 = vld [vmem:[%s2468 + $0x8] sm:$0xff]
        %v2471 = vld [vmem:[%s2468 + $0x10] sm:$0xff]
        %v2472 = vld [vmem:[%s2468 + $0x18] sm:$0xff]
        %v2474 = vsel %vm1996, %v2460, 0
        %v2477 = vsel %vm1996, %v2461, 0
        %v2480 = vsel %vm1996, %v2462, 0
        %v2483 = vsel %vm1996, %v2463, 0
        %v2486 = vsel %vm1996, %v2464, 0
        %v2489 = vsel %vm1996, %v2465, 0
        %v2492 = vsel %vm1996, %v2466, 0
        %v2495 = vsel %vm1996, %v2467, 0
        %2497 = vmatprep.subr.mxu0 0.0
        %2498 = vmatpush1.msra.mxu0 %v2469
        %2499 = vmatprep.subr.mxu0 0.0
        %2500 = vmatpush1.msra.mxu0 %v2470
        %2501 = vmatprep.subr.mxu0 0.0
        %2502 = vmatpush1.msra.mxu0 %v2471
        %2503 = vmatprep.subr.mxu0 0.0
        %2504 = vmatpush1.msra.mxu0 %v2472
        %2505 = vmatprep.subr.mxu0 0.0
        %2506 = vmatpush1.msra.mxu0 0.0
        %2507 = vmatprep.subr.mxu0 0.0
        %2508 = vmatpush1.msra.mxu0 0.0
        %2509 = vmatprep.subr.mxu0 0.0
        %2510 = vmatpush1.msra.mxu0 0.0
        %2511 = vmatprep.subr.mxu0 0.0
        %2512 = vmatpush1.msra.mxu0 0.0
        %2513 = vmatprep.subr.mxu0 0.0
        %2514 = vmatpush1.msra.mxu0 0.0
        %2515 = vmatprep.subr.mxu0 0.0
        %2516 = vmatpush1.msra.mxu0 0.0
        %2517 = vmatprep.subr.mxu0 0.0
        %2518 = vmatpush1.msra.mxu0 0.0
        %2519 = vmatprep.subr.mxu0 0.0
        %2520 = vmatpush1.msra.mxu0 0.0
        %2521 = vmatprep.subr.mxu0 0.0
        %2522 = vmatpush1.msra.mxu0 0.0
        %2523 = vmatprep.subr.mxu0 0.0
        %2524 = vmatpush1.msra.mxu0 0.0
        %2525 = vmatprep.subr.mxu0 0.0
        %2526 = vmatpush1.msra.mxu0 0.0
        %2527 = vmatprep.subr.mxu0 0.0
        %2528 = vmatpush1.msra.mxu0 0.0
        %2529 = vmatprep.subr.mxu0 0.0
        %2530 = vmatpush1.msra.mxu0 0.0
        %2531 = vmatprep.subr.mxu0 0.0
        %2532 = vmatpush1.msra.mxu0 0.0
        %2533 = vmatprep.subr.mxu0 0.0
        %2534 = vmatpush1.msra.mxu0 0.0
        %2535 = vmatprep.subr.mxu0 0.0
        %2536 = vmatpush1.msra.mxu0 0.0
        %2537 = vmatprep.subr.mxu0 0.0
        %2538 = vmatpush1.msra.mxu0 0.0
        %2539 = vmatprep.subr.mxu0 0.0
        %2540 = vmatpush1.msra.mxu0 0.0
        %2541 = vmatprep.subr.mxu0 0.0
        %2542 = vmatpush1.msra.mxu0 0.0
        %2543 = vmatprep.subr.mxu0 0.0
        %2544 = vmatpush1.msra.mxu0 0.0
        %2545 = vmatprep.subr.mxu0 0.0
        %2546 = vmatpush1.msra.mxu0 0.0
        %2547 = vmatprep.subr.mxu0 0.0
        %2548 = vmatpush1.msra.mxu0 0.0
        %2549 = vmatprep.subr.mxu0 0.0
        %2550 = vmatpush1.msra.mxu0 0.0
        %2551 = vmatprep.subr.mxu0 0.0
        %2552 = vmatpush1.msra.mxu0 0.0
        %2553 = vmatprep.subr.mxu0 0.0
        %2554 = vmatpush1.msra.mxu0 0.0
        %2555 = vmatprep.subr.mxu0 0.0
        %2556 = vmatpush1.msra.mxu0 0.0
        %2557 = vmatprep.subr.mxu0 0.0
        %2558 = vmatpush1.msra.mxu0 0.0
        %2559 = vmatprep.subr.mxu0 0.0
        %2560 = vmatpush1.msra.mxu0 0.0
        %2561 = vmatprep.mubr.f32.mxu0 0.0
        %2562 = vmatmul.mubr.f32.gmra.mrb[0].mxu0 %v2474
        %v2563 = vpop.f32.mrb[0].mxu0
        %v2564 = vadd.f32 0.0, %v2563
        %v2565 = vpop.f32.mrb[0].mxu0
        %2566 = vmatprep.mubr.f32.mxu0 0.0
        %2567 = vmatmul.mubr.f32.gmra.mrb[0].mxu0 %v2477
        %v2568 = vpop.f32.mrb[0].mxu0
        %v2569 = vadd.f32 0.0, %v2568
        %v2570 = vpop.f32.mrb[0].mxu0
        %2571 = vmatprep.mubr.f32.mxu0 0.0
        %2572 = vmatmul.mubr.f32.gmra.mrb[0].mxu0 %v2480
        %v2573 = vpop.f32.mrb[0].mxu0
        %v2574 = vadd.f32 0.0, %v2573
        %v2575 = vpop.f32.mrb[0].mxu0
        %2576 = vmatprep.mubr.f32.mxu0 0.0
        %2577 = vmatmul.mubr.f32.gmra.mrb[0].mxu0 %v2483
        %v2578 = vpop.f32.mrb[0].mxu0
        %v2579 = vadd.f32 0.0, %v2578
        %v2580 = vpop.f32.mrb[0].mxu0
        %2581 = vmatprep.mubr.f32.mxu0 0.0
        %2582 = vmatmul.mubr.f32.gmra.mrb[0].mxu0 %v2486
        %v2583 = vpop.f32.mrb[0].mxu0
        %v2584 = vadd.f32 0.0, %v2583
        %v2585 = vpop.f32.mrb[0].mxu0
        %2586 = vmatprep.mubr.f32.mxu0 0.0
        %2587 = vmatmul.mubr.f32.gmra.mrb[0].mxu0 %v2489
        %v2588 = vpop.f32.mrb[0].mxu0
        %v2589 = vadd.f32 0.0, %v2588
        %v2590 = vpop.f32.mrb[0].mxu0
        %2591 = vmatprep.mubr.f32.mxu0 0.0
        %2592 = vmatmul.mubr.f32.gmra.mrb[0].mxu0 %v2492
        %v2593 = vpop.f32.mrb[0].mxu0
        %v2594 = vadd.f32 0.0, %v2593
        %v2595 = vpop.f32.mrb[0].mxu0
        %2596 = vmatprep.mubr.f32.mxu0 0.0
        %2597 = vmatmul.mubr.f32.gmra.mrb[0].mxu0 %v2495
        %v2598 = vpop.f32.mrb[0].mxu0
        %v2599 = vadd.f32 0.0, %v2598
        %v2600 = vpop.f32.mrb[0].mxu0
        %2601 = vdwg.mxu0
        %v2602 = vadd.f32 %v2452, %v2564
        %v2603 = vadd.f32 %v2453, %v2569
        %v2604 = vadd.f32 %v2454, %v2574
        %v2605 = vadd.f32 %v2455, %v2579
        %v2606 = vadd.f32 %v2456, %v2584
        %v2607 = vadd.f32 %v2457, %v2589
        %v2608 = vadd.f32 %v2458, %v2594
        %v2609 = vadd.f32 %v2459, %v2599
        %v2610 = vld [vmem:[%s2018 + $0x1] sm:$0xff]
        %v2611 = vld [vmem:[%s2018 + $0x11] sm:$0xff]
        %v2612 = vld [vmem:[%s2018 + $0x21] sm:$0xff]
        %v2613 = vld [vmem:[%s2018 + $0x31] sm:$0xff]
        %v2614 = vld [vmem:[%s2018 + $0x41] sm:$0xff]
        %v2615 = vld [vmem:[%s2018 + $0x51] sm:$0xff]
        %v2616 = vld [vmem:[%s2018 + $0x61] sm:$0xff]
        %v2617 = vld [vmem:[%s2018 + $0x71] sm:$0xff]
        %s2618 = scalar_lea.vmem %s3, 128
        %v2619 = vld [vmem:[%s2618] sm:$0xff]
        %v2620 = vld [vmem:[%s2618 + $0x8] sm:$0xff]
        %v2621 = vld [vmem:[%s2618 + $0x10] sm:$0xff]
        %v2622 = vld [vmem:[%s2618 + $0x18] sm:$0xff]
        %v2624 = vsel %vm1996, %v2610, 0
        %v2627 = vsel %vm1996, %v2611, 0
        %v2630 = vsel %vm1996, %v2612, 0
        %v2633 = vsel %vm1996, %v2613, 0
        %v2636 = vsel %vm1996, %v2614, 0
        %v2639 = vsel %vm1996, %v2615, 0
        %v2642 = vsel %vm1996, %v2616, 0
        %v2645 = vsel %vm1996, %v2617, 0
        %2647 = vmatprep.subr.mxu0 0.0
        %2648 = vmatpush1.msra.mxu0 %v2619
        %2649 = vmatprep.subr.mxu0 0.0
        %2650 = vmatpush1.msra.mxu0 %v2620
        %2651 = vmatprep.subr.mxu0 0.0
        %2652 = vmatpush1.msra.mxu0 %v2621
        %2653 = vmatprep.subr.mxu0 0.0
        %2654 = vmatpush1.msra.mxu0 %v2622
        %2655 = vmatprep.subr.mxu0 0.0
        %2656 = vmatpush1.msra.mxu0 0.0
        %2657 = vmatprep.subr.mxu0 0.0
        %2658 = vmatpush1.msra.mxu0 0.0
        %2659 = vmatprep.subr.mxu0 0.0
        %2660 = vmatpush1.msra.mxu0 0.0
        %2661 = vmatprep.subr.mxu0 0.0
        %2662 = vmatpush1.msra.mxu0 0.0
        %2663 = vmatprep.subr.mxu0 0.0
        %2664 = vmatpush1.msra.mxu0 0.0
        %2665 = vmatprep.subr.mxu0 0.0
        %2666 = vmatpush1.msra.mxu0 0.0
        %2667 = vmatprep.subr.mxu0 0.0
        %2668 = vmatpush1.msra.mxu0 0.0
        %2669 = vmatprep.subr.mxu0 0.0
        %2670 = vmatpush1.msra.mxu0 0.0
        %2671 = vmatprep.subr.mxu0 0.0
        %2672 = vmatpush1.msra.mxu0 0.0
        %2673 = vmatprep.subr.mxu0 0.0
        %2674 = vmatpush1.msra.mxu0 0.0
        %2675 = vmatprep.subr.mxu0 0.0
        %2676 = vmatpush1.msra.mxu0 0.0
        %2677 = vmatprep.subr.mxu0 0.0
        %2678 = vmatpush1.msra.mxu0 0.0
        %2679 = vmatprep.subr.mxu0 0.0
        %2680 = vmatpush1.msra.mxu0 0.0
        %2681 = vmatprep.subr.mxu0 0.0
        %2682 = vmatpush1.msra.mxu0 0.0
        %2683 = vmatprep.subr.mxu0 0.0
        %2684 = vmatpush1.msra.mxu0 0.0
        %2685 = vmatprep.subr.mxu0 0.0
        %2686 = vmatpush1.msra.mxu0 0.0
        %2687 = vmatprep.subr.mxu0 0.0
        %2688 = vmatpush1.msra.mxu0 0.0
        %2689 = vmatprep.subr.mxu0 0.0
        %2690 = vmatpush1.msra.mxu0 0.0
        %2691 = vmatprep.subr.mxu0 0.0
        %2692 = vmatpush1.msra.mxu0 0.0
        %2693 = vmatprep.subr.mxu0 0.0
        %2694 = vmatpush1.msra.mxu0 0.0
        %2695 = vmatprep.subr.mxu0 0.0
        %2696 = vmatpush1.msra.mxu0 0.0
        %2697 = vmatprep.subr.mxu0 0.0
        %2698 = vmatpush1.msra.mxu0 0.0
        %2699 = vmatprep.subr.mxu0 0.0
        %2700 = vmatpush1.msra.mxu0 0.0
        %2701 = vmatprep.subr.mxu0 0.0
        %2702 = vmatpush1.msra.mxu0 0.0
        %2703 = vmatprep.subr.mxu0 0.0
        %2704 = vmatpush1.msra.mxu0 0.0
        %2705 = vmatprep.subr.mxu0 0.0
        %2706 = vmatpush1.msra.mxu0 0.0
        %2707 = vmatprep.subr.mxu0 0.0
        %2708 = vmatpush1.msra.mxu0 0.0
        %2709 = vmatprep.subr.mxu0 0.0
        %2710 = vmatpush1.msra.mxu0 0.0
        %2711 = vmatprep.mubr.f32.mxu0 0.0
        %2712 = vmatmul.mubr.f32.gmra.mrb[0].mxu0 %v2624
        %v2713 = vpop.f32.mrb[0].mxu0
        %v2714 = vadd.f32 0.0, %v2713
        %v2715 = vpop.f32.mrb[0].mxu0
        %2716 = vmatprep.mubr.f32.mxu0 0.0
        %2717 = vmatmul.mubr.f32.gmra.mrb[0].mxu0 %v2627
        %v2718 = vpop.f32.mrb[0].mxu0
        %v2719 = vadd.f32 0.0, %v2718
        %v2720 = vpop.f32.mrb[0].mxu0
        %2721 = vmatprep.mubr.f32.mxu0 0.0
        %2722 = vmatmul.mubr.f32.gmra.mrb[0].mxu0 %v2630
        %v2723 = vpop.f32.mrb[0].mxu0
        %v2724 = vadd.f32 0.0, %v2723
        %v2725 = vpop.f32.mrb[0].mxu0
        %2726 = vmatprep.mubr.f32.mxu0 0.0
        %2727 = vmatmul.mubr.f32.gmra.mrb[0].mxu0 %v2633
        %v2728 = vpop.f32.mrb[0].mxu0
        %v2729 = vadd.f32 0.0, %v2728
        %v2730 = vpop.f32.mrb[0].mxu0
        %2731 = vmatprep.mubr.f32.mxu0 0.0
        %2732 = vmatmul.mubr.f32.gmra.mrb[0].mxu0 %v2636
        %v2733 = vpop.f32.mrb[0].mxu0
        %v2734 = vadd.f32 0.0, %v2733
        %v2735 = vpop.f32.mrb[0].mxu0
        %2736 = vmatprep.mubr.f32.mxu0 0.0
        %2737 = vmatmul.mubr.f32.gmra.mrb[0].mxu0 %v2639
        %v2738 = vpop.f32.mrb[0].mxu0
        %v2739 = vadd.f32 0.0, %v2738
        %v2740 = vpop.f32.mrb[0].mxu0
        %2741 = vmatprep.mubr.f32.mxu0 0.0
        %2742 = vmatmul.mubr.f32.gmra.mrb[0].mxu0 %v2642
        %v2743 = vpop.f32.mrb[0].mxu0
        %v2744 = vadd.f32 0.0, %v2743
        %v2745 = vpop.f32.mrb[0].mxu0
        %2746 = vmatprep.mubr.f32.mxu0 0.0
        %2747 = vmatmul.mubr.f32.gmra.mrb[0].mxu0 %v2645
        %v2748 = vpop.f32.mrb[0].mxu0
        %v2749 = vadd.f32 0.0, %v2748
        %v2750 = vpop.f32.mrb[0].mxu0
        %2751 = vdwg.mxu0
        %v2752 = vadd.f32 %v2602, %v2714
        %v2753 = vadd.f32 %v2603, %v2719
        %v2754 = vadd.f32 %v2604, %v2724
        %v2755 = vadd.f32 %v2605, %v2729
        %v2756 = vadd.f32 %v2606, %v2734
        %v2757 = vadd.f32 %v2607, %v2739
        %v2758 = vadd.f32 %v2608, %v2744
        %v2759 = vadd.f32 %v2609, %v2749
        %v2760 = vld [vmem:[%s2018 + $0x2] sm:$0xff]
        %v2761 = vld [vmem:[%s2018 + $0x12] sm:$0xff]
        %v2762 = vld [vmem:[%s2018 + $0x22] sm:$0xff]
        %v2763 = vld [vmem:[%s2018 + $0x32] sm:$0xff]
        %v2764 = vld [vmem:[%s2018 + $0x42] sm:$0xff]
        %v2765 = vld [vmem:[%s2018 + $0x52] sm:$0xff]
        %v2766 = vld [vmem:[%s2018 + $0x62] sm:$0xff]
        %v2767 = vld [vmem:[%s2018 + $0x72] sm:$0xff]
        %s2768 = scalar_lea.vmem %s3, 160
        %v2769 = vld [vmem:[%s2768] sm:$0xff]
        %v2770 = vld [vmem:[%s2768 + $0x8] sm:$0xff]
        %v2771 = vld [vmem:[%s2768 + $0x10] sm:$0xff]
        %v2772 = vld [vmem:[%s2768 + $0x18] sm:$0xff]
        %v2774 = vsel %vm1996, %v2760, 0
        %v2777 = vsel %vm1996, %v2761, 0
        %v2780 = vsel %vm1996, %v2762, 0
        %v2783 = vsel %vm1996, %v2763, 0
        %v2786 = vsel %vm1996, %v2764, 0
        %v2789 = vsel %vm1996, %v2765, 0
        %v2792 = vsel %vm1996, %v2766, 0
        %v2795 = vsel %vm1996, %v2767, 0
        %2797 = vmatprep.subr.mxu0 0.0
        %2798 = vmatpush1.msra.mxu0 %v2769
        %2799 = vmatprep.subr.mxu0 0.0
        %2800 = vmatpush1.msra.mxu0 %v2770
        %2801 = vmatprep.subr.mxu0 0.0
        %2802 = vmatpush1.msra.mxu0 %v2771
        %2803 = vmatprep.subr.mxu0 0.0
        %2804 = vmatpush1.msra.mxu0 %v2772
        %2805 = vmatprep.subr.mxu0 0.0
        %2806 = vmatpush1.msra.mxu0 0.0
        %2807 = vmatprep.subr.mxu0 0.0
        %2808 = vmatpush1.msra.mxu0 0.0
        %2809 = vmatprep.subr.mxu0 0.0
        %2810 = vmatpush1.msra.mxu0 0.0
        %2811 = vmatprep.subr.mxu0 0.0
        %2812 = vmatpush1.msra.mxu0 0.0
        %2813 = vmatprep.subr.mxu0 0.0
        %2814 = vmatpush1.msra.mxu0 0.0
        %2815 = vmatprep.subr.mxu0 0.0
        %2816 = vmatpush1.msra.mxu0 0.0
        %2817 = vmatprep.subr.mxu0 0.0
        %2818 = vmatpush1.msra.mxu0 0.0
        %2819 = vmatprep.subr.mxu0 0.0
        %2820 = vmatpush1.msra.mxu0 0.0
        %2821 = vmatprep.subr.mxu0 0.0
        %2822 = vmatpush1.msra.mxu0 0.0
        %2823 = vmatprep.subr.mxu0 0.0
        %2824 = vmatpush1.msra.mxu0 0.0
        %2825 = vmatprep.subr.mxu0 0.0
        %2826 = vmatpush1.msra.mxu0 0.0
        %2827 = vmatprep.subr.mxu0 0.0
        %2828 = vmatpush1.msra.mxu0 0.0
        %2829 = vmatprep.subr.mxu0 0.0
        %2830 = vmatpush1.msra.mxu0 0.0
        %2831 = vmatprep.subr.mxu0 0.0
        %2832 = vmatpush1.msra.mxu0 0.0
        %2833 = vmatprep.subr.mxu0 0.0
        %2834 = vmatpush1.msra.mxu0 0.0
        %2835 = vmatprep.subr.mxu0 0.0
        %2836 = vmatpush1.msra.mxu0 0.0
        %2837 = vmatprep.subr.mxu0 0.0
        %2838 = vmatpush1.msra.mxu0 0.0
        %2839 = vmatprep.subr.mxu0 0.0
        %2840 = vmatpush1.msra.mxu0 0.0
        %2841 = vmatprep.subr.mxu0 0.0
        %2842 = vmatpush1.msra.mxu0 0.0
        %2843 = vmatprep.subr.mxu0 0.0
        %2844 = vmatpush1.msra.mxu0 0.0
        %2845 = vmatprep.subr.mxu0 0.0
        %2846 = vmatpush1.msra.mxu0 0.0
        %2847 = vmatprep.subr.mxu0 0.0
        %2848 = vmatpush1.msra.mxu0 0.0
        %2849 = vmatprep.subr.mxu0 0.0
        %2850 = vmatpush1.msra.mxu0 0.0
        %2851 = vmatprep.subr.mxu0 0.0
        %2852 = vmatpush1.msra.mxu0 0.0
        %2853 = vmatprep.subr.mxu0 0.0
        %2854 = vmatpush1.msra.mxu0 0.0
        %2855 = vmatprep.subr.mxu0 0.0
        %2856 = vmatpush1.msra.mxu0 0.0
        %2857 = vmatprep.subr.mxu0 0.0
        %2858 = vmatpush1.msra.mxu0 0.0
        %2859 = vmatprep.subr.mxu0 0.0
        %2860 = vmatpush1.msra.mxu0 0.0
        %2861 = vmatprep.mubr.f32.mxu0 0.0
        %2862 = vmatmul.mubr.f32.gmra.mrb[0].mxu0 %v2774
        %v2863 = vpop.f32.mrb[0].mxu0
        %v2864 = vadd.f32 0.0, %v2863
        %v2865 = vpop.f32.mrb[0].mxu0
        %2866 = vmatprep.mubr.f32.mxu0 0.0
        %2867 = vmatmul.mubr.f32.gmra.mrb[0].mxu0 %v2777
        %v2868 = vpop.f32.mrb[0].mxu0
        %v2869 = vadd.f32 0.0, %v2868
        %v2870 = vpop.f32.mrb[0].mxu0
        %2871 = vmatprep.mubr.f32.mxu0 0.0
        %2872 = vmatmul.mubr.f32.gmra.mrb[0].mxu0 %v2780
        %v2873 = vpop.f32.mrb[0].mxu0
        %v2874 = vadd.f32 0.0, %v2873
        %v2875 = vpop.f32.mrb[0].mxu0
        %2876 = vmatprep.mubr.f32.mxu0 0.0
        %2877 = vmatmul.mubr.f32.gmra.mrb[0].mxu0 %v2783
        %v2878 = vpop.f32.mrb[0].mxu0
        %v2879 = vadd.f32 0.0, %v2878
        %v2880 = vpop.f32.mrb[0].mxu0
        %2881 = vmatprep.mubr.f32.mxu0 0.0
        %2882 = vmatmul.mubr.f32.gmra.mrb[0].mxu0 %v2786
        %v2883 = vpop.f32.mrb[0].mxu0
        %v2884 = vadd.f32 0.0, %v2883
        %v2885 = vpop.f32.mrb[0].mxu0
        %2886 = vmatprep.mubr.f32.mxu0 0.0
        %2887 = vmatmul.mubr.f32.gmra.mrb[0].mxu0 %v2789
        %v2888 = vpop.f32.mrb[0].mxu0
        %v2889 = vadd.f32 0.0, %v2888
        %v2890 = vpop.f32.mrb[0].mxu0
        %2891 = vmatprep.mubr.f32.mxu0 0.0
        %2892 = vmatmul.mubr.f32.gmra.mrb[0].mxu0 %v2792
        %v2893 = vpop.f32.mrb[0].mxu0
        %v2894 = vadd.f32 0.0, %v2893
        %v2895 = vpop.f32.mrb[0].mxu0
        %2896 = vmatprep.mubr.f32.mxu0 0.0
        %2897 = vmatmul.mubr.f32.gmra.mrb[0].mxu0 %v2795
        %v2898 = vpop.f32.mrb[0].mxu0
        %v2899 = vadd.f32 0.0, %v2898
        %v2900 = vpop.f32.mrb[0].mxu0
        %2901 = vdwg.mxu0
        %v2902 = vadd.f32 %v2752, %v2864
        %v2903 = vadd.f32 %v2753, %v2869
        %v2904 = vadd.f32 %v2754, %v2874
        %v2905 = vadd.f32 %v2755, %v2879
        %v2906 = vadd.f32 %v2756, %v2884
        %v2907 = vadd.f32 %v2757, %v2889
        %v2908 = vadd.f32 %v2758, %v2894
        %v2909 = vadd.f32 %v2759, %v2899
        %s2910 = scalar_lea.vmem [#allocation3], 32
        %v2911 = vld [vmem:[%s2910] sm:$0xff]
        %v2912 = vld [vmem:[%s2910 + $0x10] sm:$0xff]
        %v2913 = vld [vmem:[%s2910 + $0x20] sm:$0xff]
        %v2914 = vld [vmem:[%s2910 + $0x30] sm:$0xff]
        %v2915 = vld [vmem:[%s2910 + $0x40] sm:$0xff]
        %v2916 = vld [vmem:[%s2910 + $0x50] sm:$0xff]
        %v2917 = vld [vmem:[%s2910 + $0x60] sm:$0xff]
        %v2918 = vld [vmem:[%s2910 + $0x70] sm:$0xff]
        %s2919 = scalar_lea.vmem %s3, 192
        %v2920 = vld [vmem:[%s2919] sm:$0xff]
        %v2921 = vld [vmem:[%s2919 + $0x8] sm:$0xff]
        %v2922 = vld [vmem:[%s2919 + $0x10] sm:$0xff]
        %v2923 = vld [vmem:[%s2919 + $0x18] sm:$0xff]
        %v2925 = vsel %vm1996, %v2911, 0
        %v2928 = vsel %vm1996, %v2912, 0
        %v2931 = vsel %vm1996, %v2913, 0
        %v2934 = vsel %vm1996, %v2914, 0
        %v2937 = vsel %vm1996, %v2915, 0
        %v2940 = vsel %vm1996, %v2916, 0
        %v2943 = vsel %vm1996, %v2917, 0
        %v2946 = vsel %vm1996, %v2918, 0
        %2948 = vmatprep.subr.mxu0 0.0
        %2949 = vmatpush1.msra.mxu0 %v2920
        %2950 = vmatprep.subr.mxu0 0.0
        %2951 = vmatpush1.msra.mxu0 %v2921
        %2952 = vmatprep.subr.mxu0 0.0
        %2953 = vmatpush1.msra.mxu0 %v2922
        %2954 = vmatprep.subr.mxu0 0.0
        %2955 = vmatpush1.msra.mxu0 %v2923
        %2956 = vmatprep.subr.mxu0 0.0
        %2957 = vmatpush1.msra.mxu0 0.0
        %2958 = vmatprep.subr.mxu0 0.0
        %2959 = vmatpush1.msra.mxu0 0.0
        %2960 = vmatprep.subr.mxu0 0.0
        %2961 = vmatpush1.msra.mxu0 0.0
        %2962 = vmatprep.subr.mxu0 0.0
        %2963 = vmatpush1.msra.mxu0 0.0
        %2964 = vmatprep.subr.mxu0 0.0
        %2965 = vmatpush1.msra.mxu0 0.0
        %2966 = vmatprep.subr.mxu0 0.0
        %2967 = vmatpush1.msra.mxu0 0.0
        %2968 = vmatprep.subr.mxu0 0.0
        %2969 = vmatpush1.msra.mxu0 0.0
        %2970 = vmatprep.subr.mxu0 0.0
        %2971 = vmatpush1.msra.mxu0 0.0
        %2972 = vmatprep.subr.mxu0 0.0
        %2973 = vmatpush1.msra.mxu0 0.0
        %2974 = vmatprep.subr.mxu0 0.0
        %2975 = vmatpush1.msra.mxu0 0.0
        %2976 = vmatprep.subr.mxu0 0.0
        %2977 = vmatpush1.msra.mxu0 0.0
        %2978 = vmatprep.subr.mxu0 0.0
        %2979 = vmatpush1.msra.mxu0 0.0
        %2980 = vmatprep.subr.mxu0 0.0
        %2981 = vmatpush1.msra.mxu0 0.0
        %2982 = vmatprep.subr.mxu0 0.0
        %2983 = vmatpush1.msra.mxu0 0.0
        %2984 = vmatprep.subr.mxu0 0.0
        %2985 = vmatpush1.msra.mxu0 0.0
        %2986 = vmatprep.subr.mxu0 0.0
        %2987 = vmatpush1.msra.mxu0 0.0
        %2988 = vmatprep.subr.mxu0 0.0
        %2989 = vmatpush1.msra.mxu0 0.0
        %2990 = vmatprep.subr.mxu0 0.0
        %2991 = vmatpush1.msra.mxu0 0.0
        %2992 = vmatprep.subr.mxu0 0.0
        %2993 = vmatpush1.msra.mxu0 0.0
        %2994 = vmatprep.subr.mxu0 0.0
        %2995 = vmatpush1.msra.mxu0 0.0
        %2996 = vmatprep.subr.mxu0 0.0
        %2997 = vmatpush1.msra.mxu0 0.0
        %2998 = vmatprep.subr.mxu0 0.0
        %2999 = vmatpush1.msra.mxu0 0.0
        %3000 = vmatprep.subr.mxu0 0.0
        %3001 = vmatpush1.msra.mxu0 0.0
        %3002 = vmatprep.subr.mxu0 0.0
        %3003 = vmatpush1.msra.mxu0 0.0
        %3004 = vmatprep.subr.mxu0 0.0
        %3005 = vmatpush1.msra.mxu0 0.0
        %3006 = vmatprep.subr.mxu0 0.0
        %3007 = vmatpush1.msra.mxu0 0.0
        %3008 = vmatprep.subr.mxu0 0.0
        %3009 = vmatpush1.msra.mxu0 0.0
        %3010 = vmatprep.subr.mxu0 0.0
        %3011 = vmatpush1.msra.mxu0 0.0
        %3012 = vmatprep.mubr.f32.mxu0 0.0
        %3013 = vmatmul.mubr.f32.gmra.mrb[0].mxu0 %v2925
        %v3014 = vpop.f32.mrb[0].mxu0
        %v3015 = vadd.f32 0.0, %v3014
        %v3016 = vpop.f32.mrb[0].mxu0
        %3017 = vmatprep.mubr.f32.mxu0 0.0
        %3018 = vmatmul.mubr.f32.gmra.mrb[0].mxu0 %v2928
        %v3019 = vpop.f32.mrb[0].mxu0
        %v3020 = vadd.f32 0.0, %v3019
        %v3021 = vpop.f32.mrb[0].mxu0
        %3022 = vmatprep.mubr.f32.mxu0 0.0
        %3023 = vmatmul.mubr.f32.gmra.mrb[0].mxu0 %v2931
        %v3024 = vpop.f32.mrb[0].mxu0
        %v3025 = vadd.f32 0.0, %v3024
        %v3026 = vpop.f32.mrb[0].mxu0
        %3027 = vmatprep.mubr.f32.mxu0 0.0
        %3028 = vmatmul.mubr.f32.gmra.mrb[0].mxu0 %v2934
        %v3029 = vpop.f32.mrb[0].mxu0
        %v3030 = vadd.f32 0.0, %v3029
        %v3031 = vpop.f32.mrb[0].mxu0
        %3032 = vmatprep.mubr.f32.mxu0 0.0
        %3033 = vmatmul.mubr.f32.gmra.mrb[0].mxu0 %v2937
        %v3034 = vpop.f32.mrb[0].mxu0
        %v3035 = vadd.f32 0.0, %v3034
        %v3036 = vpop.f32.mrb[0].mxu0
        %3037 = vmatprep.mubr.f32.mxu0 0.0
        %3038 = vmatmul.mubr.f32.gmra.mrb[0].mxu0 %v2940
        %v3039 = vpop.f32.mrb[0].mxu0
        %v3040 = vadd.f32 0.0, %v3039
        %v3041 = vpop.f32.mrb[0].mxu0
        %3042 = vmatprep.mubr.f32.mxu0 0.0
        %3043 = vmatmul.mubr.f32.gmra.mrb[0].mxu0 %v2943
        %v3044 = vpop.f32.mrb[0].mxu0
        %v3045 = vadd.f32 0.0, %v3044
        %v3046 = vpop.f32.mrb[0].mxu0
        %3047 = vmatprep.mubr.f32.mxu0 0.0
        %3048 = vmatmul.mubr.f32.gmra.mrb[0].mxu0 %v2946
        %v3049 = vpop.f32.mrb[0].mxu0
        %v3050 = vadd.f32 0.0, %v3049
        %v3051 = vpop.f32.mrb[0].mxu0
        %3052 = vdwg.mxu0
        %v3053 = vadd.f32 %v2902, %v3015
        %v3054 = vadd.f32 %v2903, %v3020
        %v3055 = vadd.f32 %v2904, %v3025
        %v3056 = vadd.f32 %v2905, %v3030
        %v3057 = vadd.f32 %v2906, %v3035
        %v3058 = vadd.f32 %v2907, %v3040
        %v3059 = vadd.f32 %v2908, %v3045
        %v3060 = vadd.f32 %v2909, %v3050
        %v3061 = vld [vmem:[%s2910 + $0x1] sm:$0xff]
        %v3062 = vld [vmem:[%s2910 + $0x11] sm:$0xff]
        %v3063 = vld [vmem:[%s2910 + $0x21] sm:$0xff]
        %v3064 = vld [vmem:[%s2910 + $0x31] sm:$0xff]
        %v3065 = vld [vmem:[%s2910 + $0x41] sm:$0xff]
        %v3066 = vld [vmem:[%s2910 + $0x51] sm:$0xff]
        %v3067 = vld [vmem:[%s2910 + $0x61] sm:$0xff]
        %v3068 = vld [vmem:[%s2910 + $0x71] sm:$0xff]
        %s3069 = scalar_lea.vmem %s3, 224
        %v3070 = vld [vmem:[%s3069] sm:$0xff]
        %v3071 = vld [vmem:[%s3069 + $0x8] sm:$0xff]
        %v3072 = vld [vmem:[%s3069 + $0x10] sm:$0xff]
        %v3073 = vld [vmem:[%s3069 + $0x18] sm:$0xff]
        %v3075 = vsel %vm1996, %v3061, 0
        %v3078 = vsel %vm1996, %v3062, 0
        %v3081 = vsel %vm1996, %v3063, 0
        %v3084 = vsel %vm1996, %v3064, 0
        %v3087 = vsel %vm1996, %v3065, 0
        %v3090 = vsel %vm1996, %v3066, 0
        %v3093 = vsel %vm1996, %v3067, 0
        %v3096 = vsel %vm1996, %v3068, 0
        %3098 = vmatprep.subr.mxu0 0.0
        %3099 = vmatpush1.msra.mxu0 %v3070
        %3100 = vmatprep.subr.mxu0 0.0
        %3101 = vmatpush1.msra.mxu0 %v3071
        %3102 = vmatprep.subr.mxu0 0.0
        %3103 = vmatpush1.msra.mxu0 %v3072
        %3104 = vmatprep.subr.mxu0 0.0
        %3105 = vmatpush1.msra.mxu0 %v3073
        %3106 = vmatprep.subr.mxu0 0.0
        %3107 = vmatpush1.msra.mxu0 0.0
        %3108 = vmatprep.subr.mxu0 0.0
        %3109 = vmatpush1.msra.mxu0 0.0
        %3110 = vmatprep.subr.mxu0 0.0
        %3111 = vmatpush1.msra.mxu0 0.0
        %3112 = vmatprep.subr.mxu0 0.0
        %3113 = vmatpush1.msra.mxu0 0.0
        %3114 = vmatprep.subr.mxu0 0.0
        %3115 = vmatpush1.msra.mxu0 0.0
        %3116 = vmatprep.subr.mxu0 0.0
        %3117 = vmatpush1.msra.mxu0 0.0
        %3118 = vmatprep.subr.mxu0 0.0
        %3119 = vmatpush1.msra.mxu0 0.0
        %3120 = vmatprep.subr.mxu0 0.0
        %3121 = vmatpush1.msra.mxu0 0.0
        %3122 = vmatprep.subr.mxu0 0.0
        %3123 = vmatpush1.msra.mxu0 0.0
        %3124 = vmatprep.subr.mxu0 0.0
        %3125 = vmatpush1.msra.mxu0 0.0
        %3126 = vmatprep.subr.mxu0 0.0
        %3127 = vmatpush1.msra.mxu0 0.0
        %3128 = vmatprep.subr.mxu0 0.0
        %3129 = vmatpush1.msra.mxu0 0.0
        %3130 = vmatprep.subr.mxu0 0.0
        %3131 = vmatpush1.msra.mxu0 0.0
        %3132 = vmatprep.subr.mxu0 0.0
        %3133 = vmatpush1.msra.mxu0 0.0
        %3134 = vmatprep.subr.mxu0 0.0
        %3135 = vmatpush1.msra.mxu0 0.0
        %3136 = vmatprep.subr.mxu0 0.0
        %3137 = vmatpush1.msra.mxu0 0.0
        %3138 = vmatprep.subr.mxu0 0.0
        %3139 = vmatpush1.msra.mxu0 0.0
        %3140 = vmatprep.subr.mxu0 0.0
        %3141 = vmatpush1.msra.mxu0 0.0
        %3142 = vmatprep.subr.mxu0 0.0
        %3143 = vmatpush1.msra.mxu0 0.0
        %3144 = vmatprep.subr.mxu0 0.0
        %3145 = vmatpush1.msra.mxu0 0.0
        %3146 = vmatprep.subr.mxu0 0.0
        %3147 = vmatpush1.msra.mxu0 0.0
        %3148 = vmatprep.subr.mxu0 0.0
        %3149 = vmatpush1.msra.mxu0 0.0
        %3150 = vmatprep.subr.mxu0 0.0
        %3151 = vmatpush1.msra.mxu0 0.0
        %3152 = vmatprep.subr.mxu0 0.0
        %3153 = vmatpush1.msra.mxu0 0.0
        %3154 = vmatprep.subr.mxu0 0.0
        %3155 = vmatpush1.msra.mxu0 0.0
        %3156 = vmatprep.subr.mxu0 0.0
        %3157 = vmatpush1.msra.mxu0 0.0
        %3158 = vmatprep.subr.mxu0 0.0
        %3159 = vmatpush1.msra.mxu0 0.0
        %3160 = vmatprep.subr.mxu0 0.0
        %3161 = vmatpush1.msra.mxu0 0.0
        %3162 = vmatprep.mubr.f32.mxu0 0.0
        %3163 = vmatmul.mubr.f32.gmra.mrb[0].mxu0 %v3075
        %v3164 = vpop.f32.mrb[0].mxu0
        %v3165 = vadd.f32 0.0, %v3164
        %v3166 = vpop.f32.mrb[0].mxu0
        %3167 = vmatprep.mubr.f32.mxu0 0.0
        %3168 = vmatmul.mubr.f32.gmra.mrb[0].mxu0 %v3078
        %v3169 = vpop.f32.mrb[0].mxu0
        %v3170 = vadd.f32 0.0, %v3169
        %v3171 = vpop.f32.mrb[0].mxu0
        %3172 = vmatprep.mubr.f32.mxu0 0.0
        %3173 = vmatmul.mubr.f32.gmra.mrb[0].mxu0 %v3081
        %v3174 = vpop.f32.mrb[0].mxu0
        %v3175 = vadd.f32 0.0, %v3174
        %v3176 = vpop.f32.mrb[0].mxu0
        %3177 = vmatprep.mubr.f32.mxu0 0.0
        %3178 = vmatmul.mubr.f32.gmra.mrb[0].mxu0 %v3084
        %v3179 = vpop.f32.mrb[0].mxu0
        %v3180 = vadd.f32 0.0, %v3179
        %v3181 = vpop.f32.mrb[0].mxu0
        %3182 = vmatprep.mubr.f32.mxu0 0.0
        %3183 = vmatmul.mubr.f32.gmra.mrb[0].mxu0 %v3087
        %v3184 = vpop.f32.mrb[0].mxu0
        %v3185 = vadd.f32 0.0, %v3184
        %v3186 = vpop.f32.mrb[0].mxu0
        %3187 = vmatprep.mubr.f32.mxu0 0.0
        %3188 = vmatmul.mubr.f32.gmra.mrb[0].mxu0 %v3090
        %v3189 = vpop.f32.mrb[0].mxu0
        %v3190 = vadd.f32 0.0, %v3189
        %v3191 = vpop.f32.mrb[0].mxu0
        %3192 = vmatprep.mubr.f32.mxu0 0.0
        %3193 = vmatmul.mubr.f32.gmra.mrb[0].mxu0 %v3093
        %v3194 = vpop.f32.mrb[0].mxu0
        %v3195 = vadd.f32 0.0, %v3194
        %v3196 = vpop.f32.mrb[0].mxu0
        %3197 = vmatprep.mubr.f32.mxu0 0.0
        %3198 = vmatmul.mubr.f32.gmra.mrb[0].mxu0 %v3096
        %v3199 = vpop.f32.mrb[0].mxu0
        %v3200 = vadd.f32 0.0, %v3199
        %v3201 = vpop.f32.mrb[0].mxu0
        %3202 = vdwg.mxu0
        %v3203 = vadd.f32 %v3053, %v3165
        %v3204 = vadd.f32 %v3054, %v3170
        %v3205 = vadd.f32 %v3055, %v3175
        %v3206 = vadd.f32 %v3056, %v3180
        %v3207 = vadd.f32 %v3057, %v3185
        %v3208 = vadd.f32 %v3058, %v3190
        %v3209 = vadd.f32 %v3059, %v3195
        %v3210 = vadd.f32 %v3060, %v3200
        %v3211 = vld [vmem:[%s2910 + $0x2] sm:$0xff]
        %v3212 = vld [vmem:[%s2910 + $0x12] sm:$0xff]
        %v3213 = vld [vmem:[%s2910 + $0x22] sm:$0xff]
        %v3214 = vld [vmem:[%s2910 + $0x32] sm:$0xff]
        %v3215 = vld [vmem:[%s2910 + $0x42] sm:$0xff]
        %v3216 = vld [vmem:[%s2910 + $0x52] sm:$0xff]
        %v3217 = vld [vmem:[%s2910 + $0x62] sm:$0xff]
        %v3218 = vld [vmem:[%s2910 + $0x72] sm:$0xff]
        %s3219 = scalar_lea.vmem %s3, 256
        %v3220 = vld [vmem:[%s3219] sm:$0xff]
        %v3221 = vld [vmem:[%s3219 + $0x8] sm:$0xff]
        %v3222 = vld [vmem:[%s3219 + $0x10] sm:$0xff]
        %v3223 = vld [vmem:[%s3219 + $0x18] sm:$0xff]
        %v3225 = vsel %vm1996, %v3211, 0
        %v3228 = vsel %vm1996, %v3212, 0
        %v3231 = vsel %vm1996, %v3213, 0
        %v3234 = vsel %vm1996, %v3214, 0
        %v3237 = vsel %vm1996, %v3215, 0
        %v3240 = vsel %vm1996, %v3216, 0
        %v3243 = vsel %vm1996, %v3217, 0
        %v3246 = vsel %vm1996, %v3218, 0
        %3248 = vmatprep.subr.mxu0 0.0
        %3249 = vmatpush1.msra.mxu0 %v3220
        %3250 = vmatprep.subr.mxu0 0.0
        %3251 = vmatpush1.msra.mxu0 %v3221
        %3252 = vmatprep.subr.mxu0 0.0
        %3253 = vmatpush1.msra.mxu0 %v3222
        %3254 = vmatprep.subr.mxu0 0.0
        %3255 = vmatpush1.msra.mxu0 %v3223
        %3256 = vmatprep.subr.mxu0 0.0
        %3257 = vmatpush1.msra.mxu0 0.0
        %3258 = vmatprep.subr.mxu0 0.0
        %3259 = vmatpush1.msra.mxu0 0.0
        %3260 = vmatprep.subr.mxu0 0.0
        %3261 = vmatpush1.msra.mxu0 0.0
        %3262 = vmatprep.subr.mxu0 0.0
        %3263 = vmatpush1.msra.mxu0 0.0
        %3264 = vmatprep.subr.mxu0 0.0
        %3265 = vmatpush1.msra.mxu0 0.0
        %3266 = vmatprep.subr.mxu0 0.0
        %3267 = vmatpush1.msra.mxu0 0.0
        %3268 = vmatprep.subr.mxu0 0.0
        %3269 = vmatpush1.msra.mxu0 0.0
        %3270 = vmatprep.subr.mxu0 0.0
        %3271 = vmatpush1.msra.mxu0 0.0
        %3272 = vmatprep.subr.mxu0 0.0
        %3273 = vmatpush1.msra.mxu0 0.0
        %3274 = vmatprep.subr.mxu0 0.0
        %3275 = vmatpush1.msra.mxu0 0.0
        %3276 = vmatprep.subr.mxu0 0.0
        %3277 = vmatpush1.msra.mxu0 0.0
        %3278 = vmatprep.subr.mxu0 0.0
        %3279 = vmatpush1.msra.mxu0 0.0
        %3280 = vmatprep.subr.mxu0 0.0
        %3281 = vmatpush1.msra.mxu0 0.0
        %3282 = vmatprep.subr.mxu0 0.0
        %3283 = vmatpush1.msra.mxu0 0.0
        %3284 = vmatprep.subr.mxu0 0.0
        %3285 = vmatpush1.msra.mxu0 0.0
        %3286 = vmatprep.subr.mxu0 0.0
        %3287 = vmatpush1.msra.mxu0 0.0
        %3288 = vmatprep.subr.mxu0 0.0
        %3289 = vmatpush1.msra.mxu0 0.0
        %3290 = vmatprep.subr.mxu0 0.0
        %3291 = vmatpush1.msra.mxu0 0.0
        %3292 = vmatprep.subr.mxu0 0.0
        %3293 = vmatpush1.msra.mxu0 0.0
        %3294 = vmatprep.subr.mxu0 0.0
        %3295 = vmatpush1.msra.mxu0 0.0
        %3296 = vmatprep.subr.mxu0 0.0
        %3297 = vmatpush1.msra.mxu0 0.0
        %3298 = vmatprep.subr.mxu0 0.0
        %3299 = vmatpush1.msra.mxu0 0.0
        %3300 = vmatprep.subr.mxu0 0.0
        %3301 = vmatpush1.msra.mxu0 0.0
        %3302 = vmatprep.subr.mxu0 0.0
        %3303 = vmatpush1.msra.mxu0 0.0
        %3304 = vmatprep.subr.mxu0 0.0
        %3305 = vmatpush1.msra.mxu0 0.0
        %3306 = vmatprep.subr.mxu0 0.0
        %3307 = vmatpush1.msra.mxu0 0.0
        %3308 = vmatprep.subr.mxu0 0.0
        %3309 = vmatpush1.msra.mxu0 0.0
        %3310 = vmatprep.subr.mxu0 0.0
        %3311 = vmatpush1.msra.mxu0 0.0
        %3312 = vmatprep.mubr.f32.mxu0 0.0
        %3313 = vmatmul.mubr.f32.gmra.mrb[0].mxu0 %v3225
        %v3314 = vpop.f32.mrb[0].mxu0
        %v3315 = vadd.f32 0.0, %v3314
        %v3316 = vpop.f32.mrb[0].mxu0
        %3317 = vmatprep.mubr.f32.mxu0 0.0
        %3318 = vmatmul.mubr.f32.gmra.mrb[0].mxu0 %v3228
        %v3319 = vpop.f32.mrb[0].mxu0
        %v3320 = vadd.f32 0.0, %v3319
        %v3321 = vpop.f32.mrb[0].mxu0
        %3322 = vmatprep.mubr.f32.mxu0 0.0
        %3323 = vmatmul.mubr.f32.gmra.mrb[0].mxu0 %v3231
        %v3324 = vpop.f32.mrb[0].mxu0
        %v3325 = vadd.f32 0.0, %v3324
        %v3326 = vpop.f32.mrb[0].mxu0
        %3327 = vmatprep.mubr.f32.mxu0 0.0
        %3328 = vmatmul.mubr.f32.gmra.mrb[0].mxu0 %v3234
        %v3329 = vpop.f32.mrb[0].mxu0
        %v3330 = vadd.f32 0.0, %v3329
        %v3331 = vpop.f32.mrb[0].mxu0
        %3332 = vmatprep.mubr.f32.mxu0 0.0
        %3333 = vmatmul.mubr.f32.gmra.mrb[0].mxu0 %v3237
        %v3334 = vpop.f32.mrb[0].mxu0
        %v3335 = vadd.f32 0.0, %v3334
        %v3336 = vpop.f32.mrb[0].mxu0
        %3337 = vmatprep.mubr.f32.mxu0 0.0
        %3338 = vmatmul.mubr.f32.gmra.mrb[0].mxu0 %v3240
        %v3339 = vpop.f32.mrb[0].mxu0
        %v3340 = vadd.f32 0.0, %v3339
        %v3341 = vpop.f32.mrb[0].mxu0
        %3342 = vmatprep.mubr.f32.mxu0 0.0
        %3343 = vmatmul.mubr.f32.gmra.mrb[0].mxu0 %v3243
        %v3344 = vpop.f32.mrb[0].mxu0
        %v3345 = vadd.f32 0.0, %v3344
        %v3346 = vpop.f32.mrb[0].mxu0
        %3347 = vmatprep.mubr.f32.mxu0 0.0
        %3348 = vmatmul.mubr.f32.gmra.mrb[0].mxu0 %v3246
        %v3349 = vpop.f32.mrb[0].mxu0
        %v3350 = vadd.f32 0.0, %v3349
        %v3351 = vpop.f32.mrb[0].mxu0
        %3352 = vdwg.mxu0
        %v3353 = vadd.f32 %v3203, %v3315
        %v3354 = vadd.f32 %v3204, %v3320
        %v3355 = vadd.f32 %v3205, %v3325
        %v3356 = vadd.f32 %v3206, %v3330
        %v3357 = vadd.f32 %v3207, %v3335
        %v3358 = vadd.f32 %v3208, %v3340
        %v3359 = vadd.f32 %v3209, %v3345
        %v3360 = vadd.f32 %v3210, %v3350
        %v3361 = vld [vmem:[%s4] sm:$0x1]
        %v3363 = vlaneseq
        %v3364 = vshrl.u32 %v3363, 7
        %v3365 = vsub.s32 0, %v3364
        %v3366 = vrot.slane %v3361, %v3365
        %v3368 = vadd.f32 %v3353, %v3366
        %v3369 = vadd.f32 %v3354, %v3366
        %v3370 = vadd.f32 %v3355, %v3366
        %v3371 = vadd.f32 %v3356, %v3366
        %v3372 = vadd.f32 %v3357, %v3366
        %v3373 = vadd.f32 %v3358, %v3366
        %v3374 = vadd.f32 %v3359, %v3366
        %v3375 = vadd.f32 %v3360, %v3366
        %v3376 = vmax.f32 %v3368, 0.0
        %v3377 = vmax.f32 %v3369, 0.0
        %v3378 = vmax.f32 %v3370, 0.0
        %v3379 = vmax.f32 %v3371, 0.0
        %v3380 = vmax.f32 %v3372, 0.0
        %v3381 = vmax.f32 %v3373, 0.0
        %v3382 = vmax.f32 %v3374, 0.0
        %v3383 = vmax.f32 %v3375, 0.0
        %vm3384 = vcmask 523264
        %3385 = vst.msk [vmem:[#allocation4] sm:$0xff] %vm3384, 0.0
        %vm3386 = vcmask 517120
        %3387 = vst.msk [vmem:[#allocation4 + $0x8] sm:$0x3] %vm3386, 0.0
        %3388 = vst.msk [vmem:[#allocation4 + $0x10] sm:$0xff] %vm3384, 0.0
        %3389 = vst.msk [vmem:[#allocation4 + $0x18] sm:$0x3] %vm3386, 0.0
        %3390 = vst.msk [vmem:[#allocation4 + $0x20] sm:$0xff] %vm3384, 0.0
        %3391 = vst.msk [vmem:[#allocation4 + $0x28] sm:$0x3] %vm3386, 0.0
        %3392 = vst.msk [vmem:[#allocation4 + $0x30] sm:$0xff] %vm3384, 0.0
        %3393 = vst.msk [vmem:[#allocation4 + $0x38] sm:$0x3] %vm3386, 0.0
        %3394 = vst.msk [vmem:[#allocation4 + $0x40] sm:$0xff] %vm3384, 0.0
        %3395 = vst.msk [vmem:[#allocation4 + $0x48] sm:$0x3] %vm3386, 0.0
        %3396 = vst.msk [vmem:[#allocation4 + $0x50] sm:$0xff] %vm3384, 0.0
        %3397 = vst.msk [vmem:[#allocation4 + $0x58] sm:$0x3] %vm3386, 0.0
        %3398 = vst.msk [vmem:[#allocation4 + $0x60] sm:$0xff] %vm3384, 0.0
        %3399 = vst.msk [vmem:[#allocation4 + $0x68] sm:$0x3] %vm3386, 0.0
        %3400 = vst.msk [vmem:[#allocation4 + $0x70] sm:$0xff] %vm3384, 0.0
        %3401 = vst.msk [vmem:[#allocation4 + $0x78] sm:$0x3] %vm3386, 0.0
        %3402 = vst.msk [vmem:[#allocation4 + $0x80] sm:$0xff] %vm3384, 0.0
        %3403 = vst.msk [vmem:[#allocation4 + $0x88] sm:$0x3] %vm3386, 0.0
        %3404 = vst.msk [vmem:[#allocation4 + $0x90] sm:$0xff] %vm3384, 0.0
        %3405 = vst.msk [vmem:[#allocation4 + $0x98] sm:$0x3] %vm3386, 0.0
        %s3406 = scalar_lea.vmem [#allocation4], 16
        %3407 = vst.msk [vmem:[%s3406 + $0x1] sm:$0xff] %vm3384, %v3376
        %3408 = vst.msk [vmem:[%s3406 + $0x11] sm:$0xff] %vm3384, %v3377
        %3409 = vst.msk [vmem:[%s3406 + $0x21] sm:$0xff] %vm3384, %v3378
        %3410 = vst.msk [vmem:[%s3406 + $0x31] sm:$0xff] %vm3384, %v3379
        %3411 = vst.msk [vmem:[%s3406 + $0x41] sm:$0xff] %vm3384, %v3380
        %3412 = vst.msk [vmem:[%s3406 + $0x51] sm:$0xff] %vm3384, %v3381
        %3413 = vst.msk [vmem:[%s3406 + $0x61] sm:$0xff] %vm3384, %v3382
        %3414 = vst.msk [vmem:[%s3406 + $0x71] sm:$0xff] %vm3384, %v3383
        %v3415 = vld [vmem:[#allocation4] sm:$0xff]
        %v3416 = vld [vmem:[#allocation4 + $0x10] sm:$0xff]
        %v3417 = vld [vmem:[#allocation4 + $0x20] sm:$0xff]
        %v3418 = vld [vmem:[#allocation4 + $0x30] sm:$0xff]
        %v3419 = vld [vmem:[#allocation4 + $0x40] sm:$0xff]
        %v3420 = vld [vmem:[#allocation4 + $0x50] sm:$0xff]
        %v3421 = vld [vmem:[#allocation4 + $0x60] sm:$0xff]
        %v3422 = vld [vmem:[#allocation4 + $0x70] sm:$0xff]
        %v3423 = vld [vmem:[#allocation9] sm:$0xff]
        %v3424 = vld [vmem:[#allocation9 + $0x8] sm:$0xff]
        %v3425 = vld [vmem:[#allocation9 + $0x10] sm:$0xff]
        %v3426 = vld [vmem:[#allocation9 + $0x18] sm:$0xff]
        %v3427 = vld [vmem:[#allocation9 + $0x20] sm:$0xff]
        %v3428 = vld [vmem:[#allocation9 + $0x28] sm:$0xff]
        %v3429 = vld [vmem:[#allocation9 + $0x30] sm:$0xff]
        %v3430 = vld [vmem:[#allocation9 + $0x38] sm:$0xff]
        %v3431 = vld [vmem:[#allocation4 + $0x1] sm:$0xff]
        %v3432 = vld [vmem:[#allocation4 + $0x11] sm:$0xff]
        %v3433 = vld [vmem:[#allocation4 + $0x21] sm:$0xff]
        %v3434 = vld [vmem:[#allocation4 + $0x31] sm:$0xff]
        %v3435 = vld [vmem:[#allocation4 + $0x41] sm:$0xff]
        %v3436 = vld [vmem:[#allocation4 + $0x51] sm:$0xff]
        %v3437 = vld [vmem:[#allocation4 + $0x61] sm:$0xff]
        %v3438 = vld [vmem:[#allocation4 + $0x71] sm:$0xff]
        %s3439 = scalar_lea.vmem [#allocation9], 64
        %v3440 = vld [vmem:[%s3439] sm:$0xff]
        %v3441 = vld [vmem:[%s3439 + $0x8] sm:$0xff]
        %v3442 = vld [vmem:[%s3439 + $0x10] sm:$0xff]
        %v3443 = vld [vmem:[%s3439 + $0x18] sm:$0xff]
        %v3444 = vld [vmem:[%s3439 + $0x20] sm:$0xff]
        %v3445 = vld [vmem:[%s3439 + $0x28] sm:$0xff]
        %v3446 = vld [vmem:[%s3439 + $0x30] sm:$0xff]
        %v3447 = vld [vmem:[%s3439 + $0x38] sm:$0xff]
        %v3449 = vsel %vm3384, %v3431, 0
        %v3452 = vsel %vm3384, %v3432, 0
        %v3455 = vsel %vm3384, %v3433, 0
        %v3458 = vsel %vm3384, %v3434, 0
        %v3461 = vsel %vm3384, %v3435, 0
        %v3464 = vsel %vm3384, %v3436, 0
        %v3467 = vsel %vm3384, %v3437, 0
        %v3470 = vsel %vm3384, %v3438, 0
        %3472 = vmatprep.subr.mxu0 0.0
        %3473 = vmatpush1.msra.mxu0 %v3440
        %3474 = vmatprep.subr.mxu0 0.0
        %3475 = vmatpush1.msra.mxu0 %v3441
        %3476 = vmatprep.subr.mxu0 0.0
        %3477 = vmatpush1.msra.mxu0 %v3442
        %3478 = vmatprep.subr.mxu0 0.0
        %3479 = vmatpush1.msra.mxu0 %v3443
        %3480 = vmatprep.subr.mxu0 0.0
        %3481 = vmatpush1.msra.mxu0 %v3444
        %3482 = vmatprep.subr.mxu0 0.0
        %3483 = vmatpush1.msra.mxu0 %v3445
        %3484 = vmatprep.subr.mxu0 0.0
        %3485 = vmatpush1.msra.mxu0 %v3446
        %3486 = vmatprep.subr.mxu0 0.0
        %3487 = vmatpush1.msra.mxu0 %v3447
        %3488 = vmatprep.subr.mxu0 0.0
        %3489 = vmatpush1.msra.mxu0 0.0
        %3490 = vmatprep.subr.mxu0 0.0
        %3491 = vmatpush1.msra.mxu0 0.0
        %3492 = vmatprep.subr.mxu0 0.0
        %3493 = vmatpush1.msra.mxu0 0.0
        %3494 = vmatprep.subr.mxu0 0.0
        %3495 = vmatpush1.msra.mxu0 0.0
        %3496 = vmatprep.subr.mxu0 0.0
        %3497 = vmatpush1.msra.mxu0 0.0
        %3498 = vmatprep.subr.mxu0 0.0
        %3499 = vmatpush1.msra.mxu0 0.0
        %3500 = vmatprep.subr.mxu0 0.0
        %3501 = vmatpush1.msra.mxu0 0.0
        %3502 = vmatprep.subr.mxu0 0.0
        %3503 = vmatpush1.msra.mxu0 0.0
        %3504 = vmatprep.subr.mxu0 0.0
        %3505 = vmatpush1.msra.mxu0 0.0
        %3506 = vmatprep.subr.mxu0 0.0
        %3507 = vmatpush1.msra.mxu0 0.0
        %3508 = vmatprep.subr.mxu0 0.0
        %3509 = vmatpush1.msra.mxu0 0.0
        %3510 = vmatprep.subr.mxu0 0.0
        %3511 = vmatpush1.msra.mxu0 0.0
        %3512 = vmatprep.subr.mxu0 0.0
        %3513 = vmatpush1.msra.mxu0 0.0
        %3514 = vmatprep.subr.mxu0 0.0
        %3515 = vmatpush1.msra.mxu0 0.0
        %3516 = vmatprep.subr.mxu0 0.0
        %3517 = vmatpush1.msra.mxu0 0.0
        %3518 = vmatprep.subr.mxu0 0.0
        %3519 = vmatpush1.msra.mxu0 0.0
        %3520 = vmatprep.subr.mxu0 0.0
        %3521 = vmatpush1.msra.mxu0 0.0
        %3522 = vmatprep.subr.mxu0 0.0
        %3523 = vmatpush1.msra.mxu0 0.0
        %3524 = vmatprep.subr.mxu0 0.0
        %3525 = vmatpush1.msra.mxu0 0.0
        %3526 = vmatprep.subr.mxu0 0.0
        %3527 = vmatpush1.msra.mxu0 0.0
        %3528 = vmatprep.subr.mxu0 0.0
        %3529 = vmatpush1.msra.mxu0 0.0
        %3530 = vmatprep.subr.mxu0 0.0
        %3531 = vmatpush1.msra.mxu0 0.0
        %3532 = vmatprep.subr.mxu0 0.0
        %3533 = vmatpush1.msra.mxu0 0.0
        %3534 = vmatprep.subr.mxu0 0.0
        %3535 = vmatpush1.msra.mxu0 0.0
        %3536 = vmatprep.mubr.f32.mxu0 0.0
        %3537 = vmatmul.mubr.f32.gmra.mrb[0].mxu0 %v3449
        %v3538 = vpop.f32.mrb[0].mxu0
        %v3539 = vadd.f32 0.0, %v3538
        %v3540 = vpop.f32.mrb[0].mxu0
        %3541 = vmatprep.mubr.f32.mxu0 0.0
        %3542 = vmatmul.mubr.f32.gmra.mrb[0].mxu0 %v3452
        %v3543 = vpop.f32.mrb[0].mxu0
        %v3544 = vadd.f32 0.0, %v3543
        %v3545 = vpop.f32.mrb[0].mxu0
        %3546 = vmatprep.mubr.f32.mxu0 0.0
        %3547 = vmatmul.mubr.f32.gmra.mrb[0].mxu0 %v3455
        %v3548 = vpop.f32.mrb[0].mxu0
        %v3549 = vadd.f32 0.0, %v3548
        %v3550 = vpop.f32.mrb[0].mxu0
        %3551 = vmatprep.mubr.f32.mxu0 0.0
        %3552 = vmatmul.mubr.f32.gmra.mrb[0].mxu0 %v3458
        %v3553 = vpop.f32.mrb[0].mxu0
        %v3554 = vadd.f32 0.0, %v3553
        %v3555 = vpop.f32.mrb[0].mxu0
        %3556 = vmatprep.mubr.f32.mxu0 0.0
        %3557 = vmatmul.mubr.f32.gmra.mrb[0].mxu0 %v3461
        %v3558 = vpop.f32.mrb[0].mxu0
        %v3559 = vadd.f32 0.0, %v3558
        %v3560 = vpop.f32.mrb[0].mxu0
        %3561 = vmatprep.mubr.f32.mxu0 0.0
        %3562 = vmatmul.mubr.f32.gmra.mrb[0].mxu0 %v3464
        %v3563 = vpop.f32.mrb[0].mxu0
        %v3564 = vadd.f32 0.0, %v3563
        %v3565 = vpop.f32.mrb[0].mxu0
        %3566 = vmatprep.mubr.f32.mxu0 0.0
        %3567 = vmatmul.mubr.f32.gmra.mrb[0].mxu0 %v3467
        %v3568 = vpop.f32.mrb[0].mxu0
        %v3569 = vadd.f32 0.0, %v3568
        %v3570 = vpop.f32.mrb[0].mxu0
        %3571 = vmatprep.mubr.f32.mxu0 0.0
        %3572 = vmatmul.mubr.f32.gmra.mrb[0].mxu0 %v3470
        %v3573 = vpop.f32.mrb[0].mxu0
        %v3574 = vadd.f32 0.0, %v3573
        %v3575 = vpop.f32.mrb[0].mxu0
        %3576 = vdwg.mxu0
        %v3578 = vsel %vm3384, %v3415, 0
        %v3581 = vsel %vm3384, %v3416, 0
        %v3584 = vsel %vm3384, %v3417, 0
        %v3587 = vsel %vm3384, %v3418, 0
        %v3590 = vsel %vm3384, %v3419, 0
        %v3593 = vsel %vm3384, %v3420, 0
        %v3596 = vsel %vm3384, %v3421, 0
        %v3599 = vsel %vm3384, %v3422, 0
        %3601 = vmatprep.subr.mxu0 0.0
        %3602 = vmatpush1.msra.mxu0 %v3423
        %3603 = vmatprep.subr.mxu0 0.0
        %3604 = vmatpush1.msra.mxu0 %v3424
        %3605 = vmatprep.subr.mxu0 0.0
        %3606 = vmatpush1.msra.mxu0 %v3425
        %3607 = vmatprep.subr.mxu0 0.0
        %3608 = vmatpush1.msra.mxu0 %v3426
        %3609 = vmatprep.subr.mxu0 0.0
        %3610 = vmatpush1.msra.mxu0 %v3427
        %3611 = vmatprep.subr.mxu0 0.0
        %3612 = vmatpush1.msra.mxu0 %v3428
        %3613 = vmatprep.subr.mxu0 0.0
        %3614 = vmatpush1.msra.mxu0 %v3429
        %3615 = vmatprep.subr.mxu0 0.0
        %3616 = vmatpush1.msra.mxu0 %v3430
        %3617 = vmatprep.subr.mxu0 0.0
        %3618 = vmatpush1.msra.mxu0 0.0
        %3619 = vmatprep.subr.mxu0 0.0
        %3620 = vmatpush1.msra.mxu0 0.0
        %3621 = vmatprep.subr.mxu0 0.0
        %3622 = vmatpush1.msra.mxu0 0.0
        %3623 = vmatprep.subr.mxu0 0.0
        %3624 = vmatpush1.msra.mxu0 0.0
        %3625 = vmatprep.subr.mxu0 0.0
        %3626 = vmatpush1.msra.mxu0 0.0
        %3627 = vmatprep.subr.mxu0 0.0
        %3628 = vmatpush1.msra.mxu0 0.0
        %3629 = vmatprep.subr.mxu0 0.0
        %3630 = vmatpush1.msra.mxu0 0.0
        %3631 = vmatprep.subr.mxu0 0.0
        %3632 = vmatpush1.msra.mxu0 0.0
        %3633 = vmatprep.subr.mxu0 0.0
        %3634 = vmatpush1.msra.mxu0 0.0
        %3635 = vmatprep.subr.mxu0 0.0
        %3636 = vmatpush1.msra.mxu0 0.0
        %3637 = vmatprep.subr.mxu0 0.0
        %3638 = vmatpush1.msra.mxu0 0.0
        %3639 = vmatprep.subr.mxu0 0.0
        %3640 = vmatpush1.msra.mxu0 0.0
        %3641 = vmatprep.subr.mxu0 0.0
        %3642 = vmatpush1.msra.mxu0 0.0
        %3643 = vmatprep.subr.mxu0 0.0
        %3644 = vmatpush1.msra.mxu0 0.0
        %3645 = vmatprep.subr.mxu0 0.0
        %3646 = vmatpush1.msra.mxu0 0.0
        %3647 = vmatprep.subr.mxu0 0.0
        %3648 = vmatpush1.msra.mxu0 0.0
        %3649 = vmatprep.subr.mxu0 0.0
        %3650 = vmatpush1.msra.mxu0 0.0
        %3651 = vmatprep.subr.mxu0 0.0
        %3652 = vmatpush1.msra.mxu0 0.0
        %3653 = vmatprep.subr.mxu0 0.0
        %3654 = vmatpush1.msra.mxu0 0.0
        %3655 = vmatprep.subr.mxu0 0.0
        %3656 = vmatpush1.msra.mxu0 0.0
        %3657 = vmatprep.subr.mxu0 0.0
        %3658 = vmatpush1.msra.mxu0 0.0
        %3659 = vmatprep.subr.mxu0 0.0
        %3660 = vmatpush1.msra.mxu0 0.0
        %3661 = vmatprep.subr.mxu0 0.0
        %3662 = vmatpush1.msra.mxu0 0.0
        %3663 = vmatprep.subr.mxu0 0.0
        %3664 = vmatpush1.msra.mxu0 0.0
        %3665 = vmatprep.mubr.f32.mxu0 0.0
        %3666 = vmatmul.mubr.f32.gmra.mrb[0].mxu0 %v3578
        %v3667 = vpop.f32.mrb[0].mxu0
        %v3668 = vadd.f32 %v3539, %v3667
        %v3669 = vpop.f32.mrb[0].mxu0
        %3670 = vmatprep.mubr.f32.mxu0 0.0
        %3671 = vmatmul.mubr.f32.gmra.mrb[0].mxu0 %v3581
        %v3672 = vpop.f32.mrb[0].mxu0
        %v3673 = vadd.f32 %v3544, %v3672
        %v3674 = vpop.f32.mrb[0].mxu0
        %3675 = vmatprep.mubr.f32.mxu0 0.0
        %3676 = vmatmul.mubr.f32.gmra.mrb[0].mxu0 %v3584
        %v3677 = vpop.f32.mrb[0].mxu0
        %v3678 = vadd.f32 %v3549, %v3677
        %v3679 = vpop.f32.mrb[0].mxu0
        %3680 = vmatprep.mubr.f32.mxu0 0.0
        %3681 = vmatmul.mubr.f32.gmra.mrb[0].mxu0 %v3587
        %v3682 = vpop.f32.mrb[0].mxu0
        %v3683 = vadd.f32 %v3554, %v3682
        %v3684 = vpop.f32.mrb[0].mxu0
        %3685 = vmatprep.mubr.f32.mxu0 0.0
        %3686 = vmatmul.mubr.f32.gmra.mrb[0].mxu0 %v3590
        %v3687 = vpop.f32.mrb[0].mxu0
        %v3688 = vadd.f32 %v3559, %v3687
        %v3689 = vpop.f32.mrb[0].mxu0
        %3690 = vmatprep.mubr.f32.mxu0 0.0
        %3691 = vmatmul.mubr.f32.gmra.mrb[0].mxu0 %v3593
        %v3692 = vpop.f32.mrb[0].mxu0
        %v3693 = vadd.f32 %v3564, %v3692
        %v3694 = vpop.f32.mrb[0].mxu0
        %3695 = vmatprep.mubr.f32.mxu0 0.0
        %3696 = vmatmul.mubr.f32.gmra.mrb[0].mxu0 %v3596
        %v3697 = vpop.f32.mrb[0].mxu0
        %v3698 = vadd.f32 %v3569, %v3697
        %v3699 = vpop.f32.mrb[0].mxu0
        %3700 = vmatprep.mubr.f32.mxu0 0.0
        %3701 = vmatmul.mubr.f32.gmra.mrb[0].mxu0 %v3599
        %v3702 = vpop.f32.mrb[0].mxu0
        %v3703 = vadd.f32 %v3574, %v3702
        %v3704 = vpop.f32.mrb[0].mxu0
        %3705 = vdwg.mxu0
        %v3706 = vld [vmem:[#allocation4 + $0x2] sm:$0xff]
        %v3707 = vld [vmem:[#allocation4 + $0x12] sm:$0xff]
        %v3708 = vld [vmem:[#allocation4 + $0x22] sm:$0xff]
        %v3709 = vld [vmem:[#allocation4 + $0x32] sm:$0xff]
        %v3710 = vld [vmem:[#allocation4 + $0x42] sm:$0xff]
        %v3711 = vld [vmem:[#allocation4 + $0x52] sm:$0xff]
        %v3712 = vld [vmem:[#allocation4 + $0x62] sm:$0xff]
        %v3713 = vld [vmem:[#allocation4 + $0x72] sm:$0xff]
        %s3714 = scalar_lea.vmem [#allocation9], 128
        %v3715 = vld [vmem:[%s3714] sm:$0xff]
        %v3716 = vld [vmem:[%s3714 + $0x8] sm:$0xff]
        %v3717 = vld [vmem:[%s3714 + $0x10] sm:$0xff]
        %v3718 = vld [vmem:[%s3714 + $0x18] sm:$0xff]
        %v3719 = vld [vmem:[%s3714 + $0x20] sm:$0xff]
        %v3720 = vld [vmem:[%s3714 + $0x28] sm:$0xff]
        %v3721 = vld [vmem:[%s3714 + $0x30] sm:$0xff]
        %v3722 = vld [vmem:[%s3714 + $0x38] sm:$0xff]
        %v3724 = vsel %vm3384, %v3706, 0
        %v3727 = vsel %vm3384, %v3707, 0
        %v3730 = vsel %vm3384, %v3708, 0
        %v3733 = vsel %vm3384, %v3709, 0
        %v3736 = vsel %vm3384, %v3710, 0
        %v3739 = vsel %vm3384, %v3711, 0
        %v3742 = vsel %vm3384, %v3712, 0
        %v3745 = vsel %vm3384, %v3713, 0
        %3747 = vmatprep.subr.mxu0 0.0
        %3748 = vmatpush1.msra.mxu0 %v3715
        %3749 = vmatprep.subr.mxu0 0.0
        %3750 = vmatpush1.msra.mxu0 %v3716
        %3751 = vmatprep.subr.mxu0 0.0
        %3752 = vmatpush1.msra.mxu0 %v3717
        %3753 = vmatprep.subr.mxu0 0.0
        %3754 = vmatpush1.msra.mxu0 %v3718
        %3755 = vmatprep.subr.mxu0 0.0
        %3756 = vmatpush1.msra.mxu0 %v3719
        %3757 = vmatprep.subr.mxu0 0.0
        %3758 = vmatpush1.msra.mxu0 %v3720
        %3759 = vmatprep.subr.mxu0 0.0
        %3760 = vmatpush1.msra.mxu0 %v3721
        %3761 = vmatprep.subr.mxu0 0.0
        %3762 = vmatpush1.msra.mxu0 %v3722
        %3763 = vmatprep.subr.mxu0 0.0
        %3764 = vmatpush1.msra.mxu0 0.0
        %3765 = vmatprep.subr.mxu0 0.0
        %3766 = vmatpush1.msra.mxu0 0.0
        %3767 = vmatprep.subr.mxu0 0.0
        %3768 = vmatpush1.msra.mxu0 0.0
        %3769 = vmatprep.subr.mxu0 0.0
        %3770 = vmatpush1.msra.mxu0 0.0
        %3771 = vmatprep.subr.mxu0 0.0
        %3772 = vmatpush1.msra.mxu0 0.0
        %3773 = vmatprep.subr.mxu0 0.0
        %3774 = vmatpush1.msra.mxu0 0.0
        %3775 = vmatprep.subr.mxu0 0.0
        %3776 = vmatpush1.msra.mxu0 0.0
        %3777 = vmatprep.subr.mxu0 0.0
        %3778 = vmatpush1.msra.mxu0 0.0
        %3779 = vmatprep.subr.mxu0 0.0
        %3780 = vmatpush1.msra.mxu0 0.0
        %3781 = vmatprep.subr.mxu0 0.0
        %3782 = vmatpush1.msra.mxu0 0.0
        %3783 = vmatprep.subr.mxu0 0.0
        %3784 = vmatpush1.msra.mxu0 0.0
        %3785 = vmatprep.subr.mxu0 0.0
        %3786 = vmatpush1.msra.mxu0 0.0
        %3787 = vmatprep.subr.mxu0 0.0
        %3788 = vmatpush1.msra.mxu0 0.0
        %3789 = vmatprep.subr.mxu0 0.0
        %3790 = vmatpush1.msra.mxu0 0.0
        %3791 = vmatprep.subr.mxu0 0.0
        %3792 = vmatpush1.msra.mxu0 0.0
        %3793 = vmatprep.subr.mxu0 0.0
        %3794 = vmatpush1.msra.mxu0 0.0
        %3795 = vmatprep.subr.mxu0 0.0
        %3796 = vmatpush1.msra.mxu0 0.0
        %3797 = vmatprep.subr.mxu0 0.0
        %3798 = vmatpush1.msra.mxu0 0.0
        %3799 = vmatprep.subr.mxu0 0.0
        %3800 = vmatpush1.msra.mxu0 0.0
        %3801 = vmatprep.subr.mxu0 0.0
        %3802 = vmatpush1.msra.mxu0 0.0
        %3803 = vmatprep.subr.mxu0 0.0
        %3804 = vmatpush1.msra.mxu0 0.0
        %3805 = vmatprep.subr.mxu0 0.0
        %3806 = vmatpush1.msra.mxu0 0.0
        %3807 = vmatprep.subr.mxu0 0.0
        %3808 = vmatpush1.msra.mxu0 0.0
        %3809 = vmatprep.subr.mxu0 0.0
        %3810 = vmatpush1.msra.mxu0 0.0
        %3811 = vmatprep.mubr.f32.mxu0 0.0
        %3812 = vmatmul.mubr.f32.gmra.mrb[0].mxu0 %v3724
        %v3813 = vpop.f32.mrb[0].mxu0
        %v3814 = vadd.f32 0.0, %v3813
        %v3815 = vpop.f32.mrb[0].mxu0
        %3816 = vmatprep.mubr.f32.mxu0 0.0
        %3817 = vmatmul.mubr.f32.gmra.mrb[0].mxu0 %v3727
        %v3818 = vpop.f32.mrb[0].mxu0
        %v3819 = vadd.f32 0.0, %v3818
        %v3820 = vpop.f32.mrb[0].mxu0
        %3821 = vmatprep.mubr.f32.mxu0 0.0
        %3822 = vmatmul.mubr.f32.gmra.mrb[0].mxu0 %v3730
        %v3823 = vpop.f32.mrb[0].mxu0
        %v3824 = vadd.f32 0.0, %v3823
        %v3825 = vpop.f32.mrb[0].mxu0
        %3826 = vmatprep.mubr.f32.mxu0 0.0
        %3827 = vmatmul.mubr.f32.gmra.mrb[0].mxu0 %v3733
        %v3828 = vpop.f32.mrb[0].mxu0
        %v3829 = vadd.f32 0.0, %v3828
        %v3830 = vpop.f32.mrb[0].mxu0
        %3831 = vmatprep.mubr.f32.mxu0 0.0
        %3832 = vmatmul.mubr.f32.gmra.mrb[0].mxu0 %v3736
        %v3833 = vpop.f32.mrb[0].mxu0
        %v3834 = vadd.f32 0.0, %v3833
        %v3835 = vpop.f32.mrb[0].mxu0
        %3836 = vmatprep.mubr.f32.mxu0 0.0
        %3837 = vmatmul.mubr.f32.gmra.mrb[0].mxu0 %v3739
        %v3838 = vpop.f32.mrb[0].mxu0
        %v3839 = vadd.f32 0.0, %v3838
        %v3840 = vpop.f32.mrb[0].mxu0
        %3841 = vmatprep.mubr.f32.mxu0 0.0
        %3842 = vmatmul.mubr.f32.gmra.mrb[0].mxu0 %v3742
        %v3843 = vpop.f32.mrb[0].mxu0
        %v3844 = vadd.f32 0.0, %v3843
        %v3845 = vpop.f32.mrb[0].mxu0
        %3846 = vmatprep.mubr.f32.mxu0 0.0
        %3847 = vmatmul.mubr.f32.gmra.mrb[0].mxu0 %v3745
        %v3848 = vpop.f32.mrb[0].mxu0
        %v3849 = vadd.f32 0.0, %v3848
        %v3850 = vpop.f32.mrb[0].mxu0
        %3851 = vdwg.mxu0
        %v3852 = vadd.f32 %v3668, %v3814
        %v3853 = vadd.f32 %v3673, %v3819
        %v3854 = vadd.f32 %v3678, %v3824
        %v3855 = vadd.f32 %v3683, %v3829
        %v3856 = vadd.f32 %v3688, %v3834
        %v3857 = vadd.f32 %v3693, %v3839
        %v3858 = vadd.f32 %v3698, %v3844
        %v3859 = vadd.f32 %v3703, %v3849
        %v3860 = vld [vmem:[%s3406] sm:$0xff]
        %v3861 = vld [vmem:[%s3406 + $0x10] sm:$0xff]
        %v3862 = vld [vmem:[%s3406 + $0x20] sm:$0xff]
        %v3863 = vld [vmem:[%s3406 + $0x30] sm:$0xff]
        %v3864 = vld [vmem:[%s3406 + $0x40] sm:$0xff]
        %v3865 = vld [vmem:[%s3406 + $0x50] sm:$0xff]
        %v3866 = vld [vmem:[%s3406 + $0x60] sm:$0xff]
        %v3867 = vld [vmem:[%s3406 + $0x70] sm:$0xff]
        %s3868 = scalar_lea.vmem [#allocation9], 192
        %v3869 = vld [vmem:[%s3868] sm:$0xff]
        %v3870 = vld [vmem:[%s3868 + $0x8] sm:$0xff]
        %v3871 = vld [vmem:[%s3868 + $0x10] sm:$0xff]
        %v3872 = vld [vmem:[%s3868 + $0x18] sm:$0xff]
        %v3873 = vld [vmem:[%s3868 + $0x20] sm:$0xff]
        %v3874 = vld [vmem:[%s3868 + $0x28] sm:$0xff]
        %v3875 = vld [vmem:[%s3868 + $0x30] sm:$0xff]
        %v3876 = vld [vmem:[%s3868 + $0x38] sm:$0xff]
        %v3878 = vsel %vm3384, %v3860, 0
        %v3881 = vsel %vm3384, %v3861, 0
        %v3884 = vsel %vm3384, %v3862, 0
        %v3887 = vsel %vm3384, %v3863, 0
        %v3890 = vsel %vm3384, %v3864, 0
        %v3893 = vsel %vm3384, %v3865, 0
        %v3896 = vsel %vm3384, %v3866, 0
        %v3899 = vsel %vm3384, %v3867, 0
        %3901 = vmatprep.subr.mxu0 0.0
        %3902 = vmatpush1.msra.mxu0 %v3869
        %3903 = vmatprep.subr.mxu0 0.0
        %3904 = vmatpush1.msra.mxu0 %v3870
        %3905 = vmatprep.subr.mxu0 0.0
        %3906 = vmatpush1.msra.mxu0 %v3871
        %3907 = vmatprep.subr.mxu0 0.0
        %3908 = vmatpush1.msra.mxu0 %v3872
        %3909 = vmatprep.subr.mxu0 0.0
        %3910 = vmatpush1.msra.mxu0 %v3873
        %3911 = vmatprep.subr.mxu0 0.0
        %3912 = vmatpush1.msra.mxu0 %v3874
        %3913 = vmatprep.subr.mxu0 0.0
        %3914 = vmatpush1.msra.mxu0 %v3875
        %3915 = vmatprep.subr.mxu0 0.0
        %3916 = vmatpush1.msra.mxu0 %v3876
        %3917 = vmatprep.subr.mxu0 0.0
        %3918 = vmatpush1.msra.mxu0 0.0
        %3919 = vmatprep.subr.mxu0 0.0
        %3920 = vmatpush1.msra.mxu0 0.0
        %3921 = vmatprep.subr.mxu0 0.0
        %3922 = vmatpush1.msra.mxu0 0.0
        %3923 = vmatprep.subr.mxu0 0.0
        %3924 = vmatpush1.msra.mxu0 0.0
        %3925 = vmatprep.subr.mxu0 0.0
        %3926 = vmatpush1.msra.mxu0 0.0
        %3927 = vmatprep.subr.mxu0 0.0
        %3928 = vmatpush1.msra.mxu0 0.0
        %3929 = vmatprep.subr.mxu0 0.0
        %3930 = vmatpush1.msra.mxu0 0.0
        %3931 = vmatprep.subr.mxu0 0.0
        %3932 = vmatpush1.msra.mxu0 0.0
        %3933 = vmatprep.subr.mxu0 0.0
        %3934 = vmatpush1.msra.mxu0 0.0
        %3935 = vmatprep.subr.mxu0 0.0
        %3936 = vmatpush1.msra.mxu0 0.0
        %3937 = vmatprep.subr.mxu0 0.0
        %3938 = vmatpush1.msra.mxu0 0.0
        %3939 = vmatprep.subr.mxu0 0.0
        %3940 = vmatpush1.msra.mxu0 0.0
        %3941 = vmatprep.subr.mxu0 0.0
        %3942 = vmatpush1.msra.mxu0 0.0
        %3943 = vmatprep.subr.mxu0 0.0
        %3944 = vmatpush1.msra.mxu0 0.0
        %3945 = vmatprep.subr.mxu0 0.0
        %3946 = vmatpush1.msra.mxu0 0.0
        %3947 = vmatprep.subr.mxu0 0.0
        %3948 = vmatpush1.msra.mxu0 0.0
        %3949 = vmatprep.subr.mxu0 0.0
        %3950 = vmatpush1.msra.mxu0 0.0
        %3951 = vmatprep.subr.mxu0 0.0
        %3952 = vmatpush1.msra.mxu0 0.0
        %3953 = vmatprep.subr.mxu0 0.0
        %3954 = vmatpush1.msra.mxu0 0.0
        %3955 = vmatprep.subr.mxu0 0.0
        %3956 = vmatpush1.msra.mxu0 0.0
        %3957 = vmatprep.subr.mxu0 0.0
        %3958 = vmatpush1.msra.mxu0 0.0
        %3959 = vmatprep.subr.mxu0 0.0
        %3960 = vmatpush1.msra.mxu0 0.0
        %3961 = vmatprep.subr.mxu0 0.0
        %3962 = vmatpush1.msra.mxu0 0.0
        %3963 = vmatprep.subr.mxu0 0.0
        %3964 = vmatpush1.msra.mxu0 0.0
        %3965 = vmatprep.mubr.f32.mxu0 0.0
        %3966 = vmatmul.mubr.f32.gmra.mrb[0].mxu0 %v3878
        %v3967 = vpop.f32.mrb[0].mxu0
        %v3968 = vadd.f32 0.0, %v3967
        %v3969 = vpop.f32.mrb[0].mxu0
        %3970 = vmatprep.mubr.f32.mxu0 0.0
        %3971 = vmatmul.mubr.f32.gmra.mrb[0].mxu0 %v3881
        %v3972 = vpop.f32.mrb[0].mxu0
        %v3973 = vadd.f32 0.0, %v3972
        %v3974 = vpop.f32.mrb[0].mxu0
        %3975 = vmatprep.mubr.f32.mxu0 0.0
        %3976 = vmatmul.mubr.f32.gmra.mrb[0].mxu0 %v3884
        %v3977 = vpop.f32.mrb[0].mxu0
        %v3978 = vadd.f32 0.0, %v3977
        %v3979 = vpop.f32.mrb[0].mxu0
        %3980 = vmatprep.mubr.f32.mxu0 0.0
        %3981 = vmatmul.mubr.f32.gmra.mrb[0].mxu0 %v3887
        %v3982 = vpop.f32.mrb[0].mxu0
        %v3983 = vadd.f32 0.0, %v3982
        %v3984 = vpop.f32.mrb[0].mxu0
        %3985 = vmatprep.mubr.f32.mxu0 0.0
        %3986 = vmatmul.mubr.f32.gmra.mrb[0].mxu0 %v3890
        %v3987 = vpop.f32.mrb[0].mxu0
        %v3988 = vadd.f32 0.0, %v3987
        %v3989 = vpop.f32.mrb[0].mxu0
        %3990 = vmatprep.mubr.f32.mxu0 0.0
        %3991 = vmatmul.mubr.f32.gmra.mrb[0].mxu0 %v3893
        %v3992 = vpop.f32.mrb[0].mxu0
        %v3993 = vadd.f32 0.0, %v3992
        %v3994 = vpop.f32.mrb[0].mxu0
        %3995 = vmatprep.mubr.f32.mxu0 0.0
        %3996 = vmatmul.mubr.f32.gmra.mrb[0].mxu0 %v3896
        %v3997 = vpop.f32.mrb[0].mxu0
        %v3998 = vadd.f32 0.0, %v3997
        %v3999 = vpop.f32.mrb[0].mxu0
        %4000 = vmatprep.mubr.f32.mxu0 0.0
        %4001 = vmatmul.mubr.f32.gmra.mrb[0].mxu0 %v3899
        %v4002 = vpop.f32.mrb[0].mxu0
        %v4003 = vadd.f32 0.0, %v4002
        %v4004 = vpop.f32.mrb[0].mxu0
        %4005 = vdwg.mxu0
        %v4006 = vadd.f32 %v3852, %v3968
        %v4007 = vadd.f32 %v3853, %v3973
        %v4008 = vadd.f32 %v3854, %v3978
        %v4009 = vadd.f32 %v3855, %v3983
        %v4010 = vadd.f32 %v3856, %v3988
        %v4011 = vadd.f32 %v3857, %v3993
        %v4012 = vadd.f32 %v3858, %v3998
        %v4013 = vadd.f32 %v3859, %v4003
        %v4014 = vld [vmem:[%s3406 + $0x1] sm:$0xff]
        %v4015 = vld [vmem:[%s3406 + $0x11] sm:$0xff]
        %v4016 = vld [vmem:[%s3406 + $0x21] sm:$0xff]
        %v4017 = vld [vmem:[%s3406 + $0x31] sm:$0xff]
        %v4018 = vld [vmem:[%s3406 + $0x41] sm:$0xff]
        %v4019 = vld [vmem:[%s3406 + $0x51] sm:$0xff]
        %v4020 = vld [vmem:[%s3406 + $0x61] sm:$0xff]
        %v4021 = vld [vmem:[%s3406 + $0x71] sm:$0xff]
        %s4022 = scalar_lea.vmem [#allocation9], 256
        %v4023 = vld [vmem:[%s4022] sm:$0xff]
        %v4024 = vld [vmem:[%s4022 + $0x8] sm:$0xff]
        %v4025 = vld [vmem:[%s4022 + $0x10] sm:$0xff]
        %v4026 = vld [vmem:[%s4022 + $0x18] sm:$0xff]
        %v4027 = vld [vmem:[%s4022 + $0x20] sm:$0xff]
        %v4028 = vld [vmem:[%s4022 + $0x28] sm:$0xff]
        %v4029 = vld [vmem:[%s4022 + $0x30] sm:$0xff]
        %v4030 = vld [vmem:[%s4022 + $0x38] sm:$0xff]
        %v4032 = vsel %vm3384, %v4014, 0
        %v4035 = vsel %vm3384, %v4015, 0
        %v4038 = vsel %vm3384, %v4016, 0
        %v4041 = vsel %vm3384, %v4017, 0
        %v4044 = vsel %vm3384, %v4018, 0
        %v4047 = vsel %vm3384, %v4019, 0
        %v4050 = vsel %vm3384, %v4020, 0
        %v4053 = vsel %vm3384, %v4021, 0
        %4055 = vmatprep.subr.mxu0 0.0
        %4056 = vmatpush1.msra.mxu0 %v4023
        %4057 = vmatprep.subr.mxu0 0.0
        %4058 = vmatpush1.msra.mxu0 %v4024
        %4059 = vmatprep.subr.mxu0 0.0
        %4060 = vmatpush1.msra.mxu0 %v4025
        %4061 = vmatprep.subr.mxu0 0.0
        %4062 = vmatpush1.msra.mxu0 %v4026
        %4063 = vmatprep.subr.mxu0 0.0
        %4064 = vmatpush1.msra.mxu0 %v4027
        %4065 = vmatprep.subr.mxu0 0.0
        %4066 = vmatpush1.msra.mxu0 %v4028
        %4067 = vmatprep.subr.mxu0 0.0
        %4068 = vmatpush1.msra.mxu0 %v4029
        %4069 = vmatprep.subr.mxu0 0.0
        %4070 = vmatpush1.msra.mxu0 %v4030
        %4071 = vmatprep.subr.mxu0 0.0
        %4072 = vmatpush1.msra.mxu0 0.0
        %4073 = vmatprep.subr.mxu0 0.0
        %4074 = vmatpush1.msra.mxu0 0.0
        %4075 = vmatprep.subr.mxu0 0.0
        %4076 = vmatpush1.msra.mxu0 0.0
        %4077 = vmatprep.subr.mxu0 0.0
        %4078 = vmatpush1.msra.mxu0 0.0
        %4079 = vmatprep.subr.mxu0 0.0
        %4080 = vmatpush1.msra.mxu0 0.0
        %4081 = vmatprep.subr.mxu0 0.0
        %4082 = vmatpush1.msra.mxu0 0.0
        %4083 = vmatprep.subr.mxu0 0.0
        %4084 = vmatpush1.msra.mxu0 0.0
        %4085 = vmatprep.subr.mxu0 0.0
        %4086 = vmatpush1.msra.mxu0 0.0
        %4087 = vmatprep.subr.mxu0 0.0
        %4088 = vmatpush1.msra.mxu0 0.0
        %4089 = vmatprep.subr.mxu0 0.0
        %4090 = vmatpush1.msra.mxu0 0.0
        %4091 = vmatprep.subr.mxu0 0.0
        %4092 = vmatpush1.msra.mxu0 0.0
        %4093 = vmatprep.subr.mxu0 0.0
        %4094 = vmatpush1.msra.mxu0 0.0
        %4095 = vmatprep.subr.mxu0 0.0
        %4096 = vmatpush1.msra.mxu0 0.0
        %4097 = vmatprep.subr.mxu0 0.0
        %4098 = vmatpush1.msra.mxu0 0.0
        %4099 = vmatprep.subr.mxu0 0.0
        %4100 = vmatpush1.msra.mxu0 0.0
        %4101 = vmatprep.subr.mxu0 0.0
        %4102 = vmatpush1.msra.mxu0 0.0
        %4103 = vmatprep.subr.mxu0 0.0
        %4104 = vmatpush1.msra.mxu0 0.0
        %4105 = vmatprep.subr.mxu0 0.0
        %4106 = vmatpush1.msra.mxu0 0.0
        %4107 = vmatprep.subr.mxu0 0.0
        %4108 = vmatpush1.msra.mxu0 0.0
        %4109 = vmatprep.subr.mxu0 0.0
        %4110 = vmatpush1.msra.mxu0 0.0
        %4111 = vmatprep.subr.mxu0 0.0
        %4112 = vmatpush1.msra.mxu0 0.0
        %4113 = vmatprep.subr.mxu0 0.0
        %4114 = vmatpush1.msra.mxu0 0.0
        %4115 = vmatprep.subr.mxu0 0.0
        %4116 = vmatpush1.msra.mxu0 0.0
        %4117 = vmatprep.subr.mxu0 0.0
        %4118 = vmatpush1.msra.mxu0 0.0
        %4119 = vmatprep.mubr.f32.mxu0 0.0
        %4120 = vmatmul.mubr.f32.gmra.mrb[0].mxu0 %v4032
        %v4121 = vpop.f32.mrb[0].mxu0
        %v4122 = vadd.f32 0.0, %v4121
        %v4123 = vpop.f32.mrb[0].mxu0
        %4124 = vmatprep.mubr.f32.mxu0 0.0
        %4125 = vmatmul.mubr.f32.gmra.mrb[0].mxu0 %v4035
        %v4126 = vpop.f32.mrb[0].mxu0
        %v4127 = vadd.f32 0.0, %v4126
        %v4128 = vpop.f32.mrb[0].mxu0
        %4129 = vmatprep.mubr.f32.mxu0 0.0
        %4130 = vmatmul.mubr.f32.gmra.mrb[0].mxu0 %v4038
        %v4131 = vpop.f32.mrb[0].mxu0
        %v4132 = vadd.f32 0.0, %v4131
        %v4133 = vpop.f32.mrb[0].mxu0
        %4134 = vmatprep.mubr.f32.mxu0 0.0
        %4135 = vmatmul.mubr.f32.gmra.mrb[0].mxu0 %v4041
        %v4136 = vpop.f32.mrb[0].mxu0
        %v4137 = vadd.f32 0.0, %v4136
        %v4138 = vpop.f32.mrb[0].mxu0
        %4139 = vmatprep.mubr.f32.mxu0 0.0
        %4140 = vmatmul.mubr.f32.gmra.mrb[0].mxu0 %v4044
        %v4141 = vpop.f32.mrb[0].mxu0
        %v4142 = vadd.f32 0.0, %v4141
        %v4143 = vpop.f32.mrb[0].mxu0
        %4144 = vmatprep.mubr.f32.mxu0 0.0
        %4145 = vmatmul.mubr.f32.gmra.mrb[0].mxu0 %v4047
        %v4146 = vpop.f32.mrb[0].mxu0
        %v4147 = vadd.f32 0.0, %v4146
        %v4148 = vpop.f32.mrb[0].mxu0
        %4149 = vmatprep.mubr.f32.mxu0 0.0
        %4150 = vmatmul.mubr.f32.gmra.mrb[0].mxu0 %v4050
        %v4151 = vpop.f32.mrb[0].mxu0
        %v4152 = vadd.f32 0.0, %v4151
        %v4153 = vpop.f32.mrb[0].mxu0
        %4154 = vmatprep.mubr.f32.mxu0 0.0
        %4155 = vmatmul.mubr.f32.gmra.mrb[0].mxu0 %v4053
        %v4156 = vpop.f32.mrb[0].mxu0
        %v4157 = vadd.f32 0.0, %v4156
        %v4158 = vpop.f32.mrb[0].mxu0
        %4159 = vdwg.mxu0
        %v4160 = vadd.f32 %v4006, %v4122
        %v4161 = vadd.f32 %v4007, %v4127
        %v4162 = vadd.f32 %v4008, %v4132
        %v4163 = vadd.f32 %v4009, %v4137
        %v4164 = vadd.f32 %v4010, %v4142
        %v4165 = vadd.f32 %v4011, %v4147
        %v4166 = vadd.f32 %v4012, %v4152
        %v4167 = vadd.f32 %v4013, %v4157
        %v4168 = vld [vmem:[%s3406 + $0x2] sm:$0xff]
        %v4169 = vld [vmem:[%s3406 + $0x12] sm:$0xff]
        %v4170 = vld [vmem:[%s3406 + $0x22] sm:$0xff]
        %v4171 = vld [vmem:[%s3406 + $0x32] sm:$0xff]
        %v4172 = vld [vmem:[%s3406 + $0x42] sm:$0xff]
        %v4173 = vld [vmem:[%s3406 + $0x52] sm:$0xff]
        %v4174 = vld [vmem:[%s3406 + $0x62] sm:$0xff]
        %v4175 = vld [vmem:[%s3406 + $0x72] sm:$0xff]
        %s4176 = scalar_lea.vmem [#allocation9], 320
        %v4177 = vld [vmem:[%s4176] sm:$0xff]
        %v4178 = vld [vmem:[%s4176 + $0x8] sm:$0xff]
        %v4179 = vld [vmem:[%s4176 + $0x10] sm:$0xff]
        %v4180 = vld [vmem:[%s4176 + $0x18] sm:$0xff]
        %v4181 = vld [vmem:[%s4176 + $0x20] sm:$0xff]
        %v4182 = vld [vmem:[%s4176 + $0x28] sm:$0xff]
        %v4183 = vld [vmem:[%s4176 + $0x30] sm:$0xff]
        %v4184 = vld [vmem:[%s4176 + $0x38] sm:$0xff]
        %v4186 = vsel %vm3384, %v4168, 0
        %v4189 = vsel %vm3384, %v4169, 0
        %v4192 = vsel %vm3384, %v4170, 0
        %v4195 = vsel %vm3384, %v4171, 0
        %v4198 = vsel %vm3384, %v4172, 0
        %v4201 = vsel %vm3384, %v4173, 0
        %v4204 = vsel %vm3384, %v4174, 0
        %v4207 = vsel %vm3384, %v4175, 0
        %4209 = vmatprep.subr.mxu0 0.0
        %4210 = vmatpush1.msra.mxu0 %v4177
        %4211 = vmatprep.subr.mxu0 0.0
        %4212 = vmatpush1.msra.mxu0 %v4178
        %4213 = vmatprep.subr.mxu0 0.0
        %4214 = vmatpush1.msra.mxu0 %v4179
        %4215 = vmatprep.subr.mxu0 0.0
        %4216 = vmatpush1.msra.mxu0 %v4180
        %4217 = vmatprep.subr.mxu0 0.0
        %4218 = vmatpush1.msra.mxu0 %v4181
        %4219 = vmatprep.subr.mxu0 0.0
        %4220 = vmatpush1.msra.mxu0 %v4182
        %4221 = vmatprep.subr.mxu0 0.0
        %4222 = vmatpush1.msra.mxu0 %v4183
        %4223 = vmatprep.subr.mxu0 0.0
        %4224 = vmatpush1.msra.mxu0 %v4184
        %4225 = vmatprep.subr.mxu0 0.0
        %4226 = vmatpush1.msra.mxu0 0.0
        %4227 = vmatprep.subr.mxu0 0.0
        %4228 = vmatpush1.msra.mxu0 0.0
        %4229 = vmatprep.subr.mxu0 0.0
        %4230 = vmatpush1.msra.mxu0 0.0
        %4231 = vmatprep.subr.mxu0 0.0
        %4232 = vmatpush1.msra.mxu0 0.0
        %4233 = vmatprep.subr.mxu0 0.0
        %4234 = vmatpush1.msra.mxu0 0.0
        %4235 = vmatprep.subr.mxu0 0.0
        %4236 = vmatpush1.msra.mxu0 0.0
        %4237 = vmatprep.subr.mxu0 0.0
        %4238 = vmatpush1.msra.mxu0 0.0
        %4239 = vmatprep.subr.mxu0 0.0
        %4240 = vmatpush1.msra.mxu0 0.0
        %4241 = vmatprep.subr.mxu0 0.0
        %4242 = vmatpush1.msra.mxu0 0.0
        %4243 = vmatprep.subr.mxu0 0.0
        %4244 = vmatpush1.msra.mxu0 0.0
        %4245 = vmatprep.subr.mxu0 0.0
        %4246 = vmatpush1.msra.mxu0 0.0
        %4247 = vmatprep.subr.mxu0 0.0
        %4248 = vmatpush1.msra.mxu0 0.0
        %4249 = vmatprep.subr.mxu0 0.0
        %4250 = vmatpush1.msra.mxu0 0.0
        %4251 = vmatprep.subr.mxu0 0.0
        %4252 = vmatpush1.msra.mxu0 0.0
        %4253 = vmatprep.subr.mxu0 0.0
        %4254 = vmatpush1.msra.mxu0 0.0
        %4255 = vmatprep.subr.mxu0 0.0
        %4256 = vmatpush1.msra.mxu0 0.0
        %4257 = vmatprep.subr.mxu0 0.0
        %4258 = vmatpush1.msra.mxu0 0.0
        %4259 = vmatprep.subr.mxu0 0.0
        %4260 = vmatpush1.msra.mxu0 0.0
        %4261 = vmatprep.subr.mxu0 0.0
        %4262 = vmatpush1.msra.mxu0 0.0
        %4263 = vmatprep.subr.mxu0 0.0
        %4264 = vmatpush1.msra.mxu0 0.0
        %4265 = vmatprep.subr.mxu0 0.0
        %4266 = vmatpush1.msra.mxu0 0.0
        %4267 = vmatprep.subr.mxu0 0.0
        %4268 = vmatpush1.msra.mxu0 0.0
        %4269 = vmatprep.subr.mxu0 0.0
        %4270 = vmatpush1.msra.mxu0 0.0
        %4271 = vmatprep.subr.mxu0 0.0
        %4272 = vmatpush1.msra.mxu0 0.0
        %4273 = vmatprep.mubr.f32.mxu0 0.0
        %4274 = vmatmul.mubr.f32.gmra.mrb[0].mxu0 %v4186
        %v4275 = vpop.f32.mrb[0].mxu0
        %v4276 = vadd.f32 0.0, %v4275
        %v4277 = vpop.f32.mrb[0].mxu0
        %4278 = vmatprep.mubr.f32.mxu0 0.0
        %4279 = vmatmul.mubr.f32.gmra.mrb[0].mxu0 %v4189
        %v4280 = vpop.f32.mrb[0].mxu0
        %v4281 = vadd.f32 0.0, %v4280
        %v4282 = vpop.f32.mrb[0].mxu0
        %4283 = vmatprep.mubr.f32.mxu0 0.0
        %4284 = vmatmul.mubr.f32.gmra.mrb[0].mxu0 %v4192
        %v4285 = vpop.f32.mrb[0].mxu0
        %v4286 = vadd.f32 0.0, %v4285
        %v4287 = vpop.f32.mrb[0].mxu0
        %4288 = vmatprep.mubr.f32.mxu0 0.0
        %4289 = vmatmul.mubr.f32.gmra.mrb[0].mxu0 %v4195
        %v4290 = vpop.f32.mrb[0].mxu0
        %v4291 = vadd.f32 0.0, %v4290
        %v4292 = vpop.f32.mrb[0].mxu0
        %4293 = vmatprep.mubr.f32.mxu0 0.0
        %4294 = vmatmul.mubr.f32.gmra.mrb[0].mxu0 %v4198
        %v4295 = vpop.f32.mrb[0].mxu0
        %v4296 = vadd.f32 0.0, %v4295
        %v4297 = vpop.f32.mrb[0].mxu0
        %4298 = vmatprep.mubr.f32.mxu0 0.0
        %4299 = vmatmul.mubr.f32.gmra.mrb[0].mxu0 %v4201
        %v4300 = vpop.f32.mrb[0].mxu0
        %v4301 = vadd.f32 0.0, %v4300
        %v4302 = vpop.f32.mrb[0].mxu0
        %4303 = vmatprep.mubr.f32.mxu0 0.0
        %4304 = vmatmul.mubr.f32.gmra.mrb[0].mxu0 %v4204
        %v4305 = vpop.f32.mrb[0].mxu0
        %v4306 = vadd.f32 0.0, %v4305
        %v4307 = vpop.f32.mrb[0].mxu0
        %4308 = vmatprep.mubr.f32.mxu0 0.0
        %4309 = vmatmul.mubr.f32.gmra.mrb[0].mxu0 %v4207
        %v4310 = vpop.f32.mrb[0].mxu0
        %v4311 = vadd.f32 0.0, %v4310
        %v4312 = vpop.f32.mrb[0].mxu0
        %4313 = vdwg.mxu0
        %v4314 = vadd.f32 %v4160, %v4276
        %v4315 = vadd.f32 %v4161, %v4281
        %v4316 = vadd.f32 %v4162, %v4286
        %v4317 = vadd.f32 %v4163, %v4291
        %v4318 = vadd.f32 %v4164, %v4296
        %v4319 = vadd.f32 %v4165, %v4301
        %v4320 = vadd.f32 %v4166, %v4306
        %v4321 = vadd.f32 %v4167, %v4311
        %s4322 = scalar_lea.vmem [#allocation4], 32
        %v4323 = vld [vmem:[%s4322] sm:$0xff]
        %v4324 = vld [vmem:[%s4322 + $0x10] sm:$0xff]
        %v4325 = vld [vmem:[%s4322 + $0x20] sm:$0xff]
        %v4326 = vld [vmem:[%s4322 + $0x30] sm:$0xff]
        %v4327 = vld [vmem:[%s4322 + $0x40] sm:$0xff]
        %v4328 = vld [vmem:[%s4322 + $0x50] sm:$0xff]
        %v4329 = vld [vmem:[%s4322 + $0x60] sm:$0xff]
        %v4330 = vld [vmem:[%s4322 + $0x70] sm:$0xff]
        %s4331 = scalar_lea.vmem [#allocation9], 384
        %v4332 = vld [vmem:[%s4331] sm:$0xff]
        %v4333 = vld [vmem:[%s4331 + $0x8] sm:$0xff]
        %v4334 = vld [vmem:[%s4331 + $0x10] sm:$0xff]
        %v4335 = vld [vmem:[%s4331 + $0x18] sm:$0xff]
        %v4336 = vld [vmem:[%s4331 + $0x20] sm:$0xff]
        %v4337 = vld [vmem:[%s4331 + $0x28] sm:$0xff]
        %v4338 = vld [vmem:[%s4331 + $0x30] sm:$0xff]
        %v4339 = vld [vmem:[%s4331 + $0x38] sm:$0xff]
        %v4341 = vsel %vm3384, %v4323, 0
        %v4344 = vsel %vm3384, %v4324, 0
        %v4347 = vsel %vm3384, %v4325, 0
        %v4350 = vsel %vm3384, %v4326, 0
        %v4353 = vsel %vm3384, %v4327, 0
        %v4356 = vsel %vm3384, %v4328, 0
        %v4359 = vsel %vm3384, %v4329, 0
        %v4362 = vsel %vm3384, %v4330, 0
        %4364 = vmatprep.subr.mxu0 0.0
        %4365 = vmatpush1.msra.mxu0 %v4332
        %4366 = vmatprep.subr.mxu0 0.0
        %4367 = vmatpush1.msra.mxu0 %v4333
        %4368 = vmatprep.subr.mxu0 0.0
        %4369 = vmatpush1.msra.mxu0 %v4334
        %4370 = vmatprep.subr.mxu0 0.0
        %4371 = vmatpush1.msra.mxu0 %v4335
        %4372 = vmatprep.subr.mxu0 0.0
        %4373 = vmatpush1.msra.mxu0 %v4336
        %4374 = vmatprep.subr.mxu0 0.0
        %4375 = vmatpush1.msra.mxu0 %v4337
        %4376 = vmatprep.subr.mxu0 0.0
        %4377 = vmatpush1.msra.mxu0 %v4338
        %4378 = vmatprep.subr.mxu0 0.0
        %4379 = vmatpush1.msra.mxu0 %v4339
        %4380 = vmatprep.subr.mxu0 0.0
        %4381 = vmatpush1.msra.mxu0 0.0
        %4382 = vmatprep.subr.mxu0 0.0
        %4383 = vmatpush1.msra.mxu0 0.0
        %4384 = vmatprep.subr.mxu0 0.0
        %4385 = vmatpush1.msra.mxu0 0.0
        %4386 = vmatprep.subr.mxu0 0.0
        %4387 = vmatpush1.msra.mxu0 0.0
        %4388 = vmatprep.subr.mxu0 0.0
        %4389 = vmatpush1.msra.mxu0 0.0
        %4390 = vmatprep.subr.mxu0 0.0
        %4391 = vmatpush1.msra.mxu0 0.0
        %4392 = vmatprep.subr.mxu0 0.0
        %4393 = vmatpush1.msra.mxu0 0.0
        %4394 = vmatprep.subr.mxu0 0.0
        %4395 = vmatpush1.msra.mxu0 0.0
        %4396 = vmatprep.subr.mxu0 0.0
        %4397 = vmatpush1.msra.mxu0 0.0
        %4398 = vmatprep.subr.mxu0 0.0
        %4399 = vmatpush1.msra.mxu0 0.0
        %4400 = vmatprep.subr.mxu0 0.0
        %4401 = vmatpush1.msra.mxu0 0.0
        %4402 = vmatprep.subr.mxu0 0.0
        %4403 = vmatpush1.msra.mxu0 0.0
        %4404 = vmatprep.subr.mxu0 0.0
        %4405 = vmatpush1.msra.mxu0 0.0
        %4406 = vmatprep.subr.mxu0 0.0
        %4407 = vmatpush1.msra.mxu0 0.0
        %4408 = vmatprep.subr.mxu0 0.0
        %4409 = vmatpush1.msra.mxu0 0.0
        %4410 = vmatprep.subr.mxu0 0.0
        %4411 = vmatpush1.msra.mxu0 0.0
        %4412 = vmatprep.subr.mxu0 0.0
        %4413 = vmatpush1.msra.mxu0 0.0
        %4414 = vmatprep.subr.mxu0 0.0
        %4415 = vmatpush1.msra.mxu0 0.0
        %4416 = vmatprep.subr.mxu0 0.0
        %4417 = vmatpush1.msra.mxu0 0.0
        %4418 = vmatprep.subr.mxu0 0.0
        %4419 = vmatpush1.msra.mxu0 0.0
        %4420 = vmatprep.subr.mxu0 0.0
        %4421 = vmatpush1.msra.mxu0 0.0
        %4422 = vmatprep.subr.mxu0 0.0
        %4423 = vmatpush1.msra.mxu0 0.0
        %4424 = vmatprep.subr.mxu0 0.0
        %4425 = vmatpush1.msra.mxu0 0.0
        %4426 = vmatprep.subr.mxu0 0.0
        %4427 = vmatpush1.msra.mxu0 0.0
        %4428 = vmatprep.mubr.f32.mxu0 0.0
        %4429 = vmatmul.mubr.f32.gmra.mrb[0].mxu0 %v4341
        %v4430 = vpop.f32.mrb[0].mxu0
        %v4431 = vadd.f32 0.0, %v4430
        %v4432 = vpop.f32.mrb[0].mxu0
        %4433 = vmatprep.mubr.f32.mxu0 0.0
        %4434 = vmatmul.mubr.f32.gmra.mrb[0].mxu0 %v4344
        %v4435 = vpop.f32.mrb[0].mxu0
        %v4436 = vadd.f32 0.0, %v4435
        %v4437 = vpop.f32.mrb[0].mxu0
        %4438 = vmatprep.mubr.f32.mxu0 0.0
        %4439 = vmatmul.mubr.f32.gmra.mrb[0].mxu0 %v4347
        %v4440 = vpop.f32.mrb[0].mxu0
        %v4441 = vadd.f32 0.0, %v4440
        %v4442 = vpop.f32.mrb[0].mxu0
        %4443 = vmatprep.mubr.f32.mxu0 0.0
        %4444 = vmatmul.mubr.f32.gmra.mrb[0].mxu0 %v4350
        %v4445 = vpop.f32.mrb[0].mxu0
        %v4446 = vadd.f32 0.0, %v4445
        %v4447 = vpop.f32.mrb[0].mxu0
        %4448 = vmatprep.mubr.f32.mxu0 0.0
        %4449 = vmatmul.mubr.f32.gmra.mrb[0].mxu0 %v4353
        %v4450 = vpop.f32.mrb[0].mxu0
        %v4451 = vadd.f32 0.0, %v4450
        %v4452 = vpop.f32.mrb[0].mxu0
        %4453 = vmatprep.mubr.f32.mxu0 0.0
        %4454 = vmatmul.mubr.f32.gmra.mrb[0].mxu0 %v4356
        %v4455 = vpop.f32.mrb[0].mxu0
        %v4456 = vadd.f32 0.0, %v4455
        %v4457 = vpop.f32.mrb[0].mxu0
        %4458 = vmatprep.mubr.f32.mxu0 0.0
        %4459 = vmatmul.mubr.f32.gmra.mrb[0].mxu0 %v4359
        %v4460 = vpop.f32.mrb[0].mxu0
        %v4461 = vadd.f32 0.0, %v4460
        %v4462 = vpop.f32.mrb[0].mxu0
        %4463 = vmatprep.mubr.f32.mxu0 0.0
        %4464 = vmatmul.mubr.f32.gmra.mrb[0].mxu0 %v4362
        %v4465 = vpop.f32.mrb[0].mxu0
        %v4466 = vadd.f32 0.0, %v4465
        %v4467 = vpop.f32.mrb[0].mxu0
        %4468 = vdwg.mxu0
        %v4469 = vadd.f32 %v4314, %v4431
        %v4470 = vadd.f32 %v4315, %v4436
        %v4471 = vadd.f32 %v4316, %v4441
        %v4472 = vadd.f32 %v4317, %v4446
        %v4473 = vadd.f32 %v4318, %v4451
        %v4474 = vadd.f32 %v4319, %v4456
        %v4475 = vadd.f32 %v4320, %v4461
        %v4476 = vadd.f32 %v4321, %v4466
        %v4477 = vld [vmem:[%s4322 + $0x1] sm:$0xff]
        %v4478 = vld [vmem:[%s4322 + $0x11] sm:$0xff]
        %v4479 = vld [vmem:[%s4322 + $0x21] sm:$0xff]
        %v4480 = vld [vmem:[%s4322 + $0x31] sm:$0xff]
        %v4481 = vld [vmem:[%s4322 + $0x41] sm:$0xff]
        %v4482 = vld [vmem:[%s4322 + $0x51] sm:$0xff]
        %v4483 = vld [vmem:[%s4322 + $0x61] sm:$0xff]
        %v4484 = vld [vmem:[%s4322 + $0x71] sm:$0xff]
        %s4485 = scalar_lea.vmem [#allocation9], 448
        %v4486 = vld [vmem:[%s4485] sm:$0xff]
        %v4487 = vld [vmem:[%s4485 + $0x8] sm:$0xff]
        %v4488 = vld [vmem:[%s4485 + $0x10] sm:$0xff]
        %v4489 = vld [vmem:[%s4485 + $0x18] sm:$0xff]
        %v4490 = vld [vmem:[%s4485 + $0x20] sm:$0xff]
        %v4491 = vld [vmem:[%s4485 + $0x28] sm:$0xff]
        %v4492 = vld [vmem:[%s4485 + $0x30] sm:$0xff]
        %v4493 = vld [vmem:[%s4485 + $0x38] sm:$0xff]
        %v4495 = vsel %vm3384, %v4477, 0
        %v4498 = vsel %vm3384, %v4478, 0
        %v4501 = vsel %vm3384, %v4479, 0
        %v4504 = vsel %vm3384, %v4480, 0
        %v4507 = vsel %vm3384, %v4481, 0
        %v4510 = vsel %vm3384, %v4482, 0
        %v4513 = vsel %vm3384, %v4483, 0
        %v4516 = vsel %vm3384, %v4484, 0
        %4518 = vmatprep.subr.mxu0 0.0
        %4519 = vmatpush1.msra.mxu0 %v4486
        %4520 = vmatprep.subr.mxu0 0.0
        %4521 = vmatpush1.msra.mxu0 %v4487
        %4522 = vmatprep.subr.mxu0 0.0
        %4523 = vmatpush1.msra.mxu0 %v4488
        %4524 = vmatprep.subr.mxu0 0.0
        %4525 = vmatpush1.msra.mxu0 %v4489
        %4526 = vmatprep.subr.mxu0 0.0
        %4527 = vmatpush1.msra.mxu0 %v4490
        %4528 = vmatprep.subr.mxu0 0.0
        %4529 = vmatpush1.msra.mxu0 %v4491
        %4530 = vmatprep.subr.mxu0 0.0
        %4531 = vmatpush1.msra.mxu0 %v4492
        %4532 = vmatprep.subr.mxu0 0.0
        %4533 = vmatpush1.msra.mxu0 %v4493
        %4534 = vmatprep.subr.mxu0 0.0
        %4535 = vmatpush1.msra.mxu0 0.0
        %4536 = vmatprep.subr.mxu0 0.0
        %4537 = vmatpush1.msra.mxu0 0.0
        %4538 = vmatprep.subr.mxu0 0.0
        %4539 = vmatpush1.msra.mxu0 0.0
        %4540 = vmatprep.subr.mxu0 0.0
        %4541 = vmatpush1.msra.mxu0 0.0
        %4542 = vmatprep.subr.mxu0 0.0
        %4543 = vmatpush1.msra.mxu0 0.0
        %4544 = vmatprep.subr.mxu0 0.0
        %4545 = vmatpush1.msra.mxu0 0.0
        %4546 = vmatprep.subr.mxu0 0.0
        %4547 = vmatpush1.msra.mxu0 0.0
        %4548 = vmatprep.subr.mxu0 0.0
        %4549 = vmatpush1.msra.mxu0 0.0
        %4550 = vmatprep.subr.mxu0 0.0
        %4551 = vmatpush1.msra.mxu0 0.0
        %4552 = vmatprep.subr.mxu0 0.0
        %4553 = vmatpush1.msra.mxu0 0.0
        %4554 = vmatprep.subr.mxu0 0.0
        %4555 = vmatpush1.msra.mxu0 0.0
        %4556 = vmatprep.subr.mxu0 0.0
        %4557 = vmatpush1.msra.mxu0 0.0
        %4558 = vmatprep.subr.mxu0 0.0
        %4559 = vmatpush1.msra.mxu0 0.0
        %4560 = vmatprep.subr.mxu0 0.0
        %4561 = vmatpush1.msra.mxu0 0.0
        %4562 = vmatprep.subr.mxu0 0.0
        %4563 = vmatpush1.msra.mxu0 0.0
        %4564 = vmatprep.subr.mxu0 0.0
        %4565 = vmatpush1.msra.mxu0 0.0
        %4566 = vmatprep.subr.mxu0 0.0
        %4567 = vmatpush1.msra.mxu0 0.0
        %4568 = vmatprep.subr.mxu0 0.0
        %4569 = vmatpush1.msra.mxu0 0.0
        %4570 = vmatprep.subr.mxu0 0.0
        %4571 = vmatpush1.msra.mxu0 0.0
        %4572 = vmatprep.subr.mxu0 0.0
        %4573 = vmatpush1.msra.mxu0 0.0
        %4574 = vmatprep.subr.mxu0 0.0
        %4575 = vmatpush1.msra.mxu0 0.0
        %4576 = vmatprep.subr.mxu0 0.0
        %4577 = vmatpush1.msra.mxu0 0.0
        %4578 = vmatprep.subr.mxu0 0.0
        %4579 = vmatpush1.msra.mxu0 0.0
        %4580 = vmatprep.subr.mxu0 0.0
        %4581 = vmatpush1.msra.mxu0 0.0
        %4582 = vmatprep.mubr.f32.mxu0 0.0
        %4583 = vmatmul.mubr.f32.gmra.mrb[0].mxu0 %v4495
        %v4584 = vpop.f32.mrb[0].mxu0
        %v4585 = vadd.f32 0.0, %v4584
        %v4586 = vpop.f32.mrb[0].mxu0
        %4587 = vmatprep.mubr.f32.mxu0 0.0
        %4588 = vmatmul.mubr.f32.gmra.mrb[0].mxu0 %v4498
        %v4589 = vpop.f32.mrb[0].mxu0
        %v4590 = vadd.f32 0.0, %v4589
        %v4591 = vpop.f32.mrb[0].mxu0
        %4592 = vmatprep.mubr.f32.mxu0 0.0
        %4593 = vmatmul.mubr.f32.gmra.mrb[0].mxu0 %v4501
        %v4594 = vpop.f32.mrb[0].mxu0
        %v4595 = vadd.f32 0.0, %v4594
        %v4596 = vpop.f32.mrb[0].mxu0
        %4597 = vmatprep.mubr.f32.mxu0 0.0
        %4598 = vmatmul.mubr.f32.gmra.mrb[0].mxu0 %v4504
        %v4599 = vpop.f32.mrb[0].mxu0
        %v4600 = vadd.f32 0.0, %v4599
        %v4601 = vpop.f32.mrb[0].mxu0
        %4602 = vmatprep.mubr.f32.mxu0 0.0
        %4603 = vmatmul.mubr.f32.gmra.mrb[0].mxu0 %v4507
        %v4604 = vpop.f32.mrb[0].mxu0
        %v4605 = vadd.f32 0.0, %v4604
        %v4606 = vpop.f32.mrb[0].mxu0
        %4607 = vmatprep.mubr.f32.mxu0 0.0
        %4608 = vmatmul.mubr.f32.gmra.mrb[0].mxu0 %v4510
        %v4609 = vpop.f32.mrb[0].mxu0
        %v4610 = vadd.f32 0.0, %v4609
        %v4611 = vpop.f32.mrb[0].mxu0
        %4612 = vmatprep.mubr.f32.mxu0 0.0
        %4613 = vmatmul.mubr.f32.gmra.mrb[0].mxu0 %v4513
        %v4614 = vpop.f32.mrb[0].mxu0
        %v4615 = vadd.f32 0.0, %v4614
        %v4616 = vpop.f32.mrb[0].mxu0
        %4617 = vmatprep.mubr.f32.mxu0 0.0
        %4618 = vmatmul.mubr.f32.gmra.mrb[0].mxu0 %v4516
        %v4619 = vpop.f32.mrb[0].mxu0
        %v4620 = vadd.f32 0.0, %v4619
        %v4621 = vpop.f32.mrb[0].mxu0
        %4622 = vdwg.mxu0
        %v4623 = vadd.f32 %v4469, %v4585
        %v4624 = vadd.f32 %v4470, %v4590
        %v4625 = vadd.f32 %v4471, %v4595
        %v4626 = vadd.f32 %v4472, %v4600
        %v4627 = vadd.f32 %v4473, %v4605
        %v4628 = vadd.f32 %v4474, %v4610
        %v4629 = vadd.f32 %v4475, %v4615
        %v4630 = vadd.f32 %v4476, %v4620
        %v4631 = vld [vmem:[%s4322 + $0x2] sm:$0xff]
        %v4632 = vld [vmem:[%s4322 + $0x12] sm:$0xff]
        %v4633 = vld [vmem:[%s4322 + $0x22] sm:$0xff]
        %v4634 = vld [vmem:[%s4322 + $0x32] sm:$0xff]
        %v4635 = vld [vmem:[%s4322 + $0x42] sm:$0xff]
        %v4636 = vld [vmem:[%s4322 + $0x52] sm:$0xff]
        %v4637 = vld [vmem:[%s4322 + $0x62] sm:$0xff]
        %v4638 = vld [vmem:[%s4322 + $0x72] sm:$0xff]
        %s4639 = scalar_lea.vmem [#allocation9], 512
        %v4640 = vld [vmem:[%s4639] sm:$0xff]
        %v4641 = vld [vmem:[%s4639 + $0x8] sm:$0xff]
        %v4642 = vld [vmem:[%s4639 + $0x10] sm:$0xff]
        %v4643 = vld [vmem:[%s4639 + $0x18] sm:$0xff]
        %v4644 = vld [vmem:[%s4639 + $0x20] sm:$0xff]
        %v4645 = vld [vmem:[%s4639 + $0x28] sm:$0xff]
        %v4646 = vld [vmem:[%s4639 + $0x30] sm:$0xff]
        %v4647 = vld [vmem:[%s4639 + $0x38] sm:$0xff]
        %v4649 = vsel %vm3384, %v4631, 0
        %v4652 = vsel %vm3384, %v4632, 0
        %v4655 = vsel %vm3384, %v4633, 0
        %v4658 = vsel %vm3384, %v4634, 0
        %v4661 = vsel %vm3384, %v4635, 0
        %v4664 = vsel %vm3384, %v4636, 0
        %v4667 = vsel %vm3384, %v4637, 0
        %v4670 = vsel %vm3384, %v4638, 0
        %4672 = vmatprep.subr.mxu0 0.0
        %4673 = vmatpush1.msra.mxu0 %v4640
        %4674 = vmatprep.subr.mxu0 0.0
        %4675 = vmatpush1.msra.mxu0 %v4641
        %4676 = vmatprep.subr.mxu0 0.0
        %4677 = vmatpush1.msra.mxu0 %v4642
        %4678 = vmatprep.subr.mxu0 0.0
        %4679 = vmatpush1.msra.mxu0 %v4643
        %4680 = vmatprep.subr.mxu0 0.0
        %4681 = vmatpush1.msra.mxu0 %v4644
        %4682 = vmatprep.subr.mxu0 0.0
        %4683 = vmatpush1.msra.mxu0 %v4645
        %4684 = vmatprep.subr.mxu0 0.0
        %4685 = vmatpush1.msra.mxu0 %v4646
        %4686 = vmatprep.subr.mxu0 0.0
        %4687 = vmatpush1.msra.mxu0 %v4647
        %4688 = vmatprep.subr.mxu0 0.0
        %4689 = vmatpush1.msra.mxu0 0.0
        %4690 = vmatprep.subr.mxu0 0.0
        %4691 = vmatpush1.msra.mxu0 0.0
        %4692 = vmatprep.subr.mxu0 0.0
        %4693 = vmatpush1.msra.mxu0 0.0
        %4694 = vmatprep.subr.mxu0 0.0
        %4695 = vmatpush1.msra.mxu0 0.0
        %4696 = vmatprep.subr.mxu0 0.0
        %4697 = vmatpush1.msra.mxu0 0.0
        %4698 = vmatprep.subr.mxu0 0.0
        %4699 = vmatpush1.msra.mxu0 0.0
        %4700 = vmatprep.subr.mxu0 0.0
        %4701 = vmatpush1.msra.mxu0 0.0
        %4702 = vmatprep.subr.mxu0 0.0
        %4703 = vmatpush1.msra.mxu0 0.0
        %4704 = vmatprep.subr.mxu0 0.0
        %4705 = vmatpush1.msra.mxu0 0.0
        %4706 = vmatprep.subr.mxu0 0.0
        %4707 = vmatpush1.msra.mxu0 0.0
        %4708 = vmatprep.subr.mxu0 0.0
        %4709 = vmatpush1.msra.mxu0 0.0
        %4710 = vmatprep.subr.mxu0 0.0
        %4711 = vmatpush1.msra.mxu0 0.0
        %4712 = vmatprep.subr.mxu0 0.0
        %4713 = vmatpush1.msra.mxu0 0.0
        %4714 = vmatprep.subr.mxu0 0.0
        %4715 = vmatpush1.msra.mxu0 0.0
        %4716 = vmatprep.subr.mxu0 0.0
        %4717 = vmatpush1.msra.mxu0 0.0
        %4718 = vmatprep.subr.mxu0 0.0
        %4719 = vmatpush1.msra.mxu0 0.0
        %4720 = vmatprep.subr.mxu0 0.0
        %4721 = vmatpush1.msra.mxu0 0.0
        %4722 = vmatprep.subr.mxu0 0.0
        %4723 = vmatpush1.msra.mxu0 0.0
        %4724 = vmatprep.subr.mxu0 0.0
        %4725 = vmatpush1.msra.mxu0 0.0
        %4726 = vmatprep.subr.mxu0 0.0
        %4727 = vmatpush1.msra.mxu0 0.0
        %4728 = vmatprep.subr.mxu0 0.0
        %4729 = vmatpush1.msra.mxu0 0.0
        %4730 = vmatprep.subr.mxu0 0.0
        %4731 = vmatpush1.msra.mxu0 0.0
        %4732 = vmatprep.subr.mxu0 0.0
        %4733 = vmatpush1.msra.mxu0 0.0
        %4734 = vmatprep.subr.mxu0 0.0
        %4735 = vmatpush1.msra.mxu0 0.0
        %4736 = vmatprep.mubr.f32.mxu0 0.0
        %4737 = vmatmul.mubr.f32.gmra.mrb[0].mxu0 %v4649
        %v4738 = vpop.f32.mrb[0].mxu0
        %v4739 = vadd.f32 0.0, %v4738
        %v4740 = vpop.f32.mrb[0].mxu0
        %4741 = vmatprep.mubr.f32.mxu0 0.0
        %4742 = vmatmul.mubr.f32.gmra.mrb[0].mxu0 %v4652
        %v4743 = vpop.f32.mrb[0].mxu0
        %v4744 = vadd.f32 0.0, %v4743
        %v4745 = vpop.f32.mrb[0].mxu0
        %4746 = vmatprep.mubr.f32.mxu0 0.0
        %4747 = vmatmul.mubr.f32.gmra.mrb[0].mxu0 %v4655
        %v4748 = vpop.f32.mrb[0].mxu0
        %v4749 = vadd.f32 0.0, %v4748
        %v4750 = vpop.f32.mrb[0].mxu0
        %4751 = vmatprep.mubr.f32.mxu0 0.0
        %4752 = vmatmul.mubr.f32.gmra.mrb[0].mxu0 %v4658
        %v4753 = vpop.f32.mrb[0].mxu0
        %v4754 = vadd.f32 0.0, %v4753
        %v4755 = vpop.f32.mrb[0].mxu0
        %4756 = vmatprep.mubr.f32.mxu0 0.0
        %4757 = vmatmul.mubr.f32.gmra.mrb[0].mxu0 %v4661
        %v4758 = vpop.f32.mrb[0].mxu0
        %v4759 = vadd.f32 0.0, %v4758
        %v4760 = vpop.f32.mrb[0].mxu0
        %4761 = vmatprep.mubr.f32.mxu0 0.0
        %4762 = vmatmul.mubr.f32.gmra.mrb[0].mxu0 %v4664
        %v4763 = vpop.f32.mrb[0].mxu0
        %v4764 = vadd.f32 0.0, %v4763
        %v4765 = vpop.f32.mrb[0].mxu0
        %4766 = vmatprep.mubr.f32.mxu0 0.0
        %4767 = vmatmul.mubr.f32.gmra.mrb[0].mxu0 %v4667
        %v4768 = vpop.f32.mrb[0].mxu0
        %v4769 = vadd.f32 0.0, %v4768
        %v4770 = vpop.f32.mrb[0].mxu0
        %4771 = vmatprep.mubr.f32.mxu0 0.0
        %4772 = vmatmul.mubr.f32.gmra.mrb[0].mxu0 %v4670
        %v4773 = vpop.f32.mrb[0].mxu0
        %v4774 = vadd.f32 0.0, %v4773
        %v4775 = vpop.f32.mrb[0].mxu0
        %4776 = vdwg.mxu0
        %v4777 = vadd.f32 %v4623, %v4739
        %v4778 = vadd.f32 %v4624, %v4744
        %v4779 = vadd.f32 %v4625, %v4749
        %v4780 = vadd.f32 %v4626, %v4754
        %v4781 = vadd.f32 %v4627, %v4759
        %v4782 = vadd.f32 %v4628, %v4764
        %v4783 = vadd.f32 %v4629, %v4769
        %v4784 = vadd.f32 %v4630, %v4774
        %v4785 = vld [vmem:[#allocation11] sm:$0x1]
        %v4787 = vlaneseq
        %v4788 = vshrl.u32 %v4787, 7
        %v4789 = vsub.s32 0, %v4788
        %v4790 = vrot.slane %v4785, %v4789
        %v4792 = vadd.f32 %v4777, %v4790
        %v4793 = vadd.f32 %v4778, %v4790
        %v4794 = vadd.f32 %v4779, %v4790
        %v4795 = vadd.f32 %v4780, %v4790
        %v4796 = vadd.f32 %v4781, %v4790
        %v4797 = vadd.f32 %v4782, %v4790
        %v4798 = vadd.f32 %v4783, %v4790
        %v4799 = vadd.f32 %v4784, %v4790
        %v4800 = vmax.f32 %v4792, 0.0
        %v4801 = vmax.f32 %v4793, 0.0
        %v4802 = vmax.f32 %v4794, 0.0
        %v4803 = vmax.f32 %v4795, 0.0
        %v4804 = vmax.f32 %v4796, 0.0
        %v4805 = vmax.f32 %v4797, 0.0
        %v4806 = vmax.f32 %v4798, 0.0
        %v4807 = vmax.f32 %v4799, 0.0
        %v4808 = vld [vmem:[%s7] sm:$0xff]
        %v4809 = vld [vmem:[%s7 + $0x8] sm:$0xff]
        %v4810 = vld [vmem:[%s7 + $0x10] sm:$0xff]
        %v4811 = vld [vmem:[%s7 + $0x18] sm:$0xff]
        %v4812 = vld [vmem:[%s7 + $0x20] sm:$0xff]
        %v4813 = vld [vmem:[%s7 + $0x28] sm:$0xff]
        %v4814 = vld [vmem:[%s7 + $0x30] sm:$0xff]
        %v4815 = vld [vmem:[%s7 + $0x38] sm:$0xff]
        %v4816 = vld [vmem:[%s7 + $0x40] sm:$0xff]
        %v4817 = vld [vmem:[%s7 + $0x48] sm:$0xff]
        %v4818 = vld [vmem:[%s7 + $0x50] sm:$0xff]
        %v4819 = vld [vmem:[%s7 + $0x58] sm:$0xff]
        %v4820 = vld [vmem:[%s7 + $0x60] sm:$0xff]
        %v4821 = vld [vmem:[%s7 + $0x68] sm:$0xff]
        %v4822 = vld [vmem:[%s7 + $0x70] sm:$0xff]
        %v4823 = vld [vmem:[%s7 + $0x78] sm:$0xff]
        %v4824 = vld [vmem:[%s8] sm:$0x1]
        %v4826 = vlaneseq
        %v4827 = vshrl.u32 %v4826, 7
        %v4828 = vsub.s32 0, %v4827
        %v4829 = vrot.slane %v4824, %v4828
        %4831 = vmatprep.subr.mxu0 0.0
        %4832 = vmatpush1.msra.mxu0 %v4808
        %4833 = vmatprep.subr.mxu0 0.0
        %4834 = vmatpush1.msra.mxu0 %v4809
        %4835 = vmatprep.subr.mxu0 0.0
        %4836 = vmatpush1.msra.mxu0 %v4810
        %4837 = vmatprep.subr.mxu0 0.0
        %4838 = vmatpush1.msra.mxu0 %v4811
        %4839 = vmatprep.subr.mxu0 0.0
        %4840 = vmatpush1.msra.mxu0 %v4812
        %4841 = vmatprep.subr.mxu0 0.0
        %4842 = vmatpush1.msra.mxu0 %v4813
        %4843 = vmatprep.subr.mxu0 0.0
        %4844 = vmatpush1.msra.mxu0 %v4814
        %4845 = vmatprep.subr.mxu0 0.0
        %4846 = vmatpush1.msra.mxu0 %v4815
        %4847 = vmatprep.subr.mxu0 0.0
        %4848 = vmatpush1.msra.mxu0 %v4816
        %4849 = vmatprep.subr.mxu0 0.0
        %4850 = vmatpush1.msra.mxu0 %v4817
        %4851 = vmatprep.subr.mxu0 0.0
        %4852 = vmatpush1.msra.mxu0 %v4818
        %4853 = vmatprep.subr.mxu0 0.0
        %4854 = vmatpush1.msra.mxu0 %v4819
        %4855 = vmatprep.subr.mxu0 0.0
        %4856 = vmatpush1.msra.mxu0 %v4820
        %4857 = vmatprep.subr.mxu0 0.0
        %4858 = vmatpush1.msra.mxu0 %v4821
        %4859 = vmatprep.subr.mxu0 0.0
        %4860 = vmatpush1.msra.mxu0 %v4822
        %4861 = vmatprep.subr.mxu0 0.0
        %4862 = vmatpush1.msra.mxu0 %v4823
        %4863 = vmatprep.subr.mxu0 0.0
        %4864 = vmatpush1.msra.mxu0 0.0
        %4865 = vmatprep.subr.mxu0 0.0
        %4866 = vmatpush1.msra.mxu0 0.0
        %4867 = vmatprep.subr.mxu0 0.0
        %4868 = vmatpush1.msra.mxu0 0.0
        %4869 = vmatprep.subr.mxu0 0.0
        %4870 = vmatpush1.msra.mxu0 0.0
        %4871 = vmatprep.subr.mxu0 0.0
        %4872 = vmatpush1.msra.mxu0 0.0
        %4873 = vmatprep.subr.mxu0 0.0
        %4874 = vmatpush1.msra.mxu0 0.0
        %4875 = vmatprep.subr.mxu0 0.0
        %4876 = vmatpush1.msra.mxu0 0.0
        %4877 = vmatprep.subr.mxu0 0.0
        %4878 = vmatpush1.msra.mxu0 0.0
        %4879 = vmatprep.subr.mxu0 0.0
        %4880 = vmatpush1.msra.mxu0 0.0
        %4881 = vmatprep.subr.mxu0 0.0
        %4882 = vmatpush1.msra.mxu0 0.0
        %4883 = vmatprep.subr.mxu0 0.0
        %4884 = vmatpush1.msra.mxu0 0.0
        %4885 = vmatprep.subr.mxu0 0.0
        %4886 = vmatpush1.msra.mxu0 0.0
        %4887 = vmatprep.subr.mxu0 0.0
        %4888 = vmatpush1.msra.mxu0 0.0
        %4889 = vmatprep.subr.mxu0 0.0
        %4890 = vmatpush1.msra.mxu0 0.0
        %4891 = vmatprep.subr.mxu0 0.0
        %4892 = vmatpush1.msra.mxu0 0.0
        %4893 = vmatprep.subr.mxu0 0.0
        %4894 = vmatpush1.msra.mxu0 0.0
        %4895 = vmatprep.mubr.f32.mxu0 0.0
        %4896 = vmatmul.mubr.f32.gmra.mrb[0].mxu0 %v4800
        %v4897 = vpop.f32.mrb[0].mxu0
        %v4898 = vadd.f32 %v4829, %v4897
        %v4899 = vpop.f32.mrb[0].mxu0
        %4900 = vmatprep.mubr.f32.mxu0 0.0
        %4901 = vmatmul.mubr.f32.gmra.mrb[0].mxu0 %v4801
        %v4902 = vpop.f32.mrb[0].mxu0
        %v4903 = vadd.f32 %v4829, %v4902
        %v4904 = vpop.f32.mrb[0].mxu0
        %4905 = vmatprep.mubr.f32.mxu0 0.0
        %4906 = vmatmul.mubr.f32.gmra.mrb[0].mxu0 %v4802
        %v4907 = vpop.f32.mrb[0].mxu0
        %v4908 = vadd.f32 %v4829, %v4907
        %v4909 = vpop.f32.mrb[0].mxu0
        %4910 = vmatprep.mubr.f32.mxu0 0.0
        %4911 = vmatmul.mubr.f32.gmra.mrb[0].mxu0 %v4803
        %v4912 = vpop.f32.mrb[0].mxu0
        %v4913 = vadd.f32 %v4829, %v4912
        %v4914 = vpop.f32.mrb[0].mxu0
        %4915 = vmatprep.mubr.f32.mxu0 0.0
        %4916 = vmatmul.mubr.f32.gmra.mrb[0].mxu0 %v4804
        %v4917 = vpop.f32.mrb[0].mxu0
        %v4918 = vadd.f32 %v4829, %v4917
        %v4919 = vpop.f32.mrb[0].mxu0
        %4920 = vmatprep.mubr.f32.mxu0 0.0
        %4921 = vmatmul.mubr.f32.gmra.mrb[0].mxu0 %v4805
        %v4922 = vpop.f32.mrb[0].mxu0
        %v4923 = vadd.f32 %v4829, %v4922
        %v4924 = vpop.f32.mrb[0].mxu0
        %4925 = vmatprep.mubr.f32.mxu0 0.0
        %4926 = vmatmul.mubr.f32.gmra.mrb[0].mxu0 %v4806
        %v4927 = vpop.f32.mrb[0].mxu0
        %v4928 = vadd.f32 %v4829, %v4927
        %v4929 = vpop.f32.mrb[0].mxu0
        %4930 = vmatprep.mubr.f32.mxu0 0.0
        %4931 = vmatmul.mubr.f32.gmra.mrb[0].mxu0 %v4807
        %v4932 = vpop.f32.mrb[0].mxu0
        %v4933 = vadd.f32 %v4829, %v4932
        %v4934 = vpop.f32.mrb[0].mxu0
        %4935 = vdwg.mxu0
        %v4936 = vmax.f32 %v4898, 0.0
        %v4937 = vmax.f32 %v4903, 0.0
        %v4938 = vmax.f32 %v4908, 0.0
        %v4939 = vmax.f32 %v4913, 0.0
        %v4940 = vmax.f32 %v4918, 0.0
        %v4941 = vmax.f32 %v4923, 0.0
        %v4942 = vmax.f32 %v4928, 0.0
        %v4943 = vmax.f32 %v4933, 0.0
        %4944 = vxpose.xlu0.b32.start [1/16] %v4936, 128
        %4945 = vxpose.xlu0.b32.cont [2/16] %v4937, 128
        %4946 = vxpose.xlu0.b32.cont [3/16] %v4938, 128
        %4947 = vxpose.xlu0.b32.cont [4/16] %v4939, 128
        %4948 = vxpose.xlu0.b32.cont [5/16] %v4940, 128
        %4949 = vxpose.xlu0.b32.cont [6/16] %v4941, 128
        %4950 = vxpose.xlu0.b32.cont [7/16] %v4942, 128
        %4951 = vxpose.xlu0.b32.cont [8/16] %v4943, 128
        %4952 = vxpose.xlu0.b32.cont [9/16] 0.0, 128
        %4953 = vxpose.xlu0.b32.cont [10/16] 0.0, 128
        %4954 = vxpose.xlu0.b32.cont [11/16] 0.0, 128
        %4955 = vxpose.xlu0.b32.cont [12/16] 0.0, 128
        %4956 = vxpose.xlu0.b32.cont [13/16] 0.0, 128
        %4957 = vxpose.xlu0.b32.cont [14/16] 0.0, 128
        %4958 = vxpose.xlu0.b32.cont [15/16] 0.0, 128
        %4959 = vxpose.xlu0.b32.end [16/16] 0.0, 128
        %v4960 = vpop.trf.xlu0
        %v4961 = vpop.trf.xlu0
        %v4962 = vpop.trf.xlu0
        %v4963 = vpop.trf.xlu0
        %v4964 = vpop.trf.xlu0
        %v4965 = vpop.trf.xlu0
        %v4966 = vpop.trf.xlu0
        %v4967 = vpop.trf.xlu0
        %v4968 = vpop.trf.xlu0
        %v4969 = vpop.trf.xlu0
        %v4970 = vpop.trf.xlu0
        %v4971 = vpop.trf.xlu0
        %v4972 = vpop.trf.xlu0
        %v4973 = vpop.trf.xlu0
        %v4974 = vpop.trf.xlu0
        %v4975 = vpop.trf.xlu0
        %v4976 = vld [vmem:[#allocation14] sm:$0x1]
        %v4977 = vld [vmem:[#allocation12] sm:$0xff]
        %v4978 = vld [vmem:[#allocation12 + $0x8] sm:$0xff]
        %v4979 = vld [vmem:[#allocation12 + $0x10] sm:$0xff]
        %v4980 = vld [vmem:[#allocation12 + $0x18] sm:$0xff]
        %v4981 = vld [vmem:[#allocation12 + $0x20] sm:$0xff]
        %v4982 = vld [vmem:[#allocation12 + $0x28] sm:$0xff]
        %v4983 = vld [vmem:[#allocation12 + $0x30] sm:$0xff]
        %v4984 = vld [vmem:[#allocation12 + $0x38] sm:$0xff]
        %v4986 = vsel %vm3384, %v4960, 0
        %4988 = vmatprep.subr.mxu0 0.0
        %4989 = vmatpush1.msra.mxu0 %v4977
        %4990 = vmatprep.subr.mxu0 0.0
        %4991 = vmatpush1.msra.mxu0 %v4978
        %4992 = vmatprep.subr.mxu0 0.0
        %4993 = vmatpush1.msra.mxu0 %v4979
        %4994 = vmatprep.subr.mxu0 0.0
        %4995 = vmatpush1.msra.mxu0 %v4980
        %4996 = vmatprep.subr.mxu0 0.0
        %4997 = vmatpush1.msra.mxu0 %v4981
        %4998 = vmatprep.subr.mxu0 0.0
        %4999 = vmatpush1.msra.mxu0 %v4982
        %5000 = vmatprep.subr.mxu0 0.0
        %5001 = vmatpush1.msra.mxu0 %v4983
        %5002 = vmatprep.subr.mxu0 0.0
        %5003 = vmatpush1.msra.mxu0 %v4984
        %5004 = vmatprep.subr.mxu0 0.0
        %5005 = vmatpush1.msra.mxu0 0.0
        %5006 = vmatprep.subr.mxu0 0.0
        %5007 = vmatpush1.msra.mxu0 0.0
        %5008 = vmatprep.subr.mxu0 0.0
        %5009 = vmatpush1.msra.mxu0 0.0
        %5010 = vmatprep.subr.mxu0 0.0
        %5011 = vmatpush1.msra.mxu0 0.0
        %5012 = vmatprep.subr.mxu0 0.0
        %5013 = vmatpush1.msra.mxu0 0.0
        %5014 = vmatprep.subr.mxu0 0.0
        %5015 = vmatpush1.msra.mxu0 0.0
        %5016 = vmatprep.subr.mxu0 0.0
        %5017 = vmatpush1.msra.mxu0 0.0
        %5018 = vmatprep.subr.mxu0 0.0
        %5019 = vmatpush1.msra.mxu0 0.0
        %5020 = vmatprep.subr.mxu0 0.0
        %5021 = vmatpush1.msra.mxu0 0.0
        %5022 = vmatprep.subr.mxu0 0.0
        %5023 = vmatpush1.msra.mxu0 0.0
        %5024 = vmatprep.subr.mxu0 0.0
        %5025 = vmatpush1.msra.mxu0 0.0
        %5026 = vmatprep.subr.mxu0 0.0
        %5027 = vmatpush1.msra.mxu0 0.0
        %5028 = vmatprep.subr.mxu0 0.0
        %5029 = vmatpush1.msra.mxu0 0.0
        %5030 = vmatprep.subr.mxu0 0.0
        %5031 = vmatpush1.msra.mxu0 0.0
        %5032 = vmatprep.subr.mxu0 0.0
        %5033 = vmatpush1.msra.mxu0 0.0
        %5034 = vmatprep.subr.mxu0 0.0
        %5035 = vmatpush1.msra.mxu0 0.0
        %5036 = vmatprep.subr.mxu0 0.0
        %5037 = vmatpush1.msra.mxu0 0.0
        %5038 = vmatprep.subr.mxu0 0.0
        %5039 = vmatpush1.msra.mxu0 0.0
        %5040 = vmatprep.subr.mxu0 0.0
        %5041 = vmatpush1.msra.mxu0 0.0
        %5042 = vmatprep.subr.mxu0 0.0
        %5043 = vmatpush1.msra.mxu0 0.0
        %5044 = vmatprep.subr.mxu0 0.0
        %5045 = vmatpush1.msra.mxu0 0.0
        %5046 = vmatprep.subr.mxu0 0.0
        %5047 = vmatpush1.msra.mxu0 0.0
        %5048 = vmatprep.subr.mxu0 0.0
        %5049 = vmatpush1.msra.mxu0 0.0
        %5050 = vmatprep.subr.mxu0 0.0
        %5051 = vmatpush1.msra.mxu0 0.0
        %5052 = vmatprep.mubr.f32.mxu0 0.0
        %5053 = vmatmul.mubr.f32.gmra.mrb[0].mxu0 %v4986
        %v5054 = vpop.f32.mrb[0].mxu0
        %v5055 = vadd.f32 0.0, %v5054
        %v5056 = vpop.f32.mrb[0].mxu0
        %5057 = vdwg.mxu0
        %v5058 = vadd.f32 %v4976, %v5055
        %s5059 = scalar_lea.vmem [#allocation12], 64
        %v5060 = vld [vmem:[%s5059] sm:$0xff]
        %v5061 = vld [vmem:[%s5059 + $0x8] sm:$0xff]
        %v5062 = vld [vmem:[%s5059 + $0x10] sm:$0xff]
        %v5063 = vld [vmem:[%s5059 + $0x18] sm:$0xff]
        %v5064 = vld [vmem:[%s5059 + $0x20] sm:$0xff]
        %v5065 = vld [vmem:[%s5059 + $0x28] sm:$0xff]
        %v5066 = vld [vmem:[%s5059 + $0x30] sm:$0xff]
        %v5067 = vld [vmem:[%s5059 + $0x38] sm:$0xff]
        %v5068 = vrot.slane %v4960, 1
        %v5069 = vsel %vm3384, %v5068, 0
        %5071 = vmatprep.subr.mxu0 0.0
        %5072 = vmatpush1.msra.mxu0 %v5060
        %5073 = vmatprep.subr.mxu0 0.0
        %5074 = vmatpush1.msra.mxu0 %v5061
        %5075 = vmatprep.subr.mxu0 0.0
        %5076 = vmatpush1.msra.mxu0 %v5062
        %5077 = vmatprep.subr.mxu0 0.0
        %5078 = vmatpush1.msra.mxu0 %v5063
        %5079 = vmatprep.subr.mxu0 0.0
        %5080 = vmatpush1.msra.mxu0 %v5064
        %5081 = vmatprep.subr.mxu0 0.0
        %5082 = vmatpush1.msra.mxu0 %v5065
        %5083 = vmatprep.subr.mxu0 0.0
        %5084 = vmatpush1.msra.mxu0 %v5066
        %5085 = vmatprep.subr.mxu0 0.0
        %5086 = vmatpush1.msra.mxu0 %v5067
        %5087 = vmatprep.subr.mxu0 0.0
        %5088 = vmatpush1.msra.mxu0 0.0
        %5089 = vmatprep.subr.mxu0 0.0
        %5090 = vmatpush1.msra.mxu0 0.0
        %5091 = vmatprep.subr.mxu0 0.0
        %5092 = vmatpush1.msra.mxu0 0.0
        %5093 = vmatprep.subr.mxu0 0.0
        %5094 = vmatpush1.msra.mxu0 0.0
        %5095 = vmatprep.subr.mxu0 0.0
        %5096 = vmatpush1.msra.mxu0 0.0
        %5097 = vmatprep.subr.mxu0 0.0
        %5098 = vmatpush1.msra.mxu0 0.0
        %5099 = vmatprep.subr.mxu0 0.0
        %5100 = vmatpush1.msra.mxu0 0.0
        %5101 = vmatprep.subr.mxu0 0.0
        %5102 = vmatpush1.msra.mxu0 0.0
        %5103 = vmatprep.subr.mxu0 0.0
        %5104 = vmatpush1.msra.mxu0 0.0
        %5105 = vmatprep.subr.mxu0 0.0
        %5106 = vmatpush1.msra.mxu0 0.0
        %5107 = vmatprep.subr.mxu0 0.0
        %5108 = vmatpush1.msra.mxu0 0.0
        %5109 = vmatprep.subr.mxu0 0.0
        %5110 = vmatpush1.msra.mxu0 0.0
        %5111 = vmatprep.subr.mxu0 0.0
        %5112 = vmatpush1.msra.mxu0 0.0
        %5113 = vmatprep.subr.mxu0 0.0
        %5114 = vmatpush1.msra.mxu0 0.0
        %5115 = vmatprep.subr.mxu0 0.0
        %5116 = vmatpush1.msra.mxu0 0.0
        %5117 = vmatprep.subr.mxu0 0.0
        %5118 = vmatpush1.msra.mxu0 0.0
        %5119 = vmatprep.subr.mxu0 0.0
        %5120 = vmatpush1.msra.mxu0 0.0
        %5121 = vmatprep.subr.mxu0 0.0
        %5122 = vmatpush1.msra.mxu0 0.0
        %5123 = vmatprep.subr.mxu0 0.0
        %5124 = vmatpush1.msra.mxu0 0.0
        %5125 = vmatprep.subr.mxu0 0.0
        %5126 = vmatpush1.msra.mxu0 0.0
        %5127 = vmatprep.subr.mxu0 0.0
        %5128 = vmatpush1.msra.mxu0 0.0
        %5129 = vmatprep.subr.mxu0 0.0
        %5130 = vmatpush1.msra.mxu0 0.0
        %5131 = vmatprep.subr.mxu0 0.0
        %5132 = vmatpush1.msra.mxu0 0.0
        %5133 = vmatprep.subr.mxu0 0.0
        %5134 = vmatpush1.msra.mxu0 0.0
        %5135 = vmatprep.mubr.f32.mxu0 0.0
        %5136 = vmatmul.mubr.f32.gmra.mrb[0].mxu0 %v5069
        %v5137 = vpop.f32.mrb[0].mxu0
        %v5138 = vadd.f32 0.0, %v5137
        %v5139 = vpop.f32.mrb[0].mxu0
        %5140 = vdwg.mxu0
        %v5141 = vadd.f32 %v5058, %v5138
        %s5142 = scalar_lea.vmem [#allocation12], 128
        %v5143 = vld [vmem:[%s5142] sm:$0xff]
        %v5144 = vld [vmem:[%s5142 + $0x8] sm:$0xff]
        %v5145 = vld [vmem:[%s5142 + $0x10] sm:$0xff]
        %v5146 = vld [vmem:[%s5142 + $0x18] sm:$0xff]
        %v5147 = vld [vmem:[%s5142 + $0x20] sm:$0xff]
        %v5148 = vld [vmem:[%s5142 + $0x28] sm:$0xff]
        %v5149 = vld [vmem:[%s5142 + $0x30] sm:$0xff]
        %v5150 = vld [vmem:[%s5142 + $0x38] sm:$0xff]
        %v5151 = vrot.slane %v4960, 2
        %v5152 = vsel %vm3384, %v5151, 0
        %5154 = vmatprep.subr.mxu0 0.0
        %5155 = vmatpush1.msra.mxu0 %v5143
        %5156 = vmatprep.subr.mxu0 0.0
        %5157 = vmatpush1.msra.mxu0 %v5144
        %5158 = vmatprep.subr.mxu0 0.0
        %5159 = vmatpush1.msra.mxu0 %v5145
        %5160 = vmatprep.subr.mxu0 0.0
        %5161 = vmatpush1.msra.mxu0 %v5146
        %5162 = vmatprep.subr.mxu0 0.0
        %5163 = vmatpush1.msra.mxu0 %v5147
        %5164 = vmatprep.subr.mxu0 0.0
        %5165 = vmatpush1.msra.mxu0 %v5148
        %5166 = vmatprep.subr.mxu0 0.0
        %5167 = vmatpush1.msra.mxu0 %v5149
        %5168 = vmatprep.subr.mxu0 0.0
        %5169 = vmatpush1.msra.mxu0 %v5150
        %5170 = vmatprep.subr.mxu0 0.0
        %5171 = vmatpush1.msra.mxu0 0.0
        %5172 = vmatprep.subr.mxu0 0.0
        %5173 = vmatpush1.msra.mxu0 0.0
        %5174 = vmatprep.subr.mxu0 0.0
        %5175 = vmatpush1.msra.mxu0 0.0
        %5176 = vmatprep.subr.mxu0 0.0
        %5177 = vmatpush1.msra.mxu0 0.0
        %5178 = vmatprep.subr.mxu0 0.0
        %5179 = vmatpush1.msra.mxu0 0.0
        %5180 = vmatprep.subr.mxu0 0.0
        %5181 = vmatpush1.msra.mxu0 0.0
        %5182 = vmatprep.subr.mxu0 0.0
        %5183 = vmatpush1.msra.mxu0 0.0
        %5184 = vmatprep.subr.mxu0 0.0
        %5185 = vmatpush1.msra.mxu0 0.0
        %5186 = vmatprep.subr.mxu0 0.0
        %5187 = vmatpush1.msra.mxu0 0.0
        %5188 = vmatprep.subr.mxu0 0.0
        %5189 = vmatpush1.msra.mxu0 0.0
        %5190 = vmatprep.subr.mxu0 0.0
        %5191 = vmatpush1.msra.mxu0 0.0
        %5192 = vmatprep.subr.mxu0 0.0
        %5193 = vmatpush1.msra.mxu0 0.0
        %5194 = vmatprep.subr.mxu0 0.0
        %5195 = vmatpush1.msra.mxu0 0.0
        %5196 = vmatprep.subr.mxu0 0.0
        %5197 = vmatpush1.msra.mxu0 0.0
        %5198 = vmatprep.subr.mxu0 0.0
        %5199 = vmatpush1.msra.mxu0 0.0
        %5200 = vmatprep.subr.mxu0 0.0
        %5201 = vmatpush1.msra.mxu0 0.0
        %5202 = vmatprep.subr.mxu0 0.0
        %5203 = vmatpush1.msra.mxu0 0.0
        %5204 = vmatprep.subr.mxu0 0.0
        %5205 = vmatpush1.msra.mxu0 0.0
        %5206 = vmatprep.subr.mxu0 0.0
        %5207 = vmatpush1.msra.mxu0 0.0
        %5208 = vmatprep.subr.mxu0 0.0
        %5209 = vmatpush1.msra.mxu0 0.0
        %5210 = vmatprep.subr.mxu0 0.0
        %5211 = vmatpush1.msra.mxu0 0.0
        %5212 = vmatprep.subr.mxu0 0.0
        %5213 = vmatpush1.msra.mxu0 0.0
        %5214 = vmatprep.subr.mxu0 0.0
        %5215 = vmatpush1.msra.mxu0 0.0
        %5216 = vmatprep.subr.mxu0 0.0
        %5217 = vmatpush1.msra.mxu0 0.0
        %5218 = vmatprep.mubr.f32.mxu0 0.0
        %5219 = vmatmul.mubr.f32.gmra.mrb[0].mxu0 %v5152
        %v5220 = vpop.f32.mrb[0].mxu0
        %v5221 = vadd.f32 0.0, %v5220
        %v5222 = vpop.f32.mrb[0].mxu0
        %5223 = vdwg.mxu0
        %v5224 = vadd.f32 %v5141, %v5221
        %s5225 = scalar_lea.vmem [#allocation12], 192
        %v5226 = vld [vmem:[%s5225] sm:$0xff]
        %v5227 = vld [vmem:[%s5225 + $0x8] sm:$0xff]
        %v5228 = vld [vmem:[%s5225 + $0x10] sm:$0xff]
        %v5229 = vld [vmem:[%s5225 + $0x18] sm:$0xff]
        %v5230 = vld [vmem:[%s5225 + $0x20] sm:$0xff]
        %v5231 = vld [vmem:[%s5225 + $0x28] sm:$0xff]
        %v5232 = vld [vmem:[%s5225 + $0x30] sm:$0xff]
        %v5233 = vld [vmem:[%s5225 + $0x38] sm:$0xff]
        %v5234 = vrot.slane %v4960, 3
        %v5235 = vsel %vm3384, %v5234, 0
        %5237 = vmatprep.subr.mxu0 0.0
        %5238 = vmatpush1.msra.mxu0 %v5226
        %5239 = vmatprep.subr.mxu0 0.0
        %5240 = vmatpush1.msra.mxu0 %v5227
        %5241 = vmatprep.subr.mxu0 0.0
        %5242 = vmatpush1.msra.mxu0 %v5228
        %5243 = vmatprep.subr.mxu0 0.0
        %5244 = vmatpush1.msra.mxu0 %v5229
        %5245 = vmatprep.subr.mxu0 0.0
        %5246 = vmatpush1.msra.mxu0 %v5230
        %5247 = vmatprep.subr.mxu0 0.0
        %5248 = vmatpush1.msra.mxu0 %v5231
        %5249 = vmatprep.subr.mxu0 0.0
        %5250 = vmatpush1.msra.mxu0 %v5232
        %5251 = vmatprep.subr.mxu0 0.0
        %5252 = vmatpush1.msra.mxu0 %v5233
        %5253 = vmatprep.subr.mxu0 0.0
        %5254 = vmatpush1.msra.mxu0 0.0
        %5255 = vmatprep.subr.mxu0 0.0
        %5256 = vmatpush1.msra.mxu0 0.0
        %5257 = vmatprep.subr.mxu0 0.0
        %5258 = vmatpush1.msra.mxu0 0.0
        %5259 = vmatprep.subr.mxu0 0.0
        %5260 = vmatpush1.msra.mxu0 0.0
        %5261 = vmatprep.subr.mxu0 0.0
        %5262 = vmatpush1.msra.mxu0 0.0
        %5263 = vmatprep.subr.mxu0 0.0
        %5264 = vmatpush1.msra.mxu0 0.0
        %5265 = vmatprep.subr.mxu0 0.0
        %5266 = vmatpush1.msra.mxu0 0.0
        %5267 = vmatprep.subr.mxu0 0.0
        %5268 = vmatpush1.msra.mxu0 0.0
        %5269 = vmatprep.subr.mxu0 0.0
        %5270 = vmatpush1.msra.mxu0 0.0
        %5271 = vmatprep.subr.mxu0 0.0
        %5272 = vmatpush1.msra.mxu0 0.0
        %5273 = vmatprep.subr.mxu0 0.0
        %5274 = vmatpush1.msra.mxu0 0.0
        %5275 = vmatprep.subr.mxu0 0.0
        %5276 = vmatpush1.msra.mxu0 0.0
        %5277 = vmatprep.subr.mxu0 0.0
        %5278 = vmatpush1.msra.mxu0 0.0
        %5279 = vmatprep.subr.mxu0 0.0
        %5280 = vmatpush1.msra.mxu0 0.0
        %5281 = vmatprep.subr.mxu0 0.0
        %5282 = vmatpush1.msra.mxu0 0.0
        %5283 = vmatprep.subr.mxu0 0.0
        %5284 = vmatpush1.msra.mxu0 0.0
        %5285 = vmatprep.subr.mxu0 0.0
        %5286 = vmatpush1.msra.mxu0 0.0
        %5287 = vmatprep.subr.mxu0 0.0
        %5288 = vmatpush1.msra.mxu0 0.0
        %5289 = vmatprep.subr.mxu0 0.0
        %5290 = vmatpush1.msra.mxu0 0.0
        %5291 = vmatprep.subr.mxu0 0.0
        %5292 = vmatpush1.msra.mxu0 0.0
        %5293 = vmatprep.subr.mxu0 0.0
        %5294 = vmatpush1.msra.mxu0 0.0
        %5295 = vmatprep.subr.mxu0 0.0
        %5296 = vmatpush1.msra.mxu0 0.0
        %5297 = vmatprep.subr.mxu0 0.0
        %5298 = vmatpush1.msra.mxu0 0.0
        %5299 = vmatprep.subr.mxu0 0.0
        %5300 = vmatpush1.msra.mxu0 0.0
        %5301 = vmatprep.mubr.f32.mxu0 0.0
        %5302 = vmatmul.mubr.f32.gmra.mrb[0].mxu0 %v5235
        %v5303 = vpop.f32.mrb[0].mxu0
        %v5304 = vadd.f32 0.0, %v5303
        %v5305 = vpop.f32.mrb[0].mxu0
        %5306 = vdwg.mxu0
        %v5307 = vadd.f32 %v5224, %v5304
        %vm5308 = vcmask 516096
        %v5309 = vsel %vm5308, %v5307, -inf
        %5310 = vmax.xlane.f32.xlu0 %v5309
        %v5311 = vpop.xlane.xlu0 %5310
        %v5312 = vsub.f32 %v5307, %v5311
        %v5313 = vmul.f32 %v5312, 1.442695
        %v5314 = vpow.pop %v5313
        %v5315 = vsel %vm5308, %v5314, 0.0
        %5316 = vadd.xlane.f32.xlu0 %v5315
        %v5317 = vpop.xlane.xlu0 %5316
        %v5318 = vlog2.pop %v5317
        %v5319 = vmul.f32 %v5318, 0.6931472
        %v5320 = vsub.f32 %v5312, %v5319
        %5321 = vst.msk [vmem:[%s585] sm:$0x1] %vm5308, %v5320
        %v5322 = vld [vmem:[%s12] sm:$0x1]
        %v5323 = vld [vmem:[%s11] sm:$0xff]
        %v5324 = vld [vmem:[%s11 + $0x8] sm:$0xff]
        %v5325 = vld [vmem:[%s11 + $0x10] sm:$0xff]
        %v5326 = vld [vmem:[%s11 + $0x18] sm:$0xff]
        %v5327 = vld [vmem:[%s11 + $0x20] sm:$0xff]
        %v5328 = vld [vmem:[%s11 + $0x28] sm:$0xff]
        %v5329 = vld [vmem:[%s11 + $0x30] sm:$0xff]
        %v5330 = vld [vmem:[%s11 + $0x38] sm:$0xff]
        %v5331 = vrot.slane %v4960, 4
        %v5332 = vsel %vm3384, %v5331, 0
        %5334 = vmatprep.subr.mxu0 0.0
        %5335 = vmatpush1.msra.mxu0 %v5323
        %5336 = vmatprep.subr.mxu0 0.0
        %5337 = vmatpush1.msra.mxu0 %v5324
        %5338 = vmatprep.subr.mxu0 0.0
        %5339 = vmatpush1.msra.mxu0 %v5325
        %5340 = vmatprep.subr.mxu0 0.0
        %5341 = vmatpush1.msra.mxu0 %v5326
        %5342 = vmatprep.subr.mxu0 0.0
        %5343 = vmatpush1.msra.mxu0 %v5327
        %5344 = vmatprep.subr.mxu0 0.0
        %5345 = vmatpush1.msra.mxu0 %v5328
        %5346 = vmatprep.subr.mxu0 0.0
        %5347 = vmatpush1.msra.mxu0 %v5329
        %5348 = vmatprep.subr.mxu0 0.0
        %5349 = vmatpush1.msra.mxu0 %v5330
        %5350 = vmatprep.subr.mxu0 0.0
        %5351 = vmatpush1.msra.mxu0 0.0
        %5352 = vmatprep.subr.mxu0 0.0
        %5353 = vmatpush1.msra.mxu0 0.0
        %5354 = vmatprep.subr.mxu0 0.0
        %5355 = vmatpush1.msra.mxu0 0.0
        %5356 = vmatprep.subr.mxu0 0.0
        %5357 = vmatpush1.msra.mxu0 0.0
        %5358 = vmatprep.subr.mxu0 0.0
        %5359 = vmatpush1.msra.mxu0 0.0
        %5360 = vmatprep.subr.mxu0 0.0
        %5361 = vmatpush1.msra.mxu0 0.0
        %5362 = vmatprep.subr.mxu0 0.0
        %5363 = vmatpush1.msra.mxu0 0.0
        %5364 = vmatprep.subr.mxu0 0.0
        %5365 = vmatpush1.msra.mxu0 0.0
        %5366 = vmatprep.subr.mxu0 0.0
        %5367 = vmatpush1.msra.mxu0 0.0
        %5368 = vmatprep.subr.mxu0 0.0
        %5369 = vmatpush1.msra.mxu0 0.0
        %5370 = vmatprep.subr.mxu0 0.0
        %5371 = vmatpush1.msra.mxu0 0.0
        %5372 = vmatprep.subr.mxu0 0.0
        %5373 = vmatpush1.msra.mxu0 0.0
        %5374 = vmatprep.subr.mxu0 0.0
        %5375 = vmatpush1.msra.mxu0 0.0
        %5376 = vmatprep.subr.mxu0 0.0
        %5377 = vmatpush1.msra.mxu0 0.0
        %5378 = vmatprep.subr.mxu0 0.0
        %5379 = vmatpush1.msra.mxu0 0.0
        %5380 = vmatprep.subr.mxu0 0.0
        %5381 = vmatpush1.msra.mxu0 0.0
        %5382 = vmatprep.subr.mxu0 0.0
        %5383 = vmatpush1.msra.mxu0 0.0
        %5384 = vmatprep.subr.mxu0 0.0
        %5385 = vmatpush1.msra.mxu0 0.0
        %5386 = vmatprep.subr.mxu0 0.0
        %5387 = vmatpush1.msra.mxu0 0.0
        %5388 = vmatprep.subr.mxu0 0.0
        %5389 = vmatpush1.msra.mxu0 0.0
        %5390 = vmatprep.subr.mxu0 0.0
        %5391 = vmatpush1.msra.mxu0 0.0
        %5392 = vmatprep.subr.mxu0 0.0
        %5393 = vmatpush1.msra.mxu0 0.0
        %5394 = vmatprep.subr.mxu0 0.0
        %5395 = vmatpush1.msra.mxu0 0.0
        %5396 = vmatprep.subr.mxu0 0.0
        %5397 = vmatpush1.msra.mxu0 0.0
        %5398 = vmatprep.mubr.f32.mxu0 0.0
        %5399 = vmatmul.mubr.f32.gmra.mrb[0].mxu0 %v5332
        %v5400 = vpop.f32.mrb[0].mxu0
        %v5401 = vadd.f32 0.0, %v5400
        %v5402 = vpop.f32.mrb[0].mxu0
        %5403 = vdwg.mxu0
        %v5404 = vadd.f32 %v5322, %v5401
        %s5405 = scalar_lea.vmem %s11, 64
        %v5406 = vld [vmem:[%s5405] sm:$0xff]
        %v5407 = vld [vmem:[%s5405 + $0x8] sm:$0xff]
        %v5408 = vld [vmem:[%s5405 + $0x10] sm:$0xff]
        %v5409 = vld [vmem:[%s5405 + $0x18] sm:$0xff]
        %v5410 = vld [vmem:[%s5405 + $0x20] sm:$0xff]
        %v5411 = vld [vmem:[%s5405 + $0x28] sm:$0xff]
        %v5412 = vld [vmem:[%s5405 + $0x30] sm:$0xff]
        %v5413 = vld [vmem:[%s5405 + $0x38] sm:$0xff]
        %v5414 = vrot.slane %v4960, 5
        %v5415 = vsel %vm3384, %v5414, 0
        %5417 = vmatprep.subr.mxu0 0.0
        %5418 = vmatpush1.msra.mxu0 %v5406
        %5419 = vmatprep.subr.mxu0 0.0
        %5420 = vmatpush1.msra.mxu0 %v5407
        %5421 = vmatprep.subr.mxu0 0.0
        %5422 = vmatpush1.msra.mxu0 %v5408
        %5423 = vmatprep.subr.mxu0 0.0
        %5424 = vmatpush1.msra.mxu0 %v5409
        %5425 = vmatprep.subr.mxu0 0.0
        %5426 = vmatpush1.msra.mxu0 %v5410
        %5427 = vmatprep.subr.mxu0 0.0
        %5428 = vmatpush1.msra.mxu0 %v5411
        %5429 = vmatprep.subr.mxu0 0.0
        %5430 = vmatpush1.msra.mxu0 %v5412
        %5431 = vmatprep.subr.mxu0 0.0
        %5432 = vmatpush1.msra.mxu0 %v5413
        %5433 = vmatprep.subr.mxu0 0.0
        %5434 = vmatpush1.msra.mxu0 0.0
        %5435 = vmatprep.subr.mxu0 0.0
        %5436 = vmatpush1.msra.mxu0 0.0
        %5437 = vmatprep.subr.mxu0 0.0
        %5438 = vmatpush1.msra.mxu0 0.0
        %5439 = vmatprep.subr.mxu0 0.0
        %5440 = vmatpush1.msra.mxu0 0.0
        %5441 = vmatprep.subr.mxu0 0.0
        %5442 = vmatpush1.msra.mxu0 0.0
        %5443 = vmatprep.subr.mxu0 0.0
        %5444 = vmatpush1.msra.mxu0 0.0
        %5445 = vmatprep.subr.mxu0 0.0
        %5446 = vmatpush1.msra.mxu0 0.0
        %5447 = vmatprep.subr.mxu0 0.0
        %5448 = vmatpush1.msra.mxu0 0.0
        %5449 = vmatprep.subr.mxu0 0.0
        %5450 = vmatpush1.msra.mxu0 0.0
        %5451 = vmatprep.subr.mxu0 0.0
        %5452 = vmatpush1.msra.mxu0 0.0
        %5453 = vmatprep.subr.mxu0 0.0
        %5454 = vmatpush1.msra.mxu0 0.0
        %5455 = vmatprep.subr.mxu0 0.0
        %5456 = vmatpush1.msra.mxu0 0.0
        %5457 = vmatprep.subr.mxu0 0.0
        %5458 = vmatpush1.msra.mxu0 0.0
        %5459 = vmatprep.subr.mxu0 0.0
        %5460 = vmatpush1.msra.mxu0 0.0
        %5461 = vmatprep.subr.mxu0 0.0
        %5462 = vmatpush1.msra.mxu0 0.0
        %5463 = vmatprep.subr.mxu0 0.0
        %5464 = vmatpush1.msra.mxu0 0.0
        %5465 = vmatprep.subr.mxu0 0.0
        %5466 = vmatpush1.msra.mxu0 0.0
        %5467 = vmatprep.subr.mxu0 0.0
        %5468 = vmatpush1.msra.mxu0 0.0
        %5469 = vmatprep.subr.mxu0 0.0
        %5470 = vmatpush1.msra.mxu0 0.0
        %5471 = vmatprep.subr.mxu0 0.0
        %5472 = vmatpush1.msra.mxu0 0.0
        %5473 = vmatprep.subr.mxu0 0.0
        %5474 = vmatpush1.msra.mxu0 0.0
        %5475 = vmatprep.subr.mxu0 0.0
        %5476 = vmatpush1.msra.mxu0 0.0
        %5477 = vmatprep.subr.mxu0 0.0
        %5478 = vmatpush1.msra.mxu0 0.0
        %5479 = vmatprep.subr.mxu0 0.0
        %5480 = vmatpush1.msra.mxu0 0.0
        %5481 = vmatprep.mubr.f32.mxu0 0.0
        %5482 = vmatmul.mubr.f32.gmra.mrb[0].mxu0 %v5415
        %v5483 = vpop.f32.mrb[0].mxu0
        %v5484 = vadd.f32 0.0, %v5483
        %v5485 = vpop.f32.mrb[0].mxu0
        %5486 = vdwg.mxu0
        %v5487 = vadd.f32 %v5404, %v5484
        %v5488 = vmax.f32 %v5487, 0.0
        %v5489 = vld [vmem:[%s13] sm:$0xff]
        %v5490 = vld [vmem:[%s13 + $0x8] sm:$0xff]
        %v5491 = vld [vmem:[%s13 + $0x10] sm:$0xff]
        %v5492 = vld [vmem:[%s13 + $0x18] sm:$0xff]
        %v5493 = vld [vmem:[%s13 + $0x20] sm:$0xff]
        %v5494 = vld [vmem:[%s13 + $0x28] sm:$0xff]
        %v5495 = vld [vmem:[%s13 + $0x30] sm:$0xff]
        %v5496 = vld [vmem:[%s13 + $0x38] sm:$0xff]
        %v5497 = vld [vmem:[#allocation5] sm:$0x1]
        %v5499 = vsel %vm3384, %v5488, 0
        %5501 = vmatprep.subr.mxu0 0.0
        %5502 = vmatpush1.msra.mxu0 %v5489
        %5503 = vmatprep.subr.mxu0 0.0
        %5504 = vmatpush1.msra.mxu0 %v5490
        %5505 = vmatprep.subr.mxu0 0.0
        %5506 = vmatpush1.msra.mxu0 %v5491
        %5507 = vmatprep.subr.mxu0 0.0
        %5508 = vmatpush1.msra.mxu0 %v5492
        %5509 = vmatprep.subr.mxu0 0.0
        %5510 = vmatpush1.msra.mxu0 %v5493
        %5511 = vmatprep.subr.mxu0 0.0
        %5512 = vmatpush1.msra.mxu0 %v5494
        %5513 = vmatprep.subr.mxu0 0.0
        %5514 = vmatpush1.msra.mxu0 %v5495
        %5515 = vmatprep.subr.mxu0 0.0
        %5516 = vmatpush1.msra.mxu0 %v5496
        %5517 = vmatprep.subr.mxu0 0.0
        %5518 = vmatpush1.msra.mxu0 0.0
        %5519 = vmatprep.subr.mxu0 0.0
        %5520 = vmatpush1.msra.mxu0 0.0
        %5521 = vmatprep.subr.mxu0 0.0
        %5522 = vmatpush1.msra.mxu0 0.0
        %5523 = vmatprep.subr.mxu0 0.0
        %5524 = vmatpush1.msra.mxu0 0.0
        %5525 = vmatprep.subr.mxu0 0.0
        %5526 = vmatpush1.msra.mxu0 0.0
        %5527 = vmatprep.subr.mxu0 0.0
        %5528 = vmatpush1.msra.mxu0 0.0
        %5529 = vmatprep.subr.mxu0 0.0
        %5530 = vmatpush1.msra.mxu0 0.0
        %5531 = vmatprep.subr.mxu0 0.0
        %5532 = vmatpush1.msra.mxu0 0.0
        %5533 = vmatprep.subr.mxu0 0.0
        %5534 = vmatpush1.msra.mxu0 0.0
        %5535 = vmatprep.subr.mxu0 0.0
        %5536 = vmatpush1.msra.mxu0 0.0
        %5537 = vmatprep.subr.mxu0 0.0
        %5538 = vmatpush1.msra.mxu0 0.0
        %5539 = vmatprep.subr.mxu0 0.0
        %5540 = vmatpush1.msra.mxu0 0.0
        %5541 = vmatprep.subr.mxu0 0.0
        %5542 = vmatpush1.msra.mxu0 0.0
        %5543 = vmatprep.subr.mxu0 0.0
        %5544 = vmatpush1.msra.mxu0 0.0
        %5545 = vmatprep.subr.mxu0 0.0
        %5546 = vmatpush1.msra.mxu0 0.0
        %5547 = vmatprep.subr.mxu0 0.0
        %5548 = vmatpush1.msra.mxu0 0.0
        %5549 = vmatprep.subr.mxu0 0.0
        %5550 = vmatpush1.msra.mxu0 0.0
        %5551 = vmatprep.subr.mxu0 0.0
        %5552 = vmatpush1.msra.mxu0 0.0
        %5553 = vmatprep.subr.mxu0 0.0
        %5554 = vmatpush1.msra.mxu0 0.0
        %5555 = vmatprep.subr.mxu0 0.0
        %5556 = vmatpush1.msra.mxu0 0.0
        %5557 = vmatprep.subr.mxu0 0.0
        %5558 = vmatpush1.msra.mxu0 0.0
        %5559 = vmatprep.subr.mxu0 0.0
        %5560 = vmatpush1.msra.mxu0 0.0
        %5561 = vmatprep.subr.mxu0 0.0
        %5562 = vmatpush1.msra.mxu0 0.0
        %5563 = vmatprep.subr.mxu0 0.0
        %5564 = vmatpush1.msra.mxu0 0.0
        %5565 = vmatprep.mubr.f32.mxu0 0.0
        %5566 = vmatmul.mubr.f32.gmra.mrb[0].mxu0 %v5499
        %v5567 = vpop.f32.mrb[0].mxu0
        %v5568 = vadd.f32 %v5497, %v5567
        %v5569 = vpop.f32.mrb[0].mxu0
        %5570 = vdwg.mxu0
        %v5571 = vtanh.pop %v5568
        %vm5572 = vcmask 0
        %5573 = vst.msk [vmem:[%s598] sm:$0x1] %vm5572, %v5571
        %s5574 = sand.u32 %s364, 1
        %s5575 = scalar_lea.sflag [#allocation8], %s5574
        %s5576 = sand.u32 %s364, 1
        %s5577 = scalar_lea.vmem [#allocation15], %s5576
        %p5578 = scmp.lt.s32.totalorder %s36, 1
        %s5579 = scalar_select %p5578, %s36, 1
        %s5580 = scalar_lea.vmem %s16, %s5579
        // Predicated region
        $region101: #{net_forward.1} parent=79 // pred_check
          %p5581 = pneg %p374
        $region102: #{net_forward.1} parent=79 // pred_check_branch
          %5583 = sbr.rel (%p5581) target = $region104
        $region103: #{net_forward.1} parent=79 // pred_region
          %s5585 = ssub.s32 16, 16
          %5586 = vsyncadd %s5575, %s5585
          %s5587 = smul.addr %s36, 16
          %s5588 = scalar_lea.hbm %s15, %s5587
          %s5590 = sshll.u32 %s5577, 4
          %s5591 = int_to_ptr.vmem [resolvable:$true] %s5590
          %5593 = dma.vmem_to_hbm [thread:$0]  %s5591, 16, %s5588, %s5575
        $region104: #{net_forward.1} parent=79 // pred_fallthru
          _
        // Predicated region
        $region105: #{net_forward.1} parent=79 // pred_check
          %p5594 = pneg %p400
        $region106: #{net_forward.1} parent=79 // pred_check_branch
          %5596 = sbr.rel (%p5594) target = $region108
        $region107: #{net_forward.1} parent=79 // pred_region
          _
        $region108: #{net_forward.1} parent=79 // pred_fallthru
          _
      $region80: #{net_forward.1} parent=5 // pred_fallthru
        _
      %p5597 = scmp.le.s32.totalorder 2, %s31
      // Predicated region
      $region109: #{net_forward.1} parent=5 // pred_check
        %p5598 = pneg %p5597
      $region110: #{net_forward.1} parent=5 // pred_check_branch
        %5600 = sbr.rel (%p5598) target = $region112
      $region111: #{net_forward.1} parent=5 // pred_region
        %s5601 = ssub.s32 %s31, 2
        // Predicated region
        $region113: #{net_forward.1} parent=111 // pred_check
          %p5602 = pneg %p380
        $region114: #{net_forward.1} parent=111 // pred_check_branch
          %5604 = sbr.rel (%p5602) target = $region116
        $region115: #{net_forward.1} parent=111 // pred_region
          %s5605 = sand.u32 %s365, 1
          %s5606 = scalar_lea.sflag [#allocation8], %s5605
          %s5607 = sand.u32 %s365, 1
          %s5608 = scalar_lea.vmem [#allocation15], %s5607
          %5609 = dma.done %s5606, 16
        $region116: #{net_forward.1} parent=111 // pred_fallthru
          _
        // Predicated region
        $region117: #{net_forward.1} parent=111 // pred_check
          %p5610 = pneg %p406
        $region118: #{net_forward.1} parent=111 // pred_check_branch
          %5612 = sbr.rel (%p5610) target = $region120
        $region119: #{net_forward.1} parent=111 // pred_region
          %p5613 = scmp.lt.s32.totalorder %s37, 1
          %s5614 = scalar_select %p5613, %s37, 1
          %s5615 = scalar_lea.vmem %s16, %s5614
        $region120: #{net_forward.1} parent=111 // pred_fallthru
          _
      $region112: #{net_forward.1} parent=5 // pred_fallthru
        _
    $region6: #{net_forward.1} parent=1 // loop_footer
      %s35 = sadd.s32 1, %s31
    $region7: #{net_forward.1} parent=1 // loop_footer_branch
      %30 = sbr.rel target = $region3
    $region8: #{net_forward.1} parent=1 // loop_exit
      _
    %5616 = vsyncpa [#allocation7], 1
    %s5617 = scalar_lea.sflag [#allocation7], 1
    %5618 = vsyncpa %s5617, 1
    %5619 = vsyncpa [#allocation10], 1
    %5620 = vsyncpa [#allocation13], 1
    %5621 = vsyncpa [#allocation8], 1
    %s5622 = scalar_lea.sflag [#allocation8], 1
    %5623 = vsyncpa %s5622, 1

</llo_original>
